<compile_context>
chip_gen: v6e
topology: v6e:2x2x1
jax: 0.10.0
libtpu: 0.0.40
codegen_flags: <defaults>
</compile_context>

<pallas_src>
from functools import partial

import jax
import jax.numpy as jnp
from jax.experimental import pallas as pl
from jax.experimental.pallas import tpu as pltpu


# --------------------------------------------------------------------------
# Fused kernel: conv1+bn1+relu -> conv2(3x3)+bn2+relu -> conv3+bn3 -> SRM ->
# residual add -> relu, one batch sample per grid step.
# --------------------------------------------------------------------------
def _bottleneck_fused_kernel(xp_ref, w1_ref, b1_ref, w2_ref, b2_ref,
                             w3_ref, b3_ref, cfc_ref, sb_ref, o_ref,
                             *, H, W, eps):
    Hp, Wp = H + 2, W + 2
    HW = H * W
    Cin = xp_ref.shape[3]
    P = w1_ref.shape[1]

    xp = xp_ref[0]                                       # (Hp, Wp, Cin) bf16

    # ---- conv1 (1x1) + bn1 + relu over the padded grid; zero the 1-px halo ----
    y1 = jnp.dot(xp.reshape(Hp * Wp, Cin), w1_ref[...],
                 preferred_element_type=jnp.float32)
    y1 = jnp.maximum(y1 + b1_ref[...], 0.0).reshape(Hp, Wp, P)
    row = jax.lax.broadcasted_iota(jnp.int32, (Hp, Wp, 1), 0)
    col = jax.lax.broadcasted_iota(jnp.int32, (Hp, Wp, 1), 1)
    interior = (row >= 1) & (row <= H) & (col >= 1) & (col <= W)
    y1 = jnp.where(interior, y1, 0.0).astype(jnp.bfloat16)

    # ---- conv2 (3x3, stride 1, pad 1) + bn2 + relu: 9 shifted MXU dots ----
    acc = jnp.zeros((HW, P), jnp.float32)
    for kh in range(3):
        for kw in range(3):
            patch = y1[kh:kh + H, kw:kw + W, :].reshape(HW, P)
            acc = acc + jnp.dot(patch, w2_ref[kh * 3 + kw],
                                preferred_element_type=jnp.float32)
    y2 = jnp.maximum(acc + b2_ref[...], 0.0).astype(jnp.bfloat16)

    # ---- conv3 (1x1) + bn3 ----
    out = jnp.dot(y2, w3_ref[...], preferred_element_type=jnp.float32)
    out = out + b3_ref[...]                              # (HW, C4) f32

    # ---- SRM: per-channel spatial mean / unbiased std + style integration ----
    s1 = jnp.sum(out, axis=0, keepdims=True)             # (1, C4)
    s2 = jnp.sum(out * out, axis=0, keepdims=True)       # (1, C4)
    mean = s1 * (1.0 / HW)
    var = (s2 - mean * s1) * (1.0 / (HW - 1))
    std = jnp.sqrt(var + eps)
    # SRM BN scale pre-folded into cfc; only the shift remains.
    z_hat = mean * cfc_ref[0:1, :] + std * cfc_ref[1:2, :] + sb_ref[...]
    g = jax.nn.sigmoid(z_hat)                            # (1, C4)

    # ---- channel gate, residual add (identity = interior of padded x), relu ----
    identity = xp[1:H + 1, 1:W + 1, :].reshape(HW, Cin).astype(jnp.float32)
    y = jnp.maximum(out * g + identity, 0.0)
    o_ref[...] = y[None].astype(o_ref.dtype)


# --------------------------------------------------------------------------
# Glue (plain JAX): BN folding into weights, layout plumbing.
# --------------------------------------------------------------------------
def fold_bn(gamma, beta, mean, var, eps=1e-5):
    scale = gamma / jnp.sqrt(var + eps)
    shift = beta - mean * scale
    return scale, shift


def bottleneck_pallas(x_nchw, p, stride=1, eps=1e-5):
    """Bottleneck forward (downsample=None, eval-mode BN). x_nchw: (N, C, H, W) f32."""
    # TODO(synk): stride > 1 would require a downsample branch; with
    # downsample=None the residual add only type-checks for stride == 1.
    assert stride == 1, "downsample=None Bottleneck requires stride == 1"
    N, Cin, H, W = x_nchw.shape
    planes = p["conv1_w"].shape[0]
    C4 = p["conv3_w"].shape[0]
    assert Cin == C4, "downsample=None requires inplanes == planes * expansion"
    Hp, Wp, HW = H + 2, W + 2, H * W

    # One fused boundary transform: NCHW f32 -> NHWC bf16 with a 1-px zero halo.
    x = jnp.transpose(x_nchw, (0, 2, 3, 1)).astype(jnp.bfloat16)
    xp = jnp.pad(x, ((0, 0), (1, 1), (1, 1), (0, 0)))

    # Fold BN scales into weight columns (f32 math, then cast operands to bf16).
    s1, b1 = fold_bn(p["bn1_gamma"], p["bn1_beta"], p["bn1_mean"], p["bn1_var"], eps)
    s2, b2 = fold_bn(p["bn2_gamma"], p["bn2_beta"], p["bn2_mean"], p["bn2_var"], eps)
    s3, b3 = fold_bn(p["bn3_gamma"], p["bn3_beta"], p["bn3_mean"], p["bn3_var"], eps)
    ss, sb = fold_bn(p["srm_bn_gamma"], p["srm_bn_beta"],
                     p["srm_bn_mean"], p["srm_bn_var"], eps)

    w1 = (jnp.transpose(p["conv1_w"][:, :, 0, 0], (1, 0))
          * s1[None, :]).astype(jnp.bfloat16)                      # (Cin, planes)
    w2 = (jnp.transpose(p["conv2_w"], (2, 3, 1, 0)).reshape(9, planes, planes)
          * s2[None, None, :]).astype(jnp.bfloat16)                # (9, planes, planes)
    w3 = (jnp.transpose(p["conv3_w"][:, :, 0, 0], (1, 0))
          * s3[None, :]).astype(jnp.bfloat16)                      # (planes, C4)
    cfc_folded = (p["cfc"] * ss[:, None]).T.astype(jnp.float32)    # (2, C4)

    b1 = b1[None, :].astype(jnp.float32)
    b2 = b2[None, :].astype(jnp.float32)
    b3 = b3[None, :].astype(jnp.float32)
    sb = sb[None, :].astype(jnp.float32)

    cost = pl.CostEstimate(
        flops=2 * N * (Hp * Wp * Cin * planes
                       + 9 * HW * planes * planes
                       + HW * planes * C4) + 10 * N * HW * C4,
        transcendentals=2 * N * C4,
        bytes_accessed=N * Hp * Wp * Cin * 2
        + (Cin * planes + 9 * planes * planes + planes * C4) * 2
        + N * HW * C4 * 4,
    )

    out = pl.pallas_call(
        partial(_bottleneck_fused_kernel, H=H, W=W, eps=eps),
        out_shape=jax.ShapeDtypeStruct((N, HW, C4), jnp.float32),
        grid_spec=pltpu.PrefetchScalarGridSpec(
            num_scalar_prefetch=0,
            grid=(N,),
            in_specs=[
                pl.BlockSpec((1, Hp, Wp, Cin), lambda n: (n, 0, 0, 0)),
                pl.BlockSpec((Cin, planes), lambda n: (0, 0)),
                pl.BlockSpec((1, planes), lambda n: (0, 0)),
                pl.BlockSpec((9, planes, planes), lambda n: (0, 0, 0)),
                pl.BlockSpec((1, planes), lambda n: (0, 0)),
                pl.BlockSpec((planes, C4), lambda n: (0, 0)),
                pl.BlockSpec((1, C4), lambda n: (0, 0)),
                pl.BlockSpec((2, C4), lambda n: (0, 0)),
                pl.BlockSpec((1, C4), lambda n: (0, 0)),
            ],
            out_specs=pl.BlockSpec((1, HW, C4), lambda n: (n, 0, 0)),
        ),
        compiler_params=pltpu.CompilerParams(
            dimension_semantics=("parallel",)),
        cost_estimate=cost,
    )(xp, w1, b1, w2, b2, w3, b3, cfc_folded, sb)

    out = out.reshape(N, H, W, C4)
    return jnp.transpose(out, (0, 3, 1, 2))                        # back to NCHW


# --------------------------------------------------------------------------
# Pure-JAX f32 reference (NCHW, mirrors the PyTorch module in eval mode)
# --------------------------------------------------------------------------
def bottleneck_ref(x, p, stride=1, eps=1e-5):
    def bn(v, g, b, m, s):
        return ((v - m[None, :, None, None]) / jnp.sqrt(s + eps)[None, :, None, None]
                * g[None, :, None, None] + b[None, :, None, None])

    def conv(v, w, stride=1, pad=0):
        return jax.lax.conv_general_dilated(
            v, w, (stride, stride), [(pad, pad), (pad, pad)],
            dimension_numbers=("NCHW", "OIHW", "NCHW"))

    out = jax.nn.relu(bn(conv(x, p["conv1_w"]),
                         p["bn1_gamma"], p["bn1_beta"], p["bn1_mean"], p["bn1_var"]))
    out = jax.nn.relu(bn(conv(out, p["conv2_w"], stride=stride, pad=1),
                         p["bn2_gamma"], p["bn2_beta"], p["bn2_mean"], p["bn2_var"]))
    out = bn(conv(out, p["conv3_w"]),
             p["bn3_gamma"], p["bn3_beta"], p["bn3_mean"], p["bn3_var"])

    # SRM
    N, C, H, W = out.shape
    flat = out.reshape(N, C, -1)
    mean = flat.mean(axis=2, keepdims=True)
    var = flat.var(axis=2, ddof=1, keepdims=True) + eps
    std = jnp.sqrt(var)
    t = jnp.concatenate([mean, std], axis=2)                       # (N, C, 2)
    z = jnp.sum(t * p["cfc"][None, :, :], axis=2)                  # (N, C)
    z_hat = ((z - p["srm_bn_mean"][None, :]) / jnp.sqrt(p["srm_bn_var"] + eps)[None, :]
             * p["srm_bn_gamma"][None, :] + p["srm_bn_beta"][None, :])
    g = jax.nn.sigmoid(z_hat)[:, :, None, None]
    out = out * g
    out = out + x
    return jax.nn.relu(out)


# --------------------------------------------------------------------------
# Deterministic parameter init (shapes from Bottleneck.__init__)
# --------------------------------------------------------------------------
def init_params(key, inplanes, planes):
    expansion = 4
    c4 = planes * expansion
    ks = jax.random.split(key, 16)

    def bn_params(k, c):
        k1, k2, k3, k4 = jax.random.split(k, 4)
        return dict(
            gamma=1.0 + 0.1 * jax.random.normal(k1, (c,), jnp.float32),
            beta=0.1 * jax.random.normal(k2, (c,), jnp.float32),
            mean=0.1 * jax.random.normal(k3, (c,), jnp.float32),
            var=0.5 + jnp.abs(jax.random.normal(k4, (c,), jnp.float32)) * 0.2,
        )

    bn1 = bn_params(ks[1], planes)
    bn2 = bn_params(ks[3], planes)
    bn3 = bn_params(ks[5], c4)
    srm_bn = bn_params(ks[7], c4)

    return dict(
        conv1_w=0.1 * jax.random.normal(ks[0], (planes, inplanes, 1, 1), jnp.float32),
        bn1_gamma=bn1["gamma"], bn1_beta=bn1["beta"],
        bn1_mean=bn1["mean"], bn1_var=bn1["var"],
        conv2_w=0.1 * jax.random.normal(ks[2], (planes, planes, 3, 3), jnp.float32),
        bn2_gamma=bn2["gamma"], bn2_beta=bn2["beta"],
        bn2_mean=bn2["mean"], bn2_var=bn2["var"],
        conv3_w=0.1 * jax.random.normal(ks[4], (c4, planes, 1, 1), jnp.float32),
        bn3_gamma=bn3["gamma"], bn3_beta=bn3["beta"],
        bn3_mean=bn3["mean"], bn3_var=bn3["var"],
        cfc=0.1 * jax.random.normal(ks[6], (c4, 2), jnp.float32),
        srm_bn_gamma=srm_bn["gamma"], srm_bn_beta=srm_bn["beta"],
        srm_bn_mean=srm_bn["mean"], srm_bn_var=srm_bn["var"],
    )


if __name__ == "__main__":
    # Small config: inplanes = planes * expansion so downsample=None is valid.
    inplanes, planes, stride = 16, 4, 1
    N, H, W = 2, 16, 16

    key = jax.random.PRNGKey(0)
    kx, kp = jax.random.split(key)
    x = jax.random.normal(kx, (N, inplanes, H, W), jnp.float32)
    params = init_params(kp, inplanes, planes)

    y = bottleneck_pallas(x, params, stride=stride)
    y = jax.block_until_ready(y)

    y_ref = bottleneck_ref(x, params, stride=stride)
    assert y.shape == y_ref.shape == (N, planes * 4, H, W)
    max_err = float(jnp.max(jnp.abs(y - y_ref)))
    # bf16 operands (f32 accumulation / statistics) => loosened tolerance.
    assert jnp.allclose(y, y_ref, atol=3e-2, rtol=3e-2), f"max_err={max_err}"

    print("KERNEL_OK")
</pallas_src>

<mosaic_0001>
module attributes {stable_mosaic.version = 11 : i64} {
  func.func @_bottleneck_fused_kernel(%arg0: i32, %arg1: memref<1x18x18x16xbf16, #tpu.memory_space<vmem>>, %arg2: memref<16x4xbf16, #tpu.memory_space<vmem>>, %arg3: memref<1x4xf32, #tpu.memory_space<vmem>>, %arg4: memref<9x4x4xbf16, #tpu.memory_space<vmem>>, %arg5: memref<1x4xf32, #tpu.memory_space<vmem>>, %arg6: memref<4x16xbf16, #tpu.memory_space<vmem>>, %arg7: memref<1x16xf32, #tpu.memory_space<vmem>>, %arg8: memref<2x16xf32, #tpu.memory_space<vmem>>, %arg9: memref<1x16xf32, #tpu.memory_space<vmem>>, %arg10: memref<1x256x16xf32, #tpu.memory_space<vmem>>) attributes {dimension_semantics = [#tpu.dimension_semantics<parallel>], iteration_bounds = array<i64: 2>, scalar_prefetch = 0 : i64, scratch_operands = 0 : i64, tpu.core_type = #tpu.core_type<tc>, window_params = [{transform_indices = @transform_0, window_bounds = array<i64: 1, 18, 18, 16>}, {pipeline_mode = #tpu.pipeline_mode<synchronous>, transform_indices = @transform_1, window_bounds = array<i64: 16, 4>}, {pipeline_mode = #tpu.pipeline_mode<synchronous>, transform_indices = @transform_2, window_bounds = array<i64: 1, 4>}, {pipeline_mode = #tpu.pipeline_mode<synchronous>, transform_indices = @transform_3, window_bounds = array<i64: 9, 4, 4>}, {pipeline_mode = #tpu.pipeline_mode<synchronous>, transform_indices = @transform_4, window_bounds = array<i64: 1, 4>}, {pipeline_mode = #tpu.pipeline_mode<synchronous>, transform_indices = @transform_5, window_bounds = array<i64: 4, 16>}, {pipeline_mode = #tpu.pipeline_mode<synchronous>, transform_indices = @transform_6, window_bounds = array<i64: 1, 16>}, {pipeline_mode = #tpu.pipeline_mode<synchronous>, transform_indices = @transform_7, window_bounds = array<i64: 2, 16>}, {pipeline_mode = #tpu.pipeline_mode<synchronous>, transform_indices = @transform_8, window_bounds = array<i64: 1, 16>}, {transform_indices = @transform_9, window_bounds = array<i64: 1, 256, 16>}]} {
    %c0 = arith.constant 0 : index
    %c0_0 = arith.constant 0 : index
    %c0_1 = arith.constant 0 : index
    %c0_2 = arith.constant 0 : index
    %0 = vector.load %arg1[%c0, %c0_0, %c0_1, %c0_2] : memref<1x18x18x16xbf16, #tpu.memory_space<vmem>>, vector<1x18x18x16xbf16>
    %1 = vector.shape_cast %0 : vector<1x18x18x16xbf16> to vector<18x18x16xbf16>
    %2 = vector.shape_cast %1 : vector<18x18x16xbf16> to vector<324x16xbf16>
    %c0_3 = arith.constant 0 : index
    %c0_4 = arith.constant 0 : index
    %3 = vector.load %arg2[%c0_3, %c0_4] : memref<16x4xbf16, #tpu.memory_space<vmem>>, vector<16x4xbf16>
    %cst = arith.constant dense<0.000000e+00> : vector<324x4xf32>
    %4 = tpu.matmul %2, %3, %cst {dimension_numbers = #tpu.dot_dimension_numbers<[1], [0], [0], [1], [0, 0, 1, 1], [], []>} : vector<324x16xbf16>, vector<16x4xbf16>, vector<324x4xf32> -> vector<324x4xf32>
    %c0_5 = arith.constant 0 : index
    %c0_6 = arith.constant 0 : index
    %5 = vector.load %arg3[%c0_5, %c0_6] : memref<1x4xf32, #tpu.memory_space<vmem>>, vector<1x4xf32>
    %6 = vector.broadcast %5 : vector<1x4xf32> to vector<324x4xf32>
    %7 = arith.addf %4, %6 : vector<324x4xf32>
    %cst_7 = arith.constant 0.000000e+00 : f32
    %8 = vector.broadcast %cst_7 : f32 to vector<324x4xf32>
    %9 = arith.maximumf %7, %8 : vector<324x4xf32>
    %10 = vector.shape_cast %9 : vector<324x4xf32> to vector<18x18x4xf32>
    %11 = tpu.iota {dimensions = array<i32: 0>} : vector<18x18x1xi32>
    %12 = tpu.iota {dimensions = array<i32: 1>} : vector<18x18x1xi32>
    %c1_i32 = arith.constant 1 : i32
    %13 = vector.broadcast %c1_i32 : i32 to vector<18x18x1xi32>
    %14 = arith.cmpi sge, %11, %13 : vector<18x18x1xi32>
    %c16_i32 = arith.constant 16 : i32
    %15 = vector.broadcast %c16_i32 : i32 to vector<18x18x1xi32>
    %16 = arith.cmpi sle, %11, %15 : vector<18x18x1xi32>
    %17 = arith.andi %14, %16 : vector<18x18x1xi1>
    %c1_i32_8 = arith.constant 1 : i32
    %18 = vector.broadcast %c1_i32_8 : i32 to vector<18x18x1xi32>
    %19 = arith.cmpi sge, %12, %18 : vector<18x18x1xi32>
    %20 = arith.andi %17, %19 : vector<18x18x1xi1>
    %c16_i32_9 = arith.constant 16 : i32
    %21 = vector.broadcast %c16_i32_9 : i32 to vector<18x18x1xi32>
    %22 = arith.cmpi sle, %12, %21 : vector<18x18x1xi32>
    %23 = arith.andi %20, %22 : vector<18x18x1xi1>
    %cst_10 = arith.constant 0.000000e+00 : f32
    %24 = vector.shape_cast %23 : vector<18x18x1xi1> to vector<18x18x1xi1>
    %25 = vector.broadcast %24 : vector<18x18x1xi1> to vector<18x18x4xi1>
    %26 = vector.broadcast %cst_10 : f32 to vector<18x18x4xf32>
    %27 = arith.select %25, %10, %26 : vector<18x18x4xi1>, vector<18x18x4xf32>
    %28 = arith.truncf %27 : vector<18x18x4xf32> to vector<18x18x4xbf16>
    %cst_11 = arith.constant 0.000000e+00 : f32
    %29 = vector.broadcast %cst_11 : f32 to vector<256x4xf32>
    %30 = vector.extract_strided_slice %28 {offsets = [0, 0, 0], sizes = [16, 16, 4], strides = [1, 1, 1]} : vector<18x18x4xbf16> to vector<16x16x4xbf16>
    %31 = vector.shape_cast %30 : vector<16x16x4xbf16> to vector<256x4xbf16>
    %c0_12 = arith.constant 0 : index
    %c0_13 = arith.constant 0 : index
    %c0_14 = arith.constant 0 : index
    %32 = vector.load %arg4[%c0_12, %c0_13, %c0_14] : memref<9x4x4xbf16, #tpu.memory_space<vmem>>, vector<1x4x4xbf16>
    %33 = vector.shape_cast %32 : vector<1x4x4xbf16> to vector<4x4xbf16>
    %cst_15 = arith.constant dense<0.000000e+00> : vector<256x4xf32>
    %34 = tpu.matmul %31, %33, %cst_15 {dimension_numbers = #tpu.dot_dimension_numbers<[1], [0], [0], [1], [0, 0, 1, 1], [], []>} : vector<256x4xbf16>, vector<4x4xbf16>, vector<256x4xf32> -> vector<256x4xf32>
    %35 = arith.addf %29, %34 : vector<256x4xf32>
    %36 = vector.extract_strided_slice %28 {offsets = [0, 1, 0], sizes = [16, 16, 4], strides = [1, 1, 1]} : vector<18x18x4xbf16> to vector<16x16x4xbf16>
    %37 = vector.shape_cast %36 : vector<16x16x4xbf16> to vector<256x4xbf16>
    %c1 = arith.constant 1 : index
    %c0_16 = arith.constant 0 : index
    %c0_17 = arith.constant 0 : index
    %38 = vector.load %arg4[%c1, %c0_16, %c0_17] : memref<9x4x4xbf16, #tpu.memory_space<vmem>>, vector<1x4x4xbf16>
    %39 = vector.shape_cast %38 : vector<1x4x4xbf16> to vector<4x4xbf16>
    %cst_18 = arith.constant dense<0.000000e+00> : vector<256x4xf32>
    %40 = tpu.matmul %37, %39, %cst_18 {dimension_numbers = #tpu.dot_dimension_numbers<[1], [0], [0], [1], [0, 0, 1, 1], [], []>} : vector<256x4xbf16>, vector<4x4xbf16>, vector<256x4xf32> -> vector<256x4xf32>
    %41 = arith.addf %35, %40 : vector<256x4xf32>
    %42 = vector.extract_strided_slice %28 {offsets = [0, 2, 0], sizes = [16, 16, 4], strides = [1, 1, 1]} : vector<18x18x4xbf16> to vector<16x16x4xbf16>
    %43 = vector.shape_cast %42 : vector<16x16x4xbf16> to vector<256x4xbf16>
    %c2 = arith.constant 2 : index
    %c0_19 = arith.constant 0 : index
    %c0_20 = arith.constant 0 : index
    %44 = vector.load %arg4[%c2, %c0_19, %c0_20] : memref<9x4x4xbf16, #tpu.memory_space<vmem>>, vector<1x4x4xbf16>
    %45 = vector.shape_cast %44 : vector<1x4x4xbf16> to vector<4x4xbf16>
    %cst_21 = arith.constant dense<0.000000e+00> : vector<256x4xf32>
    %46 = tpu.matmul %43, %45, %cst_21 {dimension_numbers = #tpu.dot_dimension_numbers<[1], [0], [0], [1], [0, 0, 1, 1], [], []>} : vector<256x4xbf16>, vector<4x4xbf16>, vector<256x4xf32> -> vector<256x4xf32>
    %47 = arith.addf %41, %46 : vector<256x4xf32>
    %48 = vector.extract_strided_slice %28 {offsets = [1, 0, 0], sizes = [16, 16, 4], strides = [1, 1, 1]} : vector<18x18x4xbf16> to vector<16x16x4xbf16>
    %49 = vector.shape_cast %48 : vector<16x16x4xbf16> to vector<256x4xbf16>
    %c3 = arith.constant 3 : index
    %c0_22 = arith.constant 0 : index
    %c0_23 = arith.constant 0 : index
    %50 = vector.load %arg4[%c3, %c0_22, %c0_23] : memref<9x4x4xbf16, #tpu.memory_space<vmem>>, vector<1x4x4xbf16>
    %51 = vector.shape_cast %50 : vector<1x4x4xbf16> to vector<4x4xbf16>
    %cst_24 = arith.constant dense<0.000000e+00> : vector<256x4xf32>
    %52 = tpu.matmul %49, %51, %cst_24 {dimension_numbers = #tpu.dot_dimension_numbers<[1], [0], [0], [1], [0, 0, 1, 1], [], []>} : vector<256x4xbf16>, vector<4x4xbf16>, vector<256x4xf32> -> vector<256x4xf32>
    %53 = arith.addf %47, %52 : vector<256x4xf32>
    %54 = vector.extract_strided_slice %28 {offsets = [1, 1, 0], sizes = [16, 16, 4], strides = [1, 1, 1]} : vector<18x18x4xbf16> to vector<16x16x4xbf16>
    %55 = vector.shape_cast %54 : vector<16x16x4xbf16> to vector<256x4xbf16>
    %c4 = arith.constant 4 : index
    %c0_25 = arith.constant 0 : index
    %c0_26 = arith.constant 0 : index
    %56 = vector.load %arg4[%c4, %c0_25, %c0_26] : memref<9x4x4xbf16, #tpu.memory_space<vmem>>, vector<1x4x4xbf16>
    %57 = vector.shape_cast %56 : vector<1x4x4xbf16> to vector<4x4xbf16>
    %cst_27 = arith.constant dense<0.000000e+00> : vector<256x4xf32>
    %58 = tpu.matmul %55, %57, %cst_27 {dimension_numbers = #tpu.dot_dimension_numbers<[1], [0], [0], [1], [0, 0, 1, 1], [], []>} : vector<256x4xbf16>, vector<4x4xbf16>, vector<256x4xf32> -> vector<256x4xf32>
    %59 = arith.addf %53, %58 : vector<256x4xf32>
    %60 = vector.extract_strided_slice %28 {offsets = [1, 2, 0], sizes = [16, 16, 4], strides = [1, 1, 1]} : vector<18x18x4xbf16> to vector<16x16x4xbf16>
    %61 = vector.shape_cast %60 : vector<16x16x4xbf16> to vector<256x4xbf16>
    %c5 = arith.constant 5 : index
    %c0_28 = arith.constant 0 : index
    %c0_29 = arith.constant 0 : index
    %62 = vector.load %arg4[%c5, %c0_28, %c0_29] : memref<9x4x4xbf16, #tpu.memory_space<vmem>>, vector<1x4x4xbf16>
    %63 = vector.shape_cast %62 : vector<1x4x4xbf16> to vector<4x4xbf16>
    %cst_30 = arith.constant dense<0.000000e+00> : vector<256x4xf32>
    %64 = tpu.matmul %61, %63, %cst_30 {dimension_numbers = #tpu.dot_dimension_numbers<[1], [0], [0], [1], [0, 0, 1, 1], [], []>} : vector<256x4xbf16>, vector<4x4xbf16>, vector<256x4xf32> -> vector<256x4xf32>
    %65 = arith.addf %59, %64 : vector<256x4xf32>
    %66 = vector.extract_strided_slice %28 {offsets = [2, 0, 0], sizes = [16, 16, 4], strides = [1, 1, 1]} : vector<18x18x4xbf16> to vector<16x16x4xbf16>
    %67 = vector.shape_cast %66 : vector<16x16x4xbf16> to vector<256x4xbf16>
    %c6 = arith.constant 6 : index
    %c0_31 = arith.constant 0 : index
    %c0_32 = arith.constant 0 : index
    %68 = vector.load %arg4[%c6, %c0_31, %c0_32] : memref<9x4x4xbf16, #tpu.memory_space<vmem>>, vector<1x4x4xbf16>
    %69 = vector.shape_cast %68 : vector<1x4x4xbf16> to vector<4x4xbf16>
    %cst_33 = arith.constant dense<0.000000e+00> : vector<256x4xf32>
    %70 = tpu.matmul %67, %69, %cst_33 {dimension_numbers = #tpu.dot_dimension_numbers<[1], [0], [0], [1], [0, 0, 1, 1], [], []>} : vector<256x4xbf16>, vector<4x4xbf16>, vector<256x4xf32> -> vector<256x4xf32>
    %71 = arith.addf %65, %70 : vector<256x4xf32>
    %72 = vector.extract_strided_slice %28 {offsets = [2, 1, 0], sizes = [16, 16, 4], strides = [1, 1, 1]} : vector<18x18x4xbf16> to vector<16x16x4xbf16>
    %73 = vector.shape_cast %72 : vector<16x16x4xbf16> to vector<256x4xbf16>
    %c7 = arith.constant 7 : index
    %c0_34 = arith.constant 0 : index
    %c0_35 = arith.constant 0 : index
    %74 = vector.load %arg4[%c7, %c0_34, %c0_35] : memref<9x4x4xbf16, #tpu.memory_space<vmem>>, vector<1x4x4xbf16>
    %75 = vector.shape_cast %74 : vector<1x4x4xbf16> to vector<4x4xbf16>
    %cst_36 = arith.constant dense<0.000000e+00> : vector<256x4xf32>
    %76 = tpu.matmul %73, %75, %cst_36 {dimension_numbers = #tpu.dot_dimension_numbers<[1], [0], [0], [1], [0, 0, 1, 1], [], []>} : vector<256x4xbf16>, vector<4x4xbf16>, vector<256x4xf32> -> vector<256x4xf32>
    %77 = arith.addf %71, %76 : vector<256x4xf32>
    %78 = vector.extract_strided_slice %28 {offsets = [2, 2, 0], sizes = [16, 16, 4], strides = [1, 1, 1]} : vector<18x18x4xbf16> to vector<16x16x4xbf16>
    %79 = vector.shape_cast %78 : vector<16x16x4xbf16> to vector<256x4xbf16>
    %c8 = arith.constant 8 : index
    %c0_37 = arith.constant 0 : index
    %c0_38 = arith.constant 0 : index
    %80 = vector.load %arg4[%c8, %c0_37, %c0_38] : memref<9x4x4xbf16, #tpu.memory_space<vmem>>, vector<1x4x4xbf16>
    %81 = vector.shape_cast %80 : vector<1x4x4xbf16> to vector<4x4xbf16>
    %cst_39 = arith.constant dense<0.000000e+00> : vector<256x4xf32>
    %82 = tpu.matmul %79, %81, %cst_39 {dimension_numbers = #tpu.dot_dimension_numbers<[1], [0], [0], [1], [0, 0, 1, 1], [], []>} : vector<256x4xbf16>, vector<4x4xbf16>, vector<256x4xf32> -> vector<256x4xf32>
    %83 = arith.addf %77, %82 : vector<256x4xf32>
    %c0_40 = arith.constant 0 : index
    %c0_41 = arith.constant 0 : index
    %84 = vector.load %arg5[%c0_40, %c0_41] : memref<1x4xf32, #tpu.memory_space<vmem>>, vector<1x4xf32>
    %85 = vector.broadcast %84 : vector<1x4xf32> to vector<256x4xf32>
    %86 = arith.addf %83, %85 : vector<256x4xf32>
    %cst_42 = arith.constant 0.000000e+00 : f32
    %87 = vector.broadcast %cst_42 : f32 to vector<256x4xf32>
    %88 = arith.maximumf %86, %87 : vector<256x4xf32>
    %89 = arith.truncf %88 : vector<256x4xf32> to vector<256x4xbf16>
    %c0_43 = arith.constant 0 : index
    %c0_44 = arith.constant 0 : index
    %90 = vector.load %arg6[%c0_43, %c0_44] : memref<4x16xbf16, #tpu.memory_space<vmem>>, vector<4x16xbf16>
    %cst_45 = arith.constant dense<0.000000e+00> : vector<256x16xf32>
    %91 = tpu.matmul %89, %90, %cst_45 {dimension_numbers = #tpu.dot_dimension_numbers<[1], [0], [0], [1], [0, 0, 1, 1], [], []>} : vector<256x4xbf16>, vector<4x16xbf16>, vector<256x16xf32> -> vector<256x16xf32>
    %c0_46 = arith.constant 0 : index
    %c0_47 = arith.constant 0 : index
    %92 = vector.load %arg7[%c0_46, %c0_47] : memref<1x16xf32, #tpu.memory_space<vmem>>, vector<1x16xf32>
    %93 = vector.broadcast %92 : vector<1x16xf32> to vector<256x16xf32>
    %94 = arith.addf %91, %93 : vector<256x16xf32>
    %cst_48 = arith.constant dense<0.000000e+00> : vector<16xf32>
    %95 = vector.multi_reduction <add>, %94, %cst_48 [0] : vector<256x16xf32> to vector<16xf32>
    %96 = vector.shape_cast %95 : vector<16xf32> to vector<1x16xf32>
    %97 = arith.mulf %94, %94 : vector<256x16xf32>
    %cst_49 = arith.constant dense<0.000000e+00> : vector<16xf32>
    %98 = vector.multi_reduction <add>, %97, %cst_49 [0] : vector<256x16xf32> to vector<16xf32>
    %99 = vector.shape_cast %98 : vector<16xf32> to vector<1x16xf32>
    %cst_50 = arith.constant 3.906250e-03 : f32
    %100 = vector.broadcast %cst_50 : f32 to vector<1x16xf32>
    %101 = arith.mulf %96, %100 : vector<1x16xf32>
    %102 = arith.mulf %101, %96 : vector<1x16xf32>
    %103 = arith.subf %99, %102 : vector<1x16xf32>
    %cst_51 = arith.constant 0.00392156886 : f32
    %104 = vector.broadcast %cst_51 : f32 to vector<1x16xf32>
    %105 = arith.mulf %103, %104 : vector<1x16xf32>
    %cst_52 = arith.constant 9.99999974E-6 : f32
    %106 = vector.broadcast %cst_52 : f32 to vector<1x16xf32>
    %107 = arith.addf %105, %106 : vector<1x16xf32>
    %108 = math.sqrt %107 : vector<1x16xf32>
    %c0_53 = arith.constant 0 : index
    %c0_54 = arith.constant 0 : index
    %109 = vector.load %arg8[%c0_53, %c0_54] : memref<2x16xf32, #tpu.memory_space<vmem>>, vector<1x16xf32>
    %110 = arith.mulf %101, %109 : vector<1x16xf32>
    %c1_55 = arith.constant 1 : index
    %c0_56 = arith.constant 0 : index
    %111 = vector.load %arg8[%c1_55, %c0_56] : memref<2x16xf32, #tpu.memory_space<vmem>>, vector<1x16xf32>
    %112 = arith.mulf %108, %111 : vector<1x16xf32>
    %113 = arith.addf %110, %112 : vector<1x16xf32>
    %c0_57 = arith.constant 0 : index
    %c0_58 = arith.constant 0 : index
    %114 = vector.load %arg9[%c0_57, %c0_58] : memref<1x16xf32, #tpu.memory_space<vmem>>, vector<1x16xf32>
    %115 = arith.addf %113, %114 : vector<1x16xf32>
    %116 = arith.negf %115 : vector<1x16xf32>
    %117 = math.exp %116 : vector<1x16xf32>
    %cst_59 = arith.constant 1.000000e+00 : f32
    %118 = vector.broadcast %cst_59 : f32 to vector<1x16xf32>
    %119 = arith.addf %118, %117 : vector<1x16xf32>
    %120 = arith.divf %118, %119 : vector<1x16xf32>
    %121 = vector.extract_strided_slice %1 {offsets = [1, 1, 0], sizes = [16, 16, 16], strides = [1, 1, 1]} : vector<18x18x16xbf16> to vector<16x16x16xbf16>
    %122 = vector.shape_cast %121 : vector<16x16x16xbf16> to vector<256x16xbf16>
    %123 = arith.extf %122 : vector<256x16xbf16> to vector<256x16xf32>
    %124 = vector.broadcast %120 : vector<1x16xf32> to vector<256x16xf32>
    %125 = arith.mulf %94, %124 : vector<256x16xf32>
    %126 = arith.addf %125, %123 : vector<256x16xf32>
    %cst_60 = arith.constant 0.000000e+00 : f32
    %127 = vector.broadcast %cst_60 : f32 to vector<256x16xf32>
    %128 = arith.maximumf %126, %127 : vector<256x16xf32>
    %129 = vector.shape_cast %128 : vector<256x16xf32> to vector<1x256x16xf32>
    %c0_61 = arith.constant 0 : index
    %c0_62 = arith.constant 0 : index
    %c0_63 = arith.constant 0 : index
    %130 = vector.load %arg10[%c0_61, %c0_62, %c0_63] : memref<1x256x16xf32, #tpu.memory_space<vmem>>, vector<1x256x16xf32>
    tpu.vector_store %arg10[%c0_61, %c0_62, %c0_63], %129 {strides = array<i32>} : memref<1x256x16xf32, #tpu.memory_space<vmem>>, vector<1x256x16xf32>,
    return
  }
  func.func @transform_0(%arg0: i32) -> (i32, i32, i32, i32) {
    %c0_i32 = arith.constant 0 : i32
    %c0_i32_0 = arith.constant 0 : i32
    %c0_i32_1 = arith.constant 0 : i32
    %c0_i32_2 = arith.constant 0 : i32
    return %arg0, %c0_i32, %c0_i32_0, %c0_i32_1 : i32, i32, i32, i32
  }
  func.func @transform_1(%arg0: i32) -> (i32, i32) {
    %c0_i32 = arith.constant 0 : i32
    %c0_i32_0 = arith.constant 0 : i32
    %c0_i32_1 = arith.constant 0 : i32
    return %c0_i32, %c0_i32_0 : i32, i32
  }
  func.func @transform_2(%arg0: i32) -> (i32, i32) {
    %c0_i32 = arith.constant 0 : i32
    %c0_i32_0 = arith.constant 0 : i32
    %c0_i32_1 = arith.constant 0 : i32
    return %c0_i32, %c0_i32_0 : i32, i32
  }
  func.func @transform_3(%arg0: i32) -> (i32, i32, i32) {
    %c0_i32 = arith.constant 0 : i32
    %c0_i32_0 = arith.constant 0 : i32
    %c0_i32_1 = arith.constant 0 : i32
    %c0_i32_2 = arith.constant 0 : i32
    return %c0_i32, %c0_i32_0, %c0_i32_1 : i32, i32, i32
  }
  func.func @transform_4(%arg0: i32) -> (i32, i32) {
    %c0_i32 = arith.constant 0 : i32
    %c0_i32_0 = arith.constant 0 : i32
    %c0_i32_1 = arith.constant 0 : i32
    return %c0_i32, %c0_i32_0 : i32, i32
  }
  func.func @transform_5(%arg0: i32) -> (i32, i32) {
    %c0_i32 = arith.constant 0 : i32
    %c0_i32_0 = arith.constant 0 : i32
    %c0_i32_1 = arith.constant 0 : i32
    return %c0_i32, %c0_i32_0 : i32, i32
  }
  func.func @transform_6(%arg0: i32) -> (i32, i32) {
    %c0_i32 = arith.constant 0 : i32
    %c0_i32_0 = arith.constant 0 : i32
    %c0_i32_1 = arith.constant 0 : i32
    return %c0_i32, %c0_i32_0 : i32, i32
  }
  func.func @transform_7(%arg0: i32) -> (i32, i32) {
    %c0_i32 = arith.constant 0 : i32
    %c0_i32_0 = arith.constant 0 : i32
    %c0_i32_1 = arith.constant 0 : i32
    return %c0_i32, %c0_i32_0 : i32, i32
  }
  func.func @transform_8(%arg0: i32) -> (i32, i32) {
    %c0_i32 = arith.constant 0 : i32
    %c0_i32_0 = arith.constant 0 : i32
    %c0_i32_1 = arith.constant 0 : i32
    return %c0_i32, %c0_i32_0 : i32, i32
  }
  func.func @transform_9(%arg0: i32) -> (i32, i32, i32) {
    %c0_i32 = arith.constant 0 : i32
    %c0_i32_0 = arith.constant 0 : i32
    %c0_i32_1 = arith.constant 0 : i32
    return %arg0, %c0_i32, %c0_i32_0 : i32, i32, i32
  }
}

</mosaic_0001>

<llo_original>
// kernel: tpu_custom_call.1
$region0: #{tpu_custom_call.1}
  #allocation0 [shape = 'u32[]', space=smem, size = 0x4, offset = 0x4, fixed_abs, tag = 'smem constant byte address 0x4 - core index']
  #allocation1 [shape = 'u32[144,128]{1,0:T(1,128)}', space=vmem, size = 0x12000, scoped, tag = 'internal scratch']
  %s0 = inlined_call_operand.vmem [shape: bf16[2,18,18,16], index: 0, kind: input, shape index: {}]
  %s1 = inlined_call_operand.vmem [shape: bf16[16,4], index: 1, kind: input, shape index: {}]
  %s2 = inlined_call_operand.vmem [shape: f32[1,4], index: 2, kind: input, shape index: {}]
  %s3 = inlined_call_operand.vmem [shape: bf16[9,4,4], index: 3, kind: input, shape index: {}]
  %s4 = inlined_call_operand.vmem [shape: f32[1,4], index: 4, kind: input, shape index: {}]
  %s5 = inlined_call_operand.vmem [shape: bf16[4,16], index: 5, kind: input, shape index: {}]
  %s6 = inlined_call_operand.vmem [shape: f32[1,16], index: 6, kind: input, shape index: {}]
  %s7 = inlined_call_operand.vmem [shape: f32[2,16], index: 7, kind: input, shape index: {}]
  %s8 = inlined_call_operand.vmem [shape: f32[1,16], index: 8, kind: input, shape index: {}]
  %s9 = inlined_call_operand.vmem [shape: f32[2,256,16], index: 9, kind: output, shape index: {}]
  %s10 = sld [smem:[#allocation0]]
  $region69: #{tpu_custom_call.1} parent=0
    _
  %s12 = ssub.s32 1, %s10
  %s13 = scalar_select 0, %s12, %s10
  loop: start=0, step=1, limit=4
  $region2: #{tpu_custom_call.1} parent=0 // loop_pre_header
    _
  $region3: #{tpu_custom_call.1} parent=0 // loop_header
    %s15 = sphi 0, %s19
    %p16 = scmp.ge.s32.totalorder %s15, 4
    %s25 = sphi 0, %s27
    %s28 = sphi 0, %s25
    %s29 = sphi 0, %s28
    %s45 = sphi 0, %s29
    %s49 = sphi 0, %s49
    %s51 = sphi 0, %s49
    %s52 = sphi 0, %s51
    %s66 = sphi 0, %s52
    %s70 = sphi 0, %s70
    %s72 = sphi 0, %s70
    %s73 = sphi 0, %s72
    %s87 = sphi 0, %s73
    %s91 = sphi 0, %s91
    %s93 = sphi 0, %s91
    %s94 = sphi 0, %s93
    %s108 = sphi 0, %s94
    %s112 = sphi 0, %s112
    %s114 = sphi 0, %s112
    %s115 = sphi 0, %s114
    %s129 = sphi 0, %s115
    %s133 = sphi 0, %s133
    %s135 = sphi 0, %s133
    %s136 = sphi 0, %s135
    %s150 = sphi 0, %s136
    %s154 = sphi 0, %s154
    %s156 = sphi 0, %s154
    %s157 = sphi 0, %s156
    %s171 = sphi 0, %s157
    %s175 = sphi 0, %s175
    %s177 = sphi 0, %s175
    %s178 = sphi 0, %s177
    %s192 = sphi 0, %s178
    %s196 = sphi 0, %s196
    %s198 = sphi 0, %s196
    %s199 = sphi 0, %s198
    %s213 = sphi 0, %s199
    %s219 = sphi 0, %s221
    %s222 = sphi 0, %s219
    %s223 = sphi 0, %s222
    %s239 = sphi 0, %s223
  $region4: #{tpu_custom_call.1} parent=0 // loop_header_branch
    %18 = sbr.rel (%p16) target = $region8
  $region5: #{tpu_custom_call.1} parent=0 // loop_body
    %s20 = ssub.s32 %s15, 1
    %s21 = ssub.s32 %s15, 2
    %s22 = sadd.s32 %s15, 1
    %s23 = ssub.s32 %s15, %s22
    %p24 = scmp.eq.s32.totalorder %s23, 0
    %s26 = sadd.s32 %s25, 1
    %s27 = scalar_select %p24, %s25, %s26
    %p30 = pneg %p24
    %p31 = scmp.eq.s32.totalorder %s15, 1
    %p32 = por %p30, %p31
    %p33 = scmp.ne.s32.totalorder %s25, %s28
    %p34 = scmp.eq.s32.totalorder %s15, 0
    %p35 = por %p33, %p34
    %p36 = scmp.ne.s32.totalorder %s25, %s28
    %p37 = scmp.eq.s32.totalorder %s20, 1
    %p38 = por %p36, %p37
    %p39 = scmp.ne.s32.totalorder %s28, %s29
    %p40 = scmp.eq.s32.totalorder %s20, 0
    %p41 = por %p39, %p40
    %p42 = scmp.ne.s32.totalorder %s28, %s29
    %p43 = scmp.eq.s32.totalorder %s21, 1
    %p44 = por %p42, %p43
    %p46 = scmp.ne.s32.totalorder %s29, %s45
    %p47 = scmp.eq.s32.totalorder %s21, 0
    %p48 = por %p46, %p47
    %s50 = sadd.s32 %s49, 1
    %p53 = scmp.eq.s32.totalorder %s15, 1
    %p54 = scmp.ne.s32.totalorder %s49, %s51
    %p55 = scmp.eq.s32.totalorder %s15, 0
    %p56 = por %p54, %p55
    %p57 = scmp.ne.s32.totalorder %s49, %s51
    %p58 = scmp.eq.s32.totalorder %s20, 1
    %p59 = por %p57, %p58
    %p60 = scmp.ne.s32.totalorder %s51, %s52
    %p61 = scmp.eq.s32.totalorder %s20, 0
    %p62 = por %p60, %p61
    %p63 = scmp.ne.s32.totalorder %s51, %s52
    %p64 = scmp.eq.s32.totalorder %s21, 1
    %p65 = por %p63, %p64
    %p67 = scmp.ne.s32.totalorder %s52, %s66
    %p68 = scmp.eq.s32.totalorder %s21, 0
    %p69 = por %p67, %p68
    %s71 = sadd.s32 %s70, 1
    %p74 = scmp.eq.s32.totalorder %s15, 1
    %p75 = scmp.ne.s32.totalorder %s70, %s72
    %p76 = scmp.eq.s32.totalorder %s15, 0
    %p77 = por %p75, %p76
    %p78 = scmp.ne.s32.totalorder %s70, %s72
    %p79 = scmp.eq.s32.totalorder %s20, 1
    %p80 = por %p78, %p79
    %p81 = scmp.ne.s32.totalorder %s72, %s73
    %p82 = scmp.eq.s32.totalorder %s20, 0
    %p83 = por %p81, %p82
    %p84 = scmp.ne.s32.totalorder %s72, %s73
    %p85 = scmp.eq.s32.totalorder %s21, 1
    %p86 = por %p84, %p85
    %p88 = scmp.ne.s32.totalorder %s73, %s87
    %p89 = scmp.eq.s32.totalorder %s21, 0
    %p90 = por %p88, %p89
    %s92 = sadd.s32 %s91, 1
    %p95 = scmp.eq.s32.totalorder %s15, 1
    %p96 = scmp.ne.s32.totalorder %s91, %s93
    %p97 = scmp.eq.s32.totalorder %s15, 0
    %p98 = por %p96, %p97
    %p99 = scmp.ne.s32.totalorder %s91, %s93
    %p100 = scmp.eq.s32.totalorder %s20, 1
    %p101 = por %p99, %p100
    %p102 = scmp.ne.s32.totalorder %s93, %s94
    %p103 = scmp.eq.s32.totalorder %s20, 0
    %p104 = por %p102, %p103
    %p105 = scmp.ne.s32.totalorder %s93, %s94
    %p106 = scmp.eq.s32.totalorder %s21, 1
    %p107 = por %p105, %p106
    %p109 = scmp.ne.s32.totalorder %s94, %s108
    %p110 = scmp.eq.s32.totalorder %s21, 0
    %p111 = por %p109, %p110
    %s113 = sadd.s32 %s112, 1
    %p116 = scmp.eq.s32.totalorder %s15, 1
    %p117 = scmp.ne.s32.totalorder %s112, %s114
    %p118 = scmp.eq.s32.totalorder %s15, 0
    %p119 = por %p117, %p118
    %p120 = scmp.ne.s32.totalorder %s112, %s114
    %p121 = scmp.eq.s32.totalorder %s20, 1
    %p122 = por %p120, %p121
    %p123 = scmp.ne.s32.totalorder %s114, %s115
    %p124 = scmp.eq.s32.totalorder %s20, 0
    %p125 = por %p123, %p124
    %p126 = scmp.ne.s32.totalorder %s114, %s115
    %p127 = scmp.eq.s32.totalorder %s21, 1
    %p128 = por %p126, %p127
    %p130 = scmp.ne.s32.totalorder %s115, %s129
    %p131 = scmp.eq.s32.totalorder %s21, 0
    %p132 = por %p130, %p131
    %s134 = sadd.s32 %s133, 1
    %p137 = scmp.eq.s32.totalorder %s15, 1
    %p138 = scmp.ne.s32.totalorder %s133, %s135
    %p139 = scmp.eq.s32.totalorder %s15, 0
    %p140 = por %p138, %p139
    %p141 = scmp.ne.s32.totalorder %s133, %s135
    %p142 = scmp.eq.s32.totalorder %s20, 1
    %p143 = por %p141, %p142
    %p144 = scmp.ne.s32.totalorder %s135, %s136
    %p145 = scmp.eq.s32.totalorder %s20, 0
    %p146 = por %p144, %p145
    %p147 = scmp.ne.s32.totalorder %s135, %s136
    %p148 = scmp.eq.s32.totalorder %s21, 1
    %p149 = por %p147, %p148
    %p151 = scmp.ne.s32.totalorder %s136, %s150
    %p152 = scmp.eq.s32.totalorder %s21, 0
    %p153 = por %p151, %p152
    %s155 = sadd.s32 %s154, 1
    %p158 = scmp.eq.s32.totalorder %s15, 1
    %p159 = scmp.ne.s32.totalorder %s154, %s156
    %p160 = scmp.eq.s32.totalorder %s15, 0
    %p161 = por %p159, %p160
    %p162 = scmp.ne.s32.totalorder %s154, %s156
    %p163 = scmp.eq.s32.totalorder %s20, 1
    %p164 = por %p162, %p163
    %p165 = scmp.ne.s32.totalorder %s156, %s157
    %p166 = scmp.eq.s32.totalorder %s20, 0
    %p167 = por %p165, %p166
    %p168 = scmp.ne.s32.totalorder %s156, %s157
    %p169 = scmp.eq.s32.totalorder %s21, 1
    %p170 = por %p168, %p169
    %p172 = scmp.ne.s32.totalorder %s157, %s171
    %p173 = scmp.eq.s32.totalorder %s21, 0
    %p174 = por %p172, %p173
    %s176 = sadd.s32 %s175, 1
    %p179 = scmp.eq.s32.totalorder %s15, 1
    %p180 = scmp.ne.s32.totalorder %s175, %s177
    %p181 = scmp.eq.s32.totalorder %s15, 0
    %p182 = por %p180, %p181
    %p183 = scmp.ne.s32.totalorder %s175, %s177
    %p184 = scmp.eq.s32.totalorder %s20, 1
    %p185 = por %p183, %p184
    %p186 = scmp.ne.s32.totalorder %s177, %s178
    %p187 = scmp.eq.s32.totalorder %s20, 0
    %p188 = por %p186, %p187
    %p189 = scmp.ne.s32.totalorder %s177, %s178
    %p190 = scmp.eq.s32.totalorder %s21, 1
    %p191 = por %p189, %p190
    %p193 = scmp.ne.s32.totalorder %s178, %s192
    %p194 = scmp.eq.s32.totalorder %s21, 0
    %p195 = por %p193, %p194
    %s197 = sadd.s32 %s196, 1
    %p200 = scmp.eq.s32.totalorder %s15, 1
    %p201 = scmp.ne.s32.totalorder %s196, %s198
    %p202 = scmp.eq.s32.totalorder %s15, 0
    %p203 = por %p201, %p202
    %p204 = scmp.ne.s32.totalorder %s196, %s198
    %p205 = scmp.eq.s32.totalorder %s20, 1
    %p206 = por %p204, %p205
    %p207 = scmp.ne.s32.totalorder %s198, %s199
    %p208 = scmp.eq.s32.totalorder %s20, 0
    %p209 = por %p207, %p208
    %p210 = scmp.ne.s32.totalorder %s198, %s199
    %p211 = scmp.eq.s32.totalorder %s21, 1
    %p212 = por %p210, %p211
    %p214 = scmp.ne.s32.totalorder %s199, %s213
    %p215 = scmp.eq.s32.totalorder %s21, 0
    %p216 = por %p214, %p215
    %s217 = ssub.s32 %s15, %s22
    %p218 = scmp.eq.s32.totalorder %s217, 0
    %s220 = sadd.s32 %s219, 1
    %s221 = scalar_select %p218, %s219, %s220
    %p224 = pneg %p218
    %p225 = scmp.eq.s32.totalorder %s15, 1
    %p226 = por %p224, %p225
    %p227 = scmp.ne.s32.totalorder %s219, %s222
    %p228 = scmp.eq.s32.totalorder %s15, 0
    %p229 = por %p227, %p228
    %p230 = scmp.ne.s32.totalorder %s219, %s222
    %p231 = scmp.eq.s32.totalorder %s20, 1
    %p232 = por %p230, %p231
    %p233 = scmp.ne.s32.totalorder %s222, %s223
    %p234 = scmp.eq.s32.totalorder %s20, 0
    %p235 = por %p233, %p234
    %p236 = scmp.ne.s32.totalorder %s222, %s223
    %p237 = scmp.eq.s32.totalorder %s21, 1
    %p238 = por %p236, %p237
    %p240 = scmp.ne.s32.totalorder %s223, %s239
    %p241 = scmp.eq.s32.totalorder %s21, 0
    %p242 = por %p240, %p241
    %p243 = scmp.le.s32.totalorder 1, %s15
    %p244 = scmp.lt.s32.totalorder %s15, 3
    %p245 = pnand %p243, %p244
    %p246 = pneg %p245
    // Predicated region
    $region9: #{tpu_custom_call.1} parent=5 // pred_check
      _
    $region10: #{tpu_custom_call.1} parent=5 // pred_check_branch
      %248 = sbr.rel (%p245) target = $region12
    $region11: #{tpu_custom_call.1} parent=5 // pred_region
      %s249 = ssub.s32 %s15, 1
      // Predicated region
      $region13: #{tpu_custom_call.1} parent=11 // pred_check
        %p250 = pneg %p62
      $region14: #{tpu_custom_call.1} parent=11 // pred_check_branch
        %252 = sbr.rel (%p250) target = $region16
      $region15: #{tpu_custom_call.1} parent=11 // pred_region
        _
      $region16: #{tpu_custom_call.1} parent=11 // pred_fallthru
        _
      // Predicated region
      $region17: #{tpu_custom_call.1} parent=11 // pred_check
        %p253 = pneg %p83
      $region18: #{tpu_custom_call.1} parent=11 // pred_check_branch
        %255 = sbr.rel (%p253) target = $region20
      $region19: #{tpu_custom_call.1} parent=11 // pred_region
        _
      $region20: #{tpu_custom_call.1} parent=11 // pred_fallthru
        _
      // Predicated region
      $region21: #{tpu_custom_call.1} parent=11 // pred_check
        %p256 = pneg %p104
      $region22: #{tpu_custom_call.1} parent=11 // pred_check_branch
        %258 = sbr.rel (%p256) target = $region24
      $region23: #{tpu_custom_call.1} parent=11 // pred_region
        _
      $region24: #{tpu_custom_call.1} parent=11 // pred_fallthru
        _
      // Predicated region
      $region25: #{tpu_custom_call.1} parent=11 // pred_check
        %p259 = pneg %p125
      $region26: #{tpu_custom_call.1} parent=11 // pred_check_branch
        %261 = sbr.rel (%p259) target = $region28
      $region27: #{tpu_custom_call.1} parent=11 // pred_region
        _
      $region28: #{tpu_custom_call.1} parent=11 // pred_fallthru
        _
      // Predicated region
      $region29: #{tpu_custom_call.1} parent=11 // pred_check
        %p262 = pneg %p146
      $region30: #{tpu_custom_call.1} parent=11 // pred_check_branch
        %264 = sbr.rel (%p262) target = $region32
      $region31: #{tpu_custom_call.1} parent=11 // pred_region
        _
      $region32: #{tpu_custom_call.1} parent=11 // pred_fallthru
        _
      // Predicated region
      $region33: #{tpu_custom_call.1} parent=11 // pred_check
        %p265 = pneg %p167
      $region34: #{tpu_custom_call.1} parent=11 // pred_check_branch
        %267 = sbr.rel (%p265) target = $region36
      $region35: #{tpu_custom_call.1} parent=11 // pred_region
        _
      $region36: #{tpu_custom_call.1} parent=11 // pred_fallthru
        _
      // Predicated region
      $region37: #{tpu_custom_call.1} parent=11 // pred_check
        %p268 = pneg %p188
      $region38: #{tpu_custom_call.1} parent=11 // pred_check_branch
        %270 = sbr.rel (%p268) target = $region40
      $region39: #{tpu_custom_call.1} parent=11 // pred_region
        _
      $region40: #{tpu_custom_call.1} parent=11 // pred_fallthru
        _
      // Predicated region
      $region41: #{tpu_custom_call.1} parent=11 // pred_check
        %p271 = pneg %p209
      $region42: #{tpu_custom_call.1} parent=11 // pred_check_branch
        %273 = sbr.rel (%p271) target = $region44
      $region43: #{tpu_custom_call.1} parent=11 // pred_region
        _
      $region44: #{tpu_custom_call.1} parent=11 // pred_fallthru
        _
    $region12: #{tpu_custom_call.1} parent=5 // pred_fallthru
      _
    %p274 = scmp.lt.s32.totalorder %s15, 2
    // Predicated region
    $region45: #{tpu_custom_call.1} parent=5 // pred_check
      %p275 = pneg %p274
    $region46: #{tpu_custom_call.1} parent=5 // pred_check_branch
      %277 = sbr.rel (%p275) target = $region48
    $region47: #{tpu_custom_call.1} parent=5 // pred_region
      // Predicated region
      $region49: #{tpu_custom_call.1} parent=47 // pred_check
        %p278 = pneg %p35
      $region50: #{tpu_custom_call.1} parent=47 // pred_check_branch
        %280 = sbr.rel (%p278) target = $region52
      $region51: #{tpu_custom_call.1} parent=47 // pred_region
        %p281 = scmp.lt.s32.totalorder %s15, 1
        %s282 = scalar_select %p281, %s15, 1
        %s283 = smul.addr %s282, 54
        %s284 = smul.addr %s283, 4
        %s285 = scalar_lea.vmem %s0, %s284
      $region52: #{tpu_custom_call.1} parent=47 // pred_fallthru
        _
    $region48: #{tpu_custom_call.1} parent=5 // pred_fallthru
      _
    %p286 = scmp.le.s32.totalorder 1, %s15
    %p287 = scmp.lt.s32.totalorder %s15, 3
    %p288 = pnand %p286, %p287
    %p289 = pneg %p288
    // Predicated region
    $region53: #{tpu_custom_call.1} parent=5 // pred_check
      _
    $region54: #{tpu_custom_call.1} parent=5 // pred_check_branch
      %291 = sbr.rel (%p288) target = $region56
    $region55: #{tpu_custom_call.1} parent=5 // pred_region
      %s292 = ssub.s32 %s15, 1
      %p293 = scmp.lt.s32.totalorder %s20, 1
      %s294 = scalar_select %p293, %s20, 1
      %s295 = smul.addr %s294, 54
      %s296 = smul.addr %s295, 4
      %s297 = scalar_lea.vmem %s0, %s296
      %p298 = pneg %p41
      %p299 = pneg %p38
      %p300 = pneg %p62
      %p301 = pneg %p59
      %p302 = pneg %p83
      %p303 = pneg %p80
      %p304 = pneg %p104
      %p305 = pneg %p101
      %p306 = pneg %p125
      %p307 = pneg %p122
      %p308 = pneg %p146
      %p309 = pneg %p143
      %p310 = pneg %p167
      %p311 = pneg %p164
      %p312 = pneg %p188
      %p313 = pneg %p185
      %p314 = pneg %p209
      %p315 = pneg %p206
      %p316 = pneg %p235
      %p317 = pneg %p232
      %p318 = scmp.lt.s32.totalorder %s20, 1
      %s319 = scalar_select %p318, %s20, 1
      %s320 = smul.addr %s319, 32
      %s321 = smul.addr %s320, 8
      %s322 = scalar_lea.vmem %s9, %s321
      %p323 = scmp.lt.s32.totalorder %s20, 1
      %s324 = scalar_select %p323, %s20, 1
      %s325 = smul.addr %s324, 54
      %s326 = smul.addr %s325, 4
      %s327 = scalar_lea.vmem %s0, %s326
      %p328 = scmp.lt.s32.totalorder %s20, 1
      %s329 = scalar_select %p328, %s20, 1
      %s330 = smul.addr %s329, 32
      %s331 = smul.addr %s330, 8
      %s332 = scalar_lea.vmem %s9, %s331
      %v334 = vld [vmem:[%s327] sm:$0xf]
      %v335 = vld [vmem:[%s327 + $0x4] sm:$0xf]
      %v336 = vld [vmem:[%s327 + $0x8] sm:$0x1]
      %v337 = vld [vmem:[%s327 + $0xc] sm:$0xf]
      %v338 = vld [vmem:[%s327 + $0x10] sm:$0xf]
      %v339 = vld [vmem:[%s327 + $0x14] sm:$0x1]
      %v340 = vld [vmem:[%s327 + $0x18] sm:$0xf]
      %v341 = vld [vmem:[%s327 + $0x1c] sm:$0xf]
      %v342 = vld [vmem:[%s327 + $0x20] sm:$0x1]
      %v343 = vld [vmem:[%s327 + $0x24] sm:$0xf]
      %v344 = vld [vmem:[%s327 + $0x28] sm:$0xf]
      %v345 = vld [vmem:[%s327 + $0x2c] sm:$0x1]
      %v346 = vld [vmem:[%s327 + $0x30] sm:$0xf]
      %v347 = vld [vmem:[%s327 + $0x34] sm:$0xf]
      %v348 = vld [vmem:[%s327 + $0x38] sm:$0x1]
      %v349 = vld [vmem:[%s327 + $0x3c] sm:$0xf]
      %v350 = vld [vmem:[%s327 + $0x40] sm:$0xf]
      %v351 = vld [vmem:[%s327 + $0x44] sm:$0x1]
      %v352 = vld [vmem:[%s327 + $0x48] sm:$0xf]
      %v353 = vld [vmem:[%s327 + $0x4c] sm:$0xf]
      %v354 = vld [vmem:[%s327 + $0x50] sm:$0x1]
      %v355 = vld [vmem:[%s327 + $0x54] sm:$0xf]
      %v356 = vld [vmem:[%s327 + $0x58] sm:$0xf]
      %v357 = vld [vmem:[%s327 + $0x5c] sm:$0x1]
      %v358 = vld [vmem:[%s327 + $0x60] sm:$0xf]
      %v359 = vld [vmem:[%s327 + $0x64] sm:$0xf]
      %v360 = vld [vmem:[%s327 + $0x68] sm:$0x1]
      %v361 = vld [vmem:[%s327 + $0x6c] sm:$0xf]
      %v362 = vld [vmem:[%s327 + $0x70] sm:$0xf]
      %v363 = vld [vmem:[%s327 + $0x74] sm:$0x1]
      %v364 = vld [vmem:[%s327 + $0x78] sm:$0xf]
      %v365 = vld [vmem:[%s327 + $0x7c] sm:$0xf]
      %v366 = vld [vmem:[%s327 + $0x80] sm:$0x1]
      %v367 = vld [vmem:[%s327 + $0x84] sm:$0xf]
      %v368 = vld [vmem:[%s327 + $0x88] sm:$0xf]
      %v369 = vld [vmem:[%s327 + $0x8c] sm:$0x1]
      %v370 = vld [vmem:[%s327 + $0x90] sm:$0xf]
      %v371 = vld [vmem:[%s327 + $0x94] sm:$0xf]
      %v372 = vld [vmem:[%s327 + $0x98] sm:$0x1]
      %v373 = vld [vmem:[%s327 + $0x9c] sm:$0xf]
      %v374 = vld [vmem:[%s327 + $0xa0] sm:$0xf]
      %v375 = vld [vmem:[%s327 + $0xa4] sm:$0x1]
      %v376 = vld [vmem:[%s327 + $0xa8] sm:$0xf]
      %v377 = vld [vmem:[%s327 + $0xac] sm:$0xf]
      %v378 = vld [vmem:[%s327 + $0xb0] sm:$0x1]
      %v379 = vld [vmem:[%s327 + $0xb4] sm:$0xf]
      %v380 = vld [vmem:[%s327 + $0xb8] sm:$0xf]
      %v381 = vld [vmem:[%s327 + $0xbc] sm:$0x1]
      %v382 = vld [vmem:[%s327 + $0xc0] sm:$0xf]
      %v383 = vld [vmem:[%s327 + $0xc4] sm:$0xf]
      %v384 = vld [vmem:[%s327 + $0xc8] sm:$0x1]
      %v385 = vld [vmem:[%s327 + $0xcc] sm:$0xf]
      %v386 = vld [vmem:[%s327 + $0xd0] sm:$0xf]
      %v387 = vld [vmem:[%s327 + $0xd4] sm:$0x1]
      %v443 = vunpack.c.l.s4 1966171168
      %v444 = vunpack.c.0.s8 %v443
      %v445 = vlaneseq
      %v446 = vshrl.u32 %v445, 7
      %v447 = vsub.s32 %v444, %v446
      %v448 = vrot.slane %v334, %v447
      %v449 = vcombine.high %v448, %v448
      %v451 = vunpack.c.l.s4 1966171168
      %v452 = vunpack.c.0.s8 %v451
      %v453 = vlaneseq
      %v454 = vshrl.u32 %v453, 7
      %v455 = vsub.s32 %v452, %v454
      %v456 = vrot.slane %v448, %v455
      %v458 = vunpack.c.l.s4 1966171168
      %v459 = vunpack.c.0.s8 %v458
      %v460 = vlaneseq
      %v461 = vshrl.u32 %v460, 7
      %v462 = vsub.s32 %v459, %v461
      %v463 = vrot.slane %v449, %v462
      %v464 = vcombine.high %v456, %v456
      %v465 = vcombine.high %v463, %v463
      %v467 = vunpack.c.l.s4 1966171168
      %v468 = vunpack.c.0.s8 %v467
      %v469 = vlaneseq
      %v470 = vshrl.u32 %v469, 7
      %v471 = vsub.s32 %v468, %v470
      %v472 = vrot.slane %v335, %v471
      %v473 = vcombine.high %v472, %v472
      %v475 = vunpack.c.l.s4 1966171168
      %v476 = vunpack.c.0.s8 %v475
      %v477 = vlaneseq
      %v478 = vshrl.u32 %v477, 7
      %v479 = vsub.s32 %v476, %v478
      %v480 = vrot.slane %v472, %v479
      %v482 = vunpack.c.l.s4 1966171168
      %v483 = vunpack.c.0.s8 %v482
      %v484 = vlaneseq
      %v485 = vshrl.u32 %v484, 7
      %v486 = vsub.s32 %v483, %v485
      %v487 = vrot.slane %v473, %v486
      %v488 = vcombine.high %v480, %v480
      %v489 = vcombine.high %v487, %v487
      %v491 = vunpack.c.l.s4 1966171168
      %v492 = vunpack.c.0.s8 %v491
      %v493 = vlaneseq
      %v494 = vshrl.u32 %v493, 7
      %v495 = vsub.s32 %v492, %v494
      %v496 = vrot.slane %v336, %v495
      %v498 = vunpack.c.l.s4 1966171168
      %v499 = vunpack.c.0.s8 %v498
      %v500 = vlaneseq
      %v501 = vshrl.u32 %v500, 7
      %v502 = vsub.s32 %v499, %v501
      %v503 = vrot.slane %v496, %v502
      %v505 = vunpack.c.l.s4 1966171168
      %v506 = vunpack.c.0.s8 %v505
      %v507 = vlaneseq
      %v508 = vshrl.u32 %v507, 7
      %v509 = vsub.s32 %v506, %v508
      %v510 = vrot.slane %v337, %v509
      %v511 = vcombine.high %v510, %v510
      %v513 = vunpack.c.l.s4 1966171168
      %v514 = vunpack.c.0.s8 %v513
      %v515 = vlaneseq
      %v516 = vshrl.u32 %v515, 7
      %v517 = vsub.s32 %v514, %v516
      %v518 = vrot.slane %v510, %v517
      %v520 = vunpack.c.l.s4 1966171168
      %v521 = vunpack.c.0.s8 %v520
      %v522 = vlaneseq
      %v523 = vshrl.u32 %v522, 7
      %v524 = vsub.s32 %v521, %v523
      %v525 = vrot.slane %v511, %v524
      %v526 = vcombine.high %v518, %v518
      %v527 = vcombine.high %v525, %v525
      %v529 = vunpack.c.l.s4 1966171168
      %v530 = vunpack.c.0.s8 %v529
      %v531 = vlaneseq
      %v532 = vshrl.u32 %v531, 7
      %v533 = vsub.s32 %v530, %v532
      %v534 = vrot.slane %v338, %v533
      %v535 = vcombine.high %v534, %v534
      %v537 = vunpack.c.l.s4 1966171168
      %v538 = vunpack.c.0.s8 %v537
      %v539 = vlaneseq
      %v540 = vshrl.u32 %v539, 7
      %v541 = vsub.s32 %v538, %v540
      %v542 = vrot.slane %v534, %v541
      %v544 = vunpack.c.l.s4 1966171168
      %v545 = vunpack.c.0.s8 %v544
      %v546 = vlaneseq
      %v547 = vshrl.u32 %v546, 7
      %v548 = vsub.s32 %v545, %v547
      %v549 = vrot.slane %v535, %v548
      %v550 = vcombine.high %v542, %v542
      %v551 = vcombine.high %v549, %v549
      %v553 = vunpack.c.l.s4 1966171168
      %v554 = vunpack.c.0.s8 %v553
      %v555 = vlaneseq
      %v556 = vshrl.u32 %v555, 7
      %v557 = vsub.s32 %v554, %v556
      %v558 = vrot.slane %v339, %v557
      %v560 = vunpack.c.l.s4 1966171168
      %v561 = vunpack.c.0.s8 %v560
      %v562 = vlaneseq
      %v563 = vshrl.u32 %v562, 7
      %v564 = vsub.s32 %v561, %v563
      %v565 = vrot.slane %v558, %v564
      %v567 = vunpack.c.l.s4 1966171168
      %v568 = vunpack.c.0.s8 %v567
      %v569 = vlaneseq
      %v570 = vshrl.u32 %v569, 7
      %v571 = vsub.s32 %v568, %v570
      %v572 = vrot.slane %v340, %v571
      %v573 = vcombine.high %v572, %v572
      %v575 = vunpack.c.l.s4 1966171168
      %v576 = vunpack.c.0.s8 %v575
      %v577 = vlaneseq
      %v578 = vshrl.u32 %v577, 7
      %v579 = vsub.s32 %v576, %v578
      %v580 = vrot.slane %v572, %v579
      %v582 = vunpack.c.l.s4 1966171168
      %v583 = vunpack.c.0.s8 %v582
      %v584 = vlaneseq
      %v585 = vshrl.u32 %v584, 7
      %v586 = vsub.s32 %v583, %v585
      %v587 = vrot.slane %v573, %v586
      %v588 = vcombine.high %v580, %v580
      %v589 = vcombine.high %v587, %v587
      %v591 = vunpack.c.l.s4 1966171168
      %v592 = vunpack.c.0.s8 %v591
      %v593 = vlaneseq
      %v594 = vshrl.u32 %v593, 7
      %v595 = vsub.s32 %v592, %v594
      %v596 = vrot.slane %v341, %v595
      %v597 = vcombine.high %v596, %v596
      %v599 = vunpack.c.l.s4 1966171168
      %v600 = vunpack.c.0.s8 %v599
      %v601 = vlaneseq
      %v602 = vshrl.u32 %v601, 7
      %v603 = vsub.s32 %v600, %v602
      %v604 = vrot.slane %v596, %v603
      %v606 = vunpack.c.l.s4 1966171168
      %v607 = vunpack.c.0.s8 %v606
      %v608 = vlaneseq
      %v609 = vshrl.u32 %v608, 7
      %v610 = vsub.s32 %v607, %v609
      %v611 = vrot.slane %v597, %v610
      %v612 = vcombine.high %v604, %v604
      %v613 = vcombine.high %v611, %v611
      %v615 = vunpack.c.l.s4 1966171168
      %v616 = vunpack.c.0.s8 %v615
      %v617 = vlaneseq
      %v618 = vshrl.u32 %v617, 7
      %v619 = vsub.s32 %v616, %v618
      %v620 = vrot.slane %v342, %v619
      %v622 = vunpack.c.l.s4 1966171168
      %v623 = vunpack.c.0.s8 %v622
      %v624 = vlaneseq
      %v625 = vshrl.u32 %v624, 7
      %v626 = vsub.s32 %v623, %v625
      %v627 = vrot.slane %v620, %v626
      %v629 = vunpack.c.l.s4 1966171168
      %v630 = vunpack.c.0.s8 %v629
      %v631 = vlaneseq
      %v632 = vshrl.u32 %v631, 7
      %v633 = vsub.s32 %v630, %v632
      %v634 = vrot.slane %v343, %v633
      %v635 = vcombine.high %v634, %v634
      %v637 = vunpack.c.l.s4 1966171168
      %v638 = vunpack.c.0.s8 %v637
      %v639 = vlaneseq
      %v640 = vshrl.u32 %v639, 7
      %v641 = vsub.s32 %v638, %v640
      %v642 = vrot.slane %v634, %v641
      %v644 = vunpack.c.l.s4 1966171168
      %v645 = vunpack.c.0.s8 %v644
      %v646 = vlaneseq
      %v647 = vshrl.u32 %v646, 7
      %v648 = vsub.s32 %v645, %v647
      %v649 = vrot.slane %v635, %v648
      %v650 = vcombine.high %v642, %v642
      %v651 = vcombine.high %v649, %v649
      %v653 = vunpack.c.l.s4 1966171168
      %v654 = vunpack.c.0.s8 %v653
      %v655 = vlaneseq
      %v656 = vshrl.u32 %v655, 7
      %v657 = vsub.s32 %v654, %v656
      %v658 = vrot.slane %v344, %v657
      %v659 = vcombine.high %v658, %v658
      %v661 = vunpack.c.l.s4 1966171168
      %v662 = vunpack.c.0.s8 %v661
      %v663 = vlaneseq
      %v664 = vshrl.u32 %v663, 7
      %v665 = vsub.s32 %v662, %v664
      %v666 = vrot.slane %v658, %v665
      %v668 = vunpack.c.l.s4 1966171168
      %v669 = vunpack.c.0.s8 %v668
      %v670 = vlaneseq
      %v671 = vshrl.u32 %v670, 7
      %v672 = vsub.s32 %v669, %v671
      %v673 = vrot.slane %v659, %v672
      %v674 = vcombine.high %v666, %v666
      %v675 = vcombine.high %v673, %v673
      %v677 = vunpack.c.l.s4 1966171168
      %v678 = vunpack.c.0.s8 %v677
      %v679 = vlaneseq
      %v680 = vshrl.u32 %v679, 7
      %v681 = vsub.s32 %v678, %v680
      %v682 = vrot.slane %v345, %v681
      %v684 = vunpack.c.l.s4 1966171168
      %v685 = vunpack.c.0.s8 %v684
      %v686 = vlaneseq
      %v687 = vshrl.u32 %v686, 7
      %v688 = vsub.s32 %v685, %v687
      %v689 = vrot.slane %v682, %v688
      %v691 = vunpack.c.l.s4 1966171168
      %v692 = vunpack.c.0.s8 %v691
      %v693 = vlaneseq
      %v694 = vshrl.u32 %v693, 7
      %v695 = vsub.s32 %v692, %v694
      %v696 = vrot.slane %v346, %v695
      %v697 = vcombine.high %v696, %v696
      %v699 = vunpack.c.l.s4 1966171168
      %v700 = vunpack.c.0.s8 %v699
      %v701 = vlaneseq
      %v702 = vshrl.u32 %v701, 7
      %v703 = vsub.s32 %v700, %v702
      %v704 = vrot.slane %v696, %v703
      %v706 = vunpack.c.l.s4 1966171168
      %v707 = vunpack.c.0.s8 %v706
      %v708 = vlaneseq
      %v709 = vshrl.u32 %v708, 7
      %v710 = vsub.s32 %v707, %v709
      %v711 = vrot.slane %v697, %v710
      %v712 = vcombine.high %v704, %v704
      %v713 = vcombine.high %v711, %v711
      %v715 = vunpack.c.l.s4 1966171168
      %v716 = vunpack.c.0.s8 %v715
      %v717 = vlaneseq
      %v718 = vshrl.u32 %v717, 7
      %v719 = vsub.s32 %v716, %v718
      %v720 = vrot.slane %v347, %v719
      %v721 = vcombine.high %v720, %v720
      %v723 = vunpack.c.l.s4 1966171168
      %v724 = vunpack.c.0.s8 %v723
      %v725 = vlaneseq
      %v726 = vshrl.u32 %v725, 7
      %v727 = vsub.s32 %v724, %v726
      %v728 = vrot.slane %v720, %v727
      %v730 = vunpack.c.l.s4 1966171168
      %v731 = vunpack.c.0.s8 %v730
      %v732 = vlaneseq
      %v733 = vshrl.u32 %v732, 7
      %v734 = vsub.s32 %v731, %v733
      %v735 = vrot.slane %v721, %v734
      %v736 = vcombine.high %v728, %v728
      %v737 = vcombine.high %v735, %v735
      %v739 = vunpack.c.l.s4 1966171168
      %v740 = vunpack.c.0.s8 %v739
      %v741 = vlaneseq
      %v742 = vshrl.u32 %v741, 7
      %v743 = vsub.s32 %v740, %v742
      %v744 = vrot.slane %v348, %v743
      %v746 = vunpack.c.l.s4 1966171168
      %v747 = vunpack.c.0.s8 %v746
      %v748 = vlaneseq
      %v749 = vshrl.u32 %v748, 7
      %v750 = vsub.s32 %v747, %v749
      %v751 = vrot.slane %v744, %v750
      %v753 = vunpack.c.l.s4 1966171168
      %v754 = vunpack.c.0.s8 %v753
      %v755 = vlaneseq
      %v756 = vshrl.u32 %v755, 7
      %v757 = vsub.s32 %v754, %v756
      %v758 = vrot.slane %v349, %v757
      %v759 = vcombine.high %v758, %v758
      %v761 = vunpack.c.l.s4 1966171168
      %v762 = vunpack.c.0.s8 %v761
      %v763 = vlaneseq
      %v764 = vshrl.u32 %v763, 7
      %v765 = vsub.s32 %v762, %v764
      %v766 = vrot.slane %v758, %v765
      %v768 = vunpack.c.l.s4 1966171168
      %v769 = vunpack.c.0.s8 %v768
      %v770 = vlaneseq
      %v771 = vshrl.u32 %v770, 7
      %v772 = vsub.s32 %v769, %v771
      %v773 = vrot.slane %v759, %v772
      %v774 = vcombine.high %v766, %v766
      %v775 = vcombine.high %v773, %v773
      %v777 = vunpack.c.l.s4 1966171168
      %v778 = vunpack.c.0.s8 %v777
      %v779 = vlaneseq
      %v780 = vshrl.u32 %v779, 7
      %v781 = vsub.s32 %v778, %v780
      %v782 = vrot.slane %v350, %v781
      %v783 = vcombine.high %v782, %v782
      %v785 = vunpack.c.l.s4 1966171168
      %v786 = vunpack.c.0.s8 %v785
      %v787 = vlaneseq
      %v788 = vshrl.u32 %v787, 7
      %v789 = vsub.s32 %v786, %v788
      %v790 = vrot.slane %v782, %v789
      %v792 = vunpack.c.l.s4 1966171168
      %v793 = vunpack.c.0.s8 %v792
      %v794 = vlaneseq
      %v795 = vshrl.u32 %v794, 7
      %v796 = vsub.s32 %v793, %v795
      %v797 = vrot.slane %v783, %v796
      %v798 = vcombine.high %v790, %v790
      %v799 = vcombine.high %v797, %v797
      %v801 = vunpack.c.l.s4 1966171168
      %v802 = vunpack.c.0.s8 %v801
      %v803 = vlaneseq
      %v804 = vshrl.u32 %v803, 7
      %v805 = vsub.s32 %v802, %v804
      %v806 = vrot.slane %v351, %v805
      %v808 = vunpack.c.l.s4 1966171168
      %v809 = vunpack.c.0.s8 %v808
      %v810 = vlaneseq
      %v811 = vshrl.u32 %v810, 7
      %v812 = vsub.s32 %v809, %v811
      %v813 = vrot.slane %v806, %v812
      %v815 = vunpack.c.l.s4 1966171168
      %v816 = vunpack.c.0.s8 %v815
      %v817 = vlaneseq
      %v818 = vshrl.u32 %v817, 7
      %v819 = vsub.s32 %v816, %v818
      %v820 = vrot.slane %v352, %v819
      %v821 = vcombine.high %v820, %v820
      %v823 = vunpack.c.l.s4 1966171168
      %v824 = vunpack.c.0.s8 %v823
      %v825 = vlaneseq
      %v826 = vshrl.u32 %v825, 7
      %v827 = vsub.s32 %v824, %v826
      %v828 = vrot.slane %v820, %v827
      %v830 = vunpack.c.l.s4 1966171168
      %v831 = vunpack.c.0.s8 %v830
      %v832 = vlaneseq
      %v833 = vshrl.u32 %v832, 7
      %v834 = vsub.s32 %v831, %v833
      %v835 = vrot.slane %v821, %v834
      %v836 = vcombine.high %v828, %v828
      %v837 = vcombine.high %v835, %v835
      %v839 = vunpack.c.l.s4 1966171168
      %v840 = vunpack.c.0.s8 %v839
      %v841 = vlaneseq
      %v842 = vshrl.u32 %v841, 7
      %v843 = vsub.s32 %v840, %v842
      %v844 = vrot.slane %v353, %v843
      %v845 = vcombine.high %v844, %v844
      %v847 = vunpack.c.l.s4 1966171168
      %v848 = vunpack.c.0.s8 %v847
      %v849 = vlaneseq
      %v850 = vshrl.u32 %v849, 7
      %v851 = vsub.s32 %v848, %v850
      %v852 = vrot.slane %v844, %v851
      %v854 = vunpack.c.l.s4 1966171168
      %v855 = vunpack.c.0.s8 %v854
      %v856 = vlaneseq
      %v857 = vshrl.u32 %v856, 7
      %v858 = vsub.s32 %v855, %v857
      %v859 = vrot.slane %v845, %v858
      %v860 = vcombine.high %v852, %v852
      %v861 = vcombine.high %v859, %v859
      %v863 = vunpack.c.l.s4 1966171168
      %v864 = vunpack.c.0.s8 %v863
      %v865 = vlaneseq
      %v866 = vshrl.u32 %v865, 7
      %v867 = vsub.s32 %v864, %v866
      %v868 = vrot.slane %v354, %v867
      %v870 = vunpack.c.l.s4 1966171168
      %v871 = vunpack.c.0.s8 %v870
      %v872 = vlaneseq
      %v873 = vshrl.u32 %v872, 7
      %v874 = vsub.s32 %v871, %v873
      %v875 = vrot.slane %v868, %v874
      %v877 = vunpack.c.l.s4 1966171168
      %v878 = vunpack.c.0.s8 %v877
      %v879 = vlaneseq
      %v880 = vshrl.u32 %v879, 7
      %v881 = vsub.s32 %v878, %v880
      %v882 = vrot.slane %v355, %v881
      %v883 = vcombine.high %v882, %v882
      %v885 = vunpack.c.l.s4 1966171168
      %v886 = vunpack.c.0.s8 %v885
      %v887 = vlaneseq
      %v888 = vshrl.u32 %v887, 7
      %v889 = vsub.s32 %v886, %v888
      %v890 = vrot.slane %v882, %v889
      %v892 = vunpack.c.l.s4 1966171168
      %v893 = vunpack.c.0.s8 %v892
      %v894 = vlaneseq
      %v895 = vshrl.u32 %v894, 7
      %v896 = vsub.s32 %v893, %v895
      %v897 = vrot.slane %v883, %v896
      %v898 = vcombine.high %v890, %v890
      %v899 = vcombine.high %v897, %v897
      %v901 = vunpack.c.l.s4 1966171168
      %v902 = vunpack.c.0.s8 %v901
      %v903 = vlaneseq
      %v904 = vshrl.u32 %v903, 7
      %v905 = vsub.s32 %v902, %v904
      %v906 = vrot.slane %v356, %v905
      %v907 = vcombine.high %v906, %v906
      %v909 = vunpack.c.l.s4 1966171168
      %v910 = vunpack.c.0.s8 %v909
      %v911 = vlaneseq
      %v912 = vshrl.u32 %v911, 7
      %v913 = vsub.s32 %v910, %v912
      %v914 = vrot.slane %v906, %v913
      %v916 = vunpack.c.l.s4 1966171168
      %v917 = vunpack.c.0.s8 %v916
      %v918 = vlaneseq
      %v919 = vshrl.u32 %v918, 7
      %v920 = vsub.s32 %v917, %v919
      %v921 = vrot.slane %v907, %v920
      %v922 = vcombine.high %v914, %v914
      %v923 = vcombine.high %v921, %v921
      %v925 = vunpack.c.l.s4 1966171168
      %v926 = vunpack.c.0.s8 %v925
      %v927 = vlaneseq
      %v928 = vshrl.u32 %v927, 7
      %v929 = vsub.s32 %v926, %v928
      %v930 = vrot.slane %v357, %v929
      %v932 = vunpack.c.l.s4 1966171168
      %v933 = vunpack.c.0.s8 %v932
      %v934 = vlaneseq
      %v935 = vshrl.u32 %v934, 7
      %v936 = vsub.s32 %v933, %v935
      %v937 = vrot.slane %v930, %v936
      %v939 = vunpack.c.l.s4 1966171168
      %v940 = vunpack.c.0.s8 %v939
      %v941 = vlaneseq
      %v942 = vshrl.u32 %v941, 7
      %v943 = vsub.s32 %v940, %v942
      %v944 = vrot.slane %v358, %v943
      %v945 = vcombine.high %v944, %v944
      %v947 = vunpack.c.l.s4 1966171168
      %v948 = vunpack.c.0.s8 %v947
      %v949 = vlaneseq
      %v950 = vshrl.u32 %v949, 7
      %v951 = vsub.s32 %v948, %v950
      %v952 = vrot.slane %v944, %v951
      %v954 = vunpack.c.l.s4 1966171168
      %v955 = vunpack.c.0.s8 %v954
      %v956 = vlaneseq
      %v957 = vshrl.u32 %v956, 7
      %v958 = vsub.s32 %v955, %v957
      %v959 = vrot.slane %v945, %v958
      %v960 = vcombine.high %v952, %v952
      %v961 = vcombine.high %v959, %v959
      %v963 = vunpack.c.l.s4 1966171168
      %v964 = vunpack.c.0.s8 %v963
      %v965 = vlaneseq
      %v966 = vshrl.u32 %v965, 7
      %v967 = vsub.s32 %v964, %v966
      %v968 = vrot.slane %v359, %v967
      %v969 = vcombine.high %v968, %v968
      %v971 = vunpack.c.l.s4 1966171168
      %v972 = vunpack.c.0.s8 %v971
      %v973 = vlaneseq
      %v974 = vshrl.u32 %v973, 7
      %v975 = vsub.s32 %v972, %v974
      %v976 = vrot.slane %v968, %v975
      %v978 = vunpack.c.l.s4 1966171168
      %v979 = vunpack.c.0.s8 %v978
      %v980 = vlaneseq
      %v981 = vshrl.u32 %v980, 7
      %v982 = vsub.s32 %v979, %v981
      %v983 = vrot.slane %v969, %v982
      %v984 = vcombine.high %v976, %v976
      %v985 = vcombine.high %v983, %v983
      %v987 = vunpack.c.l.s4 1966171168
      %v988 = vunpack.c.0.s8 %v987
      %v989 = vlaneseq
      %v990 = vshrl.u32 %v989, 7
      %v991 = vsub.s32 %v988, %v990
      %v992 = vrot.slane %v360, %v991
      %v994 = vunpack.c.l.s4 1966171168
      %v995 = vunpack.c.0.s8 %v994
      %v996 = vlaneseq
      %v997 = vshrl.u32 %v996, 7
      %v998 = vsub.s32 %v995, %v997
      %v999 = vrot.slane %v992, %v998
      %v1001 = vunpack.c.l.s4 1966171168
      %v1002 = vunpack.c.0.s8 %v1001
      %v1003 = vlaneseq
      %v1004 = vshrl.u32 %v1003, 7
      %v1005 = vsub.s32 %v1002, %v1004
      %v1006 = vrot.slane %v361, %v1005
      %v1007 = vcombine.high %v1006, %v1006
      %v1009 = vunpack.c.l.s4 1966171168
      %v1010 = vunpack.c.0.s8 %v1009
      %v1011 = vlaneseq
      %v1012 = vshrl.u32 %v1011, 7
      %v1013 = vsub.s32 %v1010, %v1012
      %v1014 = vrot.slane %v1006, %v1013
      %v1016 = vunpack.c.l.s4 1966171168
      %v1017 = vunpack.c.0.s8 %v1016
      %v1018 = vlaneseq
      %v1019 = vshrl.u32 %v1018, 7
      %v1020 = vsub.s32 %v1017, %v1019
      %v1021 = vrot.slane %v1007, %v1020
      %v1022 = vcombine.high %v1014, %v1014
      %v1023 = vcombine.high %v1021, %v1021
      %v1025 = vunpack.c.l.s4 1966171168
      %v1026 = vunpack.c.0.s8 %v1025
      %v1027 = vlaneseq
      %v1028 = vshrl.u32 %v1027, 7
      %v1029 = vsub.s32 %v1026, %v1028
      %v1030 = vrot.slane %v362, %v1029
      %v1031 = vcombine.high %v1030, %v1030
      %v1033 = vunpack.c.l.s4 1966171168
      %v1034 = vunpack.c.0.s8 %v1033
      %v1035 = vlaneseq
      %v1036 = vshrl.u32 %v1035, 7
      %v1037 = vsub.s32 %v1034, %v1036
      %v1038 = vrot.slane %v1030, %v1037
      %v1040 = vunpack.c.l.s4 1966171168
      %v1041 = vunpack.c.0.s8 %v1040
      %v1042 = vlaneseq
      %v1043 = vshrl.u32 %v1042, 7
      %v1044 = vsub.s32 %v1041, %v1043
      %v1045 = vrot.slane %v1031, %v1044
      %v1046 = vcombine.high %v1038, %v1038
      %v1047 = vcombine.high %v1045, %v1045
      %v1049 = vunpack.c.l.s4 1966171168
      %v1050 = vunpack.c.0.s8 %v1049
      %v1051 = vlaneseq
      %v1052 = vshrl.u32 %v1051, 7
      %v1053 = vsub.s32 %v1050, %v1052
      %v1054 = vrot.slane %v363, %v1053
      %v1056 = vunpack.c.l.s4 1966171168
      %v1057 = vunpack.c.0.s8 %v1056
      %v1058 = vlaneseq
      %v1059 = vshrl.u32 %v1058, 7
      %v1060 = vsub.s32 %v1057, %v1059
      %v1061 = vrot.slane %v1054, %v1060
      %v1063 = vunpack.c.l.s4 1966171168
      %v1064 = vunpack.c.0.s8 %v1063
      %v1065 = vlaneseq
      %v1066 = vshrl.u32 %v1065, 7
      %v1067 = vsub.s32 %v1064, %v1066
      %v1068 = vrot.slane %v364, %v1067
      %v1069 = vcombine.high %v1068, %v1068
      %v1071 = vunpack.c.l.s4 1966171168
      %v1072 = vunpack.c.0.s8 %v1071
      %v1073 = vlaneseq
      %v1074 = vshrl.u32 %v1073, 7
      %v1075 = vsub.s32 %v1072, %v1074
      %v1076 = vrot.slane %v1068, %v1075
      %v1078 = vunpack.c.l.s4 1966171168
      %v1079 = vunpack.c.0.s8 %v1078
      %v1080 = vlaneseq
      %v1081 = vshrl.u32 %v1080, 7
      %v1082 = vsub.s32 %v1079, %v1081
      %v1083 = vrot.slane %v1069, %v1082
      %v1084 = vcombine.high %v1076, %v1076
      %v1085 = vcombine.high %v1083, %v1083
      %v1087 = vunpack.c.l.s4 1966171168
      %v1088 = vunpack.c.0.s8 %v1087
      %v1089 = vlaneseq
      %v1090 = vshrl.u32 %v1089, 7
      %v1091 = vsub.s32 %v1088, %v1090
      %v1092 = vrot.slane %v365, %v1091
      %v1093 = vcombine.high %v1092, %v1092
      %v1095 = vunpack.c.l.s4 1966171168
      %v1096 = vunpack.c.0.s8 %v1095
      %v1097 = vlaneseq
      %v1098 = vshrl.u32 %v1097, 7
      %v1099 = vsub.s32 %v1096, %v1098
      %v1100 = vrot.slane %v1092, %v1099
      %v1102 = vunpack.c.l.s4 1966171168
      %v1103 = vunpack.c.0.s8 %v1102
      %v1104 = vlaneseq
      %v1105 = vshrl.u32 %v1104, 7
      %v1106 = vsub.s32 %v1103, %v1105
      %v1107 = vrot.slane %v1093, %v1106
      %v1108 = vcombine.high %v1100, %v1100
      %v1109 = vcombine.high %v1107, %v1107
      %v1111 = vunpack.c.l.s4 1966171168
      %v1112 = vunpack.c.0.s8 %v1111
      %v1113 = vlaneseq
      %v1114 = vshrl.u32 %v1113, 7
      %v1115 = vsub.s32 %v1112, %v1114
      %v1116 = vrot.slane %v366, %v1115
      %v1118 = vunpack.c.l.s4 1966171168
      %v1119 = vunpack.c.0.s8 %v1118
      %v1120 = vlaneseq
      %v1121 = vshrl.u32 %v1120, 7
      %v1122 = vsub.s32 %v1119, %v1121
      %v1123 = vrot.slane %v1116, %v1122
      %v1125 = vunpack.c.l.s4 1966171168
      %v1126 = vunpack.c.0.s8 %v1125
      %v1127 = vlaneseq
      %v1128 = vshrl.u32 %v1127, 7
      %v1129 = vsub.s32 %v1126, %v1128
      %v1130 = vrot.slane %v367, %v1129
      %v1131 = vcombine.high %v1130, %v1130
      %v1133 = vunpack.c.l.s4 1966171168
      %v1134 = vunpack.c.0.s8 %v1133
      %v1135 = vlaneseq
      %v1136 = vshrl.u32 %v1135, 7
      %v1137 = vsub.s32 %v1134, %v1136
      %v1138 = vrot.slane %v1130, %v1137
      %v1140 = vunpack.c.l.s4 1966171168
      %v1141 = vunpack.c.0.s8 %v1140
      %v1142 = vlaneseq
      %v1143 = vshrl.u32 %v1142, 7
      %v1144 = vsub.s32 %v1141, %v1143
      %v1145 = vrot.slane %v1131, %v1144
      %v1146 = vcombine.high %v1138, %v1138
      %v1147 = vcombine.high %v1145, %v1145
      %v1149 = vunpack.c.l.s4 1966171168
      %v1150 = vunpack.c.0.s8 %v1149
      %v1151 = vlaneseq
      %v1152 = vshrl.u32 %v1151, 7
      %v1153 = vsub.s32 %v1150, %v1152
      %v1154 = vrot.slane %v368, %v1153
      %v1155 = vcombine.high %v1154, %v1154
      %v1157 = vunpack.c.l.s4 1966171168
      %v1158 = vunpack.c.0.s8 %v1157
      %v1159 = vlaneseq
      %v1160 = vshrl.u32 %v1159, 7
      %v1161 = vsub.s32 %v1158, %v1160
      %v1162 = vrot.slane %v1154, %v1161
      %v1164 = vunpack.c.l.s4 1966171168
      %v1165 = vunpack.c.0.s8 %v1164
      %v1166 = vlaneseq
      %v1167 = vshrl.u32 %v1166, 7
      %v1168 = vsub.s32 %v1165, %v1167
      %v1169 = vrot.slane %v1155, %v1168
      %v1170 = vcombine.high %v1162, %v1162
      %v1171 = vcombine.high %v1169, %v1169
      %v1173 = vunpack.c.l.s4 1966171168
      %v1174 = vunpack.c.0.s8 %v1173
      %v1175 = vlaneseq
      %v1176 = vshrl.u32 %v1175, 7
      %v1177 = vsub.s32 %v1174, %v1176
      %v1178 = vrot.slane %v369, %v1177
      %v1180 = vunpack.c.l.s4 1966171168
      %v1181 = vunpack.c.0.s8 %v1180
      %v1182 = vlaneseq
      %v1183 = vshrl.u32 %v1182, 7
      %v1184 = vsub.s32 %v1181, %v1183
      %v1185 = vrot.slane %v1178, %v1184
      %v1187 = vunpack.c.l.s4 1966171168
      %v1188 = vunpack.c.0.s8 %v1187
      %v1189 = vlaneseq
      %v1190 = vshrl.u32 %v1189, 7
      %v1191 = vsub.s32 %v1188, %v1190
      %v1192 = vrot.slane %v370, %v1191
      %v1193 = vcombine.high %v1192, %v1192
      %v1195 = vunpack.c.l.s4 1966171168
      %v1196 = vunpack.c.0.s8 %v1195
      %v1197 = vlaneseq
      %v1198 = vshrl.u32 %v1197, 7
      %v1199 = vsub.s32 %v1196, %v1198
      %v1200 = vrot.slane %v1192, %v1199
      %v1202 = vunpack.c.l.s4 1966171168
      %v1203 = vunpack.c.0.s8 %v1202
      %v1204 = vlaneseq
      %v1205 = vshrl.u32 %v1204, 7
      %v1206 = vsub.s32 %v1203, %v1205
      %v1207 = vrot.slane %v1193, %v1206
      %v1208 = vcombine.high %v1200, %v1200
      %v1209 = vcombine.high %v1207, %v1207
      %v1211 = vunpack.c.l.s4 1966171168
      %v1212 = vunpack.c.0.s8 %v1211
      %v1213 = vlaneseq
      %v1214 = vshrl.u32 %v1213, 7
      %v1215 = vsub.s32 %v1212, %v1214
      %v1216 = vrot.slane %v371, %v1215
      %v1217 = vcombine.high %v1216, %v1216
      %v1219 = vunpack.c.l.s4 1966171168
      %v1220 = vunpack.c.0.s8 %v1219
      %v1221 = vlaneseq
      %v1222 = vshrl.u32 %v1221, 7
      %v1223 = vsub.s32 %v1220, %v1222
      %v1224 = vrot.slane %v1216, %v1223
      %v1226 = vunpack.c.l.s4 1966171168
      %v1227 = vunpack.c.0.s8 %v1226
      %v1228 = vlaneseq
      %v1229 = vshrl.u32 %v1228, 7
      %v1230 = vsub.s32 %v1227, %v1229
      %v1231 = vrot.slane %v1217, %v1230
      %v1232 = vcombine.high %v1224, %v1224
      %v1233 = vcombine.high %v1231, %v1231
      %v1235 = vunpack.c.l.s4 1966171168
      %v1236 = vunpack.c.0.s8 %v1235
      %v1237 = vlaneseq
      %v1238 = vshrl.u32 %v1237, 7
      %v1239 = vsub.s32 %v1236, %v1238
      %v1240 = vrot.slane %v372, %v1239
      %v1242 = vunpack.c.l.s4 1966171168
      %v1243 = vunpack.c.0.s8 %v1242
      %v1244 = vlaneseq
      %v1245 = vshrl.u32 %v1244, 7
      %v1246 = vsub.s32 %v1243, %v1245
      %v1247 = vrot.slane %v1240, %v1246
      %v1249 = vunpack.c.l.s4 1966171168
      %v1250 = vunpack.c.0.s8 %v1249
      %v1251 = vlaneseq
      %v1252 = vshrl.u32 %v1251, 7
      %v1253 = vsub.s32 %v1250, %v1252
      %v1254 = vrot.slane %v373, %v1253
      %v1255 = vcombine.high %v1254, %v1254
      %v1257 = vunpack.c.l.s4 1966171168
      %v1258 = vunpack.c.0.s8 %v1257
      %v1259 = vlaneseq
      %v1260 = vshrl.u32 %v1259, 7
      %v1261 = vsub.s32 %v1258, %v1260
      %v1262 = vrot.slane %v1254, %v1261
      %v1264 = vunpack.c.l.s4 1966171168
      %v1265 = vunpack.c.0.s8 %v1264
      %v1266 = vlaneseq
      %v1267 = vshrl.u32 %v1266, 7
      %v1268 = vsub.s32 %v1265, %v1267
      %v1269 = vrot.slane %v1255, %v1268
      %v1270 = vcombine.high %v1262, %v1262
      %v1271 = vcombine.high %v1269, %v1269
      %v1273 = vunpack.c.l.s4 1966171168
      %v1274 = vunpack.c.0.s8 %v1273
      %v1275 = vlaneseq
      %v1276 = vshrl.u32 %v1275, 7
      %v1277 = vsub.s32 %v1274, %v1276
      %v1278 = vrot.slane %v374, %v1277
      %v1279 = vcombine.high %v1278, %v1278
      %v1281 = vunpack.c.l.s4 1966171168
      %v1282 = vunpack.c.0.s8 %v1281
      %v1283 = vlaneseq
      %v1284 = vshrl.u32 %v1283, 7
      %v1285 = vsub.s32 %v1282, %v1284
      %v1286 = vrot.slane %v1278, %v1285
      %v1288 = vunpack.c.l.s4 1966171168
      %v1289 = vunpack.c.0.s8 %v1288
      %v1290 = vlaneseq
      %v1291 = vshrl.u32 %v1290, 7
      %v1292 = vsub.s32 %v1289, %v1291
      %v1293 = vrot.slane %v1279, %v1292
      %v1294 = vcombine.high %v1286, %v1286
      %v1295 = vcombine.high %v1293, %v1293
      %v1297 = vunpack.c.l.s4 1966171168
      %v1298 = vunpack.c.0.s8 %v1297
      %v1299 = vlaneseq
      %v1300 = vshrl.u32 %v1299, 7
      %v1301 = vsub.s32 %v1298, %v1300
      %v1302 = vrot.slane %v375, %v1301
      %v1304 = vunpack.c.l.s4 1966171168
      %v1305 = vunpack.c.0.s8 %v1304
      %v1306 = vlaneseq
      %v1307 = vshrl.u32 %v1306, 7
      %v1308 = vsub.s32 %v1305, %v1307
      %v1309 = vrot.slane %v1302, %v1308
      %v1311 = vunpack.c.l.s4 1966171168
      %v1312 = vunpack.c.0.s8 %v1311
      %v1313 = vlaneseq
      %v1314 = vshrl.u32 %v1313, 7
      %v1315 = vsub.s32 %v1312, %v1314
      %v1316 = vrot.slane %v376, %v1315
      %v1317 = vcombine.high %v1316, %v1316
      %v1319 = vunpack.c.l.s4 1966171168
      %v1320 = vunpack.c.0.s8 %v1319
      %v1321 = vlaneseq
      %v1322 = vshrl.u32 %v1321, 7
      %v1323 = vsub.s32 %v1320, %v1322
      %v1324 = vrot.slane %v1316, %v1323
      %v1326 = vunpack.c.l.s4 1966171168
      %v1327 = vunpack.c.0.s8 %v1326
      %v1328 = vlaneseq
      %v1329 = vshrl.u32 %v1328, 7
      %v1330 = vsub.s32 %v1327, %v1329
      %v1331 = vrot.slane %v1317, %v1330
      %v1332 = vcombine.high %v1324, %v1324
      %v1333 = vcombine.high %v1331, %v1331
      %v1335 = vunpack.c.l.s4 1966171168
      %v1336 = vunpack.c.0.s8 %v1335
      %v1337 = vlaneseq
      %v1338 = vshrl.u32 %v1337, 7
      %v1339 = vsub.s32 %v1336, %v1338
      %v1340 = vrot.slane %v377, %v1339
      %v1341 = vcombine.high %v1340, %v1340
      %v1343 = vunpack.c.l.s4 1966171168
      %v1344 = vunpack.c.0.s8 %v1343
      %v1345 = vlaneseq
      %v1346 = vshrl.u32 %v1345, 7
      %v1347 = vsub.s32 %v1344, %v1346
      %v1348 = vrot.slane %v1340, %v1347
      %v1350 = vunpack.c.l.s4 1966171168
      %v1351 = vunpack.c.0.s8 %v1350
      %v1352 = vlaneseq
      %v1353 = vshrl.u32 %v1352, 7
      %v1354 = vsub.s32 %v1351, %v1353
      %v1355 = vrot.slane %v1341, %v1354
      %v1356 = vcombine.high %v1348, %v1348
      %v1357 = vcombine.high %v1355, %v1355
      %v1359 = vunpack.c.l.s4 1966171168
      %v1360 = vunpack.c.0.s8 %v1359
      %v1361 = vlaneseq
      %v1362 = vshrl.u32 %v1361, 7
      %v1363 = vsub.s32 %v1360, %v1362
      %v1364 = vrot.slane %v378, %v1363
      %v1366 = vunpack.c.l.s4 1966171168
      %v1367 = vunpack.c.0.s8 %v1366
      %v1368 = vlaneseq
      %v1369 = vshrl.u32 %v1368, 7
      %v1370 = vsub.s32 %v1367, %v1369
      %v1371 = vrot.slane %v1364, %v1370
      %v1373 = vunpack.c.l.s4 1966171168
      %v1374 = vunpack.c.0.s8 %v1373
      %v1375 = vlaneseq
      %v1376 = vshrl.u32 %v1375, 7
      %v1377 = vsub.s32 %v1374, %v1376
      %v1378 = vrot.slane %v379, %v1377
      %v1379 = vcombine.high %v1378, %v1378
      %v1381 = vunpack.c.l.s4 1966171168
      %v1382 = vunpack.c.0.s8 %v1381
      %v1383 = vlaneseq
      %v1384 = vshrl.u32 %v1383, 7
      %v1385 = vsub.s32 %v1382, %v1384
      %v1386 = vrot.slane %v1378, %v1385
      %v1388 = vunpack.c.l.s4 1966171168
      %v1389 = vunpack.c.0.s8 %v1388
      %v1390 = vlaneseq
      %v1391 = vshrl.u32 %v1390, 7
      %v1392 = vsub.s32 %v1389, %v1391
      %v1393 = vrot.slane %v1379, %v1392
      %v1394 = vcombine.high %v1386, %v1386
      %v1395 = vcombine.high %v1393, %v1393
      %v1397 = vunpack.c.l.s4 1966171168
      %v1398 = vunpack.c.0.s8 %v1397
      %v1399 = vlaneseq
      %v1400 = vshrl.u32 %v1399, 7
      %v1401 = vsub.s32 %v1398, %v1400
      %v1402 = vrot.slane %v380, %v1401
      %v1403 = vcombine.high %v1402, %v1402
      %v1405 = vunpack.c.l.s4 1966171168
      %v1406 = vunpack.c.0.s8 %v1405
      %v1407 = vlaneseq
      %v1408 = vshrl.u32 %v1407, 7
      %v1409 = vsub.s32 %v1406, %v1408
      %v1410 = vrot.slane %v1402, %v1409
      %v1412 = vunpack.c.l.s4 1966171168
      %v1413 = vunpack.c.0.s8 %v1412
      %v1414 = vlaneseq
      %v1415 = vshrl.u32 %v1414, 7
      %v1416 = vsub.s32 %v1413, %v1415
      %v1417 = vrot.slane %v1403, %v1416
      %v1418 = vcombine.high %v1410, %v1410
      %v1419 = vcombine.high %v1417, %v1417
      %v1421 = vunpack.c.l.s4 1966171168
      %v1422 = vunpack.c.0.s8 %v1421
      %v1423 = vlaneseq
      %v1424 = vshrl.u32 %v1423, 7
      %v1425 = vsub.s32 %v1422, %v1424
      %v1426 = vrot.slane %v381, %v1425
      %v1428 = vunpack.c.l.s4 1966171168
      %v1429 = vunpack.c.0.s8 %v1428
      %v1430 = vlaneseq
      %v1431 = vshrl.u32 %v1430, 7
      %v1432 = vsub.s32 %v1429, %v1431
      %v1433 = vrot.slane %v1426, %v1432
      %v1435 = vunpack.c.l.s4 1966171168
      %v1436 = vunpack.c.0.s8 %v1435
      %v1437 = vlaneseq
      %v1438 = vshrl.u32 %v1437, 7
      %v1439 = vsub.s32 %v1436, %v1438
      %v1440 = vrot.slane %v382, %v1439
      %v1441 = vcombine.high %v1440, %v1440
      %v1443 = vunpack.c.l.s4 1966171168
      %v1444 = vunpack.c.0.s8 %v1443
      %v1445 = vlaneseq
      %v1446 = vshrl.u32 %v1445, 7
      %v1447 = vsub.s32 %v1444, %v1446
      %v1448 = vrot.slane %v1440, %v1447
      %v1450 = vunpack.c.l.s4 1966171168
      %v1451 = vunpack.c.0.s8 %v1450
      %v1452 = vlaneseq
      %v1453 = vshrl.u32 %v1452, 7
      %v1454 = vsub.s32 %v1451, %v1453
      %v1455 = vrot.slane %v1441, %v1454
      %v1456 = vcombine.high %v1448, %v1448
      %v1457 = vcombine.high %v1455, %v1455
      %v1459 = vunpack.c.l.s4 1966171168
      %v1460 = vunpack.c.0.s8 %v1459
      %v1461 = vlaneseq
      %v1462 = vshrl.u32 %v1461, 7
      %v1463 = vsub.s32 %v1460, %v1462
      %v1464 = vrot.slane %v383, %v1463
      %v1465 = vcombine.high %v1464, %v1464
      %v1467 = vunpack.c.l.s4 1966171168
      %v1468 = vunpack.c.0.s8 %v1467
      %v1469 = vlaneseq
      %v1470 = vshrl.u32 %v1469, 7
      %v1471 = vsub.s32 %v1468, %v1470
      %v1472 = vrot.slane %v1464, %v1471
      %v1474 = vunpack.c.l.s4 1966171168
      %v1475 = vunpack.c.0.s8 %v1474
      %v1476 = vlaneseq
      %v1477 = vshrl.u32 %v1476, 7
      %v1478 = vsub.s32 %v1475, %v1477
      %v1479 = vrot.slane %v1465, %v1478
      %v1480 = vcombine.high %v1472, %v1472
      %v1481 = vcombine.high %v1479, %v1479
      %v1483 = vunpack.c.l.s4 1966171168
      %v1484 = vunpack.c.0.s8 %v1483
      %v1485 = vlaneseq
      %v1486 = vshrl.u32 %v1485, 7
      %v1487 = vsub.s32 %v1484, %v1486
      %v1488 = vrot.slane %v384, %v1487
      %v1490 = vunpack.c.l.s4 1966171168
      %v1491 = vunpack.c.0.s8 %v1490
      %v1492 = vlaneseq
      %v1493 = vshrl.u32 %v1492, 7
      %v1494 = vsub.s32 %v1491, %v1493
      %v1495 = vrot.slane %v1488, %v1494
      %v1497 = vunpack.c.l.s4 1966171168
      %v1498 = vunpack.c.0.s8 %v1497
      %v1499 = vlaneseq
      %v1500 = vshrl.u32 %v1499, 7
      %v1501 = vsub.s32 %v1498, %v1500
      %v1502 = vrot.slane %v385, %v1501
      %v1503 = vcombine.high %v1502, %v1502
      %v1505 = vunpack.c.l.s4 1966171168
      %v1506 = vunpack.c.0.s8 %v1505
      %v1507 = vlaneseq
      %v1508 = vshrl.u32 %v1507, 7
      %v1509 = vsub.s32 %v1506, %v1508
      %v1510 = vrot.slane %v1502, %v1509
      %v1512 = vunpack.c.l.s4 1966171168
      %v1513 = vunpack.c.0.s8 %v1512
      %v1514 = vlaneseq
      %v1515 = vshrl.u32 %v1514, 7
      %v1516 = vsub.s32 %v1513, %v1515
      %v1517 = vrot.slane %v1503, %v1516
      %v1518 = vcombine.high %v1510, %v1510
      %v1519 = vcombine.high %v1517, %v1517
      %v1521 = vunpack.c.l.s4 1966171168
      %v1522 = vunpack.c.0.s8 %v1521
      %v1523 = vlaneseq
      %v1524 = vshrl.u32 %v1523, 7
      %v1525 = vsub.s32 %v1522, %v1524
      %v1526 = vrot.slane %v386, %v1525
      %v1527 = vcombine.high %v1526, %v1526
      %v1529 = vunpack.c.l.s4 1966171168
      %v1530 = vunpack.c.0.s8 %v1529
      %v1531 = vlaneseq
      %v1532 = vshrl.u32 %v1531, 7
      %v1533 = vsub.s32 %v1530, %v1532
      %v1534 = vrot.slane %v1526, %v1533
      %v1536 = vunpack.c.l.s4 1966171168
      %v1537 = vunpack.c.0.s8 %v1536
      %v1538 = vlaneseq
      %v1539 = vshrl.u32 %v1538, 7
      %v1540 = vsub.s32 %v1537, %v1539
      %v1541 = vrot.slane %v1527, %v1540
      %v1542 = vcombine.high %v1534, %v1534
      %v1543 = vcombine.high %v1541, %v1541
      %v1545 = vunpack.c.l.s4 1966171168
      %v1546 = vunpack.c.0.s8 %v1545
      %v1547 = vlaneseq
      %v1548 = vshrl.u32 %v1547, 7
      %v1549 = vsub.s32 %v1546, %v1548
      %v1550 = vrot.slane %v387, %v1549
      %v1552 = vunpack.c.l.s4 1966171168
      %v1553 = vunpack.c.0.s8 %v1552
      %v1554 = vlaneseq
      %v1555 = vshrl.u32 %v1554, 7
      %v1556 = vsub.s32 %v1553, %v1555
      %v1557 = vrot.slane %v1550, %v1556
      %v1558 = vld [vmem:[%s1] sm:$0xf]
      %v1559 = vld [vmem:[%s1 + $0x4] sm:$0xf]
      %v1560 = vld [vmem:[%s2] sm:$0x1]
      %v1562 = vlaneseq
      %v1563 = vshrl.u32 %v1562, 7
      %v1564 = vsub.s32 0, %v1563
      %v1565 = vrot.slane %v1560, %v1564
      %v1567 = vcombine.low %v456, %v463
      %v1568 = vcombine.low %v464, %v465
      %v1569 = vcombine.low %v480, %v487
      %v1570 = vcombine.low %v488, %v489
      %v1572 = vunpack.c.l.s4 1966171168
      %v1573 = vunpack.c.0.s8 %v1572
      %v1574 = vlaneseq
      %v1575 = vshrl.u32 %v1574, 7
      %v1576 = vsub.s32 %v1573, %v1575
      %v1577 = vrot.slane %v1567, %v1576
      %v1579 = vunpack.c.l.s4 1966171168
      %v1580 = vunpack.c.0.s8 %v1579
      %v1581 = vlaneseq
      %v1582 = vshrl.u32 %v1581, 7
      %v1583 = vsub.s32 %v1580, %v1582
      %v1584 = vrot.slane %v1568, %v1583
      %v1586 = vunpack.c.l.s4 1966171168
      %v1587 = vunpack.c.0.s8 %v1586
      %v1588 = vlaneseq
      %v1589 = vshrl.u32 %v1588, 7
      %v1590 = vsub.s32 %v1587, %v1589
      %v1591 = vrot.slane %v1569, %v1590
      %v1593 = vunpack.c.l.s4 1966171168
      %v1594 = vunpack.c.0.s8 %v1593
      %v1595 = vlaneseq
      %v1596 = vshrl.u32 %v1595, 7
      %v1597 = vsub.s32 %v1594, %v1596
      %v1598 = vrot.slane %v1570, %v1597
      %v1599 = vcombine.low %v1577, %v1584
      %v1600 = vcombine.low %v1591, %v1598
      %v1602 = vunpack.c.l.s4 1966171168
      %v1603 = vunpack.c.0.s8 %v1602
      %v1604 = vlaneseq
      %v1605 = vshrl.u32 %v1604, 7
      %v1606 = vsub.s32 %v1603, %v1605
      %v1607 = vrot.slane %v1599, %v1606
      %v1609 = vunpack.c.l.s4 1966171168
      %v1610 = vunpack.c.0.s8 %v1609
      %v1611 = vlaneseq
      %v1612 = vshrl.u32 %v1611, 7
      %v1613 = vsub.s32 %v1610, %v1612
      %v1614 = vrot.slane %v1600, %v1613
      %v1615 = vcombine.low %v1607, %v1614
      %v1616 = vcombine.low %v503, %v518
      %v1617 = vcombine.low %v525, %v526
      %v1618 = vcombine.low %v527, %v542
      %v1619 = vcombine.low %v549, %v550
      %v1621 = vunpack.c.l.s4 1966171168
      %v1622 = vunpack.c.0.s8 %v1621
      %v1623 = vlaneseq
      %v1624 = vshrl.u32 %v1623, 7
      %v1625 = vsub.s32 %v1622, %v1624
      %v1626 = vrot.slane %v1616, %v1625
      %v1628 = vunpack.c.l.s4 1966171168
      %v1629 = vunpack.c.0.s8 %v1628
      %v1630 = vlaneseq
      %v1631 = vshrl.u32 %v1630, 7
      %v1632 = vsub.s32 %v1629, %v1631
      %v1633 = vrot.slane %v1617, %v1632
      %v1635 = vunpack.c.l.s4 1966171168
      %v1636 = vunpack.c.0.s8 %v1635
      %v1637 = vlaneseq
      %v1638 = vshrl.u32 %v1637, 7
      %v1639 = vsub.s32 %v1636, %v1638
      %v1640 = vrot.slane %v1618, %v1639
      %v1642 = vunpack.c.l.s4 1966171168
      %v1643 = vunpack.c.0.s8 %v1642
      %v1644 = vlaneseq
      %v1645 = vshrl.u32 %v1644, 7
      %v1646 = vsub.s32 %v1643, %v1645
      %v1647 = vrot.slane %v1619, %v1646
      %v1648 = vcombine.low %v1626, %v1633
      %v1649 = vcombine.low %v1640, %v1647
      %v1651 = vunpack.c.l.s4 1966171168
      %v1652 = vunpack.c.0.s8 %v1651
      %v1653 = vlaneseq
      %v1654 = vshrl.u32 %v1653, 7
      %v1655 = vsub.s32 %v1652, %v1654
      %v1656 = vrot.slane %v1648, %v1655
      %v1658 = vunpack.c.l.s4 1966171168
      %v1659 = vunpack.c.0.s8 %v1658
      %v1660 = vlaneseq
      %v1661 = vshrl.u32 %v1660, 7
      %v1662 = vsub.s32 %v1659, %v1661
      %v1663 = vrot.slane %v1649, %v1662
      %v1664 = vcombine.low %v1656, %v1663
      %v1665 = vcombine.low %v551, %v565
      %v1666 = vcombine.low %v580, %v587
      %v1667 = vcombine.low %v588, %v589
      %v1668 = vcombine.low %v604, %v611
      %v1670 = vunpack.c.l.s4 1966171168
      %v1671 = vunpack.c.0.s8 %v1670
      %v1672 = vlaneseq
      %v1673 = vshrl.u32 %v1672, 7
      %v1674 = vsub.s32 %v1671, %v1673
      %v1675 = vrot.slane %v1665, %v1674
      %v1677 = vunpack.c.l.s4 1966171168
      %v1678 = vunpack.c.0.s8 %v1677
      %v1679 = vlaneseq
      %v1680 = vshrl.u32 %v1679, 7
      %v1681 = vsub.s32 %v1678, %v1680
      %v1682 = vrot.slane %v1666, %v1681
      %v1684 = vunpack.c.l.s4 1966171168
      %v1685 = vunpack.c.0.s8 %v1684
      %v1686 = vlaneseq
      %v1687 = vshrl.u32 %v1686, 7
      %v1688 = vsub.s32 %v1685, %v1687
      %v1689 = vrot.slane %v1667, %v1688
      %v1691 = vunpack.c.l.s4 1966171168
      %v1692 = vunpack.c.0.s8 %v1691
      %v1693 = vlaneseq
      %v1694 = vshrl.u32 %v1693, 7
      %v1695 = vsub.s32 %v1692, %v1694
      %v1696 = vrot.slane %v1668, %v1695
      %v1697 = vcombine.low %v1675, %v1682
      %v1698 = vcombine.low %v1689, %v1696
      %v1700 = vunpack.c.l.s4 1966171168
      %v1701 = vunpack.c.0.s8 %v1700
      %v1702 = vlaneseq
      %v1703 = vshrl.u32 %v1702, 7
      %v1704 = vsub.s32 %v1701, %v1703
      %v1705 = vrot.slane %v1697, %v1704
      %v1707 = vunpack.c.l.s4 1966171168
      %v1708 = vunpack.c.0.s8 %v1707
      %v1709 = vlaneseq
      %v1710 = vshrl.u32 %v1709, 7
      %v1711 = vsub.s32 %v1708, %v1710
      %v1712 = vrot.slane %v1698, %v1711
      %v1713 = vcombine.low %v1705, %v1712
      %v1714 = vcombine.low %v612, %v613
      %v1715 = vcombine.low %v627, %v642
      %v1716 = vcombine.low %v649, %v650
      %v1717 = vcombine.low %v651, %v666
      %v1719 = vunpack.c.l.s4 1966171168
      %v1720 = vunpack.c.0.s8 %v1719
      %v1721 = vlaneseq
      %v1722 = vshrl.u32 %v1721, 7
      %v1723 = vsub.s32 %v1720, %v1722
      %v1724 = vrot.slane %v1714, %v1723
      %v1726 = vunpack.c.l.s4 1966171168
      %v1727 = vunpack.c.0.s8 %v1726
      %v1728 = vlaneseq
      %v1729 = vshrl.u32 %v1728, 7
      %v1730 = vsub.s32 %v1727, %v1729
      %v1731 = vrot.slane %v1715, %v1730
      %v1733 = vunpack.c.l.s4 1966171168
      %v1734 = vunpack.c.0.s8 %v1733
      %v1735 = vlaneseq
      %v1736 = vshrl.u32 %v1735, 7
      %v1737 = vsub.s32 %v1734, %v1736
      %v1738 = vrot.slane %v1716, %v1737
      %v1740 = vunpack.c.l.s4 1966171168
      %v1741 = vunpack.c.0.s8 %v1740
      %v1742 = vlaneseq
      %v1743 = vshrl.u32 %v1742, 7
      %v1744 = vsub.s32 %v1741, %v1743
      %v1745 = vrot.slane %v1717, %v1744
      %v1746 = vcombine.low %v1724, %v1731
      %v1747 = vcombine.low %v1738, %v1745
      %v1749 = vunpack.c.l.s4 1966171168
      %v1750 = vunpack.c.0.s8 %v1749
      %v1751 = vlaneseq
      %v1752 = vshrl.u32 %v1751, 7
      %v1753 = vsub.s32 %v1750, %v1752
      %v1754 = vrot.slane %v1746, %v1753
      %v1756 = vunpack.c.l.s4 1966171168
      %v1757 = vunpack.c.0.s8 %v1756
      %v1758 = vlaneseq
      %v1759 = vshrl.u32 %v1758, 7
      %v1760 = vsub.s32 %v1757, %v1759
      %v1761 = vrot.slane %v1747, %v1760
      %v1762 = vcombine.low %v1754, %v1761
      %v1763 = vcombine.low %v673, %v674
      %v1764 = vcombine.low %v675, %v689
      %v1765 = vcombine.low %v704, %v711
      %v1766 = vcombine.low %v712, %v713
      %v1768 = vunpack.c.l.s4 1966171168
      %v1769 = vunpack.c.0.s8 %v1768
      %v1770 = vlaneseq
      %v1771 = vshrl.u32 %v1770, 7
      %v1772 = vsub.s32 %v1769, %v1771
      %v1773 = vrot.slane %v1763, %v1772
      %v1775 = vunpack.c.l.s4 1966171168
      %v1776 = vunpack.c.0.s8 %v1775
      %v1777 = vlaneseq
      %v1778 = vshrl.u32 %v1777, 7
      %v1779 = vsub.s32 %v1776, %v1778
      %v1780 = vrot.slane %v1764, %v1779
      %v1782 = vunpack.c.l.s4 1966171168
      %v1783 = vunpack.c.0.s8 %v1782
      %v1784 = vlaneseq
      %v1785 = vshrl.u32 %v1784, 7
      %v1786 = vsub.s32 %v1783, %v1785
      %v1787 = vrot.slane %v1765, %v1786
      %v1789 = vunpack.c.l.s4 1966171168
      %v1790 = vunpack.c.0.s8 %v1789
      %v1791 = vlaneseq
      %v1792 = vshrl.u32 %v1791, 7
      %v1793 = vsub.s32 %v1790, %v1792
      %v1794 = vrot.slane %v1766, %v1793
      %v1795 = vcombine.low %v1773, %v1780
      %v1796 = vcombine.low %v1787, %v1794
      %v1798 = vunpack.c.l.s4 1966171168
      %v1799 = vunpack.c.0.s8 %v1798
      %v1800 = vlaneseq
      %v1801 = vshrl.u32 %v1800, 7
      %v1802 = vsub.s32 %v1799, %v1801
      %v1803 = vrot.slane %v1795, %v1802
      %v1805 = vunpack.c.l.s4 1966171168
      %v1806 = vunpack.c.0.s8 %v1805
      %v1807 = vlaneseq
      %v1808 = vshrl.u32 %v1807, 7
      %v1809 = vsub.s32 %v1806, %v1808
      %v1810 = vrot.slane %v1796, %v1809
      %v1811 = vcombine.low %v1803, %v1810
      %v1812 = vcombine.low %v728, %v735
      %v1813 = vcombine.low %v736, %v737
      %v1814 = vcombine.low %v751, %v766
      %v1815 = vcombine.low %v773, %v774
      %v1817 = vunpack.c.l.s4 1966171168
      %v1818 = vunpack.c.0.s8 %v1817
      %v1819 = vlaneseq
      %v1820 = vshrl.u32 %v1819, 7
      %v1821 = vsub.s32 %v1818, %v1820
      %v1822 = vrot.slane %v1812, %v1821
      %v1824 = vunpack.c.l.s4 1966171168
      %v1825 = vunpack.c.0.s8 %v1824
      %v1826 = vlaneseq
      %v1827 = vshrl.u32 %v1826, 7
      %v1828 = vsub.s32 %v1825, %v1827
      %v1829 = vrot.slane %v1813, %v1828
      %v1831 = vunpack.c.l.s4 1966171168
      %v1832 = vunpack.c.0.s8 %v1831
      %v1833 = vlaneseq
      %v1834 = vshrl.u32 %v1833, 7
      %v1835 = vsub.s32 %v1832, %v1834
      %v1836 = vrot.slane %v1814, %v1835
      %v1838 = vunpack.c.l.s4 1966171168
      %v1839 = vunpack.c.0.s8 %v1838
      %v1840 = vlaneseq
      %v1841 = vshrl.u32 %v1840, 7
      %v1842 = vsub.s32 %v1839, %v1841
      %v1843 = vrot.slane %v1815, %v1842
      %v1844 = vcombine.low %v1822, %v1829
      %v1845 = vcombine.low %v1836, %v1843
      %v1847 = vunpack.c.l.s4 1966171168
      %v1848 = vunpack.c.0.s8 %v1847
      %v1849 = vlaneseq
      %v1850 = vshrl.u32 %v1849, 7
      %v1851 = vsub.s32 %v1848, %v1850
      %v1852 = vrot.slane %v1844, %v1851
      %v1854 = vunpack.c.l.s4 1966171168
      %v1855 = vunpack.c.0.s8 %v1854
      %v1856 = vlaneseq
      %v1857 = vshrl.u32 %v1856, 7
      %v1858 = vsub.s32 %v1855, %v1857
      %v1859 = vrot.slane %v1845, %v1858
      %v1860 = vcombine.low %v1852, %v1859
      %v1861 = vcombine.low %v775, %v790
      %v1862 = vcombine.low %v797, %v798
      %v1863 = vcombine.low %v799, %v813
      %v1864 = vcombine.low %v828, %v835
      %v1866 = vunpack.c.l.s4 1966171168
      %v1867 = vunpack.c.0.s8 %v1866
      %v1868 = vlaneseq
      %v1869 = vshrl.u32 %v1868, 7
      %v1870 = vsub.s32 %v1867, %v1869
      %v1871 = vrot.slane %v1861, %v1870
      %v1873 = vunpack.c.l.s4 1966171168
      %v1874 = vunpack.c.0.s8 %v1873
      %v1875 = vlaneseq
      %v1876 = vshrl.u32 %v1875, 7
      %v1877 = vsub.s32 %v1874, %v1876
      %v1878 = vrot.slane %v1862, %v1877
      %v1880 = vunpack.c.l.s4 1966171168
      %v1881 = vunpack.c.0.s8 %v1880
      %v1882 = vlaneseq
      %v1883 = vshrl.u32 %v1882, 7
      %v1884 = vsub.s32 %v1881, %v1883
      %v1885 = vrot.slane %v1863, %v1884
      %v1887 = vunpack.c.l.s4 1966171168
      %v1888 = vunpack.c.0.s8 %v1887
      %v1889 = vlaneseq
      %v1890 = vshrl.u32 %v1889, 7
      %v1891 = vsub.s32 %v1888, %v1890
      %v1892 = vrot.slane %v1864, %v1891
      %v1893 = vcombine.low %v1871, %v1878
      %v1894 = vcombine.low %v1885, %v1892
      %v1896 = vunpack.c.l.s4 1966171168
      %v1897 = vunpack.c.0.s8 %v1896
      %v1898 = vlaneseq
      %v1899 = vshrl.u32 %v1898, 7
      %v1900 = vsub.s32 %v1897, %v1899
      %v1901 = vrot.slane %v1893, %v1900
      %v1903 = vunpack.c.l.s4 1966171168
      %v1904 = vunpack.c.0.s8 %v1903
      %v1905 = vlaneseq
      %v1906 = vshrl.u32 %v1905, 7
      %v1907 = vsub.s32 %v1904, %v1906
      %v1908 = vrot.slane %v1894, %v1907
      %v1909 = vcombine.low %v1901, %v1908
      %v1910 = vcombine.low %v836, %v837
      %v1911 = vcombine.low %v852, %v859
      %v1912 = vcombine.low %v860, %v861
      %v1913 = vcombine.low %v875, %v890
      %v1915 = vunpack.c.l.s4 1966171168
      %v1916 = vunpack.c.0.s8 %v1915
      %v1917 = vlaneseq
      %v1918 = vshrl.u32 %v1917, 7
      %v1919 = vsub.s32 %v1916, %v1918
      %v1920 = vrot.slane %v1910, %v1919
      %v1922 = vunpack.c.l.s4 1966171168
      %v1923 = vunpack.c.0.s8 %v1922
      %v1924 = vlaneseq
      %v1925 = vshrl.u32 %v1924, 7
      %v1926 = vsub.s32 %v1923, %v1925
      %v1927 = vrot.slane %v1911, %v1926
      %v1929 = vunpack.c.l.s4 1966171168
      %v1930 = vunpack.c.0.s8 %v1929
      %v1931 = vlaneseq
      %v1932 = vshrl.u32 %v1931, 7
      %v1933 = vsub.s32 %v1930, %v1932
      %v1934 = vrot.slane %v1912, %v1933
      %v1936 = vunpack.c.l.s4 1966171168
      %v1937 = vunpack.c.0.s8 %v1936
      %v1938 = vlaneseq
      %v1939 = vshrl.u32 %v1938, 7
      %v1940 = vsub.s32 %v1937, %v1939
      %v1941 = vrot.slane %v1913, %v1940
      %v1942 = vcombine.low %v1920, %v1927
      %v1943 = vcombine.low %v1934, %v1941
      %v1945 = vunpack.c.l.s4 1966171168
      %v1946 = vunpack.c.0.s8 %v1945
      %v1947 = vlaneseq
      %v1948 = vshrl.u32 %v1947, 7
      %v1949 = vsub.s32 %v1946, %v1948
      %v1950 = vrot.slane %v1942, %v1949
      %v1952 = vunpack.c.l.s4 1966171168
      %v1953 = vunpack.c.0.s8 %v1952
      %v1954 = vlaneseq
      %v1955 = vshrl.u32 %v1954, 7
      %v1956 = vsub.s32 %v1953, %v1955
      %v1957 = vrot.slane %v1943, %v1956
      %v1958 = vcombine.low %v1950, %v1957
      %v1959 = vcombine.low %v897, %v898
      %v1960 = vcombine.low %v899, %v914
      %v1961 = vcombine.low %v921, %v922
      %v1962 = vcombine.low %v923, %v937
      %v1964 = vunpack.c.l.s4 1966171168
      %v1965 = vunpack.c.0.s8 %v1964
      %v1966 = vlaneseq
      %v1967 = vshrl.u32 %v1966, 7
      %v1968 = vsub.s32 %v1965, %v1967
      %v1969 = vrot.slane %v1959, %v1968
      %v1971 = vunpack.c.l.s4 1966171168
      %v1972 = vunpack.c.0.s8 %v1971
      %v1973 = vlaneseq
      %v1974 = vshrl.u32 %v1973, 7
      %v1975 = vsub.s32 %v1972, %v1974
      %v1976 = vrot.slane %v1960, %v1975
      %v1978 = vunpack.c.l.s4 1966171168
      %v1979 = vunpack.c.0.s8 %v1978
      %v1980 = vlaneseq
      %v1981 = vshrl.u32 %v1980, 7
      %v1982 = vsub.s32 %v1979, %v1981
      %v1983 = vrot.slane %v1961, %v1982
      %v1985 = vunpack.c.l.s4 1966171168
      %v1986 = vunpack.c.0.s8 %v1985
      %v1987 = vlaneseq
      %v1988 = vshrl.u32 %v1987, 7
      %v1989 = vsub.s32 %v1986, %v1988
      %v1990 = vrot.slane %v1962, %v1989
      %v1991 = vcombine.low %v1969, %v1976
      %v1992 = vcombine.low %v1983, %v1990
      %v1994 = vunpack.c.l.s4 1966171168
      %v1995 = vunpack.c.0.s8 %v1994
      %v1996 = vlaneseq
      %v1997 = vshrl.u32 %v1996, 7
      %v1998 = vsub.s32 %v1995, %v1997
      %v1999 = vrot.slane %v1991, %v1998
      %v2001 = vunpack.c.l.s4 1966171168
      %v2002 = vunpack.c.0.s8 %v2001
      %v2003 = vlaneseq
      %v2004 = vshrl.u32 %v2003, 7
      %v2005 = vsub.s32 %v2002, %v2004
      %v2006 = vrot.slane %v1992, %v2005
      %v2007 = vcombine.low %v1999, %v2006
      %v2008 = vcombine.low %v952, %v959
      %v2009 = vcombine.low %v960, %v961
      %v2010 = vcombine.low %v976, %v983
      %v2011 = vcombine.low %v984, %v985
      %v2013 = vunpack.c.l.s4 1966171168
      %v2014 = vunpack.c.0.s8 %v2013
      %v2015 = vlaneseq
      %v2016 = vshrl.u32 %v2015, 7
      %v2017 = vsub.s32 %v2014, %v2016
      %v2018 = vrot.slane %v2008, %v2017
      %v2020 = vunpack.c.l.s4 1966171168
      %v2021 = vunpack.c.0.s8 %v2020
      %v2022 = vlaneseq
      %v2023 = vshrl.u32 %v2022, 7
      %v2024 = vsub.s32 %v2021, %v2023
      %v2025 = vrot.slane %v2009, %v2024
      %v2027 = vunpack.c.l.s4 1966171168
      %v2028 = vunpack.c.0.s8 %v2027
      %v2029 = vlaneseq
      %v2030 = vshrl.u32 %v2029, 7
      %v2031 = vsub.s32 %v2028, %v2030
      %v2032 = vrot.slane %v2010, %v2031
      %v2034 = vunpack.c.l.s4 1966171168
      %v2035 = vunpack.c.0.s8 %v2034
      %v2036 = vlaneseq
      %v2037 = vshrl.u32 %v2036, 7
      %v2038 = vsub.s32 %v2035, %v2037
      %v2039 = vrot.slane %v2011, %v2038
      %v2040 = vcombine.low %v2018, %v2025
      %v2041 = vcombine.low %v2032, %v2039
      %v2043 = vunpack.c.l.s4 1966171168
      %v2044 = vunpack.c.0.s8 %v2043
      %v2045 = vlaneseq
      %v2046 = vshrl.u32 %v2045, 7
      %v2047 = vsub.s32 %v2044, %v2046
      %v2048 = vrot.slane %v2040, %v2047
      %v2050 = vunpack.c.l.s4 1966171168
      %v2051 = vunpack.c.0.s8 %v2050
      %v2052 = vlaneseq
      %v2053 = vshrl.u32 %v2052, 7
      %v2054 = vsub.s32 %v2051, %v2053
      %v2055 = vrot.slane %v2041, %v2054
      %v2056 = vcombine.low %v2048, %v2055
      %v2057 = vcombine.low %v999, %v1014
      %v2058 = vcombine.low %v1021, %v1022
      %v2059 = vcombine.low %v1023, %v1038
      %v2060 = vcombine.low %v1045, %v1046
      %v2062 = vunpack.c.l.s4 1966171168
      %v2063 = vunpack.c.0.s8 %v2062
      %v2064 = vlaneseq
      %v2065 = vshrl.u32 %v2064, 7
      %v2066 = vsub.s32 %v2063, %v2065
      %v2067 = vrot.slane %v2057, %v2066
      %v2069 = vunpack.c.l.s4 1966171168
      %v2070 = vunpack.c.0.s8 %v2069
      %v2071 = vlaneseq
      %v2072 = vshrl.u32 %v2071, 7
      %v2073 = vsub.s32 %v2070, %v2072
      %v2074 = vrot.slane %v2058, %v2073
      %v2076 = vunpack.c.l.s4 1966171168
      %v2077 = vunpack.c.0.s8 %v2076
      %v2078 = vlaneseq
      %v2079 = vshrl.u32 %v2078, 7
      %v2080 = vsub.s32 %v2077, %v2079
      %v2081 = vrot.slane %v2059, %v2080
      %v2083 = vunpack.c.l.s4 1966171168
      %v2084 = vunpack.c.0.s8 %v2083
      %v2085 = vlaneseq
      %v2086 = vshrl.u32 %v2085, 7
      %v2087 = vsub.s32 %v2084, %v2086
      %v2088 = vrot.slane %v2060, %v2087
      %v2089 = vcombine.low %v2067, %v2074
      %v2090 = vcombine.low %v2081, %v2088
      %v2092 = vunpack.c.l.s4 1966171168
      %v2093 = vunpack.c.0.s8 %v2092
      %v2094 = vlaneseq
      %v2095 = vshrl.u32 %v2094, 7
      %v2096 = vsub.s32 %v2093, %v2095
      %v2097 = vrot.slane %v2089, %v2096
      %v2099 = vunpack.c.l.s4 1966171168
      %v2100 = vunpack.c.0.s8 %v2099
      %v2101 = vlaneseq
      %v2102 = vshrl.u32 %v2101, 7
      %v2103 = vsub.s32 %v2100, %v2102
      %v2104 = vrot.slane %v2090, %v2103
      %v2105 = vcombine.low %v2097, %v2104
      %v2106 = vcombine.low %v1047, %v1061
      %v2107 = vcombine.low %v1076, %v1083
      %v2108 = vcombine.low %v1084, %v1085
      %v2109 = vcombine.low %v1100, %v1107
      %v2111 = vunpack.c.l.s4 1966171168
      %v2112 = vunpack.c.0.s8 %v2111
      %v2113 = vlaneseq
      %v2114 = vshrl.u32 %v2113, 7
      %v2115 = vsub.s32 %v2112, %v2114
      %v2116 = vrot.slane %v2106, %v2115
      %v2118 = vunpack.c.l.s4 1966171168
      %v2119 = vunpack.c.0.s8 %v2118
      %v2120 = vlaneseq
      %v2121 = vshrl.u32 %v2120, 7
      %v2122 = vsub.s32 %v2119, %v2121
      %v2123 = vrot.slane %v2107, %v2122
      %v2125 = vunpack.c.l.s4 1966171168
      %v2126 = vunpack.c.0.s8 %v2125
      %v2127 = vlaneseq
      %v2128 = vshrl.u32 %v2127, 7
      %v2129 = vsub.s32 %v2126, %v2128
      %v2130 = vrot.slane %v2108, %v2129
      %v2132 = vunpack.c.l.s4 1966171168
      %v2133 = vunpack.c.0.s8 %v2132
      %v2134 = vlaneseq
      %v2135 = vshrl.u32 %v2134, 7
      %v2136 = vsub.s32 %v2133, %v2135
      %v2137 = vrot.slane %v2109, %v2136
      %v2138 = vcombine.low %v2116, %v2123
      %v2139 = vcombine.low %v2130, %v2137
      %v2141 = vunpack.c.l.s4 1966171168
      %v2142 = vunpack.c.0.s8 %v2141
      %v2143 = vlaneseq
      %v2144 = vshrl.u32 %v2143, 7
      %v2145 = vsub.s32 %v2142, %v2144
      %v2146 = vrot.slane %v2138, %v2145
      %v2148 = vunpack.c.l.s4 1966171168
      %v2149 = vunpack.c.0.s8 %v2148
      %v2150 = vlaneseq
      %v2151 = vshrl.u32 %v2150, 7
      %v2152 = vsub.s32 %v2149, %v2151
      %v2153 = vrot.slane %v2139, %v2152
      %v2154 = vcombine.low %v2146, %v2153
      %v2155 = vcombine.low %v1108, %v1109
      %v2156 = vcombine.low %v1123, %v1138
      %v2157 = vcombine.low %v1145, %v1146
      %v2158 = vcombine.low %v1147, %v1162
      %v2160 = vunpack.c.l.s4 1966171168
      %v2161 = vunpack.c.0.s8 %v2160
      %v2162 = vlaneseq
      %v2163 = vshrl.u32 %v2162, 7
      %v2164 = vsub.s32 %v2161, %v2163
      %v2165 = vrot.slane %v2155, %v2164
      %v2167 = vunpack.c.l.s4 1966171168
      %v2168 = vunpack.c.0.s8 %v2167
      %v2169 = vlaneseq
      %v2170 = vshrl.u32 %v2169, 7
      %v2171 = vsub.s32 %v2168, %v2170
      %v2172 = vrot.slane %v2156, %v2171
      %v2174 = vunpack.c.l.s4 1966171168
      %v2175 = vunpack.c.0.s8 %v2174
      %v2176 = vlaneseq
      %v2177 = vshrl.u32 %v2176, 7
      %v2178 = vsub.s32 %v2175, %v2177
      %v2179 = vrot.slane %v2157, %v2178
      %v2181 = vunpack.c.l.s4 1966171168
      %v2182 = vunpack.c.0.s8 %v2181
      %v2183 = vlaneseq
      %v2184 = vshrl.u32 %v2183, 7
      %v2185 = vsub.s32 %v2182, %v2184
      %v2186 = vrot.slane %v2158, %v2185
      %v2187 = vcombine.low %v2165, %v2172
      %v2188 = vcombine.low %v2179, %v2186
      %v2190 = vunpack.c.l.s4 1966171168
      %v2191 = vunpack.c.0.s8 %v2190
      %v2192 = vlaneseq
      %v2193 = vshrl.u32 %v2192, 7
      %v2194 = vsub.s32 %v2191, %v2193
      %v2195 = vrot.slane %v2187, %v2194
      %v2197 = vunpack.c.l.s4 1966171168
      %v2198 = vunpack.c.0.s8 %v2197
      %v2199 = vlaneseq
      %v2200 = vshrl.u32 %v2199, 7
      %v2201 = vsub.s32 %v2198, %v2200
      %v2202 = vrot.slane %v2188, %v2201
      %v2203 = vcombine.low %v2195, %v2202
      %v2204 = vcombine.low %v1169, %v1170
      %v2205 = vcombine.low %v1171, %v1185
      %v2206 = vcombine.low %v1200, %v1207
      %v2207 = vcombine.low %v1208, %v1209
      %v2209 = vunpack.c.l.s4 1966171168
      %v2210 = vunpack.c.0.s8 %v2209
      %v2211 = vlaneseq
      %v2212 = vshrl.u32 %v2211, 7
      %v2213 = vsub.s32 %v2210, %v2212
      %v2214 = vrot.slane %v2204, %v2213
      %v2216 = vunpack.c.l.s4 1966171168
      %v2217 = vunpack.c.0.s8 %v2216
      %v2218 = vlaneseq
      %v2219 = vshrl.u32 %v2218, 7
      %v2220 = vsub.s32 %v2217, %v2219
      %v2221 = vrot.slane %v2205, %v2220
      %v2223 = vunpack.c.l.s4 1966171168
      %v2224 = vunpack.c.0.s8 %v2223
      %v2225 = vlaneseq
      %v2226 = vshrl.u32 %v2225, 7
      %v2227 = vsub.s32 %v2224, %v2226
      %v2228 = vrot.slane %v2206, %v2227
      %v2230 = vunpack.c.l.s4 1966171168
      %v2231 = vunpack.c.0.s8 %v2230
      %v2232 = vlaneseq
      %v2233 = vshrl.u32 %v2232, 7
      %v2234 = vsub.s32 %v2231, %v2233
      %v2235 = vrot.slane %v2207, %v2234
      %v2236 = vcombine.low %v2214, %v2221
      %v2237 = vcombine.low %v2228, %v2235
      %v2239 = vunpack.c.l.s4 1966171168
      %v2240 = vunpack.c.0.s8 %v2239
      %v2241 = vlaneseq
      %v2242 = vshrl.u32 %v2241, 7
      %v2243 = vsub.s32 %v2240, %v2242
      %v2244 = vrot.slane %v2236, %v2243
      %v2246 = vunpack.c.l.s4 1966171168
      %v2247 = vunpack.c.0.s8 %v2246
      %v2248 = vlaneseq
      %v2249 = vshrl.u32 %v2248, 7
      %v2250 = vsub.s32 %v2247, %v2249
      %v2251 = vrot.slane %v2237, %v2250
      %v2252 = vcombine.low %v2244, %v2251
      %v2253 = vcombine.low %v1224, %v1231
      %v2254 = vcombine.low %v1232, %v1233
      %v2255 = vcombine.low %v1247, %v1262
      %v2256 = vcombine.low %v1269, %v1270
      %v2258 = vunpack.c.l.s4 1966171168
      %v2259 = vunpack.c.0.s8 %v2258
      %v2260 = vlaneseq
      %v2261 = vshrl.u32 %v2260, 7
      %v2262 = vsub.s32 %v2259, %v2261
      %v2263 = vrot.slane %v2253, %v2262
      %v2265 = vunpack.c.l.s4 1966171168
      %v2266 = vunpack.c.0.s8 %v2265
      %v2267 = vlaneseq
      %v2268 = vshrl.u32 %v2267, 7
      %v2269 = vsub.s32 %v2266, %v2268
      %v2270 = vrot.slane %v2254, %v2269
      %v2272 = vunpack.c.l.s4 1966171168
      %v2273 = vunpack.c.0.s8 %v2272
      %v2274 = vlaneseq
      %v2275 = vshrl.u32 %v2274, 7
      %v2276 = vsub.s32 %v2273, %v2275
      %v2277 = vrot.slane %v2255, %v2276
      %v2279 = vunpack.c.l.s4 1966171168
      %v2280 = vunpack.c.0.s8 %v2279
      %v2281 = vlaneseq
      %v2282 = vshrl.u32 %v2281, 7
      %v2283 = vsub.s32 %v2280, %v2282
      %v2284 = vrot.slane %v2256, %v2283
      %v2285 = vcombine.low %v2263, %v2270
      %v2286 = vcombine.low %v2277, %v2284
      %v2288 = vunpack.c.l.s4 1966171168
      %v2289 = vunpack.c.0.s8 %v2288
      %v2290 = vlaneseq
      %v2291 = vshrl.u32 %v2290, 7
      %v2292 = vsub.s32 %v2289, %v2291
      %v2293 = vrot.slane %v2285, %v2292
      %v2295 = vunpack.c.l.s4 1966171168
      %v2296 = vunpack.c.0.s8 %v2295
      %v2297 = vlaneseq
      %v2298 = vshrl.u32 %v2297, 7
      %v2299 = vsub.s32 %v2296, %v2298
      %v2300 = vrot.slane %v2286, %v2299
      %v2301 = vcombine.low %v2293, %v2300
      %v2302 = vcombine.low %v1271, %v1286
      %v2303 = vcombine.low %v1293, %v1294
      %v2304 = vcombine.low %v1295, %v1309
      %v2305 = vcombine.low %v1324, %v1331
      %v2307 = vunpack.c.l.s4 1966171168
      %v2308 = vunpack.c.0.s8 %v2307
      %v2309 = vlaneseq
      %v2310 = vshrl.u32 %v2309, 7
      %v2311 = vsub.s32 %v2308, %v2310
      %v2312 = vrot.slane %v2302, %v2311
      %v2314 = vunpack.c.l.s4 1966171168
      %v2315 = vunpack.c.0.s8 %v2314
      %v2316 = vlaneseq
      %v2317 = vshrl.u32 %v2316, 7
      %v2318 = vsub.s32 %v2315, %v2317
      %v2319 = vrot.slane %v2303, %v2318
      %v2321 = vunpack.c.l.s4 1966171168
      %v2322 = vunpack.c.0.s8 %v2321
      %v2323 = vlaneseq
      %v2324 = vshrl.u32 %v2323, 7
      %v2325 = vsub.s32 %v2322, %v2324
      %v2326 = vrot.slane %v2304, %v2325
      %v2328 = vunpack.c.l.s4 1966171168
      %v2329 = vunpack.c.0.s8 %v2328
      %v2330 = vlaneseq
      %v2331 = vshrl.u32 %v2330, 7
      %v2332 = vsub.s32 %v2329, %v2331
      %v2333 = vrot.slane %v2305, %v2332
      %v2334 = vcombine.low %v2312, %v2319
      %v2335 = vcombine.low %v2326, %v2333
      %v2337 = vunpack.c.l.s4 1966171168
      %v2338 = vunpack.c.0.s8 %v2337
      %v2339 = vlaneseq
      %v2340 = vshrl.u32 %v2339, 7
      %v2341 = vsub.s32 %v2338, %v2340
      %v2342 = vrot.slane %v2334, %v2341
      %v2344 = vunpack.c.l.s4 1966171168
      %v2345 = vunpack.c.0.s8 %v2344
      %v2346 = vlaneseq
      %v2347 = vshrl.u32 %v2346, 7
      %v2348 = vsub.s32 %v2345, %v2347
      %v2349 = vrot.slane %v2335, %v2348
      %v2350 = vcombine.low %v2342, %v2349
      %v2351 = vcombine.low %v1332, %v1333
      %v2352 = vcombine.low %v1348, %v1355
      %v2353 = vcombine.low %v1356, %v1357
      %v2354 = vcombine.low %v1371, %v1386
      %v2356 = vunpack.c.l.s4 1966171168
      %v2357 = vunpack.c.0.s8 %v2356
      %v2358 = vlaneseq
      %v2359 = vshrl.u32 %v2358, 7
      %v2360 = vsub.s32 %v2357, %v2359
      %v2361 = vrot.slane %v2351, %v2360
      %v2363 = vunpack.c.l.s4 1966171168
      %v2364 = vunpack.c.0.s8 %v2363
      %v2365 = vlaneseq
      %v2366 = vshrl.u32 %v2365, 7
      %v2367 = vsub.s32 %v2364, %v2366
      %v2368 = vrot.slane %v2352, %v2367
      %v2370 = vunpack.c.l.s4 1966171168
      %v2371 = vunpack.c.0.s8 %v2370
      %v2372 = vlaneseq
      %v2373 = vshrl.u32 %v2372, 7
      %v2374 = vsub.s32 %v2371, %v2373
      %v2375 = vrot.slane %v2353, %v2374
      %v2377 = vunpack.c.l.s4 1966171168
      %v2378 = vunpack.c.0.s8 %v2377
      %v2379 = vlaneseq
      %v2380 = vshrl.u32 %v2379, 7
      %v2381 = vsub.s32 %v2378, %v2380
      %v2382 = vrot.slane %v2354, %v2381
      %v2383 = vcombine.low %v2361, %v2368
      %v2384 = vcombine.low %v2375, %v2382
      %v2386 = vunpack.c.l.s4 1966171168
      %v2387 = vunpack.c.0.s8 %v2386
      %v2388 = vlaneseq
      %v2389 = vshrl.u32 %v2388, 7
      %v2390 = vsub.s32 %v2387, %v2389
      %v2391 = vrot.slane %v2383, %v2390
      %v2393 = vunpack.c.l.s4 1966171168
      %v2394 = vunpack.c.0.s8 %v2393
      %v2395 = vlaneseq
      %v2396 = vshrl.u32 %v2395, 7
      %v2397 = vsub.s32 %v2394, %v2396
      %v2398 = vrot.slane %v2384, %v2397
      %v2399 = vcombine.low %v2391, %v2398
      %v2400 = vcombine.low %v1393, %v1394
      %v2401 = vcombine.low %v1395, %v1410
      %v2402 = vcombine.low %v1417, %v1418
      %v2403 = vcombine.low %v1419, %v1433
      %v2405 = vunpack.c.l.s4 1966171168
      %v2406 = vunpack.c.0.s8 %v2405
      %v2407 = vlaneseq
      %v2408 = vshrl.u32 %v2407, 7
      %v2409 = vsub.s32 %v2406, %v2408
      %v2410 = vrot.slane %v2400, %v2409
      %v2412 = vunpack.c.l.s4 1966171168
      %v2413 = vunpack.c.0.s8 %v2412
      %v2414 = vlaneseq
      %v2415 = vshrl.u32 %v2414, 7
      %v2416 = vsub.s32 %v2413, %v2415
      %v2417 = vrot.slane %v2401, %v2416
      %v2419 = vunpack.c.l.s4 1966171168
      %v2420 = vunpack.c.0.s8 %v2419
      %v2421 = vlaneseq
      %v2422 = vshrl.u32 %v2421, 7
      %v2423 = vsub.s32 %v2420, %v2422
      %v2424 = vrot.slane %v2402, %v2423
      %v2426 = vunpack.c.l.s4 1966171168
      %v2427 = vunpack.c.0.s8 %v2426
      %v2428 = vlaneseq
      %v2429 = vshrl.u32 %v2428, 7
      %v2430 = vsub.s32 %v2427, %v2429
      %v2431 = vrot.slane %v2403, %v2430
      %v2432 = vcombine.low %v2410, %v2417
      %v2433 = vcombine.low %v2424, %v2431
      %v2435 = vunpack.c.l.s4 1966171168
      %v2436 = vunpack.c.0.s8 %v2435
      %v2437 = vlaneseq
      %v2438 = vshrl.u32 %v2437, 7
      %v2439 = vsub.s32 %v2436, %v2438
      %v2440 = vrot.slane %v2432, %v2439
      %v2442 = vunpack.c.l.s4 1966171168
      %v2443 = vunpack.c.0.s8 %v2442
      %v2444 = vlaneseq
      %v2445 = vshrl.u32 %v2444, 7
      %v2446 = vsub.s32 %v2443, %v2445
      %v2447 = vrot.slane %v2433, %v2446
      %v2448 = vcombine.low %v2440, %v2447
      %v2449 = vcombine.low %v1448, %v1455
      %v2450 = vcombine.low %v1456, %v1457
      %v2451 = vcombine.low %v1472, %v1479
      %v2452 = vcombine.low %v1480, %v1481
      %v2454 = vunpack.c.l.s4 1966171168
      %v2455 = vunpack.c.0.s8 %v2454
      %v2456 = vlaneseq
      %v2457 = vshrl.u32 %v2456, 7
      %v2458 = vsub.s32 %v2455, %v2457
      %v2459 = vrot.slane %v2449, %v2458
      %v2461 = vunpack.c.l.s4 1966171168
      %v2462 = vunpack.c.0.s8 %v2461
      %v2463 = vlaneseq
      %v2464 = vshrl.u32 %v2463, 7
      %v2465 = vsub.s32 %v2462, %v2464
      %v2466 = vrot.slane %v2450, %v2465
      %v2468 = vunpack.c.l.s4 1966171168
      %v2469 = vunpack.c.0.s8 %v2468
      %v2470 = vlaneseq
      %v2471 = vshrl.u32 %v2470, 7
      %v2472 = vsub.s32 %v2469, %v2471
      %v2473 = vrot.slane %v2451, %v2472
      %v2475 = vunpack.c.l.s4 1966171168
      %v2476 = vunpack.c.0.s8 %v2475
      %v2477 = vlaneseq
      %v2478 = vshrl.u32 %v2477, 7
      %v2479 = vsub.s32 %v2476, %v2478
      %v2480 = vrot.slane %v2452, %v2479
      %v2481 = vcombine.low %v2459, %v2466
      %v2482 = vcombine.low %v2473, %v2480
      %v2484 = vunpack.c.l.s4 1966171168
      %v2485 = vunpack.c.0.s8 %v2484
      %v2486 = vlaneseq
      %v2487 = vshrl.u32 %v2486, 7
      %v2488 = vsub.s32 %v2485, %v2487
      %v2489 = vrot.slane %v2481, %v2488
      %v2491 = vunpack.c.l.s4 1966171168
      %v2492 = vunpack.c.0.s8 %v2491
      %v2493 = vlaneseq
      %v2494 = vshrl.u32 %v2493, 7
      %v2495 = vsub.s32 %v2492, %v2494
      %v2496 = vrot.slane %v2482, %v2495
      %v2497 = vcombine.low %v2489, %v2496
      %v2498 = vcombine.low %v1495, %v1510
      %v2499 = vcombine.low %v1517, %v1518
      %v2500 = vcombine.low %v1519, %v1534
      %v2501 = vcombine.low %v1541, %v1542
      %v2503 = vunpack.c.l.s4 1966171168
      %v2504 = vunpack.c.0.s8 %v2503
      %v2505 = vlaneseq
      %v2506 = vshrl.u32 %v2505, 7
      %v2507 = vsub.s32 %v2504, %v2506
      %v2508 = vrot.slane %v2498, %v2507
      %v2510 = vunpack.c.l.s4 1966171168
      %v2511 = vunpack.c.0.s8 %v2510
      %v2512 = vlaneseq
      %v2513 = vshrl.u32 %v2512, 7
      %v2514 = vsub.s32 %v2511, %v2513
      %v2515 = vrot.slane %v2499, %v2514
      %v2517 = vunpack.c.l.s4 1966171168
      %v2518 = vunpack.c.0.s8 %v2517
      %v2519 = vlaneseq
      %v2520 = vshrl.u32 %v2519, 7
      %v2521 = vsub.s32 %v2518, %v2520
      %v2522 = vrot.slane %v2500, %v2521
      %v2524 = vunpack.c.l.s4 1966171168
      %v2525 = vunpack.c.0.s8 %v2524
      %v2526 = vlaneseq
      %v2527 = vshrl.u32 %v2526, 7
      %v2528 = vsub.s32 %v2525, %v2527
      %v2529 = vrot.slane %v2501, %v2528
      %v2530 = vcombine.low %v2508, %v2515
      %v2531 = vcombine.low %v2522, %v2529
      %v2533 = vunpack.c.l.s4 1966171168
      %v2534 = vunpack.c.0.s8 %v2533
      %v2535 = vlaneseq
      %v2536 = vshrl.u32 %v2535, 7
      %v2537 = vsub.s32 %v2534, %v2536
      %v2538 = vrot.slane %v2530, %v2537
      %v2540 = vunpack.c.l.s4 1966171168
      %v2541 = vunpack.c.0.s8 %v2540
      %v2542 = vlaneseq
      %v2543 = vshrl.u32 %v2542, 7
      %v2544 = vsub.s32 %v2541, %v2543
      %v2545 = vrot.slane %v2531, %v2544
      %v2546 = vcombine.low %v2538, %v2545
      %v2547 = vcombine.low %v1543, %v1557
      %v2549 = vunpack.c.l.s4 1966171168
      %v2550 = vunpack.c.0.s8 %v2549
      %v2551 = vlaneseq
      %v2552 = vshrl.u32 %v2551, 7
      %v2553 = vsub.s32 %v2550, %v2552
      %v2554 = vrot.slane %v2547, %v2553
      %v2556 = vunpack.c.l.s4 1966171168
      %v2557 = vunpack.c.0.s8 %v2556
      %v2558 = vlaneseq
      %v2559 = vshrl.u32 %v2558, 7
      %v2560 = vsub.s32 %v2557, %v2559
      %v2561 = vrot.slane %v2554, %v2560
      %v2564 = vunpack.c.l.b16 %v1558
      %v2565 = vunpack.c.l.b16 %v1559
      %v2566 = vpack.c.b16 %v2565, %v2564
      %vm2568 = vcmask 130048
      %v2570 = vsel %vm2568, %v1615, 0
      %v2573 = vsel %vm2568, %v1664, 0
      %v2576 = vsel %vm2568, %v1713, 0
      %v2579 = vsel %vm2568, %v1762, 0
      %v2582 = vsel %vm2568, %v1811, 0
      %v2585 = vsel %vm2568, %v1860, 0
      %v2588 = vsel %vm2568, %v1909, 0
      %v2591 = vsel %vm2568, %v1958, 0
      %v2594 = vsel %vm2568, %v2007, 0
      %v2597 = vsel %vm2568, %v2056, 0
      %v2600 = vsel %vm2568, %v2105, 0
      %v2603 = vsel %vm2568, %v2154, 0
      %v2606 = vsel %vm2568, %v2203, 0
      %v2609 = vsel %vm2568, %v2252, 0
      %v2612 = vsel %vm2568, %v2301, 0
      %v2615 = vsel %vm2568, %v2350, 0
      %v2618 = vsel %vm2568, %v2399, 0
      %v2621 = vsel %vm2568, %v2448, 0
      %v2624 = vsel %vm2568, %v2497, 0
      %v2627 = vsel %vm2568, %v2546, 0
      %v2630 = vsel %vm2568, %v2561, 0
      %2632 = vmatprep.subr.bf16.mxu0 0
      %2633 = vmatpush1.bf16.msra.mxu0 0
      %2634 = vmatprep.subr.bf16.mxu0 0
      %2635 = vmatpush1.bf16.msra.mxu0 0
      %2636 = vmatprep.subr.bf16.mxu0 0
      %2637 = vmatpush1.bf16.msra.mxu0 0
      %2638 = vmatprep.subr.bf16.mxu0 0
      %2639 = vmatpush1.bf16.msra.mxu0 0
      %2640 = vmatprep.subr.bf16.mxu0 0
      %2641 = vmatpush1.bf16.msra.mxu0 0
      %2642 = vmatprep.subr.bf16.mxu0 0
      %2643 = vmatpush1.bf16.msra.mxu0 0
      %2644 = vmatprep.subr.bf16.mxu0 0
      %2645 = vmatpush1.bf16.msra.mxu0 0
      %2646 = vmatprep.subr.bf16.mxu0 0
      %2647 = vmatpush1.bf16.msra.mxu0 %v2566
      %2648 = vmatprep.subr.bf16.mxu0 0
      %2649 = vmatpush2.bf16.msra.mxu0 0
      %2650 = vmatprep.subr.bf16.mxu0 0
      %2651 = vmatpush2.bf16.msra.mxu0 0
      %2652 = vmatprep.subr.bf16.mxu0 0
      %2653 = vmatpush2.bf16.msra.mxu0 0
      %2654 = vmatprep.subr.bf16.mxu0 0
      %2655 = vmatpush2.bf16.msra.mxu0 0
      %2656 = vmatprep.subr.bf16.mxu0 0
      %2657 = vmatpush2.bf16.msra.mxu0 0
      %2658 = vmatprep.subr.bf16.mxu0 0
      %2659 = vmatpush2.bf16.msra.mxu0 0
      %2660 = vmatprep.subr.bf16.mxu0 0
      %2661 = vmatpush2.bf16.msra.mxu0 0
      %2662 = vmatprep.subr.bf16.mxu0 0
      %2663 = vmatpush2.bf16.msra.mxu0 0
      %2664 = vmatprep.mubr.bf16.mxu0 0
      %2665 = vmatmul.mubr.bf16.gmra.mxu0 %v2570
      %v2666 = vpop.f32.mrf.mxu0
      %v2667 = vadd.f32 %v1565, %v2666
      %v2668 = vpop.f32.mrf.mxu0
      %v2669 = vpop.f32.mrf.mxu0
      %v2670 = vadd.f32 %v1565, %v2669
      %v2671 = vpop.f32.mrf.mxu0
      %2672 = vmatprep.mubr.bf16.mxu0 0
      %2673 = vmatmul.mubr.bf16.gmra.mxu0 %v2573
      %v2674 = vpop.f32.mrf.mxu0
      %v2675 = vadd.f32 %v1565, %v2674
      %v2676 = vpop.f32.mrf.mxu0
      %v2677 = vpop.f32.mrf.mxu0
      %v2678 = vadd.f32 %v1565, %v2677
      %v2679 = vpop.f32.mrf.mxu0
      %2680 = vmatprep.mubr.bf16.mxu0 0
      %2681 = vmatmul.mubr.bf16.gmra.mxu0 %v2576
      %v2682 = vpop.f32.mrf.mxu0
      %v2683 = vadd.f32 %v1565, %v2682
      %v2684 = vpop.f32.mrf.mxu0
      %v2685 = vpop.f32.mrf.mxu0
      %v2686 = vadd.f32 %v1565, %v2685
      %v2687 = vpop.f32.mrf.mxu0
      %2688 = vmatprep.mubr.bf16.mxu0 0
      %2689 = vmatmul.mubr.bf16.gmra.mxu0 %v2579
      %v2690 = vpop.f32.mrf.mxu0
      %v2691 = vadd.f32 %v1565, %v2690
      %v2692 = vpop.f32.mrf.mxu0
      %v2693 = vpop.f32.mrf.mxu0
      %v2694 = vadd.f32 %v1565, %v2693
      %v2695 = vpop.f32.mrf.mxu0
      %2696 = vmatprep.mubr.bf16.mxu0 0
      %2697 = vmatmul.mubr.bf16.gmra.mxu0 %v2582
      %v2698 = vpop.f32.mrf.mxu0
      %v2699 = vadd.f32 %v1565, %v2698
      %v2700 = vpop.f32.mrf.mxu0
      %v2701 = vpop.f32.mrf.mxu0
      %v2702 = vadd.f32 %v1565, %v2701
      %v2703 = vpop.f32.mrf.mxu0
      %2704 = vmatprep.mubr.bf16.mxu0 0
      %2705 = vmatmul.mubr.bf16.gmra.mxu0 %v2585
      %v2706 = vpop.f32.mrf.mxu0
      %v2707 = vadd.f32 %v1565, %v2706
      %v2708 = vpop.f32.mrf.mxu0
      %v2709 = vpop.f32.mrf.mxu0
      %v2710 = vadd.f32 %v1565, %v2709
      %v2711 = vpop.f32.mrf.mxu0
      %2712 = vmatprep.mubr.bf16.mxu0 0
      %2713 = vmatmul.mubr.bf16.gmra.mxu0 %v2588
      %v2714 = vpop.f32.mrf.mxu0
      %v2715 = vadd.f32 %v1565, %v2714
      %v2716 = vpop.f32.mrf.mxu0
      %v2717 = vpop.f32.mrf.mxu0
      %v2718 = vadd.f32 %v1565, %v2717
      %v2719 = vpop.f32.mrf.mxu0
      %2720 = vmatprep.mubr.bf16.mxu0 0
      %2721 = vmatmul.mubr.bf16.gmra.mxu0 %v2591
      %v2722 = vpop.f32.mrf.mxu0
      %v2723 = vadd.f32 %v1565, %v2722
      %v2724 = vpop.f32.mrf.mxu0
      %v2725 = vpop.f32.mrf.mxu0
      %v2726 = vadd.f32 %v1565, %v2725
      %v2727 = vpop.f32.mrf.mxu0
      %2728 = vmatprep.mubr.bf16.mxu0 0
      %2729 = vmatmul.mubr.bf16.gmra.mxu0 %v2594
      %v2730 = vpop.f32.mrf.mxu0
      %v2731 = vadd.f32 %v1565, %v2730
      %v2732 = vpop.f32.mrf.mxu0
      %v2733 = vpop.f32.mrf.mxu0
      %v2734 = vadd.f32 %v1565, %v2733
      %v2735 = vpop.f32.mrf.mxu0
      %2736 = vmatprep.mubr.bf16.mxu0 0
      %2737 = vmatmul.mubr.bf16.gmra.mxu0 %v2597
      %v2738 = vpop.f32.mrf.mxu0
      %v2739 = vadd.f32 %v1565, %v2738
      %v2740 = vpop.f32.mrf.mxu0
      %v2741 = vpop.f32.mrf.mxu0
      %v2742 = vadd.f32 %v1565, %v2741
      %v2743 = vpop.f32.mrf.mxu0
      %2744 = vmatprep.mubr.bf16.mxu0 0
      %2745 = vmatmul.mubr.bf16.gmra.mxu0 %v2600
      %v2746 = vpop.f32.mrf.mxu0
      %v2747 = vadd.f32 %v1565, %v2746
      %v2748 = vpop.f32.mrf.mxu0
      %v2749 = vpop.f32.mrf.mxu0
      %v2750 = vadd.f32 %v1565, %v2749
      %v2751 = vpop.f32.mrf.mxu0
      %2752 = vmatprep.mubr.bf16.mxu0 0
      %2753 = vmatmul.mubr.bf16.gmra.mxu0 %v2603
      %v2754 = vpop.f32.mrf.mxu0
      %v2755 = vadd.f32 %v1565, %v2754
      %v2756 = vpop.f32.mrf.mxu0
      %v2757 = vpop.f32.mrf.mxu0
      %v2758 = vadd.f32 %v1565, %v2757
      %v2759 = vpop.f32.mrf.mxu0
      %2760 = vmatprep.mubr.bf16.mxu0 0
      %2761 = vmatmul.mubr.bf16.gmra.mxu0 %v2606
      %v2762 = vpop.f32.mrf.mxu0
      %v2763 = vadd.f32 %v1565, %v2762
      %v2764 = vpop.f32.mrf.mxu0
      %v2765 = vpop.f32.mrf.mxu0
      %v2766 = vadd.f32 %v1565, %v2765
      %v2767 = vpop.f32.mrf.mxu0
      %2768 = vmatprep.mubr.bf16.mxu0 0
      %2769 = vmatmul.mubr.bf16.gmra.mxu0 %v2609
      %v2770 = vpop.f32.mrf.mxu0
      %v2771 = vadd.f32 %v1565, %v2770
      %v2772 = vpop.f32.mrf.mxu0
      %v2773 = vpop.f32.mrf.mxu0
      %v2774 = vadd.f32 %v1565, %v2773
      %v2775 = vpop.f32.mrf.mxu0
      %2776 = vmatprep.mubr.bf16.mxu0 0
      %2777 = vmatmul.mubr.bf16.gmra.mxu0 %v2612
      %v2778 = vpop.f32.mrf.mxu0
      %v2779 = vadd.f32 %v1565, %v2778
      %v2780 = vpop.f32.mrf.mxu0
      %v2781 = vpop.f32.mrf.mxu0
      %v2782 = vadd.f32 %v1565, %v2781
      %v2783 = vpop.f32.mrf.mxu0
      %2784 = vmatprep.mubr.bf16.mxu0 0
      %2785 = vmatmul.mubr.bf16.gmra.mxu0 %v2615
      %v2786 = vpop.f32.mrf.mxu0
      %v2787 = vadd.f32 %v1565, %v2786
      %v2788 = vpop.f32.mrf.mxu0
      %v2789 = vpop.f32.mrf.mxu0
      %v2790 = vadd.f32 %v1565, %v2789
      %v2791 = vpop.f32.mrf.mxu0
      %2792 = vmatprep.mubr.bf16.mxu0 0
      %2793 = vmatmul.mubr.bf16.gmra.mxu0 %v2618
      %v2794 = vpop.f32.mrf.mxu0
      %v2795 = vadd.f32 %v1565, %v2794
      %v2796 = vpop.f32.mrf.mxu0
      %v2797 = vpop.f32.mrf.mxu0
      %v2798 = vadd.f32 %v1565, %v2797
      %v2799 = vpop.f32.mrf.mxu0
      %2800 = vmatprep.mubr.bf16.mxu0 0
      %2801 = vmatmul.mubr.bf16.gmra.mxu0 %v2621
      %v2802 = vpop.f32.mrf.mxu0
      %v2803 = vadd.f32 %v1565, %v2802
      %v2804 = vpop.f32.mrf.mxu0
      %v2805 = vpop.f32.mrf.mxu0
      %v2806 = vadd.f32 %v1565, %v2805
      %v2807 = vpop.f32.mrf.mxu0
      %2808 = vmatprep.mubr.bf16.mxu0 0
      %2809 = vmatmul.mubr.bf16.gmra.mxu0 %v2624
      %v2810 = vpop.f32.mrf.mxu0
      %v2811 = vadd.f32 %v1565, %v2810
      %v2812 = vpop.f32.mrf.mxu0
      %v2813 = vpop.f32.mrf.mxu0
      %v2814 = vadd.f32 %v1565, %v2813
      %v2815 = vpop.f32.mrf.mxu0
      %2816 = vmatprep.mubr.bf16.mxu0 0
      %2817 = vmatmul.mubr.bf16.gmra.mxu0 %v2627
      %v2818 = vpop.f32.mrf.mxu0
      %v2819 = vadd.f32 %v1565, %v2818
      %v2820 = vpop.f32.mrf.mxu0
      %v2821 = vpop.f32.mrf.mxu0
      %v2822 = vadd.f32 %v1565, %v2821
      %v2823 = vpop.f32.mrf.mxu0
      %2824 = vmatprep.mubr.bf16.mxu0 0
      %2825 = vmatmul.mubr.bf16.gmra.mxu0 %v2630
      %v2826 = vpop.f32.mrf.mxu0
      %v2827 = vadd.f32 %v1565, %v2826
      %v2828 = vpop.f32.mrf.mxu0
      %v2829 = vpop.f32.mrf.mxu0
      %v2830 = vpop.f32.mrf.mxu0
      %2831 = vdwg.mxu0
      %v2832 = vmax.f32 %v2667, 0.0
      %v2833 = vmax.f32 %v2670, 0.0
      %v2834 = vmax.f32 %v2675, 0.0
      %v2835 = vmax.f32 %v2678, 0.0
      %v2836 = vmax.f32 %v2683, 0.0
      %v2837 = vmax.f32 %v2686, 0.0
      %v2838 = vmax.f32 %v2691, 0.0
      %v2839 = vmax.f32 %v2694, 0.0
      %v2840 = vmax.f32 %v2699, 0.0
      %v2841 = vmax.f32 %v2702, 0.0
      %v2842 = vmax.f32 %v2707, 0.0
      %v2843 = vmax.f32 %v2710, 0.0
      %v2844 = vmax.f32 %v2715, 0.0
      %v2845 = vmax.f32 %v2718, 0.0
      %v2846 = vmax.f32 %v2723, 0.0
      %v2847 = vmax.f32 %v2726, 0.0
      %v2848 = vmax.f32 %v2731, 0.0
      %v2849 = vmax.f32 %v2734, 0.0
      %v2850 = vmax.f32 %v2739, 0.0
      %v2851 = vmax.f32 %v2742, 0.0
      %v2852 = vmax.f32 %v2747, 0.0
      %v2853 = vmax.f32 %v2750, 0.0
      %v2854 = vmax.f32 %v2755, 0.0
      %v2855 = vmax.f32 %v2758, 0.0
      %v2856 = vmax.f32 %v2763, 0.0
      %v2857 = vmax.f32 %v2766, 0.0
      %v2858 = vmax.f32 %v2771, 0.0
      %v2859 = vmax.f32 %v2774, 0.0
      %v2860 = vmax.f32 %v2779, 0.0
      %v2861 = vmax.f32 %v2782, 0.0
      %v2862 = vmax.f32 %v2787, 0.0
      %v2863 = vmax.f32 %v2790, 0.0
      %v2864 = vmax.f32 %v2795, 0.0
      %v2865 = vmax.f32 %v2798, 0.0
      %v2866 = vmax.f32 %v2803, 0.0
      %v2867 = vmax.f32 %v2806, 0.0
      %v2868 = vmax.f32 %v2811, 0.0
      %v2869 = vmax.f32 %v2814, 0.0
      %v2870 = vmax.f32 %v2819, 0.0
      %v2871 = vmax.f32 %v2822, 0.0
      %v2872 = vmax.f32 %v2827, 0.0
      %v2914 = vcombine.high %v2832, %v2832
      %v2916 = vunpack.c.l.s4 1983009808
      %v2917 = vunpack.c.0.s8 %v2916
      %v2918 = vlaneseq
      %v2919 = vshrl.u32 %v2918, 7
      %v2920 = vsub.s32 %v2917, %v2919
      %v2921 = vrot.slane %v2832, %v2920
      %v2923 = vunpack.c.l.s4 1983009808
      %v2924 = vunpack.c.0.s8 %v2923
      %v2925 = vlaneseq
      %v2926 = vshrl.u32 %v2925, 7
      %v2927 = vsub.s32 %v2924, %v2926
      %v2928 = vrot.slane %v2914, %v2927
      %v2929 = vcombine.high %v2921, %v2921
      %v2930 = vcombine.high %v2928, %v2928
      %v2931 = vcombine.high %v2833, %v2833
      %v2933 = vunpack.c.l.s4 1983009808
      %v2934 = vunpack.c.0.s8 %v2933
      %v2935 = vlaneseq
      %v2936 = vshrl.u32 %v2935, 7
      %v2937 = vsub.s32 %v2934, %v2936
      %v2938 = vrot.slane %v2833, %v2937
      %v2940 = vunpack.c.l.s4 1983009808
      %v2941 = vunpack.c.0.s8 %v2940
      %v2942 = vlaneseq
      %v2943 = vshrl.u32 %v2942, 7
      %v2944 = vsub.s32 %v2941, %v2943
      %v2945 = vrot.slane %v2931, %v2944
      %v2946 = vcombine.high %v2938, %v2938
      %v2947 = vcombine.high %v2945, %v2945
      %v2948 = vcombine.high %v2834, %v2834
      %v2950 = vunpack.c.l.s4 1983009808
      %v2951 = vunpack.c.0.s8 %v2950
      %v2952 = vlaneseq
      %v2953 = vshrl.u32 %v2952, 7
      %v2954 = vsub.s32 %v2951, %v2953
      %v2955 = vrot.slane %v2834, %v2954
      %v2957 = vunpack.c.l.s4 1983009808
      %v2958 = vunpack.c.0.s8 %v2957
      %v2959 = vlaneseq
      %v2960 = vshrl.u32 %v2959, 7
      %v2961 = vsub.s32 %v2958, %v2960
      %v2962 = vrot.slane %v2948, %v2961
      %v2963 = vcombine.high %v2955, %v2955
      %v2964 = vcombine.high %v2962, %v2962
      %v2965 = vcombine.high %v2835, %v2835
      %v2967 = vunpack.c.l.s4 1983009808
      %v2968 = vunpack.c.0.s8 %v2967
      %v2969 = vlaneseq
      %v2970 = vshrl.u32 %v2969, 7
      %v2971 = vsub.s32 %v2968, %v2970
      %v2972 = vrot.slane %v2835, %v2971
      %v2974 = vunpack.c.l.s4 1983009808
      %v2975 = vunpack.c.0.s8 %v2974
      %v2976 = vlaneseq
      %v2977 = vshrl.u32 %v2976, 7
      %v2978 = vsub.s32 %v2975, %v2977
      %v2979 = vrot.slane %v2965, %v2978
      %v2980 = vcombine.high %v2972, %v2972
      %v2981 = vcombine.high %v2979, %v2979
      %v2982 = vcombine.high %v2836, %v2836
      %v2984 = vunpack.c.l.s4 1983009808
      %v2985 = vunpack.c.0.s8 %v2984
      %v2986 = vlaneseq
      %v2987 = vshrl.u32 %v2986, 7
      %v2988 = vsub.s32 %v2985, %v2987
      %v2989 = vrot.slane %v2836, %v2988
      %v2991 = vunpack.c.l.s4 1983009808
      %v2992 = vunpack.c.0.s8 %v2991
      %v2993 = vlaneseq
      %v2994 = vshrl.u32 %v2993, 7
      %v2995 = vsub.s32 %v2992, %v2994
      %v2996 = vrot.slane %v2982, %v2995
      %v2997 = vcombine.high %v2989, %v2989
      %v2998 = vcombine.high %v2996, %v2996
      %v2999 = vcombine.high %v2837, %v2837
      %v3001 = vunpack.c.l.s4 1983009808
      %v3002 = vunpack.c.0.s8 %v3001
      %v3003 = vlaneseq
      %v3004 = vshrl.u32 %v3003, 7
      %v3005 = vsub.s32 %v3002, %v3004
      %v3006 = vrot.slane %v2837, %v3005
      %v3008 = vunpack.c.l.s4 1983009808
      %v3009 = vunpack.c.0.s8 %v3008
      %v3010 = vlaneseq
      %v3011 = vshrl.u32 %v3010, 7
      %v3012 = vsub.s32 %v3009, %v3011
      %v3013 = vrot.slane %v2999, %v3012
      %v3014 = vcombine.high %v3006, %v3006
      %v3015 = vcombine.high %v3013, %v3013
      %v3016 = vcombine.high %v2838, %v2838
      %v3018 = vunpack.c.l.s4 1983009808
      %v3019 = vunpack.c.0.s8 %v3018
      %v3020 = vlaneseq
      %v3021 = vshrl.u32 %v3020, 7
      %v3022 = vsub.s32 %v3019, %v3021
      %v3023 = vrot.slane %v2838, %v3022
      %v3025 = vunpack.c.l.s4 1983009808
      %v3026 = vunpack.c.0.s8 %v3025
      %v3027 = vlaneseq
      %v3028 = vshrl.u32 %v3027, 7
      %v3029 = vsub.s32 %v3026, %v3028
      %v3030 = vrot.slane %v3016, %v3029
      %v3031 = vcombine.high %v3023, %v3023
      %v3032 = vcombine.high %v3030, %v3030
      %v3033 = vcombine.high %v2839, %v2839
      %v3035 = vunpack.c.l.s4 1983009808
      %v3036 = vunpack.c.0.s8 %v3035
      %v3037 = vlaneseq
      %v3038 = vshrl.u32 %v3037, 7
      %v3039 = vsub.s32 %v3036, %v3038
      %v3040 = vrot.slane %v2839, %v3039
      %v3042 = vunpack.c.l.s4 1983009808
      %v3043 = vunpack.c.0.s8 %v3042
      %v3044 = vlaneseq
      %v3045 = vshrl.u32 %v3044, 7
      %v3046 = vsub.s32 %v3043, %v3045
      %v3047 = vrot.slane %v3033, %v3046
      %v3048 = vcombine.high %v3040, %v3040
      %v3049 = vcombine.high %v3047, %v3047
      %v3050 = vcombine.high %v2840, %v2840
      %v3052 = vunpack.c.l.s4 1983009808
      %v3053 = vunpack.c.0.s8 %v3052
      %v3054 = vlaneseq
      %v3055 = vshrl.u32 %v3054, 7
      %v3056 = vsub.s32 %v3053, %v3055
      %v3057 = vrot.slane %v2840, %v3056
      %v3059 = vunpack.c.l.s4 1983009808
      %v3060 = vunpack.c.0.s8 %v3059
      %v3061 = vlaneseq
      %v3062 = vshrl.u32 %v3061, 7
      %v3063 = vsub.s32 %v3060, %v3062
      %v3064 = vrot.slane %v3050, %v3063
      %v3065 = vcombine.high %v3057, %v3057
      %v3066 = vcombine.high %v3064, %v3064
      %v3067 = vcombine.high %v2841, %v2841
      %v3069 = vunpack.c.l.s4 1983009808
      %v3070 = vunpack.c.0.s8 %v3069
      %v3071 = vlaneseq
      %v3072 = vshrl.u32 %v3071, 7
      %v3073 = vsub.s32 %v3070, %v3072
      %v3074 = vrot.slane %v2841, %v3073
      %v3076 = vunpack.c.l.s4 1983009808
      %v3077 = vunpack.c.0.s8 %v3076
      %v3078 = vlaneseq
      %v3079 = vshrl.u32 %v3078, 7
      %v3080 = vsub.s32 %v3077, %v3079
      %v3081 = vrot.slane %v3067, %v3080
      %v3082 = vcombine.high %v3074, %v3074
      %v3083 = vcombine.high %v3081, %v3081
      %v3084 = vcombine.high %v2842, %v2842
      %v3086 = vunpack.c.l.s4 1983009808
      %v3087 = vunpack.c.0.s8 %v3086
      %v3088 = vlaneseq
      %v3089 = vshrl.u32 %v3088, 7
      %v3090 = vsub.s32 %v3087, %v3089
      %v3091 = vrot.slane %v2842, %v3090
      %v3093 = vunpack.c.l.s4 1983009808
      %v3094 = vunpack.c.0.s8 %v3093
      %v3095 = vlaneseq
      %v3096 = vshrl.u32 %v3095, 7
      %v3097 = vsub.s32 %v3094, %v3096
      %v3098 = vrot.slane %v3084, %v3097
      %v3099 = vcombine.high %v3091, %v3091
      %v3100 = vcombine.high %v3098, %v3098
      %v3101 = vcombine.high %v2843, %v2843
      %v3103 = vunpack.c.l.s4 1983009808
      %v3104 = vunpack.c.0.s8 %v3103
      %v3105 = vlaneseq
      %v3106 = vshrl.u32 %v3105, 7
      %v3107 = vsub.s32 %v3104, %v3106
      %v3108 = vrot.slane %v2843, %v3107
      %v3110 = vunpack.c.l.s4 1983009808
      %v3111 = vunpack.c.0.s8 %v3110
      %v3112 = vlaneseq
      %v3113 = vshrl.u32 %v3112, 7
      %v3114 = vsub.s32 %v3111, %v3113
      %v3115 = vrot.slane %v3101, %v3114
      %v3116 = vcombine.high %v3108, %v3108
      %v3117 = vcombine.high %v3115, %v3115
      %v3118 = vcombine.high %v2844, %v2844
      %v3120 = vunpack.c.l.s4 1983009808
      %v3121 = vunpack.c.0.s8 %v3120
      %v3122 = vlaneseq
      %v3123 = vshrl.u32 %v3122, 7
      %v3124 = vsub.s32 %v3121, %v3123
      %v3125 = vrot.slane %v2844, %v3124
      %v3127 = vunpack.c.l.s4 1983009808
      %v3128 = vunpack.c.0.s8 %v3127
      %v3129 = vlaneseq
      %v3130 = vshrl.u32 %v3129, 7
      %v3131 = vsub.s32 %v3128, %v3130
      %v3132 = vrot.slane %v3118, %v3131
      %v3133 = vcombine.high %v3125, %v3125
      %v3134 = vcombine.high %v3132, %v3132
      %v3135 = vcombine.high %v2845, %v2845
      %v3137 = vunpack.c.l.s4 1983009808
      %v3138 = vunpack.c.0.s8 %v3137
      %v3139 = vlaneseq
      %v3140 = vshrl.u32 %v3139, 7
      %v3141 = vsub.s32 %v3138, %v3140
      %v3142 = vrot.slane %v2845, %v3141
      %v3144 = vunpack.c.l.s4 1983009808
      %v3145 = vunpack.c.0.s8 %v3144
      %v3146 = vlaneseq
      %v3147 = vshrl.u32 %v3146, 7
      %v3148 = vsub.s32 %v3145, %v3147
      %v3149 = vrot.slane %v3135, %v3148
      %v3150 = vcombine.high %v3142, %v3142
      %v3151 = vcombine.high %v3149, %v3149
      %v3152 = vcombine.high %v2846, %v2846
      %v3154 = vunpack.c.l.s4 1983009808
      %v3155 = vunpack.c.0.s8 %v3154
      %v3156 = vlaneseq
      %v3157 = vshrl.u32 %v3156, 7
      %v3158 = vsub.s32 %v3155, %v3157
      %v3159 = vrot.slane %v2846, %v3158
      %v3161 = vunpack.c.l.s4 1983009808
      %v3162 = vunpack.c.0.s8 %v3161
      %v3163 = vlaneseq
      %v3164 = vshrl.u32 %v3163, 7
      %v3165 = vsub.s32 %v3162, %v3164
      %v3166 = vrot.slane %v3152, %v3165
      %v3167 = vcombine.high %v3159, %v3159
      %v3168 = vcombine.high %v3166, %v3166
      %v3169 = vcombine.high %v2847, %v2847
      %v3171 = vunpack.c.l.s4 1983009808
      %v3172 = vunpack.c.0.s8 %v3171
      %v3173 = vlaneseq
      %v3174 = vshrl.u32 %v3173, 7
      %v3175 = vsub.s32 %v3172, %v3174
      %v3176 = vrot.slane %v2847, %v3175
      %v3178 = vunpack.c.l.s4 1983009808
      %v3179 = vunpack.c.0.s8 %v3178
      %v3180 = vlaneseq
      %v3181 = vshrl.u32 %v3180, 7
      %v3182 = vsub.s32 %v3179, %v3181
      %v3183 = vrot.slane %v3169, %v3182
      %v3184 = vcombine.high %v3176, %v3176
      %v3185 = vcombine.high %v3183, %v3183
      %v3186 = vcombine.high %v2848, %v2848
      %v3188 = vunpack.c.l.s4 1983009808
      %v3189 = vunpack.c.0.s8 %v3188
      %v3190 = vlaneseq
      %v3191 = vshrl.u32 %v3190, 7
      %v3192 = vsub.s32 %v3189, %v3191
      %v3193 = vrot.slane %v2848, %v3192
      %v3195 = vunpack.c.l.s4 1983009808
      %v3196 = vunpack.c.0.s8 %v3195
      %v3197 = vlaneseq
      %v3198 = vshrl.u32 %v3197, 7
      %v3199 = vsub.s32 %v3196, %v3198
      %v3200 = vrot.slane %v3186, %v3199
      %v3201 = vcombine.high %v3193, %v3193
      %v3202 = vcombine.high %v3200, %v3200
      %v3203 = vcombine.high %v2849, %v2849
      %v3205 = vunpack.c.l.s4 1983009808
      %v3206 = vunpack.c.0.s8 %v3205
      %v3207 = vlaneseq
      %v3208 = vshrl.u32 %v3207, 7
      %v3209 = vsub.s32 %v3206, %v3208
      %v3210 = vrot.slane %v2849, %v3209
      %v3212 = vunpack.c.l.s4 1983009808
      %v3213 = vunpack.c.0.s8 %v3212
      %v3214 = vlaneseq
      %v3215 = vshrl.u32 %v3214, 7
      %v3216 = vsub.s32 %v3213, %v3215
      %v3217 = vrot.slane %v3203, %v3216
      %v3218 = vcombine.high %v3210, %v3210
      %v3219 = vcombine.high %v3217, %v3217
      %v3220 = vcombine.high %v2850, %v2850
      %v3222 = vunpack.c.l.s4 1983009808
      %v3223 = vunpack.c.0.s8 %v3222
      %v3224 = vlaneseq
      %v3225 = vshrl.u32 %v3224, 7
      %v3226 = vsub.s32 %v3223, %v3225
      %v3227 = vrot.slane %v2850, %v3226
      %v3229 = vunpack.c.l.s4 1983009808
      %v3230 = vunpack.c.0.s8 %v3229
      %v3231 = vlaneseq
      %v3232 = vshrl.u32 %v3231, 7
      %v3233 = vsub.s32 %v3230, %v3232
      %v3234 = vrot.slane %v3220, %v3233
      %v3235 = vcombine.high %v3227, %v3227
      %v3236 = vcombine.high %v3234, %v3234
      %v3237 = vcombine.high %v2851, %v2851
      %v3239 = vunpack.c.l.s4 1983009808
      %v3240 = vunpack.c.0.s8 %v3239
      %v3241 = vlaneseq
      %v3242 = vshrl.u32 %v3241, 7
      %v3243 = vsub.s32 %v3240, %v3242
      %v3244 = vrot.slane %v2851, %v3243
      %v3246 = vunpack.c.l.s4 1983009808
      %v3247 = vunpack.c.0.s8 %v3246
      %v3248 = vlaneseq
      %v3249 = vshrl.u32 %v3248, 7
      %v3250 = vsub.s32 %v3247, %v3249
      %v3251 = vrot.slane %v3237, %v3250
      %v3252 = vcombine.high %v3244, %v3244
      %v3253 = vcombine.high %v3251, %v3251
      %v3254 = vcombine.high %v2852, %v2852
      %v3256 = vunpack.c.l.s4 1983009808
      %v3257 = vunpack.c.0.s8 %v3256
      %v3258 = vlaneseq
      %v3259 = vshrl.u32 %v3258, 7
      %v3260 = vsub.s32 %v3257, %v3259
      %v3261 = vrot.slane %v2852, %v3260
      %v3263 = vunpack.c.l.s4 1983009808
      %v3264 = vunpack.c.0.s8 %v3263
      %v3265 = vlaneseq
      %v3266 = vshrl.u32 %v3265, 7
      %v3267 = vsub.s32 %v3264, %v3266
      %v3268 = vrot.slane %v3254, %v3267
      %v3269 = vcombine.high %v3261, %v3261
      %v3270 = vcombine.high %v3268, %v3268
      %v3271 = vcombine.high %v2853, %v2853
      %v3273 = vunpack.c.l.s4 1983009808
      %v3274 = vunpack.c.0.s8 %v3273
      %v3275 = vlaneseq
      %v3276 = vshrl.u32 %v3275, 7
      %v3277 = vsub.s32 %v3274, %v3276
      %v3278 = vrot.slane %v2853, %v3277
      %v3280 = vunpack.c.l.s4 1983009808
      %v3281 = vunpack.c.0.s8 %v3280
      %v3282 = vlaneseq
      %v3283 = vshrl.u32 %v3282, 7
      %v3284 = vsub.s32 %v3281, %v3283
      %v3285 = vrot.slane %v3271, %v3284
      %v3286 = vcombine.high %v3278, %v3278
      %v3287 = vcombine.high %v3285, %v3285
      %v3288 = vcombine.high %v2854, %v2854
      %v3290 = vunpack.c.l.s4 1983009808
      %v3291 = vunpack.c.0.s8 %v3290
      %v3292 = vlaneseq
      %v3293 = vshrl.u32 %v3292, 7
      %v3294 = vsub.s32 %v3291, %v3293
      %v3295 = vrot.slane %v2854, %v3294
      %v3297 = vunpack.c.l.s4 1983009808
      %v3298 = vunpack.c.0.s8 %v3297
      %v3299 = vlaneseq
      %v3300 = vshrl.u32 %v3299, 7
      %v3301 = vsub.s32 %v3298, %v3300
      %v3302 = vrot.slane %v3288, %v3301
      %v3303 = vcombine.high %v3295, %v3295
      %v3304 = vcombine.high %v3302, %v3302
      %v3305 = vcombine.high %v2855, %v2855
      %v3307 = vunpack.c.l.s4 1983009808
      %v3308 = vunpack.c.0.s8 %v3307
      %v3309 = vlaneseq
      %v3310 = vshrl.u32 %v3309, 7
      %v3311 = vsub.s32 %v3308, %v3310
      %v3312 = vrot.slane %v2855, %v3311
      %v3314 = vunpack.c.l.s4 1983009808
      %v3315 = vunpack.c.0.s8 %v3314
      %v3316 = vlaneseq
      %v3317 = vshrl.u32 %v3316, 7
      %v3318 = vsub.s32 %v3315, %v3317
      %v3319 = vrot.slane %v3305, %v3318
      %v3320 = vcombine.high %v3312, %v3312
      %v3321 = vcombine.high %v3319, %v3319
      %v3322 = vcombine.high %v2856, %v2856
      %v3324 = vunpack.c.l.s4 1983009808
      %v3325 = vunpack.c.0.s8 %v3324
      %v3326 = vlaneseq
      %v3327 = vshrl.u32 %v3326, 7
      %v3328 = vsub.s32 %v3325, %v3327
      %v3329 = vrot.slane %v2856, %v3328
      %v3331 = vunpack.c.l.s4 1983009808
      %v3332 = vunpack.c.0.s8 %v3331
      %v3333 = vlaneseq
      %v3334 = vshrl.u32 %v3333, 7
      %v3335 = vsub.s32 %v3332, %v3334
      %v3336 = vrot.slane %v3322, %v3335
      %v3337 = vcombine.high %v3329, %v3329
      %v3338 = vcombine.high %v3336, %v3336
      %v3339 = vcombine.high %v2857, %v2857
      %v3341 = vunpack.c.l.s4 1983009808
      %v3342 = vunpack.c.0.s8 %v3341
      %v3343 = vlaneseq
      %v3344 = vshrl.u32 %v3343, 7
      %v3345 = vsub.s32 %v3342, %v3344
      %v3346 = vrot.slane %v2857, %v3345
      %v3348 = vunpack.c.l.s4 1983009808
      %v3349 = vunpack.c.0.s8 %v3348
      %v3350 = vlaneseq
      %v3351 = vshrl.u32 %v3350, 7
      %v3352 = vsub.s32 %v3349, %v3351
      %v3353 = vrot.slane %v3339, %v3352
      %v3354 = vcombine.high %v3346, %v3346
      %v3355 = vcombine.high %v3353, %v3353
      %v3356 = vcombine.high %v2858, %v2858
      %v3358 = vunpack.c.l.s4 1983009808
      %v3359 = vunpack.c.0.s8 %v3358
      %v3360 = vlaneseq
      %v3361 = vshrl.u32 %v3360, 7
      %v3362 = vsub.s32 %v3359, %v3361
      %v3363 = vrot.slane %v2858, %v3362
      %v3365 = vunpack.c.l.s4 1983009808
      %v3366 = vunpack.c.0.s8 %v3365
      %v3367 = vlaneseq
      %v3368 = vshrl.u32 %v3367, 7
      %v3369 = vsub.s32 %v3366, %v3368
      %v3370 = vrot.slane %v3356, %v3369
      %v3371 = vcombine.high %v3363, %v3363
      %v3372 = vcombine.high %v3370, %v3370
      %v3373 = vcombine.high %v2859, %v2859
      %v3375 = vunpack.c.l.s4 1983009808
      %v3376 = vunpack.c.0.s8 %v3375
      %v3377 = vlaneseq
      %v3378 = vshrl.u32 %v3377, 7
      %v3379 = vsub.s32 %v3376, %v3378
      %v3380 = vrot.slane %v2859, %v3379
      %v3382 = vunpack.c.l.s4 1983009808
      %v3383 = vunpack.c.0.s8 %v3382
      %v3384 = vlaneseq
      %v3385 = vshrl.u32 %v3384, 7
      %v3386 = vsub.s32 %v3383, %v3385
      %v3387 = vrot.slane %v3373, %v3386
      %v3388 = vcombine.high %v3380, %v3380
      %v3389 = vcombine.high %v3387, %v3387
      %v3390 = vcombine.high %v2860, %v2860
      %v3392 = vunpack.c.l.s4 1983009808
      %v3393 = vunpack.c.0.s8 %v3392
      %v3394 = vlaneseq
      %v3395 = vshrl.u32 %v3394, 7
      %v3396 = vsub.s32 %v3393, %v3395
      %v3397 = vrot.slane %v2860, %v3396
      %v3399 = vunpack.c.l.s4 1983009808
      %v3400 = vunpack.c.0.s8 %v3399
      %v3401 = vlaneseq
      %v3402 = vshrl.u32 %v3401, 7
      %v3403 = vsub.s32 %v3400, %v3402
      %v3404 = vrot.slane %v3390, %v3403
      %v3405 = vcombine.high %v3397, %v3397
      %v3406 = vcombine.high %v3404, %v3404
      %v3407 = vcombine.high %v2861, %v2861
      %v3409 = vunpack.c.l.s4 1983009808
      %v3410 = vunpack.c.0.s8 %v3409
      %v3411 = vlaneseq
      %v3412 = vshrl.u32 %v3411, 7
      %v3413 = vsub.s32 %v3410, %v3412
      %v3414 = vrot.slane %v2861, %v3413
      %v3416 = vunpack.c.l.s4 1983009808
      %v3417 = vunpack.c.0.s8 %v3416
      %v3418 = vlaneseq
      %v3419 = vshrl.u32 %v3418, 7
      %v3420 = vsub.s32 %v3417, %v3419
      %v3421 = vrot.slane %v3407, %v3420
      %v3422 = vcombine.high %v3414, %v3414
      %v3423 = vcombine.high %v3421, %v3421
      %v3424 = vcombine.high %v2862, %v2862
      %v3426 = vunpack.c.l.s4 1983009808
      %v3427 = vunpack.c.0.s8 %v3426
      %v3428 = vlaneseq
      %v3429 = vshrl.u32 %v3428, 7
      %v3430 = vsub.s32 %v3427, %v3429
      %v3431 = vrot.slane %v2862, %v3430
      %v3433 = vunpack.c.l.s4 1983009808
      %v3434 = vunpack.c.0.s8 %v3433
      %v3435 = vlaneseq
      %v3436 = vshrl.u32 %v3435, 7
      %v3437 = vsub.s32 %v3434, %v3436
      %v3438 = vrot.slane %v3424, %v3437
      %v3439 = vcombine.high %v3431, %v3431
      %v3440 = vcombine.high %v3438, %v3438
      %v3441 = vcombine.high %v2863, %v2863
      %v3443 = vunpack.c.l.s4 1983009808
      %v3444 = vunpack.c.0.s8 %v3443
      %v3445 = vlaneseq
      %v3446 = vshrl.u32 %v3445, 7
      %v3447 = vsub.s32 %v3444, %v3446
      %v3448 = vrot.slane %v2863, %v3447
      %v3450 = vunpack.c.l.s4 1983009808
      %v3451 = vunpack.c.0.s8 %v3450
      %v3452 = vlaneseq
      %v3453 = vshrl.u32 %v3452, 7
      %v3454 = vsub.s32 %v3451, %v3453
      %v3455 = vrot.slane %v3441, %v3454
      %v3456 = vcombine.high %v3448, %v3448
      %v3457 = vcombine.high %v3455, %v3455
      %v3458 = vcombine.high %v2864, %v2864
      %v3460 = vunpack.c.l.s4 1983009808
      %v3461 = vunpack.c.0.s8 %v3460
      %v3462 = vlaneseq
      %v3463 = vshrl.u32 %v3462, 7
      %v3464 = vsub.s32 %v3461, %v3463
      %v3465 = vrot.slane %v2864, %v3464
      %v3467 = vunpack.c.l.s4 1983009808
      %v3468 = vunpack.c.0.s8 %v3467
      %v3469 = vlaneseq
      %v3470 = vshrl.u32 %v3469, 7
      %v3471 = vsub.s32 %v3468, %v3470
      %v3472 = vrot.slane %v3458, %v3471
      %v3473 = vcombine.high %v3465, %v3465
      %v3474 = vcombine.high %v3472, %v3472
      %v3475 = vcombine.high %v2865, %v2865
      %v3477 = vunpack.c.l.s4 1983009808
      %v3478 = vunpack.c.0.s8 %v3477
      %v3479 = vlaneseq
      %v3480 = vshrl.u32 %v3479, 7
      %v3481 = vsub.s32 %v3478, %v3480
      %v3482 = vrot.slane %v2865, %v3481
      %v3484 = vunpack.c.l.s4 1983009808
      %v3485 = vunpack.c.0.s8 %v3484
      %v3486 = vlaneseq
      %v3487 = vshrl.u32 %v3486, 7
      %v3488 = vsub.s32 %v3485, %v3487
      %v3489 = vrot.slane %v3475, %v3488
      %v3490 = vcombine.high %v3482, %v3482
      %v3491 = vcombine.high %v3489, %v3489
      %v3492 = vcombine.high %v2866, %v2866
      %v3494 = vunpack.c.l.s4 1983009808
      %v3495 = vunpack.c.0.s8 %v3494
      %v3496 = vlaneseq
      %v3497 = vshrl.u32 %v3496, 7
      %v3498 = vsub.s32 %v3495, %v3497
      %v3499 = vrot.slane %v2866, %v3498
      %v3501 = vunpack.c.l.s4 1983009808
      %v3502 = vunpack.c.0.s8 %v3501
      %v3503 = vlaneseq
      %v3504 = vshrl.u32 %v3503, 7
      %v3505 = vsub.s32 %v3502, %v3504
      %v3506 = vrot.slane %v3492, %v3505
      %v3507 = vcombine.high %v3499, %v3499
      %v3508 = vcombine.high %v3506, %v3506
      %v3509 = vcombine.high %v2867, %v2867
      %v3511 = vunpack.c.l.s4 1983009808
      %v3512 = vunpack.c.0.s8 %v3511
      %v3513 = vlaneseq
      %v3514 = vshrl.u32 %v3513, 7
      %v3515 = vsub.s32 %v3512, %v3514
      %v3516 = vrot.slane %v2867, %v3515
      %v3518 = vunpack.c.l.s4 1983009808
      %v3519 = vunpack.c.0.s8 %v3518
      %v3520 = vlaneseq
      %v3521 = vshrl.u32 %v3520, 7
      %v3522 = vsub.s32 %v3519, %v3521
      %v3523 = vrot.slane %v3509, %v3522
      %v3524 = vcombine.high %v3516, %v3516
      %v3525 = vcombine.high %v3523, %v3523
      %v3526 = vcombine.high %v2868, %v2868
      %v3528 = vunpack.c.l.s4 1983009808
      %v3529 = vunpack.c.0.s8 %v3528
      %v3530 = vlaneseq
      %v3531 = vshrl.u32 %v3530, 7
      %v3532 = vsub.s32 %v3529, %v3531
      %v3533 = vrot.slane %v2868, %v3532
      %v3535 = vunpack.c.l.s4 1983009808
      %v3536 = vunpack.c.0.s8 %v3535
      %v3537 = vlaneseq
      %v3538 = vshrl.u32 %v3537, 7
      %v3539 = vsub.s32 %v3536, %v3538
      %v3540 = vrot.slane %v3526, %v3539
      %v3541 = vcombine.high %v3533, %v3533
      %v3542 = vcombine.high %v3540, %v3540
      %v3543 = vcombine.high %v2869, %v2869
      %v3545 = vunpack.c.l.s4 1983009808
      %v3546 = vunpack.c.0.s8 %v3545
      %v3547 = vlaneseq
      %v3548 = vshrl.u32 %v3547, 7
      %v3549 = vsub.s32 %v3546, %v3548
      %v3550 = vrot.slane %v2869, %v3549
      %v3552 = vunpack.c.l.s4 1983009808
      %v3553 = vunpack.c.0.s8 %v3552
      %v3554 = vlaneseq
      %v3555 = vshrl.u32 %v3554, 7
      %v3556 = vsub.s32 %v3553, %v3555
      %v3557 = vrot.slane %v3543, %v3556
      %v3558 = vcombine.high %v3550, %v3550
      %v3559 = vcombine.high %v3557, %v3557
      %v3560 = vcombine.high %v2870, %v2870
      %v3562 = vunpack.c.l.s4 1983009808
      %v3563 = vunpack.c.0.s8 %v3562
      %v3564 = vlaneseq
      %v3565 = vshrl.u32 %v3564, 7
      %v3566 = vsub.s32 %v3563, %v3565
      %v3567 = vrot.slane %v2870, %v3566
      %v3569 = vunpack.c.l.s4 1983009808
      %v3570 = vunpack.c.0.s8 %v3569
      %v3571 = vlaneseq
      %v3572 = vshrl.u32 %v3571, 7
      %v3573 = vsub.s32 %v3570, %v3572
      %v3574 = vrot.slane %v3560, %v3573
      %v3575 = vcombine.high %v3567, %v3567
      %v3576 = vcombine.high %v3574, %v3574
      %v3577 = vcombine.high %v2871, %v2871
      %v3579 = vunpack.c.l.s4 1983009808
      %v3580 = vunpack.c.0.s8 %v3579
      %v3581 = vlaneseq
      %v3582 = vshrl.u32 %v3581, 7
      %v3583 = vsub.s32 %v3580, %v3582
      %v3584 = vrot.slane %v2871, %v3583
      %v3586 = vunpack.c.l.s4 1983009808
      %v3587 = vunpack.c.0.s8 %v3586
      %v3588 = vlaneseq
      %v3589 = vshrl.u32 %v3588, 7
      %v3590 = vsub.s32 %v3587, %v3589
      %v3591 = vrot.slane %v3577, %v3590
      %v3592 = vcombine.high %v3584, %v3584
      %v3593 = vcombine.high %v3591, %v3591
      %v3595 = vunpack.c.l.s4 1983009808
      %v3596 = vunpack.c.0.s8 %v3595
      %v3597 = vlaneseq
      %v3598 = vshrl.u32 %v3597, 7
      %v3599 = vsub.s32 %v3596, %v3598
      %v3600 = vrot.slane %v2872, %v3599
      %v3601 = vcombine.high %v3600, %v3600
      %v3602 = vlaneseq
      %v3603 = vshrl.u32 %v3602, 7
      %v3604 = vadd.s32 %v3603, 8
      %v3605 = vadd.s32 %v3603, 16
      %vm3606 = vcmp.ge.s32.totalorder %v3603, 1
      %vm3607 = vcmp.ge.s32.totalorder %v3604, 1
      %vm3608 = vcmp.ge.s32.totalorder %v3605, 1
      %vm3609 = vmand 0, %vm3606
      %vm3610 = vmand 0, %vm3607
      %vm3611 = vmand 0, %vm3608
      %vm3612 = vmand 1, %vm3606
      %vm3613 = vmand 1, %vm3607
      %vm3614 = vmand 1, %vm3608
      %vm3615 = vcmp.le.s32.totalorder %v3603, 16
      %vm3616 = vcmp.le.s32.totalorder %v3604, 16
      %vm3617 = vcmp.le.s32.totalorder %v3605, 16
      %vm3618 = vmand %vm3609, %vm3615
      %vm3619 = vmand %vm3610, %vm3616
      %vm3620 = vmand %vm3611, %vm3617
      %vm3621 = vmand %vm3612, %vm3615
      %vm3622 = vmand %vm3613, %vm3616
      %vm3623 = vmand %vm3614, %vm3617
      %v3624 = vsel %vm3618, 1, 0
      %v3625 = vsel %vm3619, 1, 0
      %v3626 = vsel %vm3620, 1, 0
      %v3627 = vsel %vm3621, 1, 0
      %v3628 = vsel %vm3622, 1, 0
      %v3629 = vsel %vm3623, 1, 0
      %vm3630 = vcmp.eq.s32.totalorder %v3624, 1
      %vm3631 = vcmp.eq.s32.totalorder %v3625, 1
      %vm3632 = vcmp.eq.s32.totalorder %v3626, 1
      %vm3633 = vcmp.eq.s32.totalorder %v3627, 1
      %vm3634 = vcmp.eq.s32.totalorder %v3628, 1
      %vm3635 = vcmp.eq.s32.totalorder %v3629, 1
      %v3636 = vcombine.low %v2921, %v2929
      %v3637 = vcombine.low %v2928, %v2930
      %v3639 = vunpack.c.l.s4 1983009808
      %v3640 = vunpack.c.0.s8 %v3639
      %v3641 = vlaneseq
      %v3642 = vshrl.u32 %v3641, 7
      %v3643 = vsub.s32 %v3640, %v3642
      %v3644 = vrot.slane %v3636, %v3643
      %v3646 = vunpack.c.l.s4 1983009808
      %v3647 = vunpack.c.0.s8 %v3646
      %v3648 = vlaneseq
      %v3649 = vshrl.u32 %v3648, 7
      %v3650 = vsub.s32 %v3647, %v3649
      %v3651 = vrot.slane %v3637, %v3650
      %v3652 = vcombine.low %v3644, %v3651
      %v3653 = vcombine.low %v2938, %v2946
      %v3654 = vcombine.low %v2945, %v2947
      %v3656 = vunpack.c.l.s4 1983009808
      %v3657 = vunpack.c.0.s8 %v3656
      %v3658 = vlaneseq
      %v3659 = vshrl.u32 %v3658, 7
      %v3660 = vsub.s32 %v3657, %v3659
      %v3661 = vrot.slane %v3653, %v3660
      %v3663 = vunpack.c.l.s4 1983009808
      %v3664 = vunpack.c.0.s8 %v3663
      %v3665 = vlaneseq
      %v3666 = vshrl.u32 %v3665, 7
      %v3667 = vsub.s32 %v3664, %v3666
      %v3668 = vrot.slane %v3654, %v3667
      %v3669 = vcombine.low %v3661, %v3668
      %v3671 = vunpack.c.l.s4 1983009808
      %v3672 = vunpack.c.0.s8 %v3671
      %v3673 = vlaneseq
      %v3674 = vshrl.u32 %v3673, 7
      %v3675 = vsub.s32 %v3672, %v3674
      %v3676 = vrot.slane %v2955, %v3675
      %v3677 = vcombine.low %v2963, %v2962
      %v3678 = vcombine.low %v2964, %v2972
      %v3680 = vunpack.c.l.s4 1983009808
      %v3681 = vunpack.c.0.s8 %v3680
      %v3682 = vlaneseq
      %v3683 = vshrl.u32 %v3682, 7
      %v3684 = vsub.s32 %v3681, %v3683
      %v3685 = vrot.slane %v3677, %v3684
      %v3687 = vunpack.c.l.s4 1983009808
      %v3688 = vunpack.c.0.s8 %v3687
      %v3689 = vlaneseq
      %v3690 = vshrl.u32 %v3689, 7
      %v3691 = vsub.s32 %v3688, %v3690
      %v3692 = vrot.slane %v3678, %v3691
      %v3693 = vcombine.low %v3685, %v3692
      %v3694 = vcombine.low %v2980, %v2979
      %v3695 = vcombine.low %v2981, %v2989
      %v3697 = vunpack.c.l.s4 1983009808
      %v3698 = vunpack.c.0.s8 %v3697
      %v3699 = vlaneseq
      %v3700 = vshrl.u32 %v3699, 7
      %v3701 = vsub.s32 %v3698, %v3700
      %v3702 = vrot.slane %v3694, %v3701
      %v3704 = vunpack.c.l.s4 1983009808
      %v3705 = vunpack.c.0.s8 %v3704
      %v3706 = vlaneseq
      %v3707 = vshrl.u32 %v3706, 7
      %v3708 = vsub.s32 %v3705, %v3707
      %v3709 = vrot.slane %v3695, %v3708
      %v3710 = vcombine.low %v3702, %v3709
      %v3712 = vunpack.c.l.s4 1983009808
      %v3713 = vunpack.c.0.s8 %v3712
      %v3714 = vlaneseq
      %v3715 = vshrl.u32 %v3714, 7
      %v3716 = vsub.s32 %v3713, %v3715
      %v3717 = vrot.slane %v2997, %v3716
      %v3718 = vcombine.low %v2996, %v2998
      %v3719 = vcombine.low %v3006, %v3014
      %v3721 = vunpack.c.l.s4 1983009808
      %v3722 = vunpack.c.0.s8 %v3721
      %v3723 = vlaneseq
      %v3724 = vshrl.u32 %v3723, 7
      %v3725 = vsub.s32 %v3722, %v3724
      %v3726 = vrot.slane %v3718, %v3725
      %v3728 = vunpack.c.l.s4 1983009808
      %v3729 = vunpack.c.0.s8 %v3728
      %v3730 = vlaneseq
      %v3731 = vshrl.u32 %v3730, 7
      %v3732 = vsub.s32 %v3729, %v3731
      %v3733 = vrot.slane %v3719, %v3732
      %v3734 = vcombine.low %v3726, %v3733
      %v3735 = vcombine.low %v3013, %v3015
      %v3736 = vcombine.low %v3023, %v3031
      %v3738 = vunpack.c.l.s4 1983009808
      %v3739 = vunpack.c.0.s8 %v3738
      %v3740 = vlaneseq
      %v3741 = vshrl.u32 %v3740, 7
      %v3742 = vsub.s32 %v3739, %v3741
      %v3743 = vrot.slane %v3735, %v3742
      %v3745 = vunpack.c.l.s4 1983009808
      %v3746 = vunpack.c.0.s8 %v3745
      %v3747 = vlaneseq
      %v3748 = vshrl.u32 %v3747, 7
      %v3749 = vsub.s32 %v3746, %v3748
      %v3750 = vrot.slane %v3736, %v3749
      %v3751 = vcombine.low %v3743, %v3750
      %v3753 = vunpack.c.l.s4 1983009808
      %v3754 = vunpack.c.0.s8 %v3753
      %v3755 = vlaneseq
      %v3756 = vshrl.u32 %v3755, 7
      %v3757 = vsub.s32 %v3754, %v3756
      %v3758 = vrot.slane %v3030, %v3757
      %v3759 = vcombine.low %v3032, %v3040
      %v3760 = vcombine.low %v3048, %v3047
      %v3762 = vunpack.c.l.s4 1983009808
      %v3763 = vunpack.c.0.s8 %v3762
      %v3764 = vlaneseq
      %v3765 = vshrl.u32 %v3764, 7
      %v3766 = vsub.s32 %v3763, %v3765
      %v3767 = vrot.slane %v3759, %v3766
      %v3769 = vunpack.c.l.s4 1983009808
      %v3770 = vunpack.c.0.s8 %v3769
      %v3771 = vlaneseq
      %v3772 = vshrl.u32 %v3771, 7
      %v3773 = vsub.s32 %v3770, %v3772
      %v3774 = vrot.slane %v3760, %v3773
      %v3775 = vcombine.low %v3767, %v3774
      %v3776 = vcombine.low %v3049, %v3057
      %v3777 = vcombine.low %v3065, %v3064
      %v3779 = vunpack.c.l.s4 1983009808
      %v3780 = vunpack.c.0.s8 %v3779
      %v3781 = vlaneseq
      %v3782 = vshrl.u32 %v3781, 7
      %v3783 = vsub.s32 %v3780, %v3782
      %v3784 = vrot.slane %v3776, %v3783
      %v3786 = vunpack.c.l.s4 1983009808
      %v3787 = vunpack.c.0.s8 %v3786
      %v3788 = vlaneseq
      %v3789 = vshrl.u32 %v3788, 7
      %v3790 = vsub.s32 %v3787, %v3789
      %v3791 = vrot.slane %v3777, %v3790
      %v3792 = vcombine.low %v3784, %v3791
      %v3794 = vunpack.c.l.s4 1983009808
      %v3795 = vunpack.c.0.s8 %v3794
      %v3796 = vlaneseq
      %v3797 = vshrl.u32 %v3796, 7
      %v3798 = vsub.s32 %v3795, %v3797
      %v3799 = vrot.slane %v3066, %v3798
      %v3800 = vcombine.low %v3074, %v3082
      %v3801 = vcombine.low %v3081, %v3083
      %v3803 = vunpack.c.l.s4 1983009808
      %v3804 = vunpack.c.0.s8 %v3803
      %v3805 = vlaneseq
      %v3806 = vshrl.u32 %v3805, 7
      %v3807 = vsub.s32 %v3804, %v3806
      %v3808 = vrot.slane %v3800, %v3807
      %v3810 = vunpack.c.l.s4 1983009808
      %v3811 = vunpack.c.0.s8 %v3810
      %v3812 = vlaneseq
      %v3813 = vshrl.u32 %v3812, 7
      %v3814 = vsub.s32 %v3811, %v3813
      %v3815 = vrot.slane %v3801, %v3814
      %v3816 = vcombine.low %v3808, %v3815
      %v3817 = vcombine.low %v3091, %v3099
      %v3818 = vcombine.low %v3098, %v3100
      %v3820 = vunpack.c.l.s4 1983009808
      %v3821 = vunpack.c.0.s8 %v3820
      %v3822 = vlaneseq
      %v3823 = vshrl.u32 %v3822, 7
      %v3824 = vsub.s32 %v3821, %v3823
      %v3825 = vrot.slane %v3817, %v3824
      %v3827 = vunpack.c.l.s4 1983009808
      %v3828 = vunpack.c.0.s8 %v3827
      %v3829 = vlaneseq
      %v3830 = vshrl.u32 %v3829, 7
      %v3831 = vsub.s32 %v3828, %v3830
      %v3832 = vrot.slane %v3818, %v3831
      %v3833 = vcombine.low %v3825, %v3832
      %v3835 = vunpack.c.l.s4 1983009808
      %v3836 = vunpack.c.0.s8 %v3835
      %v3837 = vlaneseq
      %v3838 = vshrl.u32 %v3837, 7
      %v3839 = vsub.s32 %v3836, %v3838
      %v3840 = vrot.slane %v3108, %v3839
      %v3841 = vcombine.low %v3116, %v3115
      %v3842 = vcombine.low %v3117, %v3125
      %v3844 = vunpack.c.l.s4 1983009808
      %v3845 = vunpack.c.0.s8 %v3844
      %v3846 = vlaneseq
      %v3847 = vshrl.u32 %v3846, 7
      %v3848 = vsub.s32 %v3845, %v3847
      %v3849 = vrot.slane %v3841, %v3848
      %v3851 = vunpack.c.l.s4 1983009808
      %v3852 = vunpack.c.0.s8 %v3851
      %v3853 = vlaneseq
      %v3854 = vshrl.u32 %v3853, 7
      %v3855 = vsub.s32 %v3852, %v3854
      %v3856 = vrot.slane %v3842, %v3855
      %v3857 = vcombine.low %v3849, %v3856
      %v3858 = vcombine.low %v3133, %v3132
      %v3859 = vcombine.low %v3134, %v3142
      %v3861 = vunpack.c.l.s4 1983009808
      %v3862 = vunpack.c.0.s8 %v3861
      %v3863 = vlaneseq
      %v3864 = vshrl.u32 %v3863, 7
      %v3865 = vsub.s32 %v3862, %v3864
      %v3866 = vrot.slane %v3858, %v3865
      %v3868 = vunpack.c.l.s4 1983009808
      %v3869 = vunpack.c.0.s8 %v3868
      %v3870 = vlaneseq
      %v3871 = vshrl.u32 %v3870, 7
      %v3872 = vsub.s32 %v3869, %v3871
      %v3873 = vrot.slane %v3859, %v3872
      %v3874 = vcombine.low %v3866, %v3873
      %v3876 = vunpack.c.l.s4 1983009808
      %v3877 = vunpack.c.0.s8 %v3876
      %v3878 = vlaneseq
      %v3879 = vshrl.u32 %v3878, 7
      %v3880 = vsub.s32 %v3877, %v3879
      %v3881 = vrot.slane %v3150, %v3880
      %v3882 = vcombine.low %v3149, %v3151
      %v3883 = vcombine.low %v3159, %v3167
      %v3885 = vunpack.c.l.s4 1983009808
      %v3886 = vunpack.c.0.s8 %v3885
      %v3887 = vlaneseq
      %v3888 = vshrl.u32 %v3887, 7
      %v3889 = vsub.s32 %v3886, %v3888
      %v3890 = vrot.slane %v3882, %v3889
      %v3892 = vunpack.c.l.s4 1983009808
      %v3893 = vunpack.c.0.s8 %v3892
      %v3894 = vlaneseq
      %v3895 = vshrl.u32 %v3894, 7
      %v3896 = vsub.s32 %v3893, %v3895
      %v3897 = vrot.slane %v3883, %v3896
      %v3898 = vcombine.low %v3890, %v3897
      %v3899 = vcombine.low %v3166, %v3168
      %v3900 = vcombine.low %v3176, %v3184
      %v3902 = vunpack.c.l.s4 1983009808
      %v3903 = vunpack.c.0.s8 %v3902
      %v3904 = vlaneseq
      %v3905 = vshrl.u32 %v3904, 7
      %v3906 = vsub.s32 %v3903, %v3905
      %v3907 = vrot.slane %v3899, %v3906
      %v3909 = vunpack.c.l.s4 1983009808
      %v3910 = vunpack.c.0.s8 %v3909
      %v3911 = vlaneseq
      %v3912 = vshrl.u32 %v3911, 7
      %v3913 = vsub.s32 %v3910, %v3912
      %v3914 = vrot.slane %v3900, %v3913
      %v3915 = vcombine.low %v3907, %v3914
      %v3917 = vunpack.c.l.s4 1983009808
      %v3918 = vunpack.c.0.s8 %v3917
      %v3919 = vlaneseq
      %v3920 = vshrl.u32 %v3919, 7
      %v3921 = vsub.s32 %v3918, %v3920
      %v3922 = vrot.slane %v3183, %v3921
      %v3923 = vcombine.low %v3185, %v3193
      %v3924 = vcombine.low %v3201, %v3200
      %v3926 = vunpack.c.l.s4 1983009808
      %v3927 = vunpack.c.0.s8 %v3926
      %v3928 = vlaneseq
      %v3929 = vshrl.u32 %v3928, 7
      %v3930 = vsub.s32 %v3927, %v3929
      %v3931 = vrot.slane %v3923, %v3930
      %v3933 = vunpack.c.l.s4 1983009808
      %v3934 = vunpack.c.0.s8 %v3933
      %v3935 = vlaneseq
      %v3936 = vshrl.u32 %v3935, 7
      %v3937 = vsub.s32 %v3934, %v3936
      %v3938 = vrot.slane %v3924, %v3937
      %v3939 = vcombine.low %v3931, %v3938
      %v3940 = vcombine.low %v3202, %v3210
      %v3941 = vcombine.low %v3218, %v3217
      %v3943 = vunpack.c.l.s4 1983009808
      %v3944 = vunpack.c.0.s8 %v3943
      %v3945 = vlaneseq
      %v3946 = vshrl.u32 %v3945, 7
      %v3947 = vsub.s32 %v3944, %v3946
      %v3948 = vrot.slane %v3940, %v3947
      %v3950 = vunpack.c.l.s4 1983009808
      %v3951 = vunpack.c.0.s8 %v3950
      %v3952 = vlaneseq
      %v3953 = vshrl.u32 %v3952, 7
      %v3954 = vsub.s32 %v3951, %v3953
      %v3955 = vrot.slane %v3941, %v3954
      %v3956 = vcombine.low %v3948, %v3955
      %v3958 = vunpack.c.l.s4 1983009808
      %v3959 = vunpack.c.0.s8 %v3958
      %v3960 = vlaneseq
      %v3961 = vshrl.u32 %v3960, 7
      %v3962 = vsub.s32 %v3959, %v3961
      %v3963 = vrot.slane %v3219, %v3962
      %v3964 = vcombine.low %v3227, %v3235
      %v3965 = vcombine.low %v3234, %v3236
      %v3967 = vunpack.c.l.s4 1983009808
      %v3968 = vunpack.c.0.s8 %v3967
      %v3969 = vlaneseq
      %v3970 = vshrl.u32 %v3969, 7
      %v3971 = vsub.s32 %v3968, %v3970
      %v3972 = vrot.slane %v3964, %v3971
      %v3974 = vunpack.c.l.s4 1983009808
      %v3975 = vunpack.c.0.s8 %v3974
      %v3976 = vlaneseq
      %v3977 = vshrl.u32 %v3976, 7
      %v3978 = vsub.s32 %v3975, %v3977
      %v3979 = vrot.slane %v3965, %v3978
      %v3980 = vcombine.low %v3972, %v3979
      %v3981 = vcombine.low %v3244, %v3252
      %v3982 = vcombine.low %v3251, %v3253
      %v3984 = vunpack.c.l.s4 1983009808
      %v3985 = vunpack.c.0.s8 %v3984
      %v3986 = vlaneseq
      %v3987 = vshrl.u32 %v3986, 7
      %v3988 = vsub.s32 %v3985, %v3987
      %v3989 = vrot.slane %v3981, %v3988
      %v3991 = vunpack.c.l.s4 1983009808
      %v3992 = vunpack.c.0.s8 %v3991
      %v3993 = vlaneseq
      %v3994 = vshrl.u32 %v3993, 7
      %v3995 = vsub.s32 %v3992, %v3994
      %v3996 = vrot.slane %v3982, %v3995
      %v3997 = vcombine.low %v3989, %v3996
      %v3999 = vunpack.c.l.s4 1983009808
      %v4000 = vunpack.c.0.s8 %v3999
      %v4001 = vlaneseq
      %v4002 = vshrl.u32 %v4001, 7
      %v4003 = vsub.s32 %v4000, %v4002
      %v4004 = vrot.slane %v3261, %v4003
      %v4005 = vcombine.low %v3269, %v3268
      %v4006 = vcombine.low %v3270, %v3278
      %v4008 = vunpack.c.l.s4 1983009808
      %v4009 = vunpack.c.0.s8 %v4008
      %v4010 = vlaneseq
      %v4011 = vshrl.u32 %v4010, 7
      %v4012 = vsub.s32 %v4009, %v4011
      %v4013 = vrot.slane %v4005, %v4012
      %v4015 = vunpack.c.l.s4 1983009808
      %v4016 = vunpack.c.0.s8 %v4015
      %v4017 = vlaneseq
      %v4018 = vshrl.u32 %v4017, 7
      %v4019 = vsub.s32 %v4016, %v4018
      %v4020 = vrot.slane %v4006, %v4019
      %v4021 = vcombine.low %v4013, %v4020
      %v4022 = vcombine.low %v3286, %v3285
      %v4023 = vcombine.low %v3287, %v3295
      %v4025 = vunpack.c.l.s4 1983009808
      %v4026 = vunpack.c.0.s8 %v4025
      %v4027 = vlaneseq
      %v4028 = vshrl.u32 %v4027, 7
      %v4029 = vsub.s32 %v4026, %v4028
      %v4030 = vrot.slane %v4022, %v4029
      %v4032 = vunpack.c.l.s4 1983009808
      %v4033 = vunpack.c.0.s8 %v4032
      %v4034 = vlaneseq
      %v4035 = vshrl.u32 %v4034, 7
      %v4036 = vsub.s32 %v4033, %v4035
      %v4037 = vrot.slane %v4023, %v4036
      %v4038 = vcombine.low %v4030, %v4037
      %v4040 = vunpack.c.l.s4 1983009808
      %v4041 = vunpack.c.0.s8 %v4040
      %v4042 = vlaneseq
      %v4043 = vshrl.u32 %v4042, 7
      %v4044 = vsub.s32 %v4041, %v4043
      %v4045 = vrot.slane %v3303, %v4044
      %v4046 = vcombine.low %v3302, %v3304
      %v4047 = vcombine.low %v3312, %v3320
      %v4049 = vunpack.c.l.s4 1983009808
      %v4050 = vunpack.c.0.s8 %v4049
      %v4051 = vlaneseq
      %v4052 = vshrl.u32 %v4051, 7
      %v4053 = vsub.s32 %v4050, %v4052
      %v4054 = vrot.slane %v4046, %v4053
      %v4056 = vunpack.c.l.s4 1983009808
      %v4057 = vunpack.c.0.s8 %v4056
      %v4058 = vlaneseq
      %v4059 = vshrl.u32 %v4058, 7
      %v4060 = vsub.s32 %v4057, %v4059
      %v4061 = vrot.slane %v4047, %v4060
      %v4062 = vcombine.low %v4054, %v4061
      %v4063 = vcombine.low %v3319, %v3321
      %v4064 = vcombine.low %v3329, %v3337
      %v4066 = vunpack.c.l.s4 1983009808
      %v4067 = vunpack.c.0.s8 %v4066
      %v4068 = vlaneseq
      %v4069 = vshrl.u32 %v4068, 7
      %v4070 = vsub.s32 %v4067, %v4069
      %v4071 = vrot.slane %v4063, %v4070
      %v4073 = vunpack.c.l.s4 1983009808
      %v4074 = vunpack.c.0.s8 %v4073
      %v4075 = vlaneseq
      %v4076 = vshrl.u32 %v4075, 7
      %v4077 = vsub.s32 %v4074, %v4076
      %v4078 = vrot.slane %v4064, %v4077
      %v4079 = vcombine.low %v4071, %v4078
      %v4081 = vunpack.c.l.s4 1983009808
      %v4082 = vunpack.c.0.s8 %v4081
      %v4083 = vlaneseq
      %v4084 = vshrl.u32 %v4083, 7
      %v4085 = vsub.s32 %v4082, %v4084
      %v4086 = vrot.slane %v3336, %v4085
      %v4087 = vcombine.low %v3338, %v3346
      %v4088 = vcombine.low %v3354, %v3353
      %v4090 = vunpack.c.l.s4 1983009808
      %v4091 = vunpack.c.0.s8 %v4090
      %v4092 = vlaneseq
      %v4093 = vshrl.u32 %v4092, 7
      %v4094 = vsub.s32 %v4091, %v4093
      %v4095 = vrot.slane %v4087, %v4094
      %v4097 = vunpack.c.l.s4 1983009808
      %v4098 = vunpack.c.0.s8 %v4097
      %v4099 = vlaneseq
      %v4100 = vshrl.u32 %v4099, 7
      %v4101 = vsub.s32 %v4098, %v4100
      %v4102 = vrot.slane %v4088, %v4101
      %v4103 = vcombine.low %v4095, %v4102
      %v4104 = vcombine.low %v3355, %v3363
      %v4105 = vcombine.low %v3371, %v3370
      %v4107 = vunpack.c.l.s4 1983009808
      %v4108 = vunpack.c.0.s8 %v4107
      %v4109 = vlaneseq
      %v4110 = vshrl.u32 %v4109, 7
      %v4111 = vsub.s32 %v4108, %v4110
      %v4112 = vrot.slane %v4104, %v4111
      %v4114 = vunpack.c.l.s4 1983009808
      %v4115 = vunpack.c.0.s8 %v4114
      %v4116 = vlaneseq
      %v4117 = vshrl.u32 %v4116, 7
      %v4118 = vsub.s32 %v4115, %v4117
      %v4119 = vrot.slane %v4105, %v4118
      %v4120 = vcombine.low %v4112, %v4119
      %v4122 = vunpack.c.l.s4 1983009808
      %v4123 = vunpack.c.0.s8 %v4122
      %v4124 = vlaneseq
      %v4125 = vshrl.u32 %v4124, 7
      %v4126 = vsub.s32 %v4123, %v4125
      %v4127 = vrot.slane %v3372, %v4126
      %v4128 = vcombine.low %v3380, %v3388
      %v4129 = vcombine.low %v3387, %v3389
      %v4131 = vunpack.c.l.s4 1983009808
      %v4132 = vunpack.c.0.s8 %v4131
      %v4133 = vlaneseq
      %v4134 = vshrl.u32 %v4133, 7
      %v4135 = vsub.s32 %v4132, %v4134
      %v4136 = vrot.slane %v4128, %v4135
      %v4138 = vunpack.c.l.s4 1983009808
      %v4139 = vunpack.c.0.s8 %v4138
      %v4140 = vlaneseq
      %v4141 = vshrl.u32 %v4140, 7
      %v4142 = vsub.s32 %v4139, %v4141
      %v4143 = vrot.slane %v4129, %v4142
      %v4144 = vcombine.low %v4136, %v4143
      %v4145 = vcombine.low %v3397, %v3405
      %v4146 = vcombine.low %v3404, %v3406
      %v4148 = vunpack.c.l.s4 1983009808
      %v4149 = vunpack.c.0.s8 %v4148
      %v4150 = vlaneseq
      %v4151 = vshrl.u32 %v4150, 7
      %v4152 = vsub.s32 %v4149, %v4151
      %v4153 = vrot.slane %v4145, %v4152
      %v4155 = vunpack.c.l.s4 1983009808
      %v4156 = vunpack.c.0.s8 %v4155
      %v4157 = vlaneseq
      %v4158 = vshrl.u32 %v4157, 7
      %v4159 = vsub.s32 %v4156, %v4158
      %v4160 = vrot.slane %v4146, %v4159
      %v4161 = vcombine.low %v4153, %v4160
      %v4163 = vunpack.c.l.s4 1983009808
      %v4164 = vunpack.c.0.s8 %v4163
      %v4165 = vlaneseq
      %v4166 = vshrl.u32 %v4165, 7
      %v4167 = vsub.s32 %v4164, %v4166
      %v4168 = vrot.slane %v3414, %v4167
      %v4169 = vcombine.low %v3422, %v3421
      %v4170 = vcombine.low %v3423, %v3431
      %v4172 = vunpack.c.l.s4 1983009808
      %v4173 = vunpack.c.0.s8 %v4172
      %v4174 = vlaneseq
      %v4175 = vshrl.u32 %v4174, 7
      %v4176 = vsub.s32 %v4173, %v4175
      %v4177 = vrot.slane %v4169, %v4176
      %v4179 = vunpack.c.l.s4 1983009808
      %v4180 = vunpack.c.0.s8 %v4179
      %v4181 = vlaneseq
      %v4182 = vshrl.u32 %v4181, 7
      %v4183 = vsub.s32 %v4180, %v4182
      %v4184 = vrot.slane %v4170, %v4183
      %v4185 = vcombine.low %v4177, %v4184
      %v4186 = vcombine.low %v3439, %v3438
      %v4187 = vcombine.low %v3440, %v3448
      %v4189 = vunpack.c.l.s4 1983009808
      %v4190 = vunpack.c.0.s8 %v4189
      %v4191 = vlaneseq
      %v4192 = vshrl.u32 %v4191, 7
      %v4193 = vsub.s32 %v4190, %v4192
      %v4194 = vrot.slane %v4186, %v4193
      %v4196 = vunpack.c.l.s4 1983009808
      %v4197 = vunpack.c.0.s8 %v4196
      %v4198 = vlaneseq
      %v4199 = vshrl.u32 %v4198, 7
      %v4200 = vsub.s32 %v4197, %v4199
      %v4201 = vrot.slane %v4187, %v4200
      %v4202 = vcombine.low %v4194, %v4201
      %v4204 = vunpack.c.l.s4 1983009808
      %v4205 = vunpack.c.0.s8 %v4204
      %v4206 = vlaneseq
      %v4207 = vshrl.u32 %v4206, 7
      %v4208 = vsub.s32 %v4205, %v4207
      %v4209 = vrot.slane %v3456, %v4208
      %v4210 = vcombine.low %v3455, %v3457
      %v4211 = vcombine.low %v3465, %v3473
      %v4213 = vunpack.c.l.s4 1983009808
      %v4214 = vunpack.c.0.s8 %v4213
      %v4215 = vlaneseq
      %v4216 = vshrl.u32 %v4215, 7
      %v4217 = vsub.s32 %v4214, %v4216
      %v4218 = vrot.slane %v4210, %v4217
      %v4220 = vunpack.c.l.s4 1983009808
      %v4221 = vunpack.c.0.s8 %v4220
      %v4222 = vlaneseq
      %v4223 = vshrl.u32 %v4222, 7
      %v4224 = vsub.s32 %v4221, %v4223
      %v4225 = vrot.slane %v4211, %v4224
      %v4226 = vcombine.low %v4218, %v4225
      %v4227 = vcombine.low %v3472, %v3474
      %v4228 = vcombine.low %v3482, %v3490
      %v4230 = vunpack.c.l.s4 1983009808
      %v4231 = vunpack.c.0.s8 %v4230
      %v4232 = vlaneseq
      %v4233 = vshrl.u32 %v4232, 7
      %v4234 = vsub.s32 %v4231, %v4233
      %v4235 = vrot.slane %v4227, %v4234
      %v4237 = vunpack.c.l.s4 1983009808
      %v4238 = vunpack.c.0.s8 %v4237
      %v4239 = vlaneseq
      %v4240 = vshrl.u32 %v4239, 7
      %v4241 = vsub.s32 %v4238, %v4240
      %v4242 = vrot.slane %v4228, %v4241
      %v4243 = vcombine.low %v4235, %v4242
      %v4245 = vunpack.c.l.s4 1983009808
      %v4246 = vunpack.c.0.s8 %v4245
      %v4247 = vlaneseq
      %v4248 = vshrl.u32 %v4247, 7
      %v4249 = vsub.s32 %v4246, %v4248
      %v4250 = vrot.slane %v3489, %v4249
      %v4251 = vcombine.low %v3491, %v3499
      %v4252 = vcombine.low %v3507, %v3506
      %v4254 = vunpack.c.l.s4 1983009808
      %v4255 = vunpack.c.0.s8 %v4254
      %v4256 = vlaneseq
      %v4257 = vshrl.u32 %v4256, 7
      %v4258 = vsub.s32 %v4255, %v4257
      %v4259 = vrot.slane %v4251, %v4258
      %v4261 = vunpack.c.l.s4 1983009808
      %v4262 = vunpack.c.0.s8 %v4261
      %v4263 = vlaneseq
      %v4264 = vshrl.u32 %v4263, 7
      %v4265 = vsub.s32 %v4262, %v4264
      %v4266 = vrot.slane %v4252, %v4265
      %v4267 = vcombine.low %v4259, %v4266
      %v4268 = vcombine.low %v3508, %v3516
      %v4269 = vcombine.low %v3524, %v3523
      %v4271 = vunpack.c.l.s4 1983009808
      %v4272 = vunpack.c.0.s8 %v4271
      %v4273 = vlaneseq
      %v4274 = vshrl.u32 %v4273, 7
      %v4275 = vsub.s32 %v4272, %v4274
      %v4276 = vrot.slane %v4268, %v4275
      %v4278 = vunpack.c.l.s4 1983009808
      %v4279 = vunpack.c.0.s8 %v4278
      %v4280 = vlaneseq
      %v4281 = vshrl.u32 %v4280, 7
      %v4282 = vsub.s32 %v4279, %v4281
      %v4283 = vrot.slane %v4269, %v4282
      %v4284 = vcombine.low %v4276, %v4283
      %v4286 = vunpack.c.l.s4 1983009808
      %v4287 = vunpack.c.0.s8 %v4286
      %v4288 = vlaneseq
      %v4289 = vshrl.u32 %v4288, 7
      %v4290 = vsub.s32 %v4287, %v4289
      %v4291 = vrot.slane %v3525, %v4290
      %v4292 = vcombine.low %v3533, %v3541
      %v4293 = vcombine.low %v3540, %v3542
      %v4295 = vunpack.c.l.s4 1983009808
      %v4296 = vunpack.c.0.s8 %v4295
      %v4297 = vlaneseq
      %v4298 = vshrl.u32 %v4297, 7
      %v4299 = vsub.s32 %v4296, %v4298
      %v4300 = vrot.slane %v4292, %v4299
      %v4302 = vunpack.c.l.s4 1983009808
      %v4303 = vunpack.c.0.s8 %v4302
      %v4304 = vlaneseq
      %v4305 = vshrl.u32 %v4304, 7
      %v4306 = vsub.s32 %v4303, %v4305
      %v4307 = vrot.slane %v4293, %v4306
      %v4308 = vcombine.low %v4300, %v4307
      %v4309 = vcombine.low %v3550, %v3558
      %v4310 = vcombine.low %v3557, %v3559
      %v4312 = vunpack.c.l.s4 1983009808
      %v4313 = vunpack.c.0.s8 %v4312
      %v4314 = vlaneseq
      %v4315 = vshrl.u32 %v4314, 7
      %v4316 = vsub.s32 %v4313, %v4315
      %v4317 = vrot.slane %v4309, %v4316
      %v4319 = vunpack.c.l.s4 1983009808
      %v4320 = vunpack.c.0.s8 %v4319
      %v4321 = vlaneseq
      %v4322 = vshrl.u32 %v4321, 7
      %v4323 = vsub.s32 %v4320, %v4322
      %v4324 = vrot.slane %v4310, %v4323
      %v4325 = vcombine.low %v4317, %v4324
      %v4327 = vunpack.c.l.s4 1983009808
      %v4328 = vunpack.c.0.s8 %v4327
      %v4329 = vlaneseq
      %v4330 = vshrl.u32 %v4329, 7
      %v4331 = vsub.s32 %v4328, %v4330
      %v4332 = vrot.slane %v3567, %v4331
      %v4333 = vcombine.low %v3575, %v3574
      %v4334 = vcombine.low %v3576, %v3584
      %v4336 = vunpack.c.l.s4 1983009808
      %v4337 = vunpack.c.0.s8 %v4336
      %v4338 = vlaneseq
      %v4339 = vshrl.u32 %v4338, 7
      %v4340 = vsub.s32 %v4337, %v4339
      %v4341 = vrot.slane %v4333, %v4340
      %v4343 = vunpack.c.l.s4 1983009808
      %v4344 = vunpack.c.0.s8 %v4343
      %v4345 = vlaneseq
      %v4346 = vshrl.u32 %v4345, 7
      %v4347 = vsub.s32 %v4344, %v4346
      %v4348 = vrot.slane %v4334, %v4347
      %v4349 = vcombine.low %v4341, %v4348
      %v4350 = vcombine.low %v3592, %v3591
      %v4351 = vcombine.low %v3593, %v3600
      %v4353 = vunpack.c.l.s4 1983009808
      %v4354 = vunpack.c.0.s8 %v4353
      %v4355 = vlaneseq
      %v4356 = vshrl.u32 %v4355, 7
      %v4357 = vsub.s32 %v4354, %v4356
      %v4358 = vrot.slane %v4350, %v4357
      %v4360 = vunpack.c.l.s4 1983009808
      %v4361 = vunpack.c.0.s8 %v4360
      %v4362 = vlaneseq
      %v4363 = vshrl.u32 %v4362, 7
      %v4364 = vsub.s32 %v4361, %v4363
      %v4365 = vrot.slane %v4351, %v4364
      %v4366 = vcombine.low %v4358, %v4365
      %v4368 = vunpack.c.l.s4 1983009808
      %v4369 = vunpack.c.0.s8 %v4368
      %v4370 = vlaneseq
      %v4371 = vshrl.u32 %v4370, 7
      %v4372 = vsub.s32 %v4369, %v4371
      %v4373 = vrot.slane %v3601, %v4372
      %v4428 = vsel %vm3630, %v3652, 0.0
      %v4429 = vsel %vm3631, %v3669, 0.0
      %v4430 = vsel %vm3632, %v3676, 0.0
      %v4431 = vsel %vm3633, %v3693, 0.0
      %v4432 = vsel %vm3634, %v3710, 0.0
      %v4433 = vsel %vm3635, %v3717, 0.0
      %v4434 = vsel %vm3633, %v3734, 0.0
      %v4435 = vsel %vm3634, %v3751, 0.0
      %v4436 = vsel %vm3635, %v3758, 0.0
      %v4437 = vsel %vm3633, %v3775, 0.0
      %v4438 = vsel %vm3634, %v3792, 0.0
      %v4439 = vsel %vm3635, %v3799, 0.0
      %v4440 = vsel %vm3633, %v3816, 0.0
      %v4441 = vsel %vm3634, %v3833, 0.0
      %v4442 = vsel %vm3635, %v3840, 0.0
      %v4443 = vsel %vm3633, %v3857, 0.0
      %v4444 = vsel %vm3634, %v3874, 0.0
      %v4445 = vsel %vm3635, %v3881, 0.0
      %v4446 = vsel %vm3633, %v3898, 0.0
      %v4447 = vsel %vm3634, %v3915, 0.0
      %v4448 = vsel %vm3635, %v3922, 0.0
      %v4449 = vsel %vm3633, %v3939, 0.0
      %v4450 = vsel %vm3634, %v3956, 0.0
      %v4451 = vsel %vm3635, %v3963, 0.0
      %v4452 = vsel %vm3633, %v3980, 0.0
      %v4453 = vsel %vm3634, %v3997, 0.0
      %v4454 = vsel %vm3635, %v4004, 0.0
      %v4455 = vsel %vm3633, %v4021, 0.0
      %v4456 = vsel %vm3634, %v4038, 0.0
      %v4457 = vsel %vm3635, %v4045, 0.0
      %v4458 = vsel %vm3633, %v4062, 0.0
      %v4459 = vsel %vm3634, %v4079, 0.0
      %v4460 = vsel %vm3635, %v4086, 0.0
      %v4461 = vsel %vm3633, %v4103, 0.0
      %v4462 = vsel %vm3634, %v4120, 0.0
      %v4463 = vsel %vm3635, %v4127, 0.0
      %v4464 = vsel %vm3633, %v4144, 0.0
      %v4465 = vsel %vm3634, %v4161, 0.0
      %v4466 = vsel %vm3635, %v4168, 0.0
      %v4467 = vsel %vm3633, %v4185, 0.0
      %v4468 = vsel %vm3634, %v4202, 0.0
      %v4469 = vsel %vm3635, %v4209, 0.0
      %v4470 = vsel %vm3633, %v4226, 0.0
      %v4471 = vsel %vm3634, %v4243, 0.0
      %v4472 = vsel %vm3635, %v4250, 0.0
      %v4473 = vsel %vm3633, %v4267, 0.0
      %v4474 = vsel %vm3634, %v4284, 0.0
      %v4475 = vsel %vm3635, %v4291, 0.0
      %v4476 = vsel %vm3633, %v4308, 0.0
      %v4477 = vsel %vm3634, %v4325, 0.0
      %v4478 = vsel %vm3635, %v4332, 0.0
      %v4479 = vsel %vm3630, %v4349, 0.0
      %v4480 = vsel %vm3631, %v4366, 0.0
      %v4481 = vsel %vm3632, %v4373, 0.0
      %v4482 = vpack.c.bf16 %v4429, %v4428
      %v4483 = vpack.c.bf16 %v4430, %v4430
      %v4484 = vpack.c.bf16 %v4432, %v4431
      %v4485 = vpack.c.bf16 %v4433, %v4433
      %v4486 = vpack.c.bf16 %v4435, %v4434
      %v4487 = vpack.c.bf16 %v4436, %v4436
      %v4488 = vpack.c.bf16 %v4438, %v4437
      %v4489 = vpack.c.bf16 %v4439, %v4439
      %v4490 = vpack.c.bf16 %v4441, %v4440
      %v4491 = vpack.c.bf16 %v4442, %v4442
      %v4492 = vpack.c.bf16 %v4444, %v4443
      %v4493 = vpack.c.bf16 %v4445, %v4445
      %v4494 = vpack.c.bf16 %v4447, %v4446
      %v4495 = vpack.c.bf16 %v4448, %v4448
      %v4496 = vpack.c.bf16 %v4450, %v4449
      %v4497 = vpack.c.bf16 %v4451, %v4451
      %v4498 = vpack.c.bf16 %v4453, %v4452
      %v4499 = vpack.c.bf16 %v4454, %v4454
      %v4500 = vpack.c.bf16 %v4456, %v4455
      %v4501 = vpack.c.bf16 %v4457, %v4457
      %v4502 = vpack.c.bf16 %v4459, %v4458
      %v4503 = vpack.c.bf16 %v4460, %v4460
      %v4504 = vpack.c.bf16 %v4462, %v4461
      %v4505 = vpack.c.bf16 %v4463, %v4463
      %v4506 = vpack.c.bf16 %v4465, %v4464
      %v4507 = vpack.c.bf16 %v4466, %v4466
      %v4508 = vpack.c.bf16 %v4468, %v4467
      %v4509 = vpack.c.bf16 %v4469, %v4469
      %v4510 = vpack.c.bf16 %v4471, %v4470
      %v4511 = vpack.c.bf16 %v4472, %v4472
      %v4512 = vpack.c.bf16 %v4474, %v4473
      %v4513 = vpack.c.bf16 %v4475, %v4475
      %v4514 = vpack.c.bf16 %v4477, %v4476
      %v4515 = vpack.c.bf16 %v4478, %v4478
      %v4516 = vpack.c.bf16 %v4480, %v4479
      %v4517 = vpack.c.bf16 %v4481, %v4481
      %v4518 = vld [vmem:[%s3] sm:$0x3]
      %vm4519 = vsmask.f32 7424
      %v4521 = vshrl.u32 %v4482, 16
      %v4523 = vshll.u32 %v4482, 16
      %v4525 = vrot.slane %v4523, 1
      %v4526 = vor.u32 %v4521, %v4525
      %v4528 = vshll.u32 %v4483, 16
      %v4530 = vrot.slane %v4528, 1
      %v4531 = vsel %vm4519, %v4526, %v4530
      %v4533 = vshrl.u32 %v4484, 16
      %v4535 = vshll.u32 %v4484, 16
      %v4537 = vrot.slane %v4535, 1
      %v4538 = vor.u32 %v4533, %v4537
      %v4540 = vshll.u32 %v4485, 16
      %v4542 = vrot.slane %v4540, 1
      %v4543 = vsel %vm4519, %v4538, %v4542
      %v4545 = vshrl.u32 %v4486, 16
      %v4547 = vshll.u32 %v4486, 16
      %v4549 = vrot.slane %v4547, 1
      %v4550 = vor.u32 %v4545, %v4549
      %v4552 = vshll.u32 %v4487, 16
      %v4554 = vrot.slane %v4552, 1
      %v4555 = vsel %vm4519, %v4550, %v4554
      %v4557 = vshrl.u32 %v4488, 16
      %v4559 = vshll.u32 %v4488, 16
      %v4561 = vrot.slane %v4559, 1
      %v4562 = vor.u32 %v4557, %v4561
      %v4564 = vshll.u32 %v4489, 16
      %v4566 = vrot.slane %v4564, 1
      %v4567 = vsel %vm4519, %v4562, %v4566
      %v4569 = vshrl.u32 %v4490, 16
      %v4571 = vshll.u32 %v4490, 16
      %v4573 = vrot.slane %v4571, 1
      %v4574 = vor.u32 %v4569, %v4573
      %v4576 = vshll.u32 %v4491, 16
      %v4578 = vrot.slane %v4576, 1
      %v4579 = vsel %vm4519, %v4574, %v4578
      %v4581 = vshrl.u32 %v4492, 16
      %v4583 = vshll.u32 %v4492, 16
      %v4585 = vrot.slane %v4583, 1
      %v4586 = vor.u32 %v4581, %v4585
      %v4588 = vshll.u32 %v4493, 16
      %v4590 = vrot.slane %v4588, 1
      %v4591 = vsel %vm4519, %v4586, %v4590
      %v4593 = vshrl.u32 %v4494, 16
      %v4595 = vshll.u32 %v4494, 16
      %v4597 = vrot.slane %v4595, 1
      %v4598 = vor.u32 %v4593, %v4597
      %v4600 = vshll.u32 %v4495, 16
      %v4602 = vrot.slane %v4600, 1
      %v4603 = vsel %vm4519, %v4598, %v4602
      %v4605 = vshrl.u32 %v4496, 16
      %v4607 = vshll.u32 %v4496, 16
      %v4609 = vrot.slane %v4607, 1
      %v4610 = vor.u32 %v4605, %v4609
      %v4612 = vshll.u32 %v4497, 16
      %v4614 = vrot.slane %v4612, 1
      %v4615 = vsel %vm4519, %v4610, %v4614
      %v4617 = vshrl.u32 %v4498, 16
      %v4619 = vshll.u32 %v4498, 16
      %v4621 = vrot.slane %v4619, 1
      %v4622 = vor.u32 %v4617, %v4621
      %v4624 = vshll.u32 %v4499, 16
      %v4626 = vrot.slane %v4624, 1
      %v4627 = vsel %vm4519, %v4622, %v4626
      %v4629 = vshrl.u32 %v4500, 16
      %v4631 = vshll.u32 %v4500, 16
      %v4633 = vrot.slane %v4631, 1
      %v4634 = vor.u32 %v4629, %v4633
      %v4636 = vshll.u32 %v4501, 16
      %v4638 = vrot.slane %v4636, 1
      %v4639 = vsel %vm4519, %v4634, %v4638
      %v4641 = vshrl.u32 %v4502, 16
      %v4643 = vshll.u32 %v4502, 16
      %v4645 = vrot.slane %v4643, 1
      %v4646 = vor.u32 %v4641, %v4645
      %v4648 = vshll.u32 %v4503, 16
      %v4650 = vrot.slane %v4648, 1
      %v4651 = vsel %vm4519, %v4646, %v4650
      %v4653 = vshrl.u32 %v4504, 16
      %v4655 = vshll.u32 %v4504, 16
      %v4657 = vrot.slane %v4655, 1
      %v4658 = vor.u32 %v4653, %v4657
      %v4660 = vshll.u32 %v4505, 16
      %v4662 = vrot.slane %v4660, 1
      %v4663 = vsel %vm4519, %v4658, %v4662
      %v4665 = vshrl.u32 %v4506, 16
      %v4667 = vshll.u32 %v4506, 16
      %v4669 = vrot.slane %v4667, 1
      %v4670 = vor.u32 %v4665, %v4669
      %v4672 = vshll.u32 %v4507, 16
      %v4674 = vrot.slane %v4672, 1
      %v4675 = vsel %vm4519, %v4670, %v4674
      %v4677 = vshrl.u32 %v4508, 16
      %v4679 = vshll.u32 %v4508, 16
      %v4681 = vrot.slane %v4679, 1
      %v4682 = vor.u32 %v4677, %v4681
      %v4684 = vshll.u32 %v4509, 16
      %v4686 = vrot.slane %v4684, 1
      %v4687 = vsel %vm4519, %v4682, %v4686
      %v4689 = vshrl.u32 %v4510, 16
      %v4691 = vshll.u32 %v4510, 16
      %v4693 = vrot.slane %v4691, 1
      %v4694 = vor.u32 %v4689, %v4693
      %v4696 = vshll.u32 %v4511, 16
      %v4698 = vrot.slane %v4696, 1
      %v4699 = vsel %vm4519, %v4694, %v4698
      %v4701 = vshrl.u32 %v4512, 16
      %v4703 = vshll.u32 %v4512, 16
      %v4705 = vrot.slane %v4703, 1
      %v4706 = vor.u32 %v4701, %v4705
      %v4708 = vshll.u32 %v4513, 16
      %v4710 = vrot.slane %v4708, 1
      %v4711 = vsel %vm4519, %v4706, %v4710
      %s4712 = scalar_lea.vmem %s3, 2
      %v4713 = vld [vmem:[%s4712] sm:$0x3]
      %vm4714 = vcmask 31744
      %v4716 = vsel %vm4714, %v4531, 0
      %v4719 = vsel %vm4714, %v4543, 0
      %v4722 = vsel %vm4714, %v4555, 0
      %v4725 = vsel %vm4714, %v4567, 0
      %v4728 = vsel %vm4714, %v4579, 0
      %v4731 = vsel %vm4714, %v4591, 0
      %v4734 = vsel %vm4714, %v4603, 0
      %v4737 = vsel %vm4714, %v4615, 0
      %v4740 = vsel %vm4714, %v4627, 0
      %v4743 = vsel %vm4714, %v4639, 0
      %v4746 = vsel %vm4714, %v4651, 0
      %v4749 = vsel %vm4714, %v4663, 0
      %v4752 = vsel %vm4714, %v4675, 0
      %v4755 = vsel %vm4714, %v4687, 0
      %v4758 = vsel %vm4714, %v4699, 0
      %v4761 = vsel %vm4714, %v4711, 0
      %vm4763 = vcmask 1041408
      %v4765 = vsel %vm4763, %v4713, 0
      %4767 = vmatprep.subr.bf16.mxu0 0
      %4768 = vmatpush1.bf16.msra.mxu0 0
      %4769 = vmatprep.subr.bf16.mxu0 0
      %4770 = vmatpush1.bf16.msra.mxu0 0
      %4771 = vmatprep.subr.bf16.mxu0 0
      %4772 = vmatpush1.bf16.msra.mxu0 0
      %4773 = vmatprep.subr.bf16.mxu0 0
      %4774 = vmatpush1.bf16.msra.mxu0 0
      %4775 = vmatprep.subr.bf16.mxu0 0
      %4776 = vmatpush1.bf16.msra.mxu0 0
      %4777 = vmatprep.subr.bf16.mxu0 0
      %4778 = vmatpush1.bf16.msra.mxu0 0
      %4779 = vmatprep.subr.bf16.mxu0 0
      %4780 = vmatpush1.bf16.msra.mxu0 0
      %4781 = vmatprep.subr.bf16.mxu0 0
      %4782 = vmatpush1.bf16.msra.mxu0 %v4765
      %4783 = vmatprep.subr.bf16.mxu0 0
      %4784 = vmatpush2.bf16.msra.mxu0 0
      %4785 = vmatprep.subr.bf16.mxu0 0
      %4786 = vmatpush2.bf16.msra.mxu0 0
      %4787 = vmatprep.subr.bf16.mxu0 0
      %4788 = vmatpush2.bf16.msra.mxu0 0
      %4789 = vmatprep.subr.bf16.mxu0 0
      %4790 = vmatpush2.bf16.msra.mxu0 0
      %4791 = vmatprep.subr.bf16.mxu0 0
      %4792 = vmatpush2.bf16.msra.mxu0 0
      %4793 = vmatprep.subr.bf16.mxu0 0
      %4794 = vmatpush2.bf16.msra.mxu0 0
      %4795 = vmatprep.subr.bf16.mxu0 0
      %4796 = vmatpush2.bf16.msra.mxu0 0
      %4797 = vmatprep.subr.bf16.mxu0 0
      %4798 = vmatpush2.bf16.msra.mxu0 0
      %4799 = vmatprep.mubr.bf16.mxu0 0
      %4800 = vmatmul.mubr.bf16.gmra.mxu0 %v4716
      %v4801 = vpop.f32.mrf.mxu0
      %v4802 = vadd.f32 0.0, %v4801
      %v4803 = vpop.f32.mrf.mxu0
      %v4804 = vpop.f32.mrf.mxu0
      %v4805 = vadd.f32 0.0, %v4804
      %v4806 = vpop.f32.mrf.mxu0
      %4807 = vmatprep.mubr.bf16.mxu0 0
      %4808 = vmatmul.mubr.bf16.gmra.mxu0 %v4719
      %v4809 = vpop.f32.mrf.mxu0
      %v4810 = vadd.f32 0.0, %v4809
      %v4811 = vpop.f32.mrf.mxu0
      %v4812 = vpop.f32.mrf.mxu0
      %v4813 = vadd.f32 0.0, %v4812
      %v4814 = vpop.f32.mrf.mxu0
      %4815 = vmatprep.mubr.bf16.mxu0 0
      %4816 = vmatmul.mubr.bf16.gmra.mxu0 %v4722
      %v4817 = vpop.f32.mrf.mxu0
      %v4818 = vadd.f32 0.0, %v4817
      %v4819 = vpop.f32.mrf.mxu0
      %v4820 = vpop.f32.mrf.mxu0
      %v4821 = vadd.f32 0.0, %v4820
      %v4822 = vpop.f32.mrf.mxu0
      %4823 = vmatprep.mubr.bf16.mxu0 0
      %4824 = vmatmul.mubr.bf16.gmra.mxu0 %v4725
      %v4825 = vpop.f32.mrf.mxu0
      %v4826 = vadd.f32 0.0, %v4825
      %v4827 = vpop.f32.mrf.mxu0
      %v4828 = vpop.f32.mrf.mxu0
      %v4829 = vadd.f32 0.0, %v4828
      %v4830 = vpop.f32.mrf.mxu0
      %4831 = vmatprep.mubr.bf16.mxu0 0
      %4832 = vmatmul.mubr.bf16.gmra.mxu0 %v4728
      %v4833 = vpop.f32.mrf.mxu0
      %v4834 = vadd.f32 0.0, %v4833
      %v4835 = vpop.f32.mrf.mxu0
      %v4836 = vpop.f32.mrf.mxu0
      %v4837 = vadd.f32 0.0, %v4836
      %v4838 = vpop.f32.mrf.mxu0
      %4839 = vmatprep.mubr.bf16.mxu0 0
      %4840 = vmatmul.mubr.bf16.gmra.mxu0 %v4731
      %v4841 = vpop.f32.mrf.mxu0
      %v4842 = vadd.f32 0.0, %v4841
      %v4843 = vpop.f32.mrf.mxu0
      %v4844 = vpop.f32.mrf.mxu0
      %v4845 = vadd.f32 0.0, %v4844
      %v4846 = vpop.f32.mrf.mxu0
      %4847 = vmatprep.mubr.bf16.mxu0 0
      %4848 = vmatmul.mubr.bf16.gmra.mxu0 %v4734
      %v4849 = vpop.f32.mrf.mxu0
      %v4850 = vadd.f32 0.0, %v4849
      %v4851 = vpop.f32.mrf.mxu0
      %v4852 = vpop.f32.mrf.mxu0
      %v4853 = vadd.f32 0.0, %v4852
      %v4854 = vpop.f32.mrf.mxu0
      %4855 = vmatprep.mubr.bf16.mxu0 0
      %4856 = vmatmul.mubr.bf16.gmra.mxu0 %v4737
      %v4857 = vpop.f32.mrf.mxu0
      %v4858 = vadd.f32 0.0, %v4857
      %v4859 = vpop.f32.mrf.mxu0
      %v4860 = vpop.f32.mrf.mxu0
      %v4861 = vadd.f32 0.0, %v4860
      %v4862 = vpop.f32.mrf.mxu0
      %4863 = vmatprep.mubr.bf16.mxu0 0
      %4864 = vmatmul.mubr.bf16.gmra.mxu0 %v4740
      %v4865 = vpop.f32.mrf.mxu0
      %v4866 = vadd.f32 0.0, %v4865
      %v4867 = vpop.f32.mrf.mxu0
      %v4868 = vpop.f32.mrf.mxu0
      %v4869 = vadd.f32 0.0, %v4868
      %v4870 = vpop.f32.mrf.mxu0
      %4871 = vmatprep.mubr.bf16.mxu0 0
      %4872 = vmatmul.mubr.bf16.gmra.mxu0 %v4743
      %v4873 = vpop.f32.mrf.mxu0
      %v4874 = vadd.f32 0.0, %v4873
      %v4875 = vpop.f32.mrf.mxu0
      %v4876 = vpop.f32.mrf.mxu0
      %v4877 = vadd.f32 0.0, %v4876
      %v4878 = vpop.f32.mrf.mxu0
      %4879 = vmatprep.mubr.bf16.mxu0 0
      %4880 = vmatmul.mubr.bf16.gmra.mxu0 %v4746
      %v4881 = vpop.f32.mrf.mxu0
      %v4882 = vadd.f32 0.0, %v4881
      %v4883 = vpop.f32.mrf.mxu0
      %v4884 = vpop.f32.mrf.mxu0
      %v4885 = vadd.f32 0.0, %v4884
      %v4886 = vpop.f32.mrf.mxu0
      %4887 = vmatprep.mubr.bf16.mxu0 0
      %4888 = vmatmul.mubr.bf16.gmra.mxu0 %v4749
      %v4889 = vpop.f32.mrf.mxu0
      %v4890 = vadd.f32 0.0, %v4889
      %v4891 = vpop.f32.mrf.mxu0
      %v4892 = vpop.f32.mrf.mxu0
      %v4893 = vadd.f32 0.0, %v4892
      %v4894 = vpop.f32.mrf.mxu0
      %4895 = vmatprep.mubr.bf16.mxu0 0
      %4896 = vmatmul.mubr.bf16.gmra.mxu0 %v4752
      %v4897 = vpop.f32.mrf.mxu0
      %v4898 = vadd.f32 0.0, %v4897
      %v4899 = vpop.f32.mrf.mxu0
      %v4900 = vpop.f32.mrf.mxu0
      %v4901 = vadd.f32 0.0, %v4900
      %v4902 = vpop.f32.mrf.mxu0
      %4903 = vmatprep.mubr.bf16.mxu0 0
      %4904 = vmatmul.mubr.bf16.gmra.mxu0 %v4755
      %v4905 = vpop.f32.mrf.mxu0
      %v4906 = vadd.f32 0.0, %v4905
      %v4907 = vpop.f32.mrf.mxu0
      %v4908 = vpop.f32.mrf.mxu0
      %v4909 = vadd.f32 0.0, %v4908
      %v4910 = vpop.f32.mrf.mxu0
      %4911 = vmatprep.mubr.bf16.mxu0 0
      %4912 = vmatmul.mubr.bf16.gmra.mxu0 %v4758
      %v4913 = vpop.f32.mrf.mxu0
      %v4914 = vadd.f32 0.0, %v4913
      %v4915 = vpop.f32.mrf.mxu0
      %v4916 = vpop.f32.mrf.mxu0
      %v4917 = vadd.f32 0.0, %v4916
      %v4918 = vpop.f32.mrf.mxu0
      %4919 = vmatprep.mubr.bf16.mxu0 0
      %4920 = vmatmul.mubr.bf16.gmra.mxu0 %v4761
      %v4921 = vpop.f32.mrf.mxu0
      %v4922 = vadd.f32 0.0, %v4921
      %v4923 = vpop.f32.mrf.mxu0
      %v4924 = vpop.f32.mrf.mxu0
      %v4925 = vadd.f32 0.0, %v4924
      %v4926 = vpop.f32.mrf.mxu0
      %4927 = vdwg.mxu0
      %v4928 = vsel %vm4714, %v4482, 0
      %v4930 = vsel %vm4714, %v4484, 0
      %v4932 = vsel %vm4714, %v4486, 0
      %v4934 = vsel %vm4714, %v4488, 0
      %v4936 = vsel %vm4714, %v4490, 0
      %v4938 = vsel %vm4714, %v4492, 0
      %v4940 = vsel %vm4714, %v4494, 0
      %v4942 = vsel %vm4714, %v4496, 0
      %v4944 = vsel %vm4714, %v4498, 0
      %v4946 = vsel %vm4714, %v4500, 0
      %v4948 = vsel %vm4714, %v4502, 0
      %v4950 = vsel %vm4714, %v4504, 0
      %v4952 = vsel %vm4714, %v4506, 0
      %v4954 = vsel %vm4714, %v4508, 0
      %v4956 = vsel %vm4714, %v4510, 0
      %v4958 = vsel %vm4714, %v4512, 0
      %v4961 = vsel %vm4763, %v4518, 0
      %4963 = vmatprep.subr.bf16.mxu0 0
      %4964 = vmatpush1.bf16.msra.mxu0 0
      %4965 = vmatprep.subr.bf16.mxu0 0
      %4966 = vmatpush1.bf16.msra.mxu0 0
      %4967 = vmatprep.subr.bf16.mxu0 0
      %4968 = vmatpush1.bf16.msra.mxu0 0
      %4969 = vmatprep.subr.bf16.mxu0 0
      %4970 = vmatpush1.bf16.msra.mxu0 0
      %4971 = vmatprep.subr.bf16.mxu0 0
      %4972 = vmatpush1.bf16.msra.mxu0 0
      %4973 = vmatprep.subr.bf16.mxu0 0
      %4974 = vmatpush1.bf16.msra.mxu0 0
      %4975 = vmatprep.subr.bf16.mxu0 0
      %4976 = vmatpush1.bf16.msra.mxu0 0
      %4977 = vmatprep.subr.bf16.mxu0 0
      %4978 = vmatpush1.bf16.msra.mxu0 %v4961
      %4979 = vmatprep.subr.bf16.mxu0 0
      %4980 = vmatpush2.bf16.msra.mxu0 0
      %4981 = vmatprep.subr.bf16.mxu0 0
      %4982 = vmatpush2.bf16.msra.mxu0 0
      %4983 = vmatprep.subr.bf16.mxu0 0
      %4984 = vmatpush2.bf16.msra.mxu0 0
      %4985 = vmatprep.subr.bf16.mxu0 0
      %4986 = vmatpush2.bf16.msra.mxu0 0
      %4987 = vmatprep.subr.bf16.mxu0 0
      %4988 = vmatpush2.bf16.msra.mxu0 0
      %4989 = vmatprep.subr.bf16.mxu0 0
      %4990 = vmatpush2.bf16.msra.mxu0 0
      %4991 = vmatprep.subr.bf16.mxu0 0
      %4992 = vmatpush2.bf16.msra.mxu0 0
      %4993 = vmatprep.subr.bf16.mxu0 0
      %4994 = vmatpush2.bf16.msra.mxu0 0
      %4995 = vmatprep.mubr.bf16.mxu0 0
      %4996 = vmatmul.mubr.bf16.gmra.mxu0 %v4928
      %v4997 = vpop.f32.mrf.mxu0
      %v4998 = vadd.f32 %v4802, %v4997
      %v4999 = vpop.f32.mrf.mxu0
      %v5000 = vpop.f32.mrf.mxu0
      %v5001 = vadd.f32 %v4805, %v5000
      %v5002 = vpop.f32.mrf.mxu0
      %5003 = vmatprep.mubr.bf16.mxu0 0
      %5004 = vmatmul.mubr.bf16.gmra.mxu0 %v4930
      %v5005 = vpop.f32.mrf.mxu0
      %v5006 = vadd.f32 %v4810, %v5005
      %v5007 = vpop.f32.mrf.mxu0
      %v5008 = vpop.f32.mrf.mxu0
      %v5009 = vadd.f32 %v4813, %v5008
      %v5010 = vpop.f32.mrf.mxu0
      %5011 = vmatprep.mubr.bf16.mxu0 0
      %5012 = vmatmul.mubr.bf16.gmra.mxu0 %v4932
      %v5013 = vpop.f32.mrf.mxu0
      %v5014 = vadd.f32 %v4818, %v5013
      %v5015 = vpop.f32.mrf.mxu0
      %v5016 = vpop.f32.mrf.mxu0
      %v5017 = vadd.f32 %v4821, %v5016
      %v5018 = vpop.f32.mrf.mxu0
      %5019 = vmatprep.mubr.bf16.mxu0 0
      %5020 = vmatmul.mubr.bf16.gmra.mxu0 %v4934
      %v5021 = vpop.f32.mrf.mxu0
      %v5022 = vadd.f32 %v4826, %v5021
      %v5023 = vpop.f32.mrf.mxu0
      %v5024 = vpop.f32.mrf.mxu0
      %v5025 = vadd.f32 %v4829, %v5024
      %v5026 = vpop.f32.mrf.mxu0
      %5027 = vmatprep.mubr.bf16.mxu0 0
      %5028 = vmatmul.mubr.bf16.gmra.mxu0 %v4936
      %v5029 = vpop.f32.mrf.mxu0
      %v5030 = vadd.f32 %v4834, %v5029
      %v5031 = vpop.f32.mrf.mxu0
      %v5032 = vpop.f32.mrf.mxu0
      %v5033 = vadd.f32 %v4837, %v5032
      %v5034 = vpop.f32.mrf.mxu0
      %5035 = vmatprep.mubr.bf16.mxu0 0
      %5036 = vmatmul.mubr.bf16.gmra.mxu0 %v4938
      %v5037 = vpop.f32.mrf.mxu0
      %v5038 = vadd.f32 %v4842, %v5037
      %v5039 = vpop.f32.mrf.mxu0
      %v5040 = vpop.f32.mrf.mxu0
      %v5041 = vadd.f32 %v4845, %v5040
      %v5042 = vpop.f32.mrf.mxu0
      %5043 = vmatprep.mubr.bf16.mxu0 0
      %5044 = vmatmul.mubr.bf16.gmra.mxu0 %v4940
      %v5045 = vpop.f32.mrf.mxu0
      %v5046 = vadd.f32 %v4850, %v5045
      %v5047 = vpop.f32.mrf.mxu0
      %v5048 = vpop.f32.mrf.mxu0
      %v5049 = vadd.f32 %v4853, %v5048
      %v5050 = vpop.f32.mrf.mxu0
      %5051 = vmatprep.mubr.bf16.mxu0 0
      %5052 = vmatmul.mubr.bf16.gmra.mxu0 %v4942
      %v5053 = vpop.f32.mrf.mxu0
      %v5054 = vadd.f32 %v4858, %v5053
      %v5055 = vpop.f32.mrf.mxu0
      %v5056 = vpop.f32.mrf.mxu0
      %v5057 = vadd.f32 %v4861, %v5056
      %v5058 = vpop.f32.mrf.mxu0
      %5059 = vmatprep.mubr.bf16.mxu0 0
      %5060 = vmatmul.mubr.bf16.gmra.mxu0 %v4944
      %v5061 = vpop.f32.mrf.mxu0
      %v5062 = vadd.f32 %v4866, %v5061
      %v5063 = vpop.f32.mrf.mxu0
      %v5064 = vpop.f32.mrf.mxu0
      %v5065 = vadd.f32 %v4869, %v5064
      %v5066 = vpop.f32.mrf.mxu0
      %5067 = vmatprep.mubr.bf16.mxu0 0
      %5068 = vmatmul.mubr.bf16.gmra.mxu0 %v4946
      %v5069 = vpop.f32.mrf.mxu0
      %v5070 = vadd.f32 %v4874, %v5069
      %v5071 = vpop.f32.mrf.mxu0
      %v5072 = vpop.f32.mrf.mxu0
      %v5073 = vadd.f32 %v4877, %v5072
      %v5074 = vpop.f32.mrf.mxu0
      %5075 = vmatprep.mubr.bf16.mxu0 0
      %5076 = vmatmul.mubr.bf16.gmra.mxu0 %v4948
      %v5077 = vpop.f32.mrf.mxu0
      %v5078 = vadd.f32 %v4882, %v5077
      %v5079 = vpop.f32.mrf.mxu0
      %v5080 = vpop.f32.mrf.mxu0
      %v5081 = vadd.f32 %v4885, %v5080
      %v5082 = vpop.f32.mrf.mxu0
      %5083 = vmatprep.mubr.bf16.mxu0 0
      %5084 = vmatmul.mubr.bf16.gmra.mxu0 %v4950
      %v5085 = vpop.f32.mrf.mxu0
      %v5086 = vadd.f32 %v4890, %v5085
      %v5087 = vpop.f32.mrf.mxu0
      %v5088 = vpop.f32.mrf.mxu0
      %v5089 = vadd.f32 %v4893, %v5088
      %v5090 = vpop.f32.mrf.mxu0
      %5091 = vmatprep.mubr.bf16.mxu0 0
      %5092 = vmatmul.mubr.bf16.gmra.mxu0 %v4952
      %v5093 = vpop.f32.mrf.mxu0
      %v5094 = vadd.f32 %v4898, %v5093
      %v5095 = vpop.f32.mrf.mxu0
      %v5096 = vpop.f32.mrf.mxu0
      %v5097 = vadd.f32 %v4901, %v5096
      %v5098 = vpop.f32.mrf.mxu0
      %5099 = vmatprep.mubr.bf16.mxu0 0
      %5100 = vmatmul.mubr.bf16.gmra.mxu0 %v4954
      %v5101 = vpop.f32.mrf.mxu0
      %v5102 = vadd.f32 %v4906, %v5101
      %v5103 = vpop.f32.mrf.mxu0
      %v5104 = vpop.f32.mrf.mxu0
      %v5105 = vadd.f32 %v4909, %v5104
      %v5106 = vpop.f32.mrf.mxu0
      %5107 = vmatprep.mubr.bf16.mxu0 0
      %5108 = vmatmul.mubr.bf16.gmra.mxu0 %v4956
      %v5109 = vpop.f32.mrf.mxu0
      %v5110 = vadd.f32 %v4914, %v5109
      %v5111 = vpop.f32.mrf.mxu0
      %v5112 = vpop.f32.mrf.mxu0
      %v5113 = vadd.f32 %v4917, %v5112
      %v5114 = vpop.f32.mrf.mxu0
      %5115 = vmatprep.mubr.bf16.mxu0 0
      %5116 = vmatmul.mubr.bf16.gmra.mxu0 %v4958
      %v5117 = vpop.f32.mrf.mxu0
      %v5118 = vadd.f32 %v4922, %v5117
      %v5119 = vpop.f32.mrf.mxu0
      %v5120 = vpop.f32.mrf.mxu0
      %v5121 = vadd.f32 %v4925, %v5120
      %v5122 = vpop.f32.mrf.mxu0
      %5123 = vdwg.mxu0
      %vm5156 = vcmask 1046528
      %v5157 = vrot.slane %v4482, 1
      %v5158 = vrot.slane %v4483, 1
      %v5159 = vsel %vm5156, %v5157, %v5158
      %v5160 = vrot.slane %v4484, 1
      %v5161 = vrot.slane %v4485, 1
      %v5162 = vsel %vm5156, %v5160, %v5161
      %v5163 = vrot.slane %v4486, 1
      %v5164 = vrot.slane %v4487, 1
      %v5165 = vsel %vm5156, %v5163, %v5164
      %v5166 = vrot.slane %v4488, 1
      %v5167 = vrot.slane %v4489, 1
      %v5168 = vsel %vm5156, %v5166, %v5167
      %v5169 = vrot.slane %v4490, 1
      %v5170 = vrot.slane %v4491, 1
      %v5171 = vsel %vm5156, %v5169, %v5170
      %v5172 = vrot.slane %v4492, 1
      %v5173 = vrot.slane %v4493, 1
      %v5174 = vsel %vm5156, %v5172, %v5173
      %v5175 = vrot.slane %v4494, 1
      %v5176 = vrot.slane %v4495, 1
      %v5177 = vsel %vm5156, %v5175, %v5176
      %v5178 = vrot.slane %v4496, 1
      %v5179 = vrot.slane %v4497, 1
      %v5180 = vsel %vm5156, %v5178, %v5179
      %v5181 = vrot.slane %v4498, 1
      %v5182 = vrot.slane %v4499, 1
      %v5183 = vsel %vm5156, %v5181, %v5182
      %v5184 = vrot.slane %v4500, 1
      %v5185 = vrot.slane %v4501, 1
      %v5186 = vsel %vm5156, %v5184, %v5185
      %v5187 = vrot.slane %v4502, 1
      %v5188 = vrot.slane %v4503, 1
      %v5189 = vsel %vm5156, %v5187, %v5188
      %v5190 = vrot.slane %v4504, 1
      %v5191 = vrot.slane %v4505, 1
      %v5192 = vsel %vm5156, %v5190, %v5191
      %v5193 = vrot.slane %v4506, 1
      %v5194 = vrot.slane %v4507, 1
      %v5195 = vsel %vm5156, %v5193, %v5194
      %v5196 = vrot.slane %v4508, 1
      %v5197 = vrot.slane %v4509, 1
      %v5198 = vsel %vm5156, %v5196, %v5197
      %v5199 = vrot.slane %v4510, 1
      %v5200 = vrot.slane %v4511, 1
      %v5201 = vsel %vm5156, %v5199, %v5200
      %v5202 = vrot.slane %v4512, 1
      %v5203 = vrot.slane %v4513, 1
      %v5204 = vsel %vm5156, %v5202, %v5203
      %s5205 = scalar_lea.vmem %s3, 4
      %v5206 = vld [vmem:[%s5205] sm:$0x3]
      %v5208 = vsel %vm4714, %v5159, 0
      %v5211 = vsel %vm4714, %v5162, 0
      %v5214 = vsel %vm4714, %v5165, 0
      %v5217 = vsel %vm4714, %v5168, 0
      %v5220 = vsel %vm4714, %v5171, 0
      %v5223 = vsel %vm4714, %v5174, 0
      %v5226 = vsel %vm4714, %v5177, 0
      %v5229 = vsel %vm4714, %v5180, 0
      %v5232 = vsel %vm4714, %v5183, 0
      %v5235 = vsel %vm4714, %v5186, 0
      %v5238 = vsel %vm4714, %v5189, 0
      %v5241 = vsel %vm4714, %v5192, 0
      %v5244 = vsel %vm4714, %v5195, 0
      %v5247 = vsel %vm4714, %v5198, 0
      %v5250 = vsel %vm4714, %v5201, 0
      %v5253 = vsel %vm4714, %v5204, 0
      %v5256 = vsel %vm4763, %v5206, 0
      %5258 = vmatprep.subr.bf16.mxu0 0
      %5259 = vmatpush1.bf16.msra.mxu0 0
      %5260 = vmatprep.subr.bf16.mxu0 0
      %5261 = vmatpush1.bf16.msra.mxu0 0
      %5262 = vmatprep.subr.bf16.mxu0 0
      %5263 = vmatpush1.bf16.msra.mxu0 0
      %5264 = vmatprep.subr.bf16.mxu0 0
      %5265 = vmatpush1.bf16.msra.mxu0 0
      %5266 = vmatprep.subr.bf16.mxu0 0
      %5267 = vmatpush1.bf16.msra.mxu0 0
      %5268 = vmatprep.subr.bf16.mxu0 0
      %5269 = vmatpush1.bf16.msra.mxu0 0
      %5270 = vmatprep.subr.bf16.mxu0 0
      %5271 = vmatpush1.bf16.msra.mxu0 0
      %5272 = vmatprep.subr.bf16.mxu0 0
      %5273 = vmatpush1.bf16.msra.mxu0 %v5256
      %5274 = vmatprep.subr.bf16.mxu0 0
      %5275 = vmatpush2.bf16.msra.mxu0 0
      %5276 = vmatprep.subr.bf16.mxu0 0
      %5277 = vmatpush2.bf16.msra.mxu0 0
      %5278 = vmatprep.subr.bf16.mxu0 0
      %5279 = vmatpush2.bf16.msra.mxu0 0
      %5280 = vmatprep.subr.bf16.mxu0 0
      %5281 = vmatpush2.bf16.msra.mxu0 0
      %5282 = vmatprep.subr.bf16.mxu0 0
      %5283 = vmatpush2.bf16.msra.mxu0 0
      %5284 = vmatprep.subr.bf16.mxu0 0
      %5285 = vmatpush2.bf16.msra.mxu0 0
      %5286 = vmatprep.subr.bf16.mxu0 0
      %5287 = vmatpush2.bf16.msra.mxu0 0
      %5288 = vmatprep.subr.bf16.mxu0 0
      %5289 = vmatpush2.bf16.msra.mxu0 0
      %5290 = vmatprep.mubr.bf16.mxu0 0
      %5291 = vmatmul.mubr.bf16.gmra.mxu0 %v5208
      %v5292 = vpop.f32.mrf.mxu0
      %v5293 = vadd.f32 0.0, %v5292
      %v5294 = vpop.f32.mrf.mxu0
      %v5295 = vpop.f32.mrf.mxu0
      %v5296 = vadd.f32 0.0, %v5295
      %v5297 = vpop.f32.mrf.mxu0
      %5298 = vmatprep.mubr.bf16.mxu0 0
      %5299 = vmatmul.mubr.bf16.gmra.mxu0 %v5211
      %v5300 = vpop.f32.mrf.mxu0
      %v5301 = vadd.f32 0.0, %v5300
      %v5302 = vpop.f32.mrf.mxu0
      %v5303 = vpop.f32.mrf.mxu0
      %v5304 = vadd.f32 0.0, %v5303
      %v5305 = vpop.f32.mrf.mxu0
      %5306 = vmatprep.mubr.bf16.mxu0 0
      %5307 = vmatmul.mubr.bf16.gmra.mxu0 %v5214
      %v5308 = vpop.f32.mrf.mxu0
      %v5309 = vadd.f32 0.0, %v5308
      %v5310 = vpop.f32.mrf.mxu0
      %v5311 = vpop.f32.mrf.mxu0
      %v5312 = vadd.f32 0.0, %v5311
      %v5313 = vpop.f32.mrf.mxu0
      %5314 = vmatprep.mubr.bf16.mxu0 0
      %5315 = vmatmul.mubr.bf16.gmra.mxu0 %v5217
      %v5316 = vpop.f32.mrf.mxu0
      %v5317 = vadd.f32 0.0, %v5316
      %v5318 = vpop.f32.mrf.mxu0
      %v5319 = vpop.f32.mrf.mxu0
      %v5320 = vadd.f32 0.0, %v5319
      %v5321 = vpop.f32.mrf.mxu0
      %5322 = vmatprep.mubr.bf16.mxu0 0
      %5323 = vmatmul.mubr.bf16.gmra.mxu0 %v5220
      %v5324 = vpop.f32.mrf.mxu0
      %v5325 = vadd.f32 0.0, %v5324
      %v5326 = vpop.f32.mrf.mxu0
      %v5327 = vpop.f32.mrf.mxu0
      %v5328 = vadd.f32 0.0, %v5327
      %v5329 = vpop.f32.mrf.mxu0
      %5330 = vmatprep.mubr.bf16.mxu0 0
      %5331 = vmatmul.mubr.bf16.gmra.mxu0 %v5223
      %v5332 = vpop.f32.mrf.mxu0
      %v5333 = vadd.f32 0.0, %v5332
      %v5334 = vpop.f32.mrf.mxu0
      %v5335 = vpop.f32.mrf.mxu0
      %v5336 = vadd.f32 0.0, %v5335
      %v5337 = vpop.f32.mrf.mxu0
      %5338 = vmatprep.mubr.bf16.mxu0 0
      %5339 = vmatmul.mubr.bf16.gmra.mxu0 %v5226
      %v5340 = vpop.f32.mrf.mxu0
      %v5341 = vadd.f32 0.0, %v5340
      %v5342 = vpop.f32.mrf.mxu0
      %v5343 = vpop.f32.mrf.mxu0
      %v5344 = vadd.f32 0.0, %v5343
      %v5345 = vpop.f32.mrf.mxu0
      %5346 = vmatprep.mubr.bf16.mxu0 0
      %5347 = vmatmul.mubr.bf16.gmra.mxu0 %v5229
      %v5348 = vpop.f32.mrf.mxu0
      %v5349 = vadd.f32 0.0, %v5348
      %v5350 = vpop.f32.mrf.mxu0
      %v5351 = vpop.f32.mrf.mxu0
      %v5352 = vadd.f32 0.0, %v5351
      %v5353 = vpop.f32.mrf.mxu0
      %5354 = vmatprep.mubr.bf16.mxu0 0
      %5355 = vmatmul.mubr.bf16.gmra.mxu0 %v5232
      %v5356 = vpop.f32.mrf.mxu0
      %v5357 = vadd.f32 0.0, %v5356
      %v5358 = vpop.f32.mrf.mxu0
      %v5359 = vpop.f32.mrf.mxu0
      %v5360 = vadd.f32 0.0, %v5359
      %v5361 = vpop.f32.mrf.mxu0
      %5362 = vmatprep.mubr.bf16.mxu0 0
      %5363 = vmatmul.mubr.bf16.gmra.mxu0 %v5235
      %v5364 = vpop.f32.mrf.mxu0
      %v5365 = vadd.f32 0.0, %v5364
      %v5366 = vpop.f32.mrf.mxu0
      %v5367 = vpop.f32.mrf.mxu0
      %v5368 = vadd.f32 0.0, %v5367
      %v5369 = vpop.f32.mrf.mxu0
      %5370 = vmatprep.mubr.bf16.mxu0 0
      %5371 = vmatmul.mubr.bf16.gmra.mxu0 %v5238
      %v5372 = vpop.f32.mrf.mxu0
      %v5373 = vadd.f32 0.0, %v5372
      %v5374 = vpop.f32.mrf.mxu0
      %v5375 = vpop.f32.mrf.mxu0
      %v5376 = vadd.f32 0.0, %v5375
      %v5377 = vpop.f32.mrf.mxu0
      %5378 = vmatprep.mubr.bf16.mxu0 0
      %5379 = vmatmul.mubr.bf16.gmra.mxu0 %v5241
      %v5380 = vpop.f32.mrf.mxu0
      %v5381 = vadd.f32 0.0, %v5380
      %v5382 = vpop.f32.mrf.mxu0
      %v5383 = vpop.f32.mrf.mxu0
      %v5384 = vadd.f32 0.0, %v5383
      %v5385 = vpop.f32.mrf.mxu0
      %5386 = vmatprep.mubr.bf16.mxu0 0
      %5387 = vmatmul.mubr.bf16.gmra.mxu0 %v5244
      %v5388 = vpop.f32.mrf.mxu0
      %v5389 = vadd.f32 0.0, %v5388
      %v5390 = vpop.f32.mrf.mxu0
      %v5391 = vpop.f32.mrf.mxu0
      %v5392 = vadd.f32 0.0, %v5391
      %v5393 = vpop.f32.mrf.mxu0
      %5394 = vmatprep.mubr.bf16.mxu0 0
      %5395 = vmatmul.mubr.bf16.gmra.mxu0 %v5247
      %v5396 = vpop.f32.mrf.mxu0
      %v5397 = vadd.f32 0.0, %v5396
      %v5398 = vpop.f32.mrf.mxu0
      %v5399 = vpop.f32.mrf.mxu0
      %v5400 = vadd.f32 0.0, %v5399
      %v5401 = vpop.f32.mrf.mxu0
      %5402 = vmatprep.mubr.bf16.mxu0 0
      %5403 = vmatmul.mubr.bf16.gmra.mxu0 %v5250
      %v5404 = vpop.f32.mrf.mxu0
      %v5405 = vadd.f32 0.0, %v5404
      %v5406 = vpop.f32.mrf.mxu0
      %v5407 = vpop.f32.mrf.mxu0
      %v5408 = vadd.f32 0.0, %v5407
      %v5409 = vpop.f32.mrf.mxu0
      %5410 = vmatprep.mubr.bf16.mxu0 0
      %5411 = vmatmul.mubr.bf16.gmra.mxu0 %v5253
      %v5412 = vpop.f32.mrf.mxu0
      %v5413 = vadd.f32 0.0, %v5412
      %v5414 = vpop.f32.mrf.mxu0
      %v5415 = vpop.f32.mrf.mxu0
      %v5416 = vadd.f32 0.0, %v5415
      %v5417 = vpop.f32.mrf.mxu0
      %5418 = vdwg.mxu0
      %v5419 = vadd.f32 %v4998, %v5293
      %v5420 = vadd.f32 %v5001, %v5296
      %v5421 = vadd.f32 %v5006, %v5301
      %v5422 = vadd.f32 %v5009, %v5304
      %v5423 = vadd.f32 %v5014, %v5309
      %v5424 = vadd.f32 %v5017, %v5312
      %v5425 = vadd.f32 %v5022, %v5317
      %v5426 = vadd.f32 %v5025, %v5320
      %v5427 = vadd.f32 %v5030, %v5325
      %v5428 = vadd.f32 %v5033, %v5328
      %v5429 = vadd.f32 %v5038, %v5333
      %v5430 = vadd.f32 %v5041, %v5336
      %v5431 = vadd.f32 %v5046, %v5341
      %v5432 = vadd.f32 %v5049, %v5344
      %v5433 = vadd.f32 %v5054, %v5349
      %v5434 = vadd.f32 %v5057, %v5352
      %v5435 = vadd.f32 %v5062, %v5357
      %v5436 = vadd.f32 %v5065, %v5360
      %v5437 = vadd.f32 %v5070, %v5365
      %v5438 = vadd.f32 %v5073, %v5368
      %v5439 = vadd.f32 %v5078, %v5373
      %v5440 = vadd.f32 %v5081, %v5376
      %v5441 = vadd.f32 %v5086, %v5381
      %v5442 = vadd.f32 %v5089, %v5384
      %v5443 = vadd.f32 %v5094, %v5389
      %v5444 = vadd.f32 %v5097, %v5392
      %v5445 = vadd.f32 %v5102, %v5397
      %v5446 = vadd.f32 %v5105, %v5400
      %v5447 = vadd.f32 %v5110, %v5405
      %v5448 = vadd.f32 %v5113, %v5408
      %v5449 = vadd.f32 %v5118, %v5413
      %v5450 = vadd.f32 %v5121, %v5416
      %s5451 = scalar_lea.vmem %s3, 6
      %v5452 = vld [vmem:[%s5451] sm:$0x3]
      %v5454 = vsel %vm4714, %v4514, 0
      %v5457 = vsel %vm4763, %v5452, 0
      %5459 = vmatprep.subr.bf16.mxu0 0
      %5460 = vmatpush1.bf16.msra.mxu0 0
      %5461 = vmatprep.subr.bf16.mxu0 0
      %5462 = vmatpush1.bf16.msra.mxu0 0
      %5463 = vmatprep.subr.bf16.mxu0 0
      %5464 = vmatpush1.bf16.msra.mxu0 0
      %5465 = vmatprep.subr.bf16.mxu0 0
      %5466 = vmatpush1.bf16.msra.mxu0 0
      %5467 = vmatprep.subr.bf16.mxu0 0
      %5468 = vmatpush1.bf16.msra.mxu0 0
      %5469 = vmatprep.subr.bf16.mxu0 0
      %5470 = vmatpush1.bf16.msra.mxu0 0
      %5471 = vmatprep.subr.bf16.mxu0 0
      %5472 = vmatpush1.bf16.msra.mxu0 0
      %5473 = vmatprep.subr.bf16.mxu0 0
      %5474 = vmatpush1.bf16.msra.mxu0 %v5457
      %5475 = vmatprep.subr.bf16.mxu0 0
      %5476 = vmatpush2.bf16.msra.mxu0 0
      %5477 = vmatprep.subr.bf16.mxu0 0
      %5478 = vmatpush2.bf16.msra.mxu0 0
      %5479 = vmatprep.subr.bf16.mxu0 0
      %5480 = vmatpush2.bf16.msra.mxu0 0
      %5481 = vmatprep.subr.bf16.mxu0 0
      %5482 = vmatpush2.bf16.msra.mxu0 0
      %5483 = vmatprep.subr.bf16.mxu0 0
      %5484 = vmatpush2.bf16.msra.mxu0 0
      %5485 = vmatprep.subr.bf16.mxu0 0
      %5486 = vmatpush2.bf16.msra.mxu0 0
      %5487 = vmatprep.subr.bf16.mxu0 0
      %5488 = vmatpush2.bf16.msra.mxu0 0
      %5489 = vmatprep.subr.bf16.mxu0 0
      %5490 = vmatpush2.bf16.msra.mxu0 0
      %5491 = vmatprep.mubr.bf16.mxu0 0
      %5492 = vmatmul.mubr.bf16.gmra.mxu0 %v4930
      %v5493 = vpop.f32.mrf.mxu0
      %v5494 = vadd.f32 0.0, %v5493
      %v5495 = vpop.f32.mrf.mxu0
      %v5496 = vpop.f32.mrf.mxu0
      %v5497 = vadd.f32 0.0, %v5496
      %v5498 = vpop.f32.mrf.mxu0
      %5499 = vmatprep.mubr.bf16.mxu0 0
      %5500 = vmatmul.mubr.bf16.gmra.mxu0 %v4932
      %v5501 = vpop.f32.mrf.mxu0
      %v5502 = vadd.f32 0.0, %v5501
      %v5503 = vpop.f32.mrf.mxu0
      %v5504 = vpop.f32.mrf.mxu0
      %v5505 = vadd.f32 0.0, %v5504
      %v5506 = vpop.f32.mrf.mxu0
      %5507 = vmatprep.mubr.bf16.mxu0 0
      %5508 = vmatmul.mubr.bf16.gmra.mxu0 %v4934
      %v5509 = vpop.f32.mrf.mxu0
      %v5510 = vadd.f32 0.0, %v5509
      %v5511 = vpop.f32.mrf.mxu0
      %v5512 = vpop.f32.mrf.mxu0
      %v5513 = vadd.f32 0.0, %v5512
      %v5514 = vpop.f32.mrf.mxu0
      %5515 = vmatprep.mubr.bf16.mxu0 0
      %5516 = vmatmul.mubr.bf16.gmra.mxu0 %v4936
      %v5517 = vpop.f32.mrf.mxu0
      %v5518 = vadd.f32 0.0, %v5517
      %v5519 = vpop.f32.mrf.mxu0
      %v5520 = vpop.f32.mrf.mxu0
      %v5521 = vadd.f32 0.0, %v5520
      %v5522 = vpop.f32.mrf.mxu0
      %5523 = vmatprep.mubr.bf16.mxu0 0
      %5524 = vmatmul.mubr.bf16.gmra.mxu0 %v4938
      %v5525 = vpop.f32.mrf.mxu0
      %v5526 = vadd.f32 0.0, %v5525
      %v5527 = vpop.f32.mrf.mxu0
      %v5528 = vpop.f32.mrf.mxu0
      %v5529 = vadd.f32 0.0, %v5528
      %v5530 = vpop.f32.mrf.mxu0
      %5531 = vmatprep.mubr.bf16.mxu0 0
      %5532 = vmatmul.mubr.bf16.gmra.mxu0 %v4940
      %v5533 = vpop.f32.mrf.mxu0
      %v5534 = vadd.f32 0.0, %v5533
      %v5535 = vpop.f32.mrf.mxu0
      %v5536 = vpop.f32.mrf.mxu0
      %v5537 = vadd.f32 0.0, %v5536
      %v5538 = vpop.f32.mrf.mxu0
      %5539 = vmatprep.mubr.bf16.mxu0 0
      %5540 = vmatmul.mubr.bf16.gmra.mxu0 %v4942
      %v5541 = vpop.f32.mrf.mxu0
      %v5542 = vadd.f32 0.0, %v5541
      %v5543 = vpop.f32.mrf.mxu0
      %v5544 = vpop.f32.mrf.mxu0
      %v5545 = vadd.f32 0.0, %v5544
      %v5546 = vpop.f32.mrf.mxu0
      %5547 = vmatprep.mubr.bf16.mxu0 0
      %5548 = vmatmul.mubr.bf16.gmra.mxu0 %v4944
      %v5549 = vpop.f32.mrf.mxu0
      %v5550 = vadd.f32 0.0, %v5549
      %v5551 = vpop.f32.mrf.mxu0
      %v5552 = vpop.f32.mrf.mxu0
      %v5553 = vadd.f32 0.0, %v5552
      %v5554 = vpop.f32.mrf.mxu0
      %5555 = vmatprep.mubr.bf16.mxu0 0
      %5556 = vmatmul.mubr.bf16.gmra.mxu0 %v4946
      %v5557 = vpop.f32.mrf.mxu0
      %v5558 = vadd.f32 0.0, %v5557
      %v5559 = vpop.f32.mrf.mxu0
      %v5560 = vpop.f32.mrf.mxu0
      %v5561 = vadd.f32 0.0, %v5560
      %v5562 = vpop.f32.mrf.mxu0
      %5563 = vmatprep.mubr.bf16.mxu0 0
      %5564 = vmatmul.mubr.bf16.gmra.mxu0 %v4948
      %v5565 = vpop.f32.mrf.mxu0
      %v5566 = vadd.f32 0.0, %v5565
      %v5567 = vpop.f32.mrf.mxu0
      %v5568 = vpop.f32.mrf.mxu0
      %v5569 = vadd.f32 0.0, %v5568
      %v5570 = vpop.f32.mrf.mxu0
      %5571 = vmatprep.mubr.bf16.mxu0 0
      %5572 = vmatmul.mubr.bf16.gmra.mxu0 %v4950
      %v5573 = vpop.f32.mrf.mxu0
      %v5574 = vadd.f32 0.0, %v5573
      %v5575 = vpop.f32.mrf.mxu0
      %v5576 = vpop.f32.mrf.mxu0
      %v5577 = vadd.f32 0.0, %v5576
      %v5578 = vpop.f32.mrf.mxu0
      %5579 = vmatprep.mubr.bf16.mxu0 0
      %5580 = vmatmul.mubr.bf16.gmra.mxu0 %v4952
      %v5581 = vpop.f32.mrf.mxu0
      %v5582 = vadd.f32 0.0, %v5581
      %v5583 = vpop.f32.mrf.mxu0
      %v5584 = vpop.f32.mrf.mxu0
      %v5585 = vadd.f32 0.0, %v5584
      %v5586 = vpop.f32.mrf.mxu0
      %5587 = vmatprep.mubr.bf16.mxu0 0
      %5588 = vmatmul.mubr.bf16.gmra.mxu0 %v4954
      %v5589 = vpop.f32.mrf.mxu0
      %v5590 = vadd.f32 0.0, %v5589
      %v5591 = vpop.f32.mrf.mxu0
      %v5592 = vpop.f32.mrf.mxu0
      %v5593 = vadd.f32 0.0, %v5592
      %v5594 = vpop.f32.mrf.mxu0
      %5595 = vmatprep.mubr.bf16.mxu0 0
      %5596 = vmatmul.mubr.bf16.gmra.mxu0 %v4956
      %v5597 = vpop.f32.mrf.mxu0
      %v5598 = vadd.f32 0.0, %v5597
      %v5599 = vpop.f32.mrf.mxu0
      %v5600 = vpop.f32.mrf.mxu0
      %v5601 = vadd.f32 0.0, %v5600
      %v5602 = vpop.f32.mrf.mxu0
      %5603 = vmatprep.mubr.bf16.mxu0 0
      %5604 = vmatmul.mubr.bf16.gmra.mxu0 %v4958
      %v5605 = vpop.f32.mrf.mxu0
      %v5606 = vadd.f32 0.0, %v5605
      %v5607 = vpop.f32.mrf.mxu0
      %v5608 = vpop.f32.mrf.mxu0
      %v5609 = vadd.f32 0.0, %v5608
      %v5610 = vpop.f32.mrf.mxu0
      %5611 = vmatprep.mubr.bf16.mxu0 0
      %5612 = vmatmul.mubr.bf16.gmra.mxu0 %v5454
      %v5613 = vpop.f32.mrf.mxu0
      %v5614 = vadd.f32 0.0, %v5613
      %v5615 = vpop.f32.mrf.mxu0
      %v5616 = vpop.f32.mrf.mxu0
      %v5617 = vadd.f32 0.0, %v5616
      %v5618 = vpop.f32.mrf.mxu0
      %5619 = vdwg.mxu0
      %v5620 = vadd.f32 %v5419, %v5494
      %v5621 = vadd.f32 %v5420, %v5497
      %v5622 = vadd.f32 %v5421, %v5502
      %v5623 = vadd.f32 %v5422, %v5505
      %v5624 = vadd.f32 %v5423, %v5510
      %v5625 = vadd.f32 %v5424, %v5513
      %v5626 = vadd.f32 %v5425, %v5518
      %v5627 = vadd.f32 %v5426, %v5521
      %v5628 = vadd.f32 %v5427, %v5526
      %v5629 = vadd.f32 %v5428, %v5529
      %v5630 = vadd.f32 %v5429, %v5534
      %v5631 = vadd.f32 %v5430, %v5537
      %v5632 = vadd.f32 %v5431, %v5542
      %v5633 = vadd.f32 %v5432, %v5545
      %v5634 = vadd.f32 %v5433, %v5550
      %v5635 = vadd.f32 %v5434, %v5553
      %v5636 = vadd.f32 %v5435, %v5558
      %v5637 = vadd.f32 %v5436, %v5561
      %v5638 = vadd.f32 %v5437, %v5566
      %v5639 = vadd.f32 %v5438, %v5569
      %v5640 = vadd.f32 %v5439, %v5574
      %v5641 = vadd.f32 %v5440, %v5577
      %v5642 = vadd.f32 %v5441, %v5582
      %v5643 = vadd.f32 %v5442, %v5585
      %v5644 = vadd.f32 %v5443, %v5590
      %v5645 = vadd.f32 %v5444, %v5593
      %v5646 = vadd.f32 %v5445, %v5598
      %v5647 = vadd.f32 %v5446, %v5601
      %v5648 = vadd.f32 %v5447, %v5606
      %v5649 = vadd.f32 %v5448, %v5609
      %v5650 = vadd.f32 %v5449, %v5614
      %v5651 = vadd.f32 %v5450, %v5617
      %v5652 = vshrl.u32 %v4514, 16
      %v5654 = vshll.u32 %v4514, 16
      %v5656 = vrot.slane %v5654, 1
      %v5657 = vor.u32 %v5652, %v5656
      %v5659 = vshll.u32 %v4515, 16
      %v5661 = vrot.slane %v5659, 1
      %v5662 = vsel %vm4519, %v5657, %v5661
      %s5663 = scalar_lea.vmem %s3, 8
      %v5664 = vld [vmem:[%s5663] sm:$0x3]
      %v5666 = vsel %vm4714, %v5662, 0
      %v5669 = vsel %vm4763, %v5664, 0
      %5671 = vmatprep.subr.bf16.mxu0 0
      %5672 = vmatpush1.bf16.msra.mxu0 0
      %5673 = vmatprep.subr.bf16.mxu0 0
      %5674 = vmatpush1.bf16.msra.mxu0 0
      %5675 = vmatprep.subr.bf16.mxu0 0
      %5676 = vmatpush1.bf16.msra.mxu0 0
      %5677 = vmatprep.subr.bf16.mxu0 0
      %5678 = vmatpush1.bf16.msra.mxu0 0
      %5679 = vmatprep.subr.bf16.mxu0 0
      %5680 = vmatpush1.bf16.msra.mxu0 0
      %5681 = vmatprep.subr.bf16.mxu0 0
      %5682 = vmatpush1.bf16.msra.mxu0 0
      %5683 = vmatprep.subr.bf16.mxu0 0
      %5684 = vmatpush1.bf16.msra.mxu0 0
      %5685 = vmatprep.subr.bf16.mxu0 0
      %5686 = vmatpush1.bf16.msra.mxu0 %v5669
      %5687 = vmatprep.subr.bf16.mxu0 0
      %5688 = vmatpush2.bf16.msra.mxu0 0
      %5689 = vmatprep.subr.bf16.mxu0 0
      %5690 = vmatpush2.bf16.msra.mxu0 0
      %5691 = vmatprep.subr.bf16.mxu0 0
      %5692 = vmatpush2.bf16.msra.mxu0 0
      %5693 = vmatprep.subr.bf16.mxu0 0
      %5694 = vmatpush2.bf16.msra.mxu0 0
      %5695 = vmatprep.subr.bf16.mxu0 0
      %5696 = vmatpush2.bf16.msra.mxu0 0
      %5697 = vmatprep.subr.bf16.mxu0 0
      %5698 = vmatpush2.bf16.msra.mxu0 0
      %5699 = vmatprep.subr.bf16.mxu0 0
      %5700 = vmatpush2.bf16.msra.mxu0 0
      %5701 = vmatprep.subr.bf16.mxu0 0
      %5702 = vmatpush2.bf16.msra.mxu0 0
      %5703 = vmatprep.mubr.bf16.mxu0 0
      %5704 = vmatmul.mubr.bf16.gmra.mxu0 %v4719
      %v5705 = vpop.f32.mrf.mxu0
      %v5706 = vadd.f32 0.0, %v5705
      %v5707 = vpop.f32.mrf.mxu0
      %v5708 = vpop.f32.mrf.mxu0
      %v5709 = vadd.f32 0.0, %v5708
      %v5710 = vpop.f32.mrf.mxu0
      %5711 = vmatprep.mubr.bf16.mxu0 0
      %5712 = vmatmul.mubr.bf16.gmra.mxu0 %v4722
      %v5713 = vpop.f32.mrf.mxu0
      %v5714 = vadd.f32 0.0, %v5713
      %v5715 = vpop.f32.mrf.mxu0
      %v5716 = vpop.f32.mrf.mxu0
      %v5717 = vadd.f32 0.0, %v5716
      %v5718 = vpop.f32.mrf.mxu0
      %5719 = vmatprep.mubr.bf16.mxu0 0
      %5720 = vmatmul.mubr.bf16.gmra.mxu0 %v4725
      %v5721 = vpop.f32.mrf.mxu0
      %v5722 = vadd.f32 0.0, %v5721
      %v5723 = vpop.f32.mrf.mxu0
      %v5724 = vpop.f32.mrf.mxu0
      %v5725 = vadd.f32 0.0, %v5724
      %v5726 = vpop.f32.mrf.mxu0
      %5727 = vmatprep.mubr.bf16.mxu0 0
      %5728 = vmatmul.mubr.bf16.gmra.mxu0 %v4728
      %v5729 = vpop.f32.mrf.mxu0
      %v5730 = vadd.f32 0.0, %v5729
      %v5731 = vpop.f32.mrf.mxu0
      %v5732 = vpop.f32.mrf.mxu0
      %v5733 = vadd.f32 0.0, %v5732
      %v5734 = vpop.f32.mrf.mxu0
      %5735 = vmatprep.mubr.bf16.mxu0 0
      %5736 = vmatmul.mubr.bf16.gmra.mxu0 %v4731
      %v5737 = vpop.f32.mrf.mxu0
      %v5738 = vadd.f32 0.0, %v5737
      %v5739 = vpop.f32.mrf.mxu0
      %v5740 = vpop.f32.mrf.mxu0
      %v5741 = vadd.f32 0.0, %v5740
      %v5742 = vpop.f32.mrf.mxu0
      %5743 = vmatprep.mubr.bf16.mxu0 0
      %5744 = vmatmul.mubr.bf16.gmra.mxu0 %v4734
      %v5745 = vpop.f32.mrf.mxu0
      %v5746 = vadd.f32 0.0, %v5745
      %v5747 = vpop.f32.mrf.mxu0
      %v5748 = vpop.f32.mrf.mxu0
      %v5749 = vadd.f32 0.0, %v5748
      %v5750 = vpop.f32.mrf.mxu0
      %5751 = vmatprep.mubr.bf16.mxu0 0
      %5752 = vmatmul.mubr.bf16.gmra.mxu0 %v4737
      %v5753 = vpop.f32.mrf.mxu0
      %v5754 = vadd.f32 0.0, %v5753
      %v5755 = vpop.f32.mrf.mxu0
      %v5756 = vpop.f32.mrf.mxu0
      %v5757 = vadd.f32 0.0, %v5756
      %v5758 = vpop.f32.mrf.mxu0
      %5759 = vmatprep.mubr.bf16.mxu0 0
      %5760 = vmatmul.mubr.bf16.gmra.mxu0 %v4740
      %v5761 = vpop.f32.mrf.mxu0
      %v5762 = vadd.f32 0.0, %v5761
      %v5763 = vpop.f32.mrf.mxu0
      %v5764 = vpop.f32.mrf.mxu0
      %v5765 = vadd.f32 0.0, %v5764
      %v5766 = vpop.f32.mrf.mxu0
      %5767 = vmatprep.mubr.bf16.mxu0 0
      %5768 = vmatmul.mubr.bf16.gmra.mxu0 %v4743
      %v5769 = vpop.f32.mrf.mxu0
      %v5770 = vadd.f32 0.0, %v5769
      %v5771 = vpop.f32.mrf.mxu0
      %v5772 = vpop.f32.mrf.mxu0
      %v5773 = vadd.f32 0.0, %v5772
      %v5774 = vpop.f32.mrf.mxu0
      %5775 = vmatprep.mubr.bf16.mxu0 0
      %5776 = vmatmul.mubr.bf16.gmra.mxu0 %v4746
      %v5777 = vpop.f32.mrf.mxu0
      %v5778 = vadd.f32 0.0, %v5777
      %v5779 = vpop.f32.mrf.mxu0
      %v5780 = vpop.f32.mrf.mxu0
      %v5781 = vadd.f32 0.0, %v5780
      %v5782 = vpop.f32.mrf.mxu0
      %5783 = vmatprep.mubr.bf16.mxu0 0
      %5784 = vmatmul.mubr.bf16.gmra.mxu0 %v4749
      %v5785 = vpop.f32.mrf.mxu0
      %v5786 = vadd.f32 0.0, %v5785
      %v5787 = vpop.f32.mrf.mxu0
      %v5788 = vpop.f32.mrf.mxu0
      %v5789 = vadd.f32 0.0, %v5788
      %v5790 = vpop.f32.mrf.mxu0
      %5791 = vmatprep.mubr.bf16.mxu0 0
      %5792 = vmatmul.mubr.bf16.gmra.mxu0 %v4752
      %v5793 = vpop.f32.mrf.mxu0
      %v5794 = vadd.f32 0.0, %v5793
      %v5795 = vpop.f32.mrf.mxu0
      %v5796 = vpop.f32.mrf.mxu0
      %v5797 = vadd.f32 0.0, %v5796
      %v5798 = vpop.f32.mrf.mxu0
      %5799 = vmatprep.mubr.bf16.mxu0 0
      %5800 = vmatmul.mubr.bf16.gmra.mxu0 %v4755
      %v5801 = vpop.f32.mrf.mxu0
      %v5802 = vadd.f32 0.0, %v5801
      %v5803 = vpop.f32.mrf.mxu0
      %v5804 = vpop.f32.mrf.mxu0
      %v5805 = vadd.f32 0.0, %v5804
      %v5806 = vpop.f32.mrf.mxu0
      %5807 = vmatprep.mubr.bf16.mxu0 0
      %5808 = vmatmul.mubr.bf16.gmra.mxu0 %v4758
      %v5809 = vpop.f32.mrf.mxu0
      %v5810 = vadd.f32 0.0, %v5809
      %v5811 = vpop.f32.mrf.mxu0
      %v5812 = vpop.f32.mrf.mxu0
      %v5813 = vadd.f32 0.0, %v5812
      %v5814 = vpop.f32.mrf.mxu0
      %5815 = vmatprep.mubr.bf16.mxu0 0
      %5816 = vmatmul.mubr.bf16.gmra.mxu0 %v4761
      %v5817 = vpop.f32.mrf.mxu0
      %v5818 = vadd.f32 0.0, %v5817
      %v5819 = vpop.f32.mrf.mxu0
      %v5820 = vpop.f32.mrf.mxu0
      %v5821 = vadd.f32 0.0, %v5820
      %v5822 = vpop.f32.mrf.mxu0
      %5823 = vmatprep.mubr.bf16.mxu0 0
      %5824 = vmatmul.mubr.bf16.gmra.mxu0 %v5666
      %v5825 = vpop.f32.mrf.mxu0
      %v5826 = vadd.f32 0.0, %v5825
      %v5827 = vpop.f32.mrf.mxu0
      %v5828 = vpop.f32.mrf.mxu0
      %v5829 = vadd.f32 0.0, %v5828
      %v5830 = vpop.f32.mrf.mxu0
      %5831 = vdwg.mxu0
      %v5832 = vadd.f32 %v5620, %v5706
      %v5833 = vadd.f32 %v5621, %v5709
      %v5834 = vadd.f32 %v5622, %v5714
      %v5835 = vadd.f32 %v5623, %v5717
      %v5836 = vadd.f32 %v5624, %v5722
      %v5837 = vadd.f32 %v5625, %v5725
      %v5838 = vadd.f32 %v5626, %v5730
      %v5839 = vadd.f32 %v5627, %v5733
      %v5840 = vadd.f32 %v5628, %v5738
      %v5841 = vadd.f32 %v5629, %v5741
      %v5842 = vadd.f32 %v5630, %v5746
      %v5843 = vadd.f32 %v5631, %v5749
      %v5844 = vadd.f32 %v5632, %v5754
      %v5845 = vadd.f32 %v5633, %v5757
      %v5846 = vadd.f32 %v5634, %v5762
      %v5847 = vadd.f32 %v5635, %v5765
      %v5848 = vadd.f32 %v5636, %v5770
      %v5849 = vadd.f32 %v5637, %v5773
      %v5850 = vadd.f32 %v5638, %v5778
      %v5851 = vadd.f32 %v5639, %v5781
      %v5852 = vadd.f32 %v5640, %v5786
      %v5853 = vadd.f32 %v5641, %v5789
      %v5854 = vadd.f32 %v5642, %v5794
      %v5855 = vadd.f32 %v5643, %v5797
      %v5856 = vadd.f32 %v5644, %v5802
      %v5857 = vadd.f32 %v5645, %v5805
      %v5858 = vadd.f32 %v5646, %v5810
      %v5859 = vadd.f32 %v5647, %v5813
      %v5860 = vadd.f32 %v5648, %v5818
      %v5861 = vadd.f32 %v5649, %v5821
      %v5862 = vadd.f32 %v5650, %v5826
      %v5863 = vadd.f32 %v5651, %v5829
      %v5866 = vrot.slane %v4514, 1
      %v5867 = vrot.slane %v4515, 1
      %v5868 = vsel %vm5156, %v5866, %v5867
      %s5869 = scalar_lea.vmem %s3, 10
      %v5870 = vld [vmem:[%s5869] sm:$0x3]
      %v5872 = vsel %vm4714, %v5868, 0
      %v5875 = vsel %vm4763, %v5870, 0
      %5877 = vmatprep.subr.bf16.mxu0 0
      %5878 = vmatpush1.bf16.msra.mxu0 0
      %5879 = vmatprep.subr.bf16.mxu0 0
      %5880 = vmatpush1.bf16.msra.mxu0 0
      %5881 = vmatprep.subr.bf16.mxu0 0
      %5882 = vmatpush1.bf16.msra.mxu0 0
      %5883 = vmatprep.subr.bf16.mxu0 0
      %5884 = vmatpush1.bf16.msra.mxu0 0
      %5885 = vmatprep.subr.bf16.mxu0 0
      %5886 = vmatpush1.bf16.msra.mxu0 0
      %5887 = vmatprep.subr.bf16.mxu0 0
      %5888 = vmatpush1.bf16.msra.mxu0 0
      %5889 = vmatprep.subr.bf16.mxu0 0
      %5890 = vmatpush1.bf16.msra.mxu0 0
      %5891 = vmatprep.subr.bf16.mxu0 0
      %5892 = vmatpush1.bf16.msra.mxu0 %v5875
      %5893 = vmatprep.subr.bf16.mxu0 0
      %5894 = vmatpush2.bf16.msra.mxu0 0
      %5895 = vmatprep.subr.bf16.mxu0 0
      %5896 = vmatpush2.bf16.msra.mxu0 0
      %5897 = vmatprep.subr.bf16.mxu0 0
      %5898 = vmatpush2.bf16.msra.mxu0 0
      %5899 = vmatprep.subr.bf16.mxu0 0
      %5900 = vmatpush2.bf16.msra.mxu0 0
      %5901 = vmatprep.subr.bf16.mxu0 0
      %5902 = vmatpush2.bf16.msra.mxu0 0
      %5903 = vmatprep.subr.bf16.mxu0 0
      %5904 = vmatpush2.bf16.msra.mxu0 0
      %5905 = vmatprep.subr.bf16.mxu0 0
      %5906 = vmatpush2.bf16.msra.mxu0 0
      %5907 = vmatprep.subr.bf16.mxu0 0
      %5908 = vmatpush2.bf16.msra.mxu0 0
      %5909 = vmatprep.mubr.bf16.mxu0 0
      %5910 = vmatmul.mubr.bf16.gmra.mxu0 %v5211
      %v5911 = vpop.f32.mrf.mxu0
      %v5912 = vadd.f32 0.0, %v5911
      %v5913 = vpop.f32.mrf.mxu0
      %v5914 = vpop.f32.mrf.mxu0
      %v5915 = vadd.f32 0.0, %v5914
      %v5916 = vpop.f32.mrf.mxu0
      %5917 = vmatprep.mubr.bf16.mxu0 0
      %5918 = vmatmul.mubr.bf16.gmra.mxu0 %v5214
      %v5919 = vpop.f32.mrf.mxu0
      %v5920 = vadd.f32 0.0, %v5919
      %v5921 = vpop.f32.mrf.mxu0
      %v5922 = vpop.f32.mrf.mxu0
      %v5923 = vadd.f32 0.0, %v5922
      %v5924 = vpop.f32.mrf.mxu0
      %5925 = vmatprep.mubr.bf16.mxu0 0
      %5926 = vmatmul.mubr.bf16.gmra.mxu0 %v5217
      %v5927 = vpop.f32.mrf.mxu0
      %v5928 = vadd.f32 0.0, %v5927
      %v5929 = vpop.f32.mrf.mxu0
      %v5930 = vpop.f32.mrf.mxu0
      %v5931 = vadd.f32 0.0, %v5930
      %v5932 = vpop.f32.mrf.mxu0
      %5933 = vmatprep.mubr.bf16.mxu0 0
      %5934 = vmatmul.mubr.bf16.gmra.mxu0 %v5220
      %v5935 = vpop.f32.mrf.mxu0
      %v5936 = vadd.f32 0.0, %v5935
      %v5937 = vpop.f32.mrf.mxu0
      %v5938 = vpop.f32.mrf.mxu0
      %v5939 = vadd.f32 0.0, %v5938
      %v5940 = vpop.f32.mrf.mxu0
      %5941 = vmatprep.mubr.bf16.mxu0 0
      %5942 = vmatmul.mubr.bf16.gmra.mxu0 %v5223
      %v5943 = vpop.f32.mrf.mxu0
      %v5944 = vadd.f32 0.0, %v5943
      %v5945 = vpop.f32.mrf.mxu0
      %v5946 = vpop.f32.mrf.mxu0
      %v5947 = vadd.f32 0.0, %v5946
      %v5948 = vpop.f32.mrf.mxu0
      %5949 = vmatprep.mubr.bf16.mxu0 0
      %5950 = vmatmul.mubr.bf16.gmra.mxu0 %v5226
      %v5951 = vpop.f32.mrf.mxu0
      %v5952 = vadd.f32 0.0, %v5951
      %v5953 = vpop.f32.mrf.mxu0
      %v5954 = vpop.f32.mrf.mxu0
      %v5955 = vadd.f32 0.0, %v5954
      %v5956 = vpop.f32.mrf.mxu0
      %5957 = vmatprep.mubr.bf16.mxu0 0
      %5958 = vmatmul.mubr.bf16.gmra.mxu0 %v5229
      %v5959 = vpop.f32.mrf.mxu0
      %v5960 = vadd.f32 0.0, %v5959
      %v5961 = vpop.f32.mrf.mxu0
      %v5962 = vpop.f32.mrf.mxu0
      %v5963 = vadd.f32 0.0, %v5962
      %v5964 = vpop.f32.mrf.mxu0
      %5965 = vmatprep.mubr.bf16.mxu0 0
      %5966 = vmatmul.mubr.bf16.gmra.mxu0 %v5232
      %v5967 = vpop.f32.mrf.mxu0
      %v5968 = vadd.f32 0.0, %v5967
      %v5969 = vpop.f32.mrf.mxu0
      %v5970 = vpop.f32.mrf.mxu0
      %v5971 = vadd.f32 0.0, %v5970
      %v5972 = vpop.f32.mrf.mxu0
      %5973 = vmatprep.mubr.bf16.mxu0 0
      %5974 = vmatmul.mubr.bf16.gmra.mxu0 %v5235
      %v5975 = vpop.f32.mrf.mxu0
      %v5976 = vadd.f32 0.0, %v5975
      %v5977 = vpop.f32.mrf.mxu0
      %v5978 = vpop.f32.mrf.mxu0
      %v5979 = vadd.f32 0.0, %v5978
      %v5980 = vpop.f32.mrf.mxu0
      %5981 = vmatprep.mubr.bf16.mxu0 0
      %5982 = vmatmul.mubr.bf16.gmra.mxu0 %v5238
      %v5983 = vpop.f32.mrf.mxu0
      %v5984 = vadd.f32 0.0, %v5983
      %v5985 = vpop.f32.mrf.mxu0
      %v5986 = vpop.f32.mrf.mxu0
      %v5987 = vadd.f32 0.0, %v5986
      %v5988 = vpop.f32.mrf.mxu0
      %5989 = vmatprep.mubr.bf16.mxu0 0
      %5990 = vmatmul.mubr.bf16.gmra.mxu0 %v5241
      %v5991 = vpop.f32.mrf.mxu0
      %v5992 = vadd.f32 0.0, %v5991
      %v5993 = vpop.f32.mrf.mxu0
      %v5994 = vpop.f32.mrf.mxu0
      %v5995 = vadd.f32 0.0, %v5994
      %v5996 = vpop.f32.mrf.mxu0
      %5997 = vmatprep.mubr.bf16.mxu0 0
      %5998 = vmatmul.mubr.bf16.gmra.mxu0 %v5244
      %v5999 = vpop.f32.mrf.mxu0
      %v6000 = vadd.f32 0.0, %v5999
      %v6001 = vpop.f32.mrf.mxu0
      %v6002 = vpop.f32.mrf.mxu0
      %v6003 = vadd.f32 0.0, %v6002
      %v6004 = vpop.f32.mrf.mxu0
      %6005 = vmatprep.mubr.bf16.mxu0 0
      %6006 = vmatmul.mubr.bf16.gmra.mxu0 %v5247
      %v6007 = vpop.f32.mrf.mxu0
      %v6008 = vadd.f32 0.0, %v6007
      %v6009 = vpop.f32.mrf.mxu0
      %v6010 = vpop.f32.mrf.mxu0
      %v6011 = vadd.f32 0.0, %v6010
      %v6012 = vpop.f32.mrf.mxu0
      %6013 = vmatprep.mubr.bf16.mxu0 0
      %6014 = vmatmul.mubr.bf16.gmra.mxu0 %v5250
      %v6015 = vpop.f32.mrf.mxu0
      %v6016 = vadd.f32 0.0, %v6015
      %v6017 = vpop.f32.mrf.mxu0
      %v6018 = vpop.f32.mrf.mxu0
      %v6019 = vadd.f32 0.0, %v6018
      %v6020 = vpop.f32.mrf.mxu0
      %6021 = vmatprep.mubr.bf16.mxu0 0
      %6022 = vmatmul.mubr.bf16.gmra.mxu0 %v5253
      %v6023 = vpop.f32.mrf.mxu0
      %v6024 = vadd.f32 0.0, %v6023
      %v6025 = vpop.f32.mrf.mxu0
      %v6026 = vpop.f32.mrf.mxu0
      %v6027 = vadd.f32 0.0, %v6026
      %v6028 = vpop.f32.mrf.mxu0
      %6029 = vmatprep.mubr.bf16.mxu0 0
      %6030 = vmatmul.mubr.bf16.gmra.mxu0 %v5872
      %v6031 = vpop.f32.mrf.mxu0
      %v6032 = vadd.f32 0.0, %v6031
      %v6033 = vpop.f32.mrf.mxu0
      %v6034 = vpop.f32.mrf.mxu0
      %v6035 = vadd.f32 0.0, %v6034
      %v6036 = vpop.f32.mrf.mxu0
      %6037 = vdwg.mxu0
      %v6038 = vadd.f32 %v5832, %v5912
      %v6039 = vadd.f32 %v5833, %v5915
      %v6040 = vadd.f32 %v5834, %v5920
      %v6041 = vadd.f32 %v5835, %v5923
      %v6042 = vadd.f32 %v5836, %v5928
      %v6043 = vadd.f32 %v5837, %v5931
      %v6044 = vadd.f32 %v5838, %v5936
      %v6045 = vadd.f32 %v5839, %v5939
      %v6046 = vadd.f32 %v5840, %v5944
      %v6047 = vadd.f32 %v5841, %v5947
      %v6048 = vadd.f32 %v5842, %v5952
      %v6049 = vadd.f32 %v5843, %v5955
      %v6050 = vadd.f32 %v5844, %v5960
      %v6051 = vadd.f32 %v5845, %v5963
      %v6052 = vadd.f32 %v5846, %v5968
      %v6053 = vadd.f32 %v5847, %v5971
      %v6054 = vadd.f32 %v5848, %v5976
      %v6055 = vadd.f32 %v5849, %v5979
      %v6056 = vadd.f32 %v5850, %v5984
      %v6057 = vadd.f32 %v5851, %v5987
      %v6058 = vadd.f32 %v5852, %v5992
      %v6059 = vadd.f32 %v5853, %v5995
      %v6060 = vadd.f32 %v5854, %v6000
      %v6061 = vadd.f32 %v5855, %v6003
      %v6062 = vadd.f32 %v5856, %v6008
      %v6063 = vadd.f32 %v5857, %v6011
      %v6064 = vadd.f32 %v5858, %v6016
      %v6065 = vadd.f32 %v5859, %v6019
      %v6066 = vadd.f32 %v5860, %v6024
      %v6067 = vadd.f32 %v5861, %v6027
      %v6068 = vadd.f32 %v5862, %v6032
      %v6069 = vadd.f32 %v5863, %v6035
      %s6070 = scalar_lea.vmem %s3, 12
      %v6071 = vld [vmem:[%s6070] sm:$0x3]
      %v6073 = vsel %vm4714, %v4516, 0
      %v6076 = vsel %vm4763, %v6071, 0
      %6078 = vmatprep.subr.bf16.mxu0 0
      %6079 = vmatpush1.bf16.msra.mxu0 0
      %6080 = vmatprep.subr.bf16.mxu0 0
      %6081 = vmatpush1.bf16.msra.mxu0 0
      %6082 = vmatprep.subr.bf16.mxu0 0
      %6083 = vmatpush1.bf16.msra.mxu0 0
      %6084 = vmatprep.subr.bf16.mxu0 0
      %6085 = vmatpush1.bf16.msra.mxu0 0
      %6086 = vmatprep.subr.bf16.mxu0 0
      %6087 = vmatpush1.bf16.msra.mxu0 0
      %6088 = vmatprep.subr.bf16.mxu0 0
      %6089 = vmatpush1.bf16.msra.mxu0 0
      %6090 = vmatprep.subr.bf16.mxu0 0
      %6091 = vmatpush1.bf16.msra.mxu0 0
      %6092 = vmatprep.subr.bf16.mxu0 0
      %6093 = vmatpush1.bf16.msra.mxu0 %v6076
      %6094 = vmatprep.subr.bf16.mxu0 0
      %6095 = vmatpush2.bf16.msra.mxu0 0
      %6096 = vmatprep.subr.bf16.mxu0 0
      %6097 = vmatpush2.bf16.msra.mxu0 0
      %6098 = vmatprep.subr.bf16.mxu0 0
      %6099 = vmatpush2.bf16.msra.mxu0 0
      %6100 = vmatprep.subr.bf16.mxu0 0
      %6101 = vmatpush2.bf16.msra.mxu0 0
      %6102 = vmatprep.subr.bf16.mxu0 0
      %6103 = vmatpush2.bf16.msra.mxu0 0
      %6104 = vmatprep.subr.bf16.mxu0 0
      %6105 = vmatpush2.bf16.msra.mxu0 0
      %6106 = vmatprep.subr.bf16.mxu0 0
      %6107 = vmatpush2.bf16.msra.mxu0 0
      %6108 = vmatprep.subr.bf16.mxu0 0
      %6109 = vmatpush2.bf16.msra.mxu0 0
      %6110 = vmatprep.mubr.bf16.mxu0 0
      %6111 = vmatmul.mubr.bf16.gmra.mxu0 %v4932
      %v6112 = vpop.f32.mrf.mxu0
      %v6113 = vadd.f32 0.0, %v6112
      %v6114 = vpop.f32.mrf.mxu0
      %v6115 = vpop.f32.mrf.mxu0
      %v6116 = vadd.f32 0.0, %v6115
      %v6117 = vpop.f32.mrf.mxu0
      %6118 = vmatprep.mubr.bf16.mxu0 0
      %6119 = vmatmul.mubr.bf16.gmra.mxu0 %v4934
      %v6120 = vpop.f32.mrf.mxu0
      %v6121 = vadd.f32 0.0, %v6120
      %v6122 = vpop.f32.mrf.mxu0
      %v6123 = vpop.f32.mrf.mxu0
      %v6124 = vadd.f32 0.0, %v6123
      %v6125 = vpop.f32.mrf.mxu0
      %6126 = vmatprep.mubr.bf16.mxu0 0
      %6127 = vmatmul.mubr.bf16.gmra.mxu0 %v4936
      %v6128 = vpop.f32.mrf.mxu0
      %v6129 = vadd.f32 0.0, %v6128
      %v6130 = vpop.f32.mrf.mxu0
      %v6131 = vpop.f32.mrf.mxu0
      %v6132 = vadd.f32 0.0, %v6131
      %v6133 = vpop.f32.mrf.mxu0
      %6134 = vmatprep.mubr.bf16.mxu0 0
      %6135 = vmatmul.mubr.bf16.gmra.mxu0 %v4938
      %v6136 = vpop.f32.mrf.mxu0
      %v6137 = vadd.f32 0.0, %v6136
      %v6138 = vpop.f32.mrf.mxu0
      %v6139 = vpop.f32.mrf.mxu0
      %v6140 = vadd.f32 0.0, %v6139
      %v6141 = vpop.f32.mrf.mxu0
      %6142 = vmatprep.mubr.bf16.mxu0 0
      %6143 = vmatmul.mubr.bf16.gmra.mxu0 %v4940
      %v6144 = vpop.f32.mrf.mxu0
      %v6145 = vadd.f32 0.0, %v6144
      %v6146 = vpop.f32.mrf.mxu0
      %v6147 = vpop.f32.mrf.mxu0
      %v6148 = vadd.f32 0.0, %v6147
      %v6149 = vpop.f32.mrf.mxu0
      %6150 = vmatprep.mubr.bf16.mxu0 0
      %6151 = vmatmul.mubr.bf16.gmra.mxu0 %v4942
      %v6152 = vpop.f32.mrf.mxu0
      %v6153 = vadd.f32 0.0, %v6152
      %v6154 = vpop.f32.mrf.mxu0
      %v6155 = vpop.f32.mrf.mxu0
      %v6156 = vadd.f32 0.0, %v6155
      %v6157 = vpop.f32.mrf.mxu0
      %6158 = vmatprep.mubr.bf16.mxu0 0
      %6159 = vmatmul.mubr.bf16.gmra.mxu0 %v4944
      %v6160 = vpop.f32.mrf.mxu0
      %v6161 = vadd.f32 0.0, %v6160
      %v6162 = vpop.f32.mrf.mxu0
      %v6163 = vpop.f32.mrf.mxu0
      %v6164 = vadd.f32 0.0, %v6163
      %v6165 = vpop.f32.mrf.mxu0
      %6166 = vmatprep.mubr.bf16.mxu0 0
      %6167 = vmatmul.mubr.bf16.gmra.mxu0 %v4946
      %v6168 = vpop.f32.mrf.mxu0
      %v6169 = vadd.f32 0.0, %v6168
      %v6170 = vpop.f32.mrf.mxu0
      %v6171 = vpop.f32.mrf.mxu0
      %v6172 = vadd.f32 0.0, %v6171
      %v6173 = vpop.f32.mrf.mxu0
      %6174 = vmatprep.mubr.bf16.mxu0 0
      %6175 = vmatmul.mubr.bf16.gmra.mxu0 %v4948
      %v6176 = vpop.f32.mrf.mxu0
      %v6177 = vadd.f32 0.0, %v6176
      %v6178 = vpop.f32.mrf.mxu0
      %v6179 = vpop.f32.mrf.mxu0
      %v6180 = vadd.f32 0.0, %v6179
      %v6181 = vpop.f32.mrf.mxu0
      %6182 = vmatprep.mubr.bf16.mxu0 0
      %6183 = vmatmul.mubr.bf16.gmra.mxu0 %v4950
      %v6184 = vpop.f32.mrf.mxu0
      %v6185 = vadd.f32 0.0, %v6184
      %v6186 = vpop.f32.mrf.mxu0
      %v6187 = vpop.f32.mrf.mxu0
      %v6188 = vadd.f32 0.0, %v6187
      %v6189 = vpop.f32.mrf.mxu0
      %6190 = vmatprep.mubr.bf16.mxu0 0
      %6191 = vmatmul.mubr.bf16.gmra.mxu0 %v4952
      %v6192 = vpop.f32.mrf.mxu0
      %v6193 = vadd.f32 0.0, %v6192
      %v6194 = vpop.f32.mrf.mxu0
      %v6195 = vpop.f32.mrf.mxu0
      %v6196 = vadd.f32 0.0, %v6195
      %v6197 = vpop.f32.mrf.mxu0
      %6198 = vmatprep.mubr.bf16.mxu0 0
      %6199 = vmatmul.mubr.bf16.gmra.mxu0 %v4954
      %v6200 = vpop.f32.mrf.mxu0
      %v6201 = vadd.f32 0.0, %v6200
      %v6202 = vpop.f32.mrf.mxu0
      %v6203 = vpop.f32.mrf.mxu0
      %v6204 = vadd.f32 0.0, %v6203
      %v6205 = vpop.f32.mrf.mxu0
      %6206 = vmatprep.mubr.bf16.mxu0 0
      %6207 = vmatmul.mubr.bf16.gmra.mxu0 %v4956
      %v6208 = vpop.f32.mrf.mxu0
      %v6209 = vadd.f32 0.0, %v6208
      %v6210 = vpop.f32.mrf.mxu0
      %v6211 = vpop.f32.mrf.mxu0
      %v6212 = vadd.f32 0.0, %v6211
      %v6213 = vpop.f32.mrf.mxu0
      %6214 = vmatprep.mubr.bf16.mxu0 0
      %6215 = vmatmul.mubr.bf16.gmra.mxu0 %v4958
      %v6216 = vpop.f32.mrf.mxu0
      %v6217 = vadd.f32 0.0, %v6216
      %v6218 = vpop.f32.mrf.mxu0
      %v6219 = vpop.f32.mrf.mxu0
      %v6220 = vadd.f32 0.0, %v6219
      %v6221 = vpop.f32.mrf.mxu0
      %6222 = vmatprep.mubr.bf16.mxu0 0
      %6223 = vmatmul.mubr.bf16.gmra.mxu0 %v5454
      %v6224 = vpop.f32.mrf.mxu0
      %v6225 = vadd.f32 0.0, %v6224
      %v6226 = vpop.f32.mrf.mxu0
      %v6227 = vpop.f32.mrf.mxu0
      %v6228 = vadd.f32 0.0, %v6227
      %v6229 = vpop.f32.mrf.mxu0
      %6230 = vmatprep.mubr.bf16.mxu0 0
      %6231 = vmatmul.mubr.bf16.gmra.mxu0 %v6073
      %v6232 = vpop.f32.mrf.mxu0
      %v6233 = vadd.f32 0.0, %v6232
      %v6234 = vpop.f32.mrf.mxu0
      %v6235 = vpop.f32.mrf.mxu0
      %v6236 = vadd.f32 0.0, %v6235
      %v6237 = vpop.f32.mrf.mxu0
      %6238 = vdwg.mxu0
      %v6239 = vadd.f32 %v6038, %v6113
      %v6240 = vadd.f32 %v6039, %v6116
      %v6241 = vadd.f32 %v6040, %v6121
      %v6242 = vadd.f32 %v6041, %v6124
      %v6243 = vadd.f32 %v6042, %v6129
      %v6244 = vadd.f32 %v6043, %v6132
      %v6245 = vadd.f32 %v6044, %v6137
      %v6246 = vadd.f32 %v6045, %v6140
      %v6247 = vadd.f32 %v6046, %v6145
      %v6248 = vadd.f32 %v6047, %v6148
      %v6249 = vadd.f32 %v6048, %v6153
      %v6250 = vadd.f32 %v6049, %v6156
      %v6251 = vadd.f32 %v6050, %v6161
      %v6252 = vadd.f32 %v6051, %v6164
      %v6253 = vadd.f32 %v6052, %v6169
      %v6254 = vadd.f32 %v6053, %v6172
      %v6255 = vadd.f32 %v6054, %v6177
      %v6256 = vadd.f32 %v6055, %v6180
      %v6257 = vadd.f32 %v6056, %v6185
      %v6258 = vadd.f32 %v6057, %v6188
      %v6259 = vadd.f32 %v6058, %v6193
      %v6260 = vadd.f32 %v6059, %v6196
      %v6261 = vadd.f32 %v6060, %v6201
      %v6262 = vadd.f32 %v6061, %v6204
      %v6263 = vadd.f32 %v6062, %v6209
      %v6264 = vadd.f32 %v6063, %v6212
      %v6265 = vadd.f32 %v6064, %v6217
      %v6266 = vadd.f32 %v6065, %v6220
      %v6267 = vadd.f32 %v6066, %v6225
      %v6268 = vadd.f32 %v6067, %v6228
      %v6269 = vadd.f32 %v6068, %v6233
      %v6270 = vadd.f32 %v6069, %v6236
      %v6271 = vshrl.u32 %v4516, 16
      %v6273 = vshll.u32 %v4516, 16
      %v6275 = vrot.slane %v6273, 1
      %v6276 = vor.u32 %v6271, %v6275
      %v6278 = vshll.u32 %v4517, 16
      %v6280 = vrot.slane %v6278, 1
      %v6281 = vsel %vm4519, %v6276, %v6280
      %s6282 = scalar_lea.vmem %s3, 14
      %v6283 = vld [vmem:[%s6282] sm:$0x3]
      %v6285 = vsel %vm4714, %v6281, 0
      %v6288 = vsel %vm4763, %v6283, 0
      %6290 = vmatprep.subr.bf16.mxu0 0
      %6291 = vmatpush1.bf16.msra.mxu0 0
      %6292 = vmatprep.subr.bf16.mxu0 0
      %6293 = vmatpush1.bf16.msra.mxu0 0
      %6294 = vmatprep.subr.bf16.mxu0 0
      %6295 = vmatpush1.bf16.msra.mxu0 0
      %6296 = vmatprep.subr.bf16.mxu0 0
      %6297 = vmatpush1.bf16.msra.mxu0 0
      %6298 = vmatprep.subr.bf16.mxu0 0
      %6299 = vmatpush1.bf16.msra.mxu0 0
      %6300 = vmatprep.subr.bf16.mxu0 0
      %6301 = vmatpush1.bf16.msra.mxu0 0
      %6302 = vmatprep.subr.bf16.mxu0 0
      %6303 = vmatpush1.bf16.msra.mxu0 0
      %6304 = vmatprep.subr.bf16.mxu0 0
      %6305 = vmatpush1.bf16.msra.mxu0 %v6288
      %6306 = vmatprep.subr.bf16.mxu0 0
      %6307 = vmatpush2.bf16.msra.mxu0 0
      %6308 = vmatprep.subr.bf16.mxu0 0
      %6309 = vmatpush2.bf16.msra.mxu0 0
      %6310 = vmatprep.subr.bf16.mxu0 0
      %6311 = vmatpush2.bf16.msra.mxu0 0
      %6312 = vmatprep.subr.bf16.mxu0 0
      %6313 = vmatpush2.bf16.msra.mxu0 0
      %6314 = vmatprep.subr.bf16.mxu0 0
      %6315 = vmatpush2.bf16.msra.mxu0 0
      %6316 = vmatprep.subr.bf16.mxu0 0
      %6317 = vmatpush2.bf16.msra.mxu0 0
      %6318 = vmatprep.subr.bf16.mxu0 0
      %6319 = vmatpush2.bf16.msra.mxu0 0
      %6320 = vmatprep.subr.bf16.mxu0 0
      %6321 = vmatpush2.bf16.msra.mxu0 0
      %6322 = vmatprep.mubr.bf16.mxu0 0
      %6323 = vmatmul.mubr.bf16.gmra.mxu0 %v4722
      %v6324 = vpop.f32.mrf.mxu0
      %v6325 = vadd.f32 0.0, %v6324
      %v6326 = vpop.f32.mrf.mxu0
      %v6327 = vpop.f32.mrf.mxu0
      %v6328 = vadd.f32 0.0, %v6327
      %v6329 = vpop.f32.mrf.mxu0
      %6330 = vmatprep.mubr.bf16.mxu0 0
      %6331 = vmatmul.mubr.bf16.gmra.mxu0 %v4725
      %v6332 = vpop.f32.mrf.mxu0
      %v6333 = vadd.f32 0.0, %v6332
      %v6334 = vpop.f32.mrf.mxu0
      %v6335 = vpop.f32.mrf.mxu0
      %v6336 = vadd.f32 0.0, %v6335
      %v6337 = vpop.f32.mrf.mxu0
      %6338 = vmatprep.mubr.bf16.mxu0 0
      %6339 = vmatmul.mubr.bf16.gmra.mxu0 %v4728
      %v6340 = vpop.f32.mrf.mxu0
      %v6341 = vadd.f32 0.0, %v6340
      %v6342 = vpop.f32.mrf.mxu0
      %v6343 = vpop.f32.mrf.mxu0
      %v6344 = vadd.f32 0.0, %v6343
      %v6345 = vpop.f32.mrf.mxu0
      %6346 = vmatprep.mubr.bf16.mxu0 0
      %6347 = vmatmul.mubr.bf16.gmra.mxu0 %v4731
      %v6348 = vpop.f32.mrf.mxu0
      %v6349 = vadd.f32 0.0, %v6348
      %v6350 = vpop.f32.mrf.mxu0
      %v6351 = vpop.f32.mrf.mxu0
      %v6352 = vadd.f32 0.0, %v6351
      %v6353 = vpop.f32.mrf.mxu0
      %6354 = vmatprep.mubr.bf16.mxu0 0
      %6355 = vmatmul.mubr.bf16.gmra.mxu0 %v4734
      %v6356 = vpop.f32.mrf.mxu0
      %v6357 = vadd.f32 0.0, %v6356
      %v6358 = vpop.f32.mrf.mxu0
      %v6359 = vpop.f32.mrf.mxu0
      %v6360 = vadd.f32 0.0, %v6359
      %v6361 = vpop.f32.mrf.mxu0
      %6362 = vmatprep.mubr.bf16.mxu0 0
      %6363 = vmatmul.mubr.bf16.gmra.mxu0 %v4737
      %v6364 = vpop.f32.mrf.mxu0
      %v6365 = vadd.f32 0.0, %v6364
      %v6366 = vpop.f32.mrf.mxu0
      %v6367 = vpop.f32.mrf.mxu0
      %v6368 = vadd.f32 0.0, %v6367
      %v6369 = vpop.f32.mrf.mxu0
      %6370 = vmatprep.mubr.bf16.mxu0 0
      %6371 = vmatmul.mubr.bf16.gmra.mxu0 %v4740
      %v6372 = vpop.f32.mrf.mxu0
      %v6373 = vadd.f32 0.0, %v6372
      %v6374 = vpop.f32.mrf.mxu0
      %v6375 = vpop.f32.mrf.mxu0
      %v6376 = vadd.f32 0.0, %v6375
      %v6377 = vpop.f32.mrf.mxu0
      %6378 = vmatprep.mubr.bf16.mxu0 0
      %6379 = vmatmul.mubr.bf16.gmra.mxu0 %v4743
      %v6380 = vpop.f32.mrf.mxu0
      %v6381 = vadd.f32 0.0, %v6380
      %v6382 = vpop.f32.mrf.mxu0
      %v6383 = vpop.f32.mrf.mxu0
      %v6384 = vadd.f32 0.0, %v6383
      %v6385 = vpop.f32.mrf.mxu0
      %6386 = vmatprep.mubr.bf16.mxu0 0
      %6387 = vmatmul.mubr.bf16.gmra.mxu0 %v4746
      %v6388 = vpop.f32.mrf.mxu0
      %v6389 = vadd.f32 0.0, %v6388
      %v6390 = vpop.f32.mrf.mxu0
      %v6391 = vpop.f32.mrf.mxu0
      %v6392 = vadd.f32 0.0, %v6391
      %v6393 = vpop.f32.mrf.mxu0
      %6394 = vmatprep.mubr.bf16.mxu0 0
      %6395 = vmatmul.mubr.bf16.gmra.mxu0 %v4749
      %v6396 = vpop.f32.mrf.mxu0
      %v6397 = vadd.f32 0.0, %v6396
      %v6398 = vpop.f32.mrf.mxu0
      %v6399 = vpop.f32.mrf.mxu0
      %v6400 = vadd.f32 0.0, %v6399
      %v6401 = vpop.f32.mrf.mxu0
      %6402 = vmatprep.mubr.bf16.mxu0 0
      %6403 = vmatmul.mubr.bf16.gmra.mxu0 %v4752
      %v6404 = vpop.f32.mrf.mxu0
      %v6405 = vadd.f32 0.0, %v6404
      %v6406 = vpop.f32.mrf.mxu0
      %v6407 = vpop.f32.mrf.mxu0
      %v6408 = vadd.f32 0.0, %v6407
      %v6409 = vpop.f32.mrf.mxu0
      %6410 = vmatprep.mubr.bf16.mxu0 0
      %6411 = vmatmul.mubr.bf16.gmra.mxu0 %v4755
      %v6412 = vpop.f32.mrf.mxu0
      %v6413 = vadd.f32 0.0, %v6412
      %v6414 = vpop.f32.mrf.mxu0
      %v6415 = vpop.f32.mrf.mxu0
      %v6416 = vadd.f32 0.0, %v6415
      %v6417 = vpop.f32.mrf.mxu0
      %6418 = vmatprep.mubr.bf16.mxu0 0
      %6419 = vmatmul.mubr.bf16.gmra.mxu0 %v4758
      %v6420 = vpop.f32.mrf.mxu0
      %v6421 = vadd.f32 0.0, %v6420
      %v6422 = vpop.f32.mrf.mxu0
      %v6423 = vpop.f32.mrf.mxu0
      %v6424 = vadd.f32 0.0, %v6423
      %v6425 = vpop.f32.mrf.mxu0
      %6426 = vmatprep.mubr.bf16.mxu0 0
      %6427 = vmatmul.mubr.bf16.gmra.mxu0 %v4761
      %v6428 = vpop.f32.mrf.mxu0
      %v6429 = vadd.f32 0.0, %v6428
      %v6430 = vpop.f32.mrf.mxu0
      %v6431 = vpop.f32.mrf.mxu0
      %v6432 = vadd.f32 0.0, %v6431
      %v6433 = vpop.f32.mrf.mxu0
      %6434 = vmatprep.mubr.bf16.mxu0 0
      %6435 = vmatmul.mubr.bf16.gmra.mxu0 %v5666
      %v6436 = vpop.f32.mrf.mxu0
      %v6437 = vadd.f32 0.0, %v6436
      %v6438 = vpop.f32.mrf.mxu0
      %v6439 = vpop.f32.mrf.mxu0
      %v6440 = vadd.f32 0.0, %v6439
      %v6441 = vpop.f32.mrf.mxu0
      %6442 = vmatprep.mubr.bf16.mxu0 0
      %6443 = vmatmul.mubr.bf16.gmra.mxu0 %v6285
      %v6444 = vpop.f32.mrf.mxu0
      %v6445 = vadd.f32 0.0, %v6444
      %v6446 = vpop.f32.mrf.mxu0
      %v6447 = vpop.f32.mrf.mxu0
      %v6448 = vadd.f32 0.0, %v6447
      %v6449 = vpop.f32.mrf.mxu0
      %6450 = vdwg.mxu0
      %v6451 = vadd.f32 %v6239, %v6325
      %v6452 = vadd.f32 %v6240, %v6328
      %v6453 = vadd.f32 %v6241, %v6333
      %v6454 = vadd.f32 %v6242, %v6336
      %v6455 = vadd.f32 %v6243, %v6341
      %v6456 = vadd.f32 %v6244, %v6344
      %v6457 = vadd.f32 %v6245, %v6349
      %v6458 = vadd.f32 %v6246, %v6352
      %v6459 = vadd.f32 %v6247, %v6357
      %v6460 = vadd.f32 %v6248, %v6360
      %v6461 = vadd.f32 %v6249, %v6365
      %v6462 = vadd.f32 %v6250, %v6368
      %v6463 = vadd.f32 %v6251, %v6373
      %v6464 = vadd.f32 %v6252, %v6376
      %v6465 = vadd.f32 %v6253, %v6381
      %v6466 = vadd.f32 %v6254, %v6384
      %v6467 = vadd.f32 %v6255, %v6389
      %v6468 = vadd.f32 %v6256, %v6392
      %v6469 = vadd.f32 %v6257, %v6397
      %v6470 = vadd.f32 %v6258, %v6400
      %v6471 = vadd.f32 %v6259, %v6405
      %v6472 = vadd.f32 %v6260, %v6408
      %v6473 = vadd.f32 %v6261, %v6413
      %v6474 = vadd.f32 %v6262, %v6416
      %v6475 = vadd.f32 %v6263, %v6421
      %v6476 = vadd.f32 %v6264, %v6424
      %v6477 = vadd.f32 %v6265, %v6429
      %v6478 = vadd.f32 %v6266, %v6432
      %v6479 = vadd.f32 %v6267, %v6437
      %v6480 = vadd.f32 %v6268, %v6440
      %v6481 = vadd.f32 %v6269, %v6445
      %v6482 = vadd.f32 %v6270, %v6448
      %v6485 = vrot.slane %v4516, 1
      %v6486 = vrot.slane %v4517, 1
      %v6487 = vsel %vm5156, %v6485, %v6486
      %s6488 = scalar_lea.vmem %s3, 16
      %v6489 = vld [vmem:[%s6488] sm:$0x3]
      %v6491 = vsel %vm4714, %v6487, 0
      %v6494 = vsel %vm4763, %v6489, 0
      %6496 = vmatprep.subr.bf16.mxu0 0
      %6497 = vmatpush1.bf16.msra.mxu0 0
      %6498 = vmatprep.subr.bf16.mxu0 0
      %6499 = vmatpush1.bf16.msra.mxu0 0
      %6500 = vmatprep.subr.bf16.mxu0 0
      %6501 = vmatpush1.bf16.msra.mxu0 0
      %6502 = vmatprep.subr.bf16.mxu0 0
      %6503 = vmatpush1.bf16.msra.mxu0 0
      %6504 = vmatprep.subr.bf16.mxu0 0
      %6505 = vmatpush1.bf16.msra.mxu0 0
      %6506 = vmatprep.subr.bf16.mxu0 0
      %6507 = vmatpush1.bf16.msra.mxu0 0
      %6508 = vmatprep.subr.bf16.mxu0 0
      %6509 = vmatpush1.bf16.msra.mxu0 0
      %6510 = vmatprep.subr.bf16.mxu0 0
      %6511 = vmatpush1.bf16.msra.mxu0 %v6494
      %6512 = vmatprep.subr.bf16.mxu0 0
      %6513 = vmatpush2.bf16.msra.mxu0 0
      %6514 = vmatprep.subr.bf16.mxu0 0
      %6515 = vmatpush2.bf16.msra.mxu0 0
      %6516 = vmatprep.subr.bf16.mxu0 0
      %6517 = vmatpush2.bf16.msra.mxu0 0
      %6518 = vmatprep.subr.bf16.mxu0 0
      %6519 = vmatpush2.bf16.msra.mxu0 0
      %6520 = vmatprep.subr.bf16.mxu0 0
      %6521 = vmatpush2.bf16.msra.mxu0 0
      %6522 = vmatprep.subr.bf16.mxu0 0
      %6523 = vmatpush2.bf16.msra.mxu0 0
      %6524 = vmatprep.subr.bf16.mxu0 0
      %6525 = vmatpush2.bf16.msra.mxu0 0
      %6526 = vmatprep.subr.bf16.mxu0 0
      %6527 = vmatpush2.bf16.msra.mxu0 0
      %6528 = vmatprep.mubr.bf16.mxu0 0
      %6529 = vmatmul.mubr.bf16.gmra.mxu0 %v5214
      %v6530 = vpop.f32.mrf.mxu0
      %v6531 = vadd.f32 0.0, %v6530
      %v6532 = vpop.f32.mrf.mxu0
      %v6533 = vpop.f32.mrf.mxu0
      %v6534 = vadd.f32 0.0, %v6533
      %v6535 = vpop.f32.mrf.mxu0
      %6536 = vmatprep.mubr.bf16.mxu0 0
      %6537 = vmatmul.mubr.bf16.gmra.mxu0 %v5217
      %v6538 = vpop.f32.mrf.mxu0
      %v6539 = vadd.f32 0.0, %v6538
      %v6540 = vpop.f32.mrf.mxu0
      %v6541 = vpop.f32.mrf.mxu0
      %v6542 = vadd.f32 0.0, %v6541
      %v6543 = vpop.f32.mrf.mxu0
      %6544 = vmatprep.mubr.bf16.mxu0 0
      %6545 = vmatmul.mubr.bf16.gmra.mxu0 %v5220
      %v6546 = vpop.f32.mrf.mxu0
      %v6547 = vadd.f32 0.0, %v6546
      %v6548 = vpop.f32.mrf.mxu0
      %v6549 = vpop.f32.mrf.mxu0
      %v6550 = vadd.f32 0.0, %v6549
      %v6551 = vpop.f32.mrf.mxu0
      %6552 = vmatprep.mubr.bf16.mxu0 0
      %6553 = vmatmul.mubr.bf16.gmra.mxu0 %v5223
      %v6554 = vpop.f32.mrf.mxu0
      %v6555 = vadd.f32 0.0, %v6554
      %v6556 = vpop.f32.mrf.mxu0
      %v6557 = vpop.f32.mrf.mxu0
      %v6558 = vadd.f32 0.0, %v6557
      %v6559 = vpop.f32.mrf.mxu0
      %6560 = vmatprep.mubr.bf16.mxu0 0
      %6561 = vmatmul.mubr.bf16.gmra.mxu0 %v5226
      %v6562 = vpop.f32.mrf.mxu0
      %v6563 = vadd.f32 0.0, %v6562
      %v6564 = vpop.f32.mrf.mxu0
      %v6565 = vpop.f32.mrf.mxu0
      %v6566 = vadd.f32 0.0, %v6565
      %v6567 = vpop.f32.mrf.mxu0
      %6568 = vmatprep.mubr.bf16.mxu0 0
      %6569 = vmatmul.mubr.bf16.gmra.mxu0 %v5229
      %v6570 = vpop.f32.mrf.mxu0
      %v6571 = vadd.f32 0.0, %v6570
      %v6572 = vpop.f32.mrf.mxu0
      %v6573 = vpop.f32.mrf.mxu0
      %v6574 = vadd.f32 0.0, %v6573
      %v6575 = vpop.f32.mrf.mxu0
      %6576 = vmatprep.mubr.bf16.mxu0 0
      %6577 = vmatmul.mubr.bf16.gmra.mxu0 %v5232
      %v6578 = vpop.f32.mrf.mxu0
      %v6579 = vadd.f32 0.0, %v6578
      %v6580 = vpop.f32.mrf.mxu0
      %v6581 = vpop.f32.mrf.mxu0
      %v6582 = vadd.f32 0.0, %v6581
      %v6583 = vpop.f32.mrf.mxu0
      %6584 = vmatprep.mubr.bf16.mxu0 0
      %6585 = vmatmul.mubr.bf16.gmra.mxu0 %v5235
      %v6586 = vpop.f32.mrf.mxu0
      %v6587 = vadd.f32 0.0, %v6586
      %v6588 = vpop.f32.mrf.mxu0
      %v6589 = vpop.f32.mrf.mxu0
      %v6590 = vadd.f32 0.0, %v6589
      %v6591 = vpop.f32.mrf.mxu0
      %6592 = vmatprep.mubr.bf16.mxu0 0
      %6593 = vmatmul.mubr.bf16.gmra.mxu0 %v5238
      %v6594 = vpop.f32.mrf.mxu0
      %v6595 = vadd.f32 0.0, %v6594
      %v6596 = vpop.f32.mrf.mxu0
      %v6597 = vpop.f32.mrf.mxu0
      %v6598 = vadd.f32 0.0, %v6597
      %v6599 = vpop.f32.mrf.mxu0
      %6600 = vmatprep.mubr.bf16.mxu0 0
      %6601 = vmatmul.mubr.bf16.gmra.mxu0 %v5241
      %v6602 = vpop.f32.mrf.mxu0
      %v6603 = vadd.f32 0.0, %v6602
      %v6604 = vpop.f32.mrf.mxu0
      %v6605 = vpop.f32.mrf.mxu0
      %v6606 = vadd.f32 0.0, %v6605
      %v6607 = vpop.f32.mrf.mxu0
      %6608 = vmatprep.mubr.bf16.mxu0 0
      %6609 = vmatmul.mubr.bf16.gmra.mxu0 %v5244
      %v6610 = vpop.f32.mrf.mxu0
      %v6611 = vadd.f32 0.0, %v6610
      %v6612 = vpop.f32.mrf.mxu0
      %v6613 = vpop.f32.mrf.mxu0
      %v6614 = vadd.f32 0.0, %v6613
      %v6615 = vpop.f32.mrf.mxu0
      %6616 = vmatprep.mubr.bf16.mxu0 0
      %6617 = vmatmul.mubr.bf16.gmra.mxu0 %v5247
      %v6618 = vpop.f32.mrf.mxu0
      %v6619 = vadd.f32 0.0, %v6618
      %v6620 = vpop.f32.mrf.mxu0
      %v6621 = vpop.f32.mrf.mxu0
      %v6622 = vadd.f32 0.0, %v6621
      %v6623 = vpop.f32.mrf.mxu0
      %6624 = vmatprep.mubr.bf16.mxu0 0
      %6625 = vmatmul.mubr.bf16.gmra.mxu0 %v5250
      %v6626 = vpop.f32.mrf.mxu0
      %v6627 = vadd.f32 0.0, %v6626
      %v6628 = vpop.f32.mrf.mxu0
      %v6629 = vpop.f32.mrf.mxu0
      %v6630 = vadd.f32 0.0, %v6629
      %v6631 = vpop.f32.mrf.mxu0
      %6632 = vmatprep.mubr.bf16.mxu0 0
      %6633 = vmatmul.mubr.bf16.gmra.mxu0 %v5253
      %v6634 = vpop.f32.mrf.mxu0
      %v6635 = vadd.f32 0.0, %v6634
      %v6636 = vpop.f32.mrf.mxu0
      %v6637 = vpop.f32.mrf.mxu0
      %v6638 = vadd.f32 0.0, %v6637
      %v6639 = vpop.f32.mrf.mxu0
      %6640 = vmatprep.mubr.bf16.mxu0 0
      %6641 = vmatmul.mubr.bf16.gmra.mxu0 %v5872
      %v6642 = vpop.f32.mrf.mxu0
      %v6643 = vadd.f32 0.0, %v6642
      %v6644 = vpop.f32.mrf.mxu0
      %v6645 = vpop.f32.mrf.mxu0
      %v6646 = vadd.f32 0.0, %v6645
      %v6647 = vpop.f32.mrf.mxu0
      %6648 = vmatprep.mubr.bf16.mxu0 0
      %6649 = vmatmul.mubr.bf16.gmra.mxu0 %v6491
      %v6650 = vpop.f32.mrf.mxu0
      %v6651 = vadd.f32 0.0, %v6650
      %v6652 = vpop.f32.mrf.mxu0
      %v6653 = vpop.f32.mrf.mxu0
      %v6654 = vadd.f32 0.0, %v6653
      %v6655 = vpop.f32.mrf.mxu0
      %6656 = vdwg.mxu0
      %v6657 = vadd.f32 %v6451, %v6531
      %v6658 = vadd.f32 %v6452, %v6534
      %v6659 = vadd.f32 %v6453, %v6539
      %v6660 = vadd.f32 %v6454, %v6542
      %v6661 = vadd.f32 %v6455, %v6547
      %v6662 = vadd.f32 %v6456, %v6550
      %v6663 = vadd.f32 %v6457, %v6555
      %v6664 = vadd.f32 %v6458, %v6558
      %v6665 = vadd.f32 %v6459, %v6563
      %v6666 = vadd.f32 %v6460, %v6566
      %v6667 = vadd.f32 %v6461, %v6571
      %v6668 = vadd.f32 %v6462, %v6574
      %v6669 = vadd.f32 %v6463, %v6579
      %v6670 = vadd.f32 %v6464, %v6582
      %v6671 = vadd.f32 %v6465, %v6587
      %v6672 = vadd.f32 %v6466, %v6590
      %v6673 = vadd.f32 %v6467, %v6595
      %v6674 = vadd.f32 %v6468, %v6598
      %v6675 = vadd.f32 %v6469, %v6603
      %v6676 = vadd.f32 %v6470, %v6606
      %v6677 = vadd.f32 %v6471, %v6611
      %v6678 = vadd.f32 %v6472, %v6614
      %v6679 = vadd.f32 %v6473, %v6619
      %v6680 = vadd.f32 %v6474, %v6622
      %v6681 = vadd.f32 %v6475, %v6627
      %v6682 = vadd.f32 %v6476, %v6630
      %v6683 = vadd.f32 %v6477, %v6635
      %v6684 = vadd.f32 %v6478, %v6638
      %v6685 = vadd.f32 %v6479, %v6643
      %v6686 = vadd.f32 %v6480, %v6646
      %v6687 = vadd.f32 %v6481, %v6651
      %v6688 = vadd.f32 %v6482, %v6654
      %v6689 = vld [vmem:[%s4] sm:$0x1]
      %v6691 = vlaneseq
      %v6692 = vshrl.u32 %v6691, 7
      %v6693 = vsub.s32 0, %v6692
      %v6694 = vrot.slane %v6689, %v6693
      %v6696 = vadd.f32 %v6657, %v6694
      %v6697 = vadd.f32 %v6658, %v6694
      %v6698 = vadd.f32 %v6659, %v6694
      %v6699 = vadd.f32 %v6660, %v6694
      %v6700 = vadd.f32 %v6661, %v6694
      %v6701 = vadd.f32 %v6662, %v6694
      %v6702 = vadd.f32 %v6663, %v6694
      %v6703 = vadd.f32 %v6664, %v6694
      %v6704 = vadd.f32 %v6665, %v6694
      %v6705 = vadd.f32 %v6666, %v6694
      %v6706 = vadd.f32 %v6667, %v6694
      %v6707 = vadd.f32 %v6668, %v6694
      %v6708 = vadd.f32 %v6669, %v6694
      %v6709 = vadd.f32 %v6670, %v6694
      %v6710 = vadd.f32 %v6671, %v6694
      %v6711 = vadd.f32 %v6672, %v6694
      %v6712 = vadd.f32 %v6673, %v6694
      %v6713 = vadd.f32 %v6674, %v6694
      %v6714 = vadd.f32 %v6675, %v6694
      %v6715 = vadd.f32 %v6676, %v6694
      %v6716 = vadd.f32 %v6677, %v6694
      %v6717 = vadd.f32 %v6678, %v6694
      %v6718 = vadd.f32 %v6679, %v6694
      %v6719 = vadd.f32 %v6680, %v6694
      %v6720 = vadd.f32 %v6681, %v6694
      %v6721 = vadd.f32 %v6682, %v6694
      %v6722 = vadd.f32 %v6683, %v6694
      %v6723 = vadd.f32 %v6684, %v6694
      %v6724 = vadd.f32 %v6685, %v6694
      %v6725 = vadd.f32 %v6686, %v6694
      %v6726 = vadd.f32 %v6687, %v6694
      %v6727 = vadd.f32 %v6688, %v6694
      %v6728 = vmax.f32 %v6696, 0.0
      %v6729 = vmax.f32 %v6697, 0.0
      %v6730 = vmax.f32 %v6698, 0.0
      %v6731 = vmax.f32 %v6699, 0.0
      %v6732 = vmax.f32 %v6700, 0.0
      %v6733 = vmax.f32 %v6701, 0.0
      %v6734 = vmax.f32 %v6702, 0.0
      %v6735 = vmax.f32 %v6703, 0.0
      %v6736 = vmax.f32 %v6704, 0.0
      %v6737 = vmax.f32 %v6705, 0.0
      %v6738 = vmax.f32 %v6706, 0.0
      %v6739 = vmax.f32 %v6707, 0.0
      %v6740 = vmax.f32 %v6708, 0.0
      %v6741 = vmax.f32 %v6709, 0.0
      %v6742 = vmax.f32 %v6710, 0.0
      %v6743 = vmax.f32 %v6711, 0.0
      %v6744 = vmax.f32 %v6712, 0.0
      %v6745 = vmax.f32 %v6713, 0.0
      %v6746 = vmax.f32 %v6714, 0.0
      %v6747 = vmax.f32 %v6715, 0.0
      %v6748 = vmax.f32 %v6716, 0.0
      %v6749 = vmax.f32 %v6717, 0.0
      %v6750 = vmax.f32 %v6718, 0.0
      %v6751 = vmax.f32 %v6719, 0.0
      %v6752 = vmax.f32 %v6720, 0.0
      %v6753 = vmax.f32 %v6721, 0.0
      %v6754 = vmax.f32 %v6722, 0.0
      %v6755 = vmax.f32 %v6723, 0.0
      %v6756 = vmax.f32 %v6724, 0.0
      %v6757 = vmax.f32 %v6725, 0.0
      %v6758 = vmax.f32 %v6726, 0.0
      %v6759 = vmax.f32 %v6727, 0.0
      %v6760 = vpack.c.bf16 %v6729, %v6728
      %v6761 = vpack.c.bf16 %v6731, %v6730
      %v6762 = vpack.c.bf16 %v6733, %v6732
      %v6763 = vpack.c.bf16 %v6735, %v6734
      %v6764 = vpack.c.bf16 %v6737, %v6736
      %v6765 = vpack.c.bf16 %v6739, %v6738
      %v6766 = vpack.c.bf16 %v6741, %v6740
      %v6767 = vpack.c.bf16 %v6743, %v6742
      %v6768 = vpack.c.bf16 %v6745, %v6744
      %v6769 = vpack.c.bf16 %v6747, %v6746
      %v6770 = vpack.c.bf16 %v6749, %v6748
      %v6771 = vpack.c.bf16 %v6751, %v6750
      %v6772 = vpack.c.bf16 %v6753, %v6752
      %v6773 = vpack.c.bf16 %v6755, %v6754
      %v6774 = vpack.c.bf16 %v6757, %v6756
      %v6775 = vpack.c.bf16 %v6759, %v6758
      %v6776 = vld [vmem:[%s5] sm:$0x3]
      %v6777 = vld [vmem:[%s6] sm:$0x1]
      %v6779 = vlaneseq
      %v6780 = vshrl.u32 %v6779, 7
      %v6781 = vsub.s32 0, %v6780
      %v6782 = vrot.slane %v6777, %v6781
      %v6785 = vsel %vm4714, %v6760, 0
      %v6788 = vsel %vm4714, %v6761, 0
      %v6791 = vsel %vm4714, %v6762, 0
      %v6794 = vsel %vm4714, %v6763, 0
      %v6797 = vsel %vm4714, %v6764, 0
      %v6800 = vsel %vm4714, %v6765, 0
      %v6803 = vsel %vm4714, %v6766, 0
      %v6806 = vsel %vm4714, %v6767, 0
      %v6809 = vsel %vm4714, %v6768, 0
      %v6812 = vsel %vm4714, %v6769, 0
      %v6815 = vsel %vm4714, %v6770, 0
      %v6818 = vsel %vm4714, %v6771, 0
      %v6821 = vsel %vm4714, %v6772, 0
      %v6824 = vsel %vm4714, %v6773, 0
      %v6827 = vsel %vm4714, %v6774, 0
      %v6830 = vsel %vm4714, %v6775, 0
      %v6833 = vsel %vm4763, %v6776, 0
      %6835 = vmatprep.subr.bf16.mxu0 0
      %6836 = vmatpush1.bf16.msra.mxu0 0
      %6837 = vmatprep.subr.bf16.mxu0 0
      %6838 = vmatpush1.bf16.msra.mxu0 0
      %6839 = vmatprep.subr.bf16.mxu0 0
      %6840 = vmatpush1.bf16.msra.mxu0 0
      %6841 = vmatprep.subr.bf16.mxu0 0
      %6842 = vmatpush1.bf16.msra.mxu0 0
      %6843 = vmatprep.subr.bf16.mxu0 0
      %6844 = vmatpush1.bf16.msra.mxu0 0
      %6845 = vmatprep.subr.bf16.mxu0 0
      %6846 = vmatpush1.bf16.msra.mxu0 0
      %6847 = vmatprep.subr.bf16.mxu0 0
      %6848 = vmatpush1.bf16.msra.mxu0 0
      %6849 = vmatprep.subr.bf16.mxu0 0
      %6850 = vmatpush1.bf16.msra.mxu0 %v6833
      %6851 = vmatprep.subr.bf16.mxu0 0
      %6852 = vmatpush2.bf16.msra.mxu0 0
      %6853 = vmatprep.subr.bf16.mxu0 0
      %6854 = vmatpush2.bf16.msra.mxu0 0
      %6855 = vmatprep.subr.bf16.mxu0 0
      %6856 = vmatpush2.bf16.msra.mxu0 0
      %6857 = vmatprep.subr.bf16.mxu0 0
      %6858 = vmatpush2.bf16.msra.mxu0 0
      %6859 = vmatprep.subr.bf16.mxu0 0
      %6860 = vmatpush2.bf16.msra.mxu0 0
      %6861 = vmatprep.subr.bf16.mxu0 0
      %6862 = vmatpush2.bf16.msra.mxu0 0
      %6863 = vmatprep.subr.bf16.mxu0 0
      %6864 = vmatpush2.bf16.msra.mxu0 0
      %6865 = vmatprep.subr.bf16.mxu0 0
      %6866 = vmatpush2.bf16.msra.mxu0 0
      %6867 = vmatprep.mubr.bf16.mxu0 0
      %6868 = vmatmul.mubr.bf16.gmra.mxu0 %v6785
      %v6869 = vpop.f32.mrf.mxu0
      %v6870 = vadd.f32 %v6782, %v6869
      %v6871 = vpop.f32.mrf.mxu0
      %v6872 = vpop.f32.mrf.mxu0
      %v6873 = vadd.f32 %v6782, %v6872
      %v6874 = vpop.f32.mrf.mxu0
      %6875 = vmatprep.mubr.bf16.mxu0 0
      %6876 = vmatmul.mubr.bf16.gmra.mxu0 %v6788
      %v6877 = vpop.f32.mrf.mxu0
      %v6878 = vadd.f32 %v6782, %v6877
      %v6879 = vpop.f32.mrf.mxu0
      %v6880 = vpop.f32.mrf.mxu0
      %v6881 = vadd.f32 %v6782, %v6880
      %v6882 = vpop.f32.mrf.mxu0
      %6883 = vmatprep.mubr.bf16.mxu0 0
      %6884 = vmatmul.mubr.bf16.gmra.mxu0 %v6791
      %v6885 = vpop.f32.mrf.mxu0
      %v6886 = vadd.f32 %v6782, %v6885
      %v6887 = vpop.f32.mrf.mxu0
      %v6888 = vpop.f32.mrf.mxu0
      %v6889 = vadd.f32 %v6782, %v6888
      %v6890 = vpop.f32.mrf.mxu0
      %6891 = vmatprep.mubr.bf16.mxu0 0
      %6892 = vmatmul.mubr.bf16.gmra.mxu0 %v6794
      %v6893 = vpop.f32.mrf.mxu0
      %v6894 = vadd.f32 %v6782, %v6893
      %v6895 = vpop.f32.mrf.mxu0
      %v6896 = vpop.f32.mrf.mxu0
      %v6897 = vadd.f32 %v6782, %v6896
      %v6898 = vpop.f32.mrf.mxu0
      %6899 = vmatprep.mubr.bf16.mxu0 0
      %6900 = vmatmul.mubr.bf16.gmra.mxu0 %v6797
      %v6901 = vpop.f32.mrf.mxu0
      %v6902 = vadd.f32 %v6782, %v6901
      %v6903 = vpop.f32.mrf.mxu0
      %v6904 = vpop.f32.mrf.mxu0
      %v6905 = vadd.f32 %v6782, %v6904
      %v6906 = vpop.f32.mrf.mxu0
      %6907 = vmatprep.mubr.bf16.mxu0 0
      %6908 = vmatmul.mubr.bf16.gmra.mxu0 %v6800
      %v6909 = vpop.f32.mrf.mxu0
      %v6910 = vadd.f32 %v6782, %v6909
      %v6911 = vpop.f32.mrf.mxu0
      %v6912 = vpop.f32.mrf.mxu0
      %v6913 = vadd.f32 %v6782, %v6912
      %v6914 = vpop.f32.mrf.mxu0
      %6915 = vmatprep.mubr.bf16.mxu0 0
      %6916 = vmatmul.mubr.bf16.gmra.mxu0 %v6803
      %v6917 = vpop.f32.mrf.mxu0
      %v6918 = vadd.f32 %v6782, %v6917
      %v6919 = vpop.f32.mrf.mxu0
      %v6920 = vpop.f32.mrf.mxu0
      %v6921 = vadd.f32 %v6782, %v6920
      %v6922 = vpop.f32.mrf.mxu0
      %6923 = vmatprep.mubr.bf16.mxu0 0
      %6924 = vmatmul.mubr.bf16.gmra.mxu0 %v6806
      %v6925 = vpop.f32.mrf.mxu0
      %v6926 = vadd.f32 %v6782, %v6925
      %v6927 = vpop.f32.mrf.mxu0
      %v6928 = vpop.f32.mrf.mxu0
      %v6929 = vadd.f32 %v6782, %v6928
      %v6930 = vpop.f32.mrf.mxu0
      %6931 = vmatprep.mubr.bf16.mxu0 0
      %6932 = vmatmul.mubr.bf16.gmra.mxu0 %v6809
      %v6933 = vpop.f32.mrf.mxu0
      %v6934 = vadd.f32 %v6782, %v6933
      %v6935 = vpop.f32.mrf.mxu0
      %v6936 = vpop.f32.mrf.mxu0
      %v6937 = vadd.f32 %v6782, %v6936
      %v6938 = vpop.f32.mrf.mxu0
      %6939 = vmatprep.mubr.bf16.mxu0 0
      %6940 = vmatmul.mubr.bf16.gmra.mxu0 %v6812
      %v6941 = vpop.f32.mrf.mxu0
      %v6942 = vadd.f32 %v6782, %v6941
      %v6943 = vpop.f32.mrf.mxu0
      %v6944 = vpop.f32.mrf.mxu0
      %v6945 = vadd.f32 %v6782, %v6944
      %v6946 = vpop.f32.mrf.mxu0
      %6947 = vmatprep.mubr.bf16.mxu0 0
      %6948 = vmatmul.mubr.bf16.gmra.mxu0 %v6815
      %v6949 = vpop.f32.mrf.mxu0
      %v6950 = vadd.f32 %v6782, %v6949
      %v6951 = vpop.f32.mrf.mxu0
      %v6952 = vpop.f32.mrf.mxu0
      %v6953 = vadd.f32 %v6782, %v6952
      %v6954 = vpop.f32.mrf.mxu0
      %6955 = vmatprep.mubr.bf16.mxu0 0
      %6956 = vmatmul.mubr.bf16.gmra.mxu0 %v6818
      %v6957 = vpop.f32.mrf.mxu0
      %v6958 = vadd.f32 %v6782, %v6957
      %v6959 = vpop.f32.mrf.mxu0
      %v6960 = vpop.f32.mrf.mxu0
      %v6961 = vadd.f32 %v6782, %v6960
      %v6962 = vpop.f32.mrf.mxu0
      %6963 = vmatprep.mubr.bf16.mxu0 0
      %6964 = vmatmul.mubr.bf16.gmra.mxu0 %v6821
      %v6965 = vpop.f32.mrf.mxu0
      %v6966 = vadd.f32 %v6782, %v6965
      %v6967 = vpop.f32.mrf.mxu0
      %v6968 = vpop.f32.mrf.mxu0
      %v6969 = vadd.f32 %v6782, %v6968
      %v6970 = vpop.f32.mrf.mxu0
      %6971 = vmatprep.mubr.bf16.mxu0 0
      %6972 = vmatmul.mubr.bf16.gmra.mxu0 %v6824
      %v6973 = vpop.f32.mrf.mxu0
      %v6974 = vadd.f32 %v6782, %v6973
      %v6975 = vpop.f32.mrf.mxu0
      %v6976 = vpop.f32.mrf.mxu0
      %v6977 = vadd.f32 %v6782, %v6976
      %v6978 = vpop.f32.mrf.mxu0
      %6979 = vmatprep.mubr.bf16.mxu0 0
      %6980 = vmatmul.mubr.bf16.gmra.mxu0 %v6827
      %v6981 = vpop.f32.mrf.mxu0
      %v6982 = vadd.f32 %v6782, %v6981
      %v6983 = vpop.f32.mrf.mxu0
      %v6984 = vpop.f32.mrf.mxu0
      %v6985 = vadd.f32 %v6782, %v6984
      %v6986 = vpop.f32.mrf.mxu0
      %6987 = vmatprep.mubr.bf16.mxu0 0
      %6988 = vmatmul.mubr.bf16.gmra.mxu0 %v6830
      %v6989 = vpop.f32.mrf.mxu0
      %v6990 = vadd.f32 %v6782, %v6989
      %v6991 = vpop.f32.mrf.mxu0
      %v6992 = vpop.f32.mrf.mxu0
      %v6993 = vadd.f32 %v6782, %v6992
      %v6994 = vpop.f32.mrf.mxu0
      %6995 = vdwg.mxu0
      %v6996 = vsel %vm2568, %v6870, 0.0
      %v6997 = vsel %vm2568, %v6873, 0.0
      %v6998 = vadd.f32 %v6996, %v6997
      %v6999 = vsel %vm2568, %v6878, 0.0
      %v7000 = vadd.f32 %v6998, %v6999
      %v7001 = vsel %vm2568, %v6881, 0.0
      %v7002 = vadd.f32 %v7000, %v7001
      %v7003 = vsel %vm2568, %v6886, 0.0
      %v7004 = vadd.f32 %v7002, %v7003
      %v7005 = vsel %vm2568, %v6889, 0.0
      %v7006 = vadd.f32 %v7004, %v7005
      %v7007 = vsel %vm2568, %v6894, 0.0
      %v7008 = vadd.f32 %v7006, %v7007
      %v7009 = vsel %vm2568, %v6897, 0.0
      %v7010 = vadd.f32 %v7008, %v7009
      %v7011 = vsel %vm2568, %v6902, 0.0
      %v7012 = vadd.f32 %v7010, %v7011
      %v7013 = vsel %vm2568, %v6905, 0.0
      %v7014 = vadd.f32 %v7012, %v7013
      %v7015 = vsel %vm2568, %v6910, 0.0
      %v7016 = vadd.f32 %v7014, %v7015
      %v7017 = vsel %vm2568, %v6913, 0.0
      %v7018 = vadd.f32 %v7016, %v7017
      %v7019 = vsel %vm2568, %v6918, 0.0
      %v7020 = vadd.f32 %v7018, %v7019
      %v7021 = vsel %vm2568, %v6921, 0.0
      %v7022 = vadd.f32 %v7020, %v7021
      %v7023 = vsel %vm2568, %v6926, 0.0
      %v7024 = vadd.f32 %v7022, %v7023
      %v7025 = vsel %vm2568, %v6929, 0.0
      %v7026 = vadd.f32 %v7024, %v7025
      %v7027 = vsel %vm2568, %v6934, 0.0
      %v7028 = vadd.f32 %v7026, %v7027
      %v7029 = vsel %vm2568, %v6937, 0.0
      %v7030 = vadd.f32 %v7028, %v7029
      %v7031 = vsel %vm2568, %v6942, 0.0
      %v7032 = vadd.f32 %v7030, %v7031
      %v7033 = vsel %vm2568, %v6945, 0.0
      %v7034 = vadd.f32 %v7032, %v7033
      %v7035 = vsel %vm2568, %v6950, 0.0
      %v7036 = vadd.f32 %v7034, %v7035
      %v7037 = vsel %vm2568, %v6953, 0.0
      %v7038 = vadd.f32 %v7036, %v7037
      %v7039 = vsel %vm2568, %v6958, 0.0
      %v7040 = vadd.f32 %v7038, %v7039
      %v7041 = vsel %vm2568, %v6961, 0.0
      %v7042 = vadd.f32 %v7040, %v7041
      %v7043 = vsel %vm2568, %v6966, 0.0
      %v7044 = vadd.f32 %v7042, %v7043
      %v7045 = vsel %vm2568, %v6969, 0.0
      %v7046 = vadd.f32 %v7044, %v7045
      %v7047 = vsel %vm2568, %v6974, 0.0
      %v7048 = vadd.f32 %v7046, %v7047
      %v7049 = vsel %vm2568, %v6977, 0.0
      %v7050 = vadd.f32 %v7048, %v7049
      %v7051 = vsel %vm2568, %v6982, 0.0
      %v7052 = vadd.f32 %v7050, %v7051
      %v7053 = vsel %vm2568, %v6985, 0.0
      %v7054 = vadd.f32 %v7052, %v7053
      %v7055 = vsel %vm2568, %v6990, 0.0
      %v7056 = vadd.f32 %v7054, %v7055
      %v7057 = vsel %vm2568, %v6993, 0.0
      %v7058 = vadd.f32 %v7056, %v7057
      %v7059 = vrot.slane %v7058, 4
      %v7060 = vadd.f32 %v7058, %v7059
      %v7061 = vrot.slane %v7060, 2
      %v7062 = vadd.f32 %v7060, %v7061
      %v7063 = vrot.slane %v7062, 1
      %v7064 = vadd.f32 %v7062, %v7063
      %v7065 = vmul.f32 %v6870, %v6870
      %v7066 = vmul.f32 %v6873, %v6873
      %v7067 = vmul.f32 %v6878, %v6878
      %v7068 = vmul.f32 %v6881, %v6881
      %v7069 = vmul.f32 %v6886, %v6886
      %v7070 = vmul.f32 %v6889, %v6889
      %v7071 = vmul.f32 %v6894, %v6894
      %v7072 = vmul.f32 %v6897, %v6897
      %v7073 = vmul.f32 %v6902, %v6902
      %v7074 = vmul.f32 %v6905, %v6905
      %v7075 = vmul.f32 %v6910, %v6910
      %v7076 = vmul.f32 %v6913, %v6913
      %v7077 = vmul.f32 %v6918, %v6918
      %v7078 = vmul.f32 %v6921, %v6921
      %v7079 = vmul.f32 %v6926, %v6926
      %v7080 = vmul.f32 %v6929, %v6929
      %v7081 = vmul.f32 %v6934, %v6934
      %v7082 = vmul.f32 %v6937, %v6937
      %v7083 = vmul.f32 %v6942, %v6942
      %v7084 = vmul.f32 %v6945, %v6945
      %v7085 = vmul.f32 %v6950, %v6950
      %v7086 = vmul.f32 %v6953, %v6953
      %v7087 = vmul.f32 %v6958, %v6958
      %v7088 = vmul.f32 %v6961, %v6961
      %v7089 = vmul.f32 %v6966, %v6966
      %v7090 = vmul.f32 %v6969, %v6969
      %v7091 = vmul.f32 %v6974, %v6974
      %v7092 = vmul.f32 %v6977, %v6977
      %v7093 = vmul.f32 %v6982, %v6982
      %v7094 = vmul.f32 %v6985, %v6985
      %v7095 = vmul.f32 %v6990, %v6990
      %v7096 = vmul.f32 %v6993, %v6993
      %v7097 = vsel %vm2568, %v7065, 0.0
      %v7098 = vsel %vm2568, %v7066, 0.0
      %v7099 = vadd.f32 %v7097, %v7098
      %v7100 = vsel %vm2568, %v7067, 0.0
      %v7101 = vadd.f32 %v7099, %v7100
      %v7102 = vsel %vm2568, %v7068, 0.0
      %v7103 = vadd.f32 %v7101, %v7102
      %v7104 = vsel %vm2568, %v7069, 0.0
      %v7105 = vadd.f32 %v7103, %v7104
      %v7106 = vsel %vm2568, %v7070, 0.0
      %v7107 = vadd.f32 %v7105, %v7106
      %v7108 = vsel %vm2568, %v7071, 0.0
      %v7109 = vadd.f32 %v7107, %v7108
      %v7110 = vsel %vm2568, %v7072, 0.0
      %v7111 = vadd.f32 %v7109, %v7110
      %v7112 = vsel %vm2568, %v7073, 0.0
      %v7113 = vadd.f32 %v7111, %v7112
      %v7114 = vsel %vm2568, %v7074, 0.0
      %v7115 = vadd.f32 %v7113, %v7114
      %v7116 = vsel %vm2568, %v7075, 0.0
      %v7117 = vadd.f32 %v7115, %v7116
      %v7118 = vsel %vm2568, %v7076, 0.0
      %v7119 = vadd.f32 %v7117, %v7118
      %v7120 = vsel %vm2568, %v7077, 0.0
      %v7121 = vadd.f32 %v7119, %v7120
      %v7122 = vsel %vm2568, %v7078, 0.0
      %v7123 = vadd.f32 %v7121, %v7122
      %v7124 = vsel %vm2568, %v7079, 0.0
      %v7125 = vadd.f32 %v7123, %v7124
      %v7126 = vsel %vm2568, %v7080, 0.0
      %v7127 = vadd.f32 %v7125, %v7126
      %v7128 = vsel %vm2568, %v7081, 0.0
      %v7129 = vadd.f32 %v7127, %v7128
      %v7130 = vsel %vm2568, %v7082, 0.0
      %v7131 = vadd.f32 %v7129, %v7130
      %v7132 = vsel %vm2568, %v7083, 0.0
      %v7133 = vadd.f32 %v7131, %v7132
      %v7134 = vsel %vm2568, %v7084, 0.0
      %v7135 = vadd.f32 %v7133, %v7134
      %v7136 = vsel %vm2568, %v7085, 0.0
      %v7137 = vadd.f32 %v7135, %v7136
      %v7138 = vsel %vm2568, %v7086, 0.0
      %v7139 = vadd.f32 %v7137, %v7138
      %v7140 = vsel %vm2568, %v7087, 0.0
      %v7141 = vadd.f32 %v7139, %v7140
      %v7142 = vsel %vm2568, %v7088, 0.0
      %v7143 = vadd.f32 %v7141, %v7142
      %v7144 = vsel %vm2568, %v7089, 0.0
      %v7145 = vadd.f32 %v7143, %v7144
      %v7146 = vsel %vm2568, %v7090, 0.0
      %v7147 = vadd.f32 %v7145, %v7146
      %v7148 = vsel %vm2568, %v7091, 0.0
      %v7149 = vadd.f32 %v7147, %v7148
      %v7150 = vsel %vm2568, %v7092, 0.0
      %v7151 = vadd.f32 %v7149, %v7150
      %v7152 = vsel %vm2568, %v7093, 0.0
      %v7153 = vadd.f32 %v7151, %v7152
      %v7154 = vsel %vm2568, %v7094, 0.0
      %v7155 = vadd.f32 %v7153, %v7154
      %v7156 = vsel %vm2568, %v7095, 0.0
      %v7157 = vadd.f32 %v7155, %v7156
      %v7158 = vsel %vm2568, %v7096, 0.0
      %v7159 = vadd.f32 %v7157, %v7158
      %v7160 = vrot.slane %v7159, 4
      %v7161 = vadd.f32 %v7159, %v7160
      %v7162 = vrot.slane %v7161, 2
      %v7163 = vadd.f32 %v7161, %v7162
      %v7164 = vrot.slane %v7163, 1
      %v7165 = vadd.f32 %v7163, %v7164
      %v7166 = vmul.f32 %v7064, 0.00390625
      %v7167 = vmul.f32 %v7166, %v7064
      %v7168 = vsub.f32 %v7165, %v7167
      %v7169 = vmul.f32 %v7168, 0.003921569
      %v7170 = vadd.f32 %v7169, 1e-05
      %v7171 = vrsqrt.pop %v7170
      %v7172 = vmul.f32 %v7170, %v7171
      %vm7173 = vcmp.eq.f32.partialorder %v7170, inf
      %v7174 = vsel %vm7173, %v7170, %v7172
      %vm7175 = vcmp.eq.f32.partialorder %v7170, 0.0
      %v7176 = vand.u32 %v7170, 2147483648
      %v7177 = vsel %vm7175, %v7176, %v7174
      %v7178 = vld [vmem:[%s7] sm:$0x1]
      %v7179 = vmul.f32 %v7166, %v7178
      %v7180 = vld [vmem:[%s7 + $0x1] sm:$0x1]
      %v7181 = vmul.f32 %v7177, %v7180
      %v7182 = vadd.f32 %v7179, %v7181
      %v7183 = vld [vmem:[%s8] sm:$0x1]
      %v7184 = vadd.f32 %v7182, %v7183
      %v7185 = vxor.u32 %v7184, 2147483648
      %v7186 = vmul.f32 %v7185, 1.442695
      %v7187 = vpow.pop %v7186
      %v7188 = vadd.f32 %v7187, 1.0
      %v7189 = vrcp.pop %v7188
      %v7190 = vmul.f32 1.0, %v7189
      %vm7191 = vsmask.f32 3328
      %vm7192 = vsmask.f32 7440
      %vm7193 = vmor %vm7191, %vm7192
      %v7195 = vshrl.u32 %v337, 16
      %v7197 = vrot.slane %v7195, 4
      %v7198 = vshll.u32 %v337, 16
      %v7200 = vrot.slane %v7198, 5
      %v7201 = vor.u32 %v7197, %v7200
      %v7202 = vrot.slane %v7201, 4
      %v7204 = vshll.u32 %v338, 16
      %v7206 = vrot.slane %v7204, 5
      %v7207 = vsel %vm7193, %v7202, %v7206
      %v7208 = vshrl.u32 %v338, 16
      %v7210 = vrot.slane %v7208, 4
      %v7211 = vor.u32 %v7210, %v7206
      %v7212 = vrot.slane %v7211, 4
      %v7214 = vshll.u32 %v339, 16
      %v7216 = vrot.slane %v7214, 5
      %v7217 = vsel %vm7193, %v7212, %v7216
      %v7219 = vshrl.u32 %v340, 16
      %v7221 = vrot.slane %v7219, 4
      %v7222 = vshll.u32 %v340, 16
      %v7224 = vrot.slane %v7222, 5
      %v7225 = vor.u32 %v7221, %v7224
      %v7226 = vrot.slane %v7225, 4
      %v7228 = vshll.u32 %v341, 16
      %v7230 = vrot.slane %v7228, 5
      %v7231 = vsel %vm7193, %v7226, %v7230
      %v7232 = vshrl.u32 %v341, 16
      %v7234 = vrot.slane %v7232, 4
      %v7235 = vor.u32 %v7234, %v7230
      %v7236 = vrot.slane %v7235, 4
      %v7238 = vshll.u32 %v342, 16
      %v7240 = vrot.slane %v7238, 5
      %v7241 = vsel %vm7193, %v7236, %v7240
      %v7243 = vshrl.u32 %v343, 16
      %v7245 = vrot.slane %v7243, 4
      %v7246 = vshll.u32 %v343, 16
      %v7248 = vrot.slane %v7246, 5
      %v7249 = vor.u32 %v7245, %v7248
      %v7250 = vrot.slane %v7249, 4
      %v7252 = vshll.u32 %v344, 16
      %v7254 = vrot.slane %v7252, 5
      %v7255 = vsel %vm7193, %v7250, %v7254
      %v7256 = vshrl.u32 %v344, 16
      %v7258 = vrot.slane %v7256, 4
      %v7259 = vor.u32 %v7258, %v7254
      %v7260 = vrot.slane %v7259, 4
      %v7262 = vshll.u32 %v345, 16
      %v7264 = vrot.slane %v7262, 5
      %v7265 = vsel %vm7193, %v7260, %v7264
      %v7267 = vshrl.u32 %v346, 16
      %v7269 = vrot.slane %v7267, 4
      %v7270 = vshll.u32 %v346, 16
      %v7272 = vrot.slane %v7270, 5
      %v7273 = vor.u32 %v7269, %v7272
      %v7274 = vrot.slane %v7273, 4
      %v7276 = vshll.u32 %v347, 16
      %v7278 = vrot.slane %v7276, 5
      %v7279 = vsel %vm7193, %v7274, %v7278
      %v7280 = vshrl.u32 %v347, 16
      %v7282 = vrot.slane %v7280, 4
      %v7283 = vor.u32 %v7282, %v7278
      %v7284 = vrot.slane %v7283, 4
      %v7286 = vshll.u32 %v348, 16
      %v7288 = vrot.slane %v7286, 5
      %v7289 = vsel %vm7193, %v7284, %v7288
      %v7291 = vshrl.u32 %v349, 16
      %v7293 = vrot.slane %v7291, 4
      %v7294 = vshll.u32 %v349, 16
      %v7296 = vrot.slane %v7294, 5
      %v7297 = vor.u32 %v7293, %v7296
      %v7298 = vrot.slane %v7297, 4
      %v7300 = vshll.u32 %v350, 16
      %v7302 = vrot.slane %v7300, 5
      %v7303 = vsel %vm7193, %v7298, %v7302
      %v7304 = vshrl.u32 %v350, 16
      %v7306 = vrot.slane %v7304, 4
      %v7307 = vor.u32 %v7306, %v7302
      %v7308 = vrot.slane %v7307, 4
      %v7310 = vshll.u32 %v351, 16
      %v7312 = vrot.slane %v7310, 5
      %v7313 = vsel %vm7193, %v7308, %v7312
      %v7315 = vshrl.u32 %v352, 16
      %v7317 = vrot.slane %v7315, 4
      %v7318 = vshll.u32 %v352, 16
      %v7320 = vrot.slane %v7318, 5
      %v7321 = vor.u32 %v7317, %v7320
      %v7322 = vrot.slane %v7321, 4
      %v7324 = vshll.u32 %v353, 16
      %v7326 = vrot.slane %v7324, 5
      %v7327 = vsel %vm7193, %v7322, %v7326
      %v7328 = vshrl.u32 %v353, 16
      %v7330 = vrot.slane %v7328, 4
      %v7331 = vor.u32 %v7330, %v7326
      %v7332 = vrot.slane %v7331, 4
      %v7334 = vshll.u32 %v354, 16
      %v7336 = vrot.slane %v7334, 5
      %v7337 = vsel %vm7193, %v7332, %v7336
      %v7339 = vshrl.u32 %v355, 16
      %v7341 = vrot.slane %v7339, 4
      %v7342 = vshll.u32 %v355, 16
      %v7344 = vrot.slane %v7342, 5
      %v7345 = vor.u32 %v7341, %v7344
      %v7346 = vrot.slane %v7345, 4
      %v7348 = vshll.u32 %v356, 16
      %v7350 = vrot.slane %v7348, 5
      %v7351 = vsel %vm7193, %v7346, %v7350
      %v7352 = vshrl.u32 %v356, 16
      %v7354 = vrot.slane %v7352, 4
      %v7355 = vor.u32 %v7354, %v7350
      %v7356 = vrot.slane %v7355, 4
      %v7358 = vshll.u32 %v357, 16
      %v7360 = vrot.slane %v7358, 5
      %v7361 = vsel %vm7193, %v7356, %v7360
      %v7363 = vshrl.u32 %v358, 16
      %v7365 = vrot.slane %v7363, 4
      %v7366 = vshll.u32 %v358, 16
      %v7368 = vrot.slane %v7366, 5
      %v7369 = vor.u32 %v7365, %v7368
      %v7370 = vrot.slane %v7369, 4
      %v7372 = vshll.u32 %v359, 16
      %v7374 = vrot.slane %v7372, 5
      %v7375 = vsel %vm7193, %v7370, %v7374
      %v7376 = vshrl.u32 %v359, 16
      %v7378 = vrot.slane %v7376, 4
      %v7379 = vor.u32 %v7378, %v7374
      %v7380 = vrot.slane %v7379, 4
      %v7382 = vshll.u32 %v360, 16
      %v7384 = vrot.slane %v7382, 5
      %v7385 = vsel %vm7193, %v7380, %v7384
      %v7387 = vshrl.u32 %v361, 16
      %v7389 = vrot.slane %v7387, 4
      %v7390 = vshll.u32 %v361, 16
      %v7392 = vrot.slane %v7390, 5
      %v7393 = vor.u32 %v7389, %v7392
      %v7394 = vrot.slane %v7393, 4
      %v7396 = vshll.u32 %v362, 16
      %v7398 = vrot.slane %v7396, 5
      %v7399 = vsel %vm7193, %v7394, %v7398
      %v7400 = vshrl.u32 %v362, 16
      %v7402 = vrot.slane %v7400, 4
      %v7403 = vor.u32 %v7402, %v7398
      %v7404 = vrot.slane %v7403, 4
      %v7406 = vshll.u32 %v363, 16
      %v7408 = vrot.slane %v7406, 5
      %v7409 = vsel %vm7193, %v7404, %v7408
      %v7411 = vshrl.u32 %v364, 16
      %v7413 = vrot.slane %v7411, 4
      %v7414 = vshll.u32 %v364, 16
      %v7416 = vrot.slane %v7414, 5
      %v7417 = vor.u32 %v7413, %v7416
      %v7418 = vrot.slane %v7417, 4
      %v7420 = vshll.u32 %v365, 16
      %v7422 = vrot.slane %v7420, 5
      %v7423 = vsel %vm7193, %v7418, %v7422
      %v7424 = vshrl.u32 %v365, 16
      %v7426 = vrot.slane %v7424, 4
      %v7427 = vor.u32 %v7426, %v7422
      %v7428 = vrot.slane %v7427, 4
      %v7430 = vshll.u32 %v366, 16
      %v7432 = vrot.slane %v7430, 5
      %v7433 = vsel %vm7193, %v7428, %v7432
      %v7435 = vshrl.u32 %v367, 16
      %v7437 = vrot.slane %v7435, 4
      %v7438 = vshll.u32 %v367, 16
      %v7440 = vrot.slane %v7438, 5
      %v7441 = vor.u32 %v7437, %v7440
      %v7442 = vrot.slane %v7441, 4
      %v7444 = vshll.u32 %v368, 16
      %v7446 = vrot.slane %v7444, 5
      %v7447 = vsel %vm7193, %v7442, %v7446
      %v7448 = vshrl.u32 %v368, 16
      %v7450 = vrot.slane %v7448, 4
      %v7451 = vor.u32 %v7450, %v7446
      %v7452 = vrot.slane %v7451, 4
      %v7454 = vshll.u32 %v369, 16
      %v7456 = vrot.slane %v7454, 5
      %v7457 = vsel %vm7193, %v7452, %v7456
      %v7459 = vshrl.u32 %v370, 16
      %v7461 = vrot.slane %v7459, 4
      %v7462 = vshll.u32 %v370, 16
      %v7464 = vrot.slane %v7462, 5
      %v7465 = vor.u32 %v7461, %v7464
      %v7466 = vrot.slane %v7465, 4
      %v7468 = vshll.u32 %v371, 16
      %v7470 = vrot.slane %v7468, 5
      %v7471 = vsel %vm7193, %v7466, %v7470
      %v7472 = vshrl.u32 %v371, 16
      %v7474 = vrot.slane %v7472, 4
      %v7475 = vor.u32 %v7474, %v7470
      %v7476 = vrot.slane %v7475, 4
      %v7478 = vshll.u32 %v372, 16
      %v7480 = vrot.slane %v7478, 5
      %v7481 = vsel %vm7193, %v7476, %v7480
      %v7483 = vshrl.u32 %v373, 16
      %v7485 = vrot.slane %v7483, 4
      %v7486 = vshll.u32 %v373, 16
      %v7488 = vrot.slane %v7486, 5
      %v7489 = vor.u32 %v7485, %v7488
      %v7490 = vrot.slane %v7489, 4
      %v7492 = vshll.u32 %v374, 16
      %v7494 = vrot.slane %v7492, 5
      %v7495 = vsel %vm7193, %v7490, %v7494
      %v7496 = vshrl.u32 %v374, 16
      %v7498 = vrot.slane %v7496, 4
      %v7499 = vor.u32 %v7498, %v7494
      %v7500 = vrot.slane %v7499, 4
      %v7502 = vshll.u32 %v375, 16
      %v7504 = vrot.slane %v7502, 5
      %v7505 = vsel %vm7193, %v7500, %v7504
      %v7507 = vshrl.u32 %v376, 16
      %v7509 = vrot.slane %v7507, 4
      %v7510 = vshll.u32 %v376, 16
      %v7512 = vrot.slane %v7510, 5
      %v7513 = vor.u32 %v7509, %v7512
      %v7514 = vrot.slane %v7513, 4
      %v7516 = vshll.u32 %v377, 16
      %v7518 = vrot.slane %v7516, 5
      %v7519 = vsel %vm7193, %v7514, %v7518
      %v7520 = vshrl.u32 %v377, 16
      %v7522 = vrot.slane %v7520, 4
      %v7523 = vor.u32 %v7522, %v7518
      %v7524 = vrot.slane %v7523, 4
      %v7526 = vshll.u32 %v378, 16
      %v7528 = vrot.slane %v7526, 5
      %v7529 = vsel %vm7193, %v7524, %v7528
      %v7531 = vshrl.u32 %v379, 16
      %v7533 = vrot.slane %v7531, 4
      %v7534 = vshll.u32 %v379, 16
      %v7536 = vrot.slane %v7534, 5
      %v7537 = vor.u32 %v7533, %v7536
      %v7538 = vrot.slane %v7537, 4
      %v7540 = vshll.u32 %v380, 16
      %v7542 = vrot.slane %v7540, 5
      %v7543 = vsel %vm7193, %v7538, %v7542
      %v7544 = vshrl.u32 %v380, 16
      %v7546 = vrot.slane %v7544, 4
      %v7547 = vor.u32 %v7546, %v7542
      %v7548 = vrot.slane %v7547, 4
      %v7550 = vshll.u32 %v381, 16
      %v7552 = vrot.slane %v7550, 5
      %v7553 = vsel %vm7193, %v7548, %v7552
      %v7555 = vshrl.u32 %v382, 16
      %v7557 = vrot.slane %v7555, 4
      %v7558 = vshll.u32 %v382, 16
      %v7560 = vrot.slane %v7558, 5
      %v7561 = vor.u32 %v7557, %v7560
      %v7562 = vrot.slane %v7561, 4
      %v7564 = vshll.u32 %v383, 16
      %v7566 = vrot.slane %v7564, 5
      %v7567 = vsel %vm7193, %v7562, %v7566
      %v7568 = vshrl.u32 %v383, 16
      %v7570 = vrot.slane %v7568, 4
      %v7571 = vor.u32 %v7570, %v7566
      %v7572 = vrot.slane %v7571, 4
      %v7574 = vshll.u32 %v384, 16
      %v7576 = vrot.slane %v7574, 5
      %v7577 = vsel %vm7193, %v7572, %v7576
      %v7610 = vunpack.c.l.bf16 %v7207
      %v7611 = vunpack.c.l.bf16 %v7217
      %v7612 = vunpack.c.l.bf16 %v7231
      %v7613 = vunpack.c.l.bf16 %v7241
      %v7614 = vunpack.c.l.bf16 %v7255
      %v7615 = vunpack.c.l.bf16 %v7265
      %v7616 = vunpack.c.l.bf16 %v7279
      %v7617 = vunpack.c.l.bf16 %v7289
      %v7618 = vunpack.c.l.bf16 %v7303
      %v7619 = vunpack.c.l.bf16 %v7313
      %v7620 = vunpack.c.l.bf16 %v7327
      %v7621 = vunpack.c.l.bf16 %v7337
      %v7622 = vunpack.c.l.bf16 %v7351
      %v7623 = vunpack.c.l.bf16 %v7361
      %v7624 = vunpack.c.l.bf16 %v7375
      %v7625 = vunpack.c.l.bf16 %v7385
      %v7626 = vunpack.c.l.bf16 %v7399
      %v7627 = vunpack.c.l.bf16 %v7409
      %v7628 = vunpack.c.l.bf16 %v7423
      %v7629 = vunpack.c.l.bf16 %v7433
      %v7630 = vunpack.c.l.bf16 %v7447
      %v7631 = vunpack.c.l.bf16 %v7457
      %v7632 = vunpack.c.l.bf16 %v7471
      %v7633 = vunpack.c.l.bf16 %v7481
      %v7634 = vunpack.c.l.bf16 %v7495
      %v7635 = vunpack.c.l.bf16 %v7505
      %v7636 = vunpack.c.l.bf16 %v7519
      %v7637 = vunpack.c.l.bf16 %v7529
      %v7638 = vunpack.c.l.bf16 %v7543
      %v7639 = vunpack.c.l.bf16 %v7553
      %v7640 = vunpack.c.l.bf16 %v7567
      %v7641 = vunpack.c.l.bf16 %v7577
      %v7642 = vlaneseq
      %v7643 = vshrl.u32 %v7642, 7
      %v7644 = vsub.s32 0, %v7643
      %v7645 = vrot.slane %v7190, %v7644
      %v7646 = vmul.f32 %v6870, %v7645
      %v7647 = vmul.f32 %v6873, %v7645
      %v7648 = vmul.f32 %v6878, %v7645
      %v7649 = vmul.f32 %v6881, %v7645
      %v7650 = vmul.f32 %v6886, %v7645
      %v7651 = vmul.f32 %v6889, %v7645
      %v7652 = vmul.f32 %v6894, %v7645
      %v7653 = vmul.f32 %v6897, %v7645
      %v7654 = vmul.f32 %v6902, %v7645
      %v7655 = vmul.f32 %v6905, %v7645
      %v7656 = vmul.f32 %v6910, %v7645
      %v7657 = vmul.f32 %v6913, %v7645
      %v7658 = vmul.f32 %v6918, %v7645
      %v7659 = vmul.f32 %v6921, %v7645
      %v7660 = vmul.f32 %v6926, %v7645
      %v7661 = vmul.f32 %v6929, %v7645
      %v7662 = vmul.f32 %v6934, %v7645
      %v7663 = vmul.f32 %v6937, %v7645
      %v7664 = vmul.f32 %v6942, %v7645
      %v7665 = vmul.f32 %v6945, %v7645
      %v7666 = vmul.f32 %v6950, %v7645
      %v7667 = vmul.f32 %v6953, %v7645
      %v7668 = vmul.f32 %v6958, %v7645
      %v7669 = vmul.f32 %v6961, %v7645
      %v7670 = vmul.f32 %v6966, %v7645
      %v7671 = vmul.f32 %v6969, %v7645
      %v7672 = vmul.f32 %v6974, %v7645
      %v7673 = vmul.f32 %v6977, %v7645
      %v7674 = vmul.f32 %v6982, %v7645
      %v7675 = vmul.f32 %v6985, %v7645
      %v7676 = vmul.f32 %v6990, %v7645
      %v7677 = vmul.f32 %v6993, %v7645
      %v7678 = vadd.f32 %v7646, %v7610
      %v7679 = vadd.f32 %v7647, %v7611
      %v7680 = vadd.f32 %v7648, %v7612
      %v7681 = vadd.f32 %v7649, %v7613
      %v7682 = vadd.f32 %v7650, %v7614
      %v7683 = vadd.f32 %v7651, %v7615
      %v7684 = vadd.f32 %v7652, %v7616
      %v7685 = vadd.f32 %v7653, %v7617
      %v7686 = vadd.f32 %v7654, %v7618
      %v7687 = vadd.f32 %v7655, %v7619
      %v7688 = vadd.f32 %v7656, %v7620
      %v7689 = vadd.f32 %v7657, %v7621
      %v7690 = vadd.f32 %v7658, %v7622
      %v7691 = vadd.f32 %v7659, %v7623
      %v7692 = vadd.f32 %v7660, %v7624
      %v7693 = vadd.f32 %v7661, %v7625
      %v7694 = vadd.f32 %v7662, %v7626
      %v7695 = vadd.f32 %v7663, %v7627
      %v7696 = vadd.f32 %v7664, %v7628
      %v7697 = vadd.f32 %v7665, %v7629
      %v7698 = vadd.f32 %v7666, %v7630
      %v7699 = vadd.f32 %v7667, %v7631
      %v7700 = vadd.f32 %v7668, %v7632
      %v7701 = vadd.f32 %v7669, %v7633
      %v7702 = vadd.f32 %v7670, %v7634
      %v7703 = vadd.f32 %v7671, %v7635
      %v7704 = vadd.f32 %v7672, %v7636
      %v7705 = vadd.f32 %v7673, %v7637
      %v7706 = vadd.f32 %v7674, %v7638
      %v7707 = vadd.f32 %v7675, %v7639
      %v7708 = vadd.f32 %v7676, %v7640
      %v7709 = vadd.f32 %v7677, %v7641
      %v7710 = vmax.f32 %v7678, 0.0
      %v7711 = vmax.f32 %v7679, 0.0
      %v7712 = vmax.f32 %v7680, 0.0
      %v7713 = vmax.f32 %v7681, 0.0
      %v7714 = vmax.f32 %v7682, 0.0
      %v7715 = vmax.f32 %v7683, 0.0
      %v7716 = vmax.f32 %v7684, 0.0
      %v7717 = vmax.f32 %v7685, 0.0
      %v7718 = vmax.f32 %v7686, 0.0
      %v7719 = vmax.f32 %v7687, 0.0
      %v7720 = vmax.f32 %v7688, 0.0
      %v7721 = vmax.f32 %v7689, 0.0
      %v7722 = vmax.f32 %v7690, 0.0
      %v7723 = vmax.f32 %v7691, 0.0
      %v7724 = vmax.f32 %v7692, 0.0
      %v7725 = vmax.f32 %v7693, 0.0
      %v7726 = vmax.f32 %v7694, 0.0
      %v7727 = vmax.f32 %v7695, 0.0
      %v7728 = vmax.f32 %v7696, 0.0
      %v7729 = vmax.f32 %v7697, 0.0
      %v7730 = vmax.f32 %v7698, 0.0
      %v7731 = vmax.f32 %v7699, 0.0
      %v7732 = vmax.f32 %v7700, 0.0
      %v7733 = vmax.f32 %v7701, 0.0
      %v7734 = vmax.f32 %v7702, 0.0
      %v7735 = vmax.f32 %v7703, 0.0
      %v7736 = vmax.f32 %v7704, 0.0
      %v7737 = vmax.f32 %v7705, 0.0
      %v7738 = vmax.f32 %v7706, 0.0
      %v7739 = vmax.f32 %v7707, 0.0
      %v7740 = vmax.f32 %v7708, 0.0
      %v7741 = vmax.f32 %v7709, 0.0
      %7742 = vst.msk [vmem:[%s332] sm:$0xff] %vm2568, %v7710
      %7743 = vst.msk [vmem:[%s332 + $0x8] sm:$0xff] %vm2568, %v7711
      %7744 = vst.msk [vmem:[%s332 + $0x10] sm:$0xff] %vm2568, %v7712
      %7745 = vst.msk [vmem:[%s332 + $0x18] sm:$0xff] %vm2568, %v7713
      %7746 = vst.msk [vmem:[%s332 + $0x20] sm:$0xff] %vm2568, %v7714
      %7747 = vst.msk [vmem:[%s332 + $0x28] sm:$0xff] %vm2568, %v7715
      %7748 = vst.msk [vmem:[%s332 + $0x30] sm:$0xff] %vm2568, %v7716
      %7749 = vst.msk [vmem:[%s332 + $0x38] sm:$0xff] %vm2568, %v7717
      %7750 = vst.msk [vmem:[%s332 + $0x40] sm:$0xff] %vm2568, %v7718
      %7751 = vst.msk [vmem:[%s332 + $0x48] sm:$0xff] %vm2568, %v7719
      %7752 = vst.msk [vmem:[%s332 + $0x50] sm:$0xff] %vm2568, %v7720
      %7753 = vst.msk [vmem:[%s332 + $0x58] sm:$0xff] %vm2568, %v7721
      %7754 = vst.msk [vmem:[%s332 + $0x60] sm:$0xff] %vm2568, %v7722
      %7755 = vst.msk [vmem:[%s332 + $0x68] sm:$0xff] %vm2568, %v7723
      %7756 = vst.msk [vmem:[%s332 + $0x70] sm:$0xff] %vm2568, %v7724
      %7757 = vst.msk [vmem:[%s332 + $0x78] sm:$0xff] %vm2568, %v7725
      %7758 = vst.msk [vmem:[%s332 + $0x80] sm:$0xff] %vm2568, %v7726
      %7759 = vst.msk [vmem:[%s332 + $0x88] sm:$0xff] %vm2568, %v7727
      %7760 = vst.msk [vmem:[%s332 + $0x90] sm:$0xff] %vm2568, %v7728
      %7761 = vst.msk [vmem:[%s332 + $0x98] sm:$0xff] %vm2568, %v7729
      %7762 = vst.msk [vmem:[%s332 + $0xa0] sm:$0xff] %vm2568, %v7730
      %7763 = vst.msk [vmem:[%s332 + $0xa8] sm:$0xff] %vm2568, %v7731
      %7764 = vst.msk [vmem:[%s332 + $0xb0] sm:$0xff] %vm2568, %v7732
      %7765 = vst.msk [vmem:[%s332 + $0xb8] sm:$0xff] %vm2568, %v7733
      %7766 = vst.msk [vmem:[%s332 + $0xc0] sm:$0xff] %vm2568, %v7734
      %7767 = vst.msk [vmem:[%s332 + $0xc8] sm:$0xff] %vm2568, %v7735
      %7768 = vst.msk [vmem:[%s332 + $0xd0] sm:$0xff] %vm2568, %v7736
      %7769 = vst.msk [vmem:[%s332 + $0xd8] sm:$0xff] %vm2568, %v7737
      %7770 = vst.msk [vmem:[%s332 + $0xe0] sm:$0xff] %vm2568, %v7738
      %7771 = vst.msk [vmem:[%s332 + $0xe8] sm:$0xff] %vm2568, %v7739
      %7772 = vst.msk [vmem:[%s332 + $0xf0] sm:$0xff] %vm2568, %v7740
      %7773 = vst.msk [vmem:[%s332 + $0xf8] sm:$0xff] %vm2568, %v7741
      %p7774 = scmp.lt.s32.totalorder %s20, 1
      %s7775 = scalar_select %p7774, %s20, 1
      %s7776 = smul.addr %s7775, 32
      %s7777 = smul.addr %s7776, 8
      %s7778 = scalar_lea.vmem %s9, %s7777
      // Predicated region
      $region57: #{tpu_custom_call.1} parent=55 // pred_check
        %p7779 = pneg %p232
      $region58: #{tpu_custom_call.1} parent=55 // pred_check_branch
        %7781 = sbr.rel (%p7779) target = $region60
      $region59: #{tpu_custom_call.1} parent=55 // pred_region
        _
      $region60: #{tpu_custom_call.1} parent=55 // pred_fallthru
        _
    $region56: #{tpu_custom_call.1} parent=5 // pred_fallthru
      _
    %p7782 = scmp.le.s32.totalorder 2, %s15
    // Predicated region
    $region61: #{tpu_custom_call.1} parent=5 // pred_check
      %p7783 = pneg %p7782
    $region62: #{tpu_custom_call.1} parent=5 // pred_check_branch
      %7785 = sbr.rel (%p7783) target = $region64
    $region63: #{tpu_custom_call.1} parent=5 // pred_region
      %s7786 = ssub.s32 %s15, 2
      // Predicated region
      $region65: #{tpu_custom_call.1} parent=63 // pred_check
        %p7787 = pneg %p238
      $region66: #{tpu_custom_call.1} parent=63 // pred_check_branch
        %7789 = sbr.rel (%p7787) target = $region68
      $region67: #{tpu_custom_call.1} parent=63 // pred_region
        %p7790 = scmp.lt.s32.totalorder %s21, 1
        %s7791 = scalar_select %p7790, %s21, 1
        %s7792 = smul.addr %s7791, 32
        %s7793 = smul.addr %s7792, 8
        %s7794 = scalar_lea.vmem %s9, %s7793
      $region68: #{tpu_custom_call.1} parent=63 // pred_fallthru
        _
    $region64: #{tpu_custom_call.1} parent=5 // pred_fallthru
      _
  $region6: #{tpu_custom_call.1} parent=0 // loop_footer
    %s19 = sadd.s32 1, %s15
  $region7: #{tpu_custom_call.1} parent=0 // loop_footer_branch
    %14 = sbr.rel target = $region3
  $region8: #{tpu_custom_call.1} parent=0 // loop_exit
    _

</llo_original>
